<compile_context>
chip_gen: v7x
topology: tpu7x:2x2x1
jax: 0.10.0
libtpu: 0.0.40
codegen_flags: <defaults>
</compile_context>

<pallas_src>
import functools

import jax
import jax.numpy as jnp
from jax.experimental import pallas as pl
from jax.experimental.pallas import tpu as pltpu


def _layer_kernel(src_ref, mem_ref, bias_ref,
                  wq_ref, wk_ref, wv_ref, wo_ref, w1_ref, w2_ref,
                  hb_ref, vec_ref, b1_ref, out_ref, *, nhead):
  """One GNNTransformerEncoderWithMemoryLayer step for a Bt-batch block."""
  bt, s_len, d_model = src_ref.shape
  m_len = mem_ref.shape[1]
  dk = wq_ref.shape[-1]

  x_f32 = src_ref[...].astype(jnp.float32)             # (Bt, S, D)
  x_bf = x_f32.astype(jnp.bfloat16)
  mem_bf = mem_ref[...].astype(jnp.bfloat16)            # (Bt, M, D)
  x2d = x_bf.reshape(bt * s_len, d_model)
  mem2d = mem_bf.reshape(bt * m_len, d_model)

  # packed small (D,) parameters: rows = [bo, b2, g1, be1, g2, be2]
  bo = vec_ref[0:1, :]; b2 = vec_ref[1:2, :]
  g1 = vec_ref[2:3, :]; be1 = vec_ref[3:4, :]
  g2 = vec_ref[4:5, :]; be2 = vec_ref[5:6, :]

  # --- multi-head attention: per-head projections, heads accumulated straight
  # --- into the output projection (bf16 MXU inputs, f32 accumulation) ---
  acc = jnp.zeros((bt * s_len, d_model), jnp.float32)
  for h in range(nhead):                                 # static unrolled loop
    wq_h = wq_ref[h]                                     # (D, dk), scale folded
    wk_h = wk_ref[h]
    wv_h = wv_ref[h]
    bq_h = hb_ref[h:h + 1, :]                            # (1, dk), scale folded
    bk_h = hb_ref[nhead + h:nhead + h + 1, :]
    bv_h = hb_ref[2 * nhead + h:2 * nhead + h + 1, :]

    qh = jnp.dot(x2d, wq_h, preferred_element_type=jnp.float32) + bq_h
    kh_m = jnp.dot(mem2d, wk_h, preferred_element_type=jnp.float32) + bk_h
    kh_s = jnp.dot(x2d, wk_h, preferred_element_type=jnp.float32) + bk_h
    vh_m = jnp.dot(mem2d, wv_h, preferred_element_type=jnp.float32) + bv_h
    vh_s = jnp.dot(x2d, wv_h, preferred_element_type=jnp.float32) + bv_h

    qh3 = qh.astype(jnp.bfloat16).reshape(bt, s_len, dk)
    kh3 = jnp.concatenate(
        [kh_m.astype(jnp.bfloat16).reshape(bt, m_len, dk),
         kh_s.astype(jnp.bfloat16).reshape(bt, s_len, dk)], axis=1)  # (Bt,K,dk)
    vh3 = jnp.concatenate(
        [vh_m.astype(jnp.bfloat16).reshape(bt, m_len, dk),
         vh_s.astype(jnp.bfloat16).reshape(bt, s_len, dk)], axis=1)

    s = jnp.einsum('bsd,bkd->bsk', qh3, kh3,
                   preferred_element_type=jnp.float32)               # (Bt,S,K)
    s = s + bias_ref[:, h, :, :].astype(jnp.float32)   # rel bias + (-1e30) mask
    s = s - jnp.max(s, axis=-1, keepdims=True)
    p = jnp.exp(s)
    p = p * pl.reciprocal(jnp.sum(p, axis=-1, keepdims=True), approx=True)
    ctx = jnp.einsum('bsk,bkd->bsd', p.astype(jnp.bfloat16), vh3,
                     preferred_element_type=jnp.float32)             # (Bt,S,dk)
    acc = acc + jnp.dot(ctx.reshape(bt * s_len, dk).astype(jnp.bfloat16),
                        wo_ref[h], preferred_element_type=jnp.float32)

  attn = acc + bo                                        # (Bt*S, D)

  # --- residual + LayerNorm1 (dropout == identity in eval mode) ---
  r1 = x_f32.reshape(bt * s_len, d_model) + attn
  mu1 = jnp.mean(r1, axis=-1, keepdims=True)
  var1 = jnp.mean((r1 - mu1) ** 2, axis=-1, keepdims=True)
  n1 = (r1 - mu1) * jax.lax.rsqrt(var1 + 1e-5) * g1 + be1

  # --- feed-forward: linear2(relu(linear1(n1))); relu output kept bf16 ---
  h1 = jnp.dot(n1.astype(jnp.bfloat16), w1_ref[...],
               preferred_element_type=jnp.float32)
  h1 = jnp.maximum(h1 + b1_ref[0:1, :], 0.0).astype(jnp.bfloat16)
  ff = jnp.dot(h1, w2_ref[...], preferred_element_type=jnp.float32) + b2

  # --- residual + LayerNorm2 ---
  r2 = n1 + ff
  mu2 = jnp.mean(r2, axis=-1, keepdims=True)
  var2 = jnp.mean((r2 - mu2) ** 2, axis=-1, keepdims=True)
  out = (r2 - mu2) * jax.lax.rsqrt(var2 + 1e-5) * g2 + be2

  out_ref[...] = out.reshape(bt, s_len, d_model).astype(out_ref.dtype)


def _const_spec(shape, single_buffer):
  """Full-array BlockSpec reused every grid step (optionally single-buffered)."""
  n = len(shape)
  if single_buffer:
    return pl.BlockSpec(shape, lambda b, _n=n: (0,) * _n,
                        pipeline_mode=pl.Buffered(1))
  return pl.BlockSpec(shape, lambda b, _n=n: (0,) * _n)


def _pick_batch_block(B, S, M, D, H, FF, dk, itemsize, vmem_limit,
                      row_target=512):
  """Choose Bt: ~row_target rows of M per step, >=2 grid steps, fits VMEM."""
  K = M + S
  bt = min(B, max(1, row_target // max(S, 1)))
  if B >= 2:
    bt = min(bt, max(1, B // 2))       # >=2 grid steps (both v7x cores busy)
  while B % bt != 0:
    bt -= 1

  def est(bt_):
    io = 2 * (bt_ * S * D * itemsize + bt_ * M * D * itemsize
              + bt_ * H * S * K * 2 + bt_ * S * D * itemsize)   # 2x buffered
    consts = 2 * ((4 * D * D + D * FF + FF * D) * 2
                  + (3 * H * dk + 6 * D + FF) * 4)
    interm = (bt_ * S * (4 * D + 2 * K) * 4 + bt_ * K * dk * 4
              + bt_ * S * FF * 6)
    return io + consts + interm

  while bt > 1 and est(bt) > int(0.7 * vmem_limit):
    bt -= 1
    while B % bt != 0:
      bt -= 1
  return bt


def gnn_encoder_with_memory_layer(memory, memory_edge_mask, memory_padding_mask,
                                  src, src_edge_mask, src_padding_mask,
                                  params, *, nhead, batch_block=None):
  """memory:(B,M,D) src:(B,S,D) edge masks:(B,S,M,mnl)/(B,S,S,snl)
  padding masks:(B,S,M)/(B,S,S) bool (True = masked).  Returns (B,S,D)."""
  B, S, D = src.shape
  M = memory.shape[1]
  K = M + S
  H = nhead
  dk = D // H
  mnl = memory_edge_mask.shape[-1]
  scale = 1.0 / float(dk) ** 0.5

  rel = params["rel"].astype(jnp.float32)                # (H, mnl + snl)

  # Lane-dense per-head additive bias with the padding mask folded in, carried
  # as bf16 (halves the dominant DMA and its pipelined VMEM footprint).
  bias_mem = jnp.einsum('bsmn,hn->bhsm',
                        memory_edge_mask.astype(jnp.float32), rel[:, :mnl])
  bias_src = jnp.einsum('bsln,hn->bhsl',
                        src_edge_mask.astype(jnp.float32), rel[:, mnl:])
  bias = jnp.concatenate([bias_mem, bias_src], axis=-1)             # (B,H,S,K)
  pad = jnp.concatenate([memory_padding_mask, src_padding_mask], axis=-1)
  bias = bias + jnp.where(pad, -1e30, 0.0)[:, None, :, :]
  bias = bias.astype(jnp.bfloat16)

  # Per-head weight layouts; fold 1/sqrt(dk) into wq (and bq).
  wq = (params["wq"].astype(jnp.float32) * scale).reshape(D, H, dk)
  wq = jnp.transpose(wq, (1, 0, 2)).astype(jnp.bfloat16)            # (H, D, dk)
  wk = jnp.transpose(params["wk"].reshape(D, H, dk), (1, 0, 2)).astype(jnp.bfloat16)
  wv = jnp.transpose(params["wv"].reshape(D, H, dk), (1, 0, 2)).astype(jnp.bfloat16)
  wo = params["wo"].astype(jnp.bfloat16).reshape(H, dk, D)          # (H, dk, D)
  w1 = params["w1"].astype(jnp.bfloat16)
  w2 = params["w2"].astype(jnp.bfloat16)
  FF = w1.shape[-1]

  # Packed small parameters: per-head projection biases and the (D,) vectors.
  hb = jnp.concatenate([
      (params["bq"].astype(jnp.float32) * scale).reshape(H, dk),
      params["bk"].astype(jnp.float32).reshape(H, dk),
      params["bv"].astype(jnp.float32).reshape(H, dk)], axis=0)     # (3H, dk)
  vec = jnp.stack([params["bo"], params["b2"], params["g1"], params["be1"],
                   params["g2"], params["be2"]]).astype(jnp.float32)  # (6, D)
  b1 = params["b1"].astype(jnp.float32).reshape(1, -1)                # (1, FF)

  # VMEM budget derived from the chip (not hard-coded 64 MiB).
  try:
    vmem_cap = int(pltpu.get_tpu_info().vmem_capacity_bytes)
  except Exception:
    vmem_cap = 128 * 1024 * 1024
  vmem_limit = max(32 * 1024 * 1024, (vmem_cap * 3) // 4)

  itemsize = jnp.dtype(src.dtype).itemsize
  if batch_block is None:
    batch_block = _pick_batch_block(B, S, M, D, H, FF, dk, itemsize, vmem_limit)
  Bt = batch_block
  while B % Bt != 0:
    Bt -= 1

  def _run(single_buffer_consts):
    in_specs = [
        pl.BlockSpec((Bt, S, D), lambda b: (b, 0, 0)),        # src
        pl.BlockSpec((Bt, M, D), lambda b: (b, 0, 0)),        # memory
        pl.BlockSpec((Bt, H, S, K), lambda b: (b, 0, 0, 0)),  # bf16 bias
        _const_spec((H, D, dk), single_buffer_consts),        # wq
        _const_spec((H, D, dk), single_buffer_consts),        # wk
        _const_spec((H, D, dk), single_buffer_consts),        # wv
        _const_spec((H, dk, D), single_buffer_consts),        # wo
        _const_spec((D, FF), single_buffer_consts),           # w1
        _const_spec((FF, D), single_buffer_consts),           # w2
        _const_spec((3 * H, dk), single_buffer_consts),       # head biases
        _const_spec((6, D), single_buffer_consts),            # packed vectors
        _const_spec((1, FF), single_buffer_consts),           # b1
    ]
    return pl.pallas_call(
        functools.partial(_layer_kernel, nhead=nhead),
        out_shape=jax.ShapeDtypeStruct((B, S, D), src.dtype),
        grid=(B // Bt,),
        in_specs=in_specs,
        out_specs=pl.BlockSpec((Bt, S, D), lambda b: (b, 0, 0)),
        compiler_params=pltpu.CompilerParams(
            dimension_semantics=("parallel",),
            vmem_limit_bytes=vmem_limit),
    )(src, memory, bias, wq, wk, wv, wo, w1, w2, hb, vec, b1)

  try:
    return _run(True)            # single-buffered constant operands
  except Exception:
    return _run(False)           # fallback: default (double) buffering


def init_layer_params(key, d_model, nhead, dim_feedforward,
                      memory_nlabels, self_nlabels):
  ks = jax.random.split(key, 7)
  s = 0.02
  nl = memory_nlabels + self_nlabels
  f32 = jnp.float32
  return {
      "wq": s * jax.random.normal(ks[0], (d_model, d_model), f32),
      "wk": s * jax.random.normal(ks[1], (d_model, d_model), f32),
      "wv": s * jax.random.normal(ks[2], (d_model, d_model), f32),
      "wo": s * jax.random.normal(ks[3], (d_model, d_model), f32),
      "rel": s * jax.random.normal(ks[4], (nhead, nl), f32),
      "bq": jnp.zeros((d_model,), f32), "bk": jnp.zeros((d_model,), f32),
      "bv": jnp.zeros((d_model,), f32), "bo": jnp.zeros((d_model,), f32),
      "w1": s * jax.random.normal(ks[5], (d_model, dim_feedforward), f32),
      "b1": jnp.zeros((dim_feedforward,), f32),
      "w2": s * jax.random.normal(ks[6], (dim_feedforward, d_model), f32),
      "b2": jnp.zeros((d_model,), f32),
      "g1": jnp.ones((d_model,), f32), "be1": jnp.zeros((d_model,), f32),
      "g2": jnp.ones((d_model,), f32), "be2": jnp.zeros((d_model,), f32),
  }


if __name__ == "__main__":
  B, S, M, D = 2, 8, 8, 32
  NHEAD, FF = 4, 64
  MEM_NL, SELF_NL = 2, 3

  root = jax.random.PRNGKey(0)
  k_mem, k_src, k_em, k_es, k_par = jax.random.split(root, 5)

  memory = jax.random.normal(k_mem, (B, M, D), jnp.float32)
  src = jax.random.normal(k_src, (B, S, D), jnp.float32)
  memory_edge_mask = (jax.random.uniform(k_em, (B, S, M, MEM_NL)) > 0.5
                      ).astype(jnp.float32)
  src_edge_mask = (jax.random.uniform(k_es, (B, S, S, SELF_NL)) > 0.5
                   ).astype(jnp.float32)
  # boolean masks, True = masked; keep at least one unmasked key per query row
  memory_padding_mask = jnp.zeros((B, S, M), jnp.bool_).at[:, :, -1].set(True)
  src_padding_mask = jnp.zeros((B, S, S), jnp.bool_)

  params = init_layer_params(k_par, D, NHEAD, FF, MEM_NL, SELF_NL)

  out = gnn_encoder_with_memory_layer(
      memory, memory_edge_mask, memory_padding_mask,
      src, src_edge_mask, src_padding_mask, params, nhead=NHEAD)
  out = jax.block_until_ready(out)
  assert out.shape == (B, S, D), out.shape
  print("KERNEL_OK")
</pallas_src>

<mosaic_0001>
module attributes {stable_mosaic.version = 11 : i64} {
  func.func @_layer_kernel(%arg0: i32, %arg1: memref<1x8x32xf32, #tpu.memory_space<vmem>>, %arg2: memref<1x8x32xf32, #tpu.memory_space<vmem>>, %arg3: memref<1x4x8x16xbf16, #tpu.memory_space<vmem>>, %arg4: memref<4x32x8xbf16, #tpu.memory_space<vmem>>, %arg5: memref<4x32x8xbf16, #tpu.memory_space<vmem>>, %arg6: memref<4x32x8xbf16, #tpu.memory_space<vmem>>, %arg7: memref<4x8x32xbf16, #tpu.memory_space<vmem>>, %arg8: memref<32x64xbf16, #tpu.memory_space<vmem>>, %arg9: memref<64x32xbf16, #tpu.memory_space<vmem>>, %arg10: memref<12x8xf32, #tpu.memory_space<vmem>>, %arg11: memref<6x32xf32, #tpu.memory_space<vmem>>, %arg12: memref<1x64xf32, #tpu.memory_space<vmem>>, %arg13: memref<1x8x32xf32, #tpu.memory_space<vmem>>) attributes {dimension_semantics = [#tpu.dimension_semantics<parallel>], iteration_bounds = array<i64: 2>, scalar_prefetch = 0 : i64, scratch_operands = 0 : i64, tpu.core_type = #tpu.core_type<tc>, window_params = [{transform_indices = @transform_0, window_bounds = array<i64: 1, 8, 32>}, {transform_indices = @transform_1, window_bounds = array<i64: 1, 8, 32>}, {transform_indices = @transform_2, window_bounds = array<i64: 1, 4, 8, 16>}, {pipeline_mode = #tpu.pipeline_mode<synchronous>, transform_indices = @transform_3, window_bounds = array<i64: 4, 32, 8>}, {pipeline_mode = #tpu.pipeline_mode<synchronous>, transform_indices = @transform_4, window_bounds = array<i64: 4, 32, 8>}, {pipeline_mode = #tpu.pipeline_mode<synchronous>, transform_indices = @transform_5, window_bounds = array<i64: 4, 32, 8>}, {pipeline_mode = #tpu.pipeline_mode<synchronous>, transform_indices = @transform_6, window_bounds = array<i64: 4, 8, 32>}, {pipeline_mode = #tpu.pipeline_mode<synchronous>, transform_indices = @transform_7, window_bounds = array<i64: 32, 64>}, {pipeline_mode = #tpu.pipeline_mode<synchronous>, transform_indices = @transform_8, window_bounds = array<i64: 64, 32>}, {pipeline_mode = #tpu.pipeline_mode<synchronous>, transform_indices = @transform_9, window_bounds = array<i64: 12, 8>}, {pipeline_mode = #tpu.pipeline_mode<synchronous>, transform_indices = @transform_10, window_bounds = array<i64: 6, 32>}, {pipeline_mode = #tpu.pipeline_mode<synchronous>, transform_indices = @transform_11, window_bounds = array<i64: 1, 64>}, {transform_indices = @transform_12, window_bounds = array<i64: 1, 8, 32>}]} {
    %c0 = arith.constant 0 : index
    %c0_0 = arith.constant 0 : index
    %c0_1 = arith.constant 0 : index
    %0 = vector.load %arg1[%c0, %c0_0, %c0_1] : memref<1x8x32xf32, #tpu.memory_space<vmem>>, vector<1x8x32xf32>
    %1 = arith.truncf %0 : vector<1x8x32xf32> to vector<1x8x32xbf16>
    %c0_2 = arith.constant 0 : index
    %c0_3 = arith.constant 0 : index
    %c0_4 = arith.constant 0 : index
    %2 = vector.load %arg2[%c0_2, %c0_3, %c0_4] : memref<1x8x32xf32, #tpu.memory_space<vmem>>, vector<1x8x32xf32>
    %3 = arith.truncf %2 : vector<1x8x32xf32> to vector<1x8x32xbf16>
    %4 = vector.shape_cast %1 : vector<1x8x32xbf16> to vector<8x32xbf16>
    %5 = vector.shape_cast %3 : vector<1x8x32xbf16> to vector<8x32xbf16>
    %c0_5 = arith.constant 0 : index
    %c0_6 = arith.constant 0 : index
    %6 = vector.load %arg11[%c0_5, %c0_6] : memref<6x32xf32, #tpu.memory_space<vmem>>, vector<1x32xf32>
    %c1 = arith.constant 1 : index
    %c0_7 = arith.constant 0 : index
    %7 = vector.load %arg11[%c1, %c0_7] : memref<6x32xf32, #tpu.memory_space<vmem>>, vector<1x32xf32>
    %c2 = arith.constant 2 : index
    %c0_8 = arith.constant 0 : index
    %8 = vector.load %arg11[%c2, %c0_8] : memref<6x32xf32, #tpu.memory_space<vmem>>, vector<1x32xf32>
    %c3 = arith.constant 3 : index
    %c0_9 = arith.constant 0 : index
    %9 = vector.load %arg11[%c3, %c0_9] : memref<6x32xf32, #tpu.memory_space<vmem>>, vector<1x32xf32>
    %c4 = arith.constant 4 : index
    %c0_10 = arith.constant 0 : index
    %10 = vector.load %arg11[%c4, %c0_10] : memref<6x32xf32, #tpu.memory_space<vmem>>, vector<1x32xf32>
    %c5 = arith.constant 5 : index
    %c0_11 = arith.constant 0 : index
    %11 = vector.load %arg11[%c5, %c0_11] : memref<6x32xf32, #tpu.memory_space<vmem>>, vector<1x32xf32>
    %cst = arith.constant 0.000000e+00 : f32
    %12 = vector.broadcast %cst : f32 to vector<8x32xf32>
    %c0_12 = arith.constant 0 : index
    %c0_13 = arith.constant 0 : index
    %c0_14 = arith.constant 0 : index
    %13 = vector.load %arg4[%c0_12, %c0_13, %c0_14] : memref<4x32x8xbf16, #tpu.memory_space<vmem>>, vector<1x32x8xbf16>
    %14 = vector.shape_cast %13 : vector<1x32x8xbf16> to vector<32x8xbf16>
    %c0_15 = arith.constant 0 : index
    %c0_16 = arith.constant 0 : index
    %c0_17 = arith.constant 0 : index
    %15 = vector.load %arg5[%c0_15, %c0_16, %c0_17] : memref<4x32x8xbf16, #tpu.memory_space<vmem>>, vector<1x32x8xbf16>
    %16 = vector.shape_cast %15 : vector<1x32x8xbf16> to vector<32x8xbf16>
    %c0_18 = arith.constant 0 : index
    %c0_19 = arith.constant 0 : index
    %c0_20 = arith.constant 0 : index
    %17 = vector.load %arg6[%c0_18, %c0_19, %c0_20] : memref<4x32x8xbf16, #tpu.memory_space<vmem>>, vector<1x32x8xbf16>
    %18 = vector.shape_cast %17 : vector<1x32x8xbf16> to vector<32x8xbf16>
    %c0_21 = arith.constant 0 : index
    %c0_22 = arith.constant 0 : index
    %19 = vector.load %arg10[%c0_21, %c0_22] : memref<12x8xf32, #tpu.memory_space<vmem>>, vector<1x8xf32>
    %c4_23 = arith.constant 4 : index
    %c0_24 = arith.constant 0 : index
    %20 = vector.load %arg10[%c4_23, %c0_24] : memref<12x8xf32, #tpu.memory_space<vmem>>, vector<1x8xf32>
    %c8 = arith.constant 8 : index
    %c0_25 = arith.constant 0 : index
    %21 = vector.load %arg10[%c8, %c0_25] : memref<12x8xf32, #tpu.memory_space<vmem>>, vector<1x8xf32>
    %cst_26 = arith.constant dense<0.000000e+00> : vector<8x8xf32>
    %22 = tpu.matmul %4, %14, %cst_26 {dimension_numbers = #tpu.dot_dimension_numbers<[1], [0], [0], [1], [0, 0, 1, 1], [], []>} : vector<8x32xbf16>, vector<32x8xbf16>, vector<8x8xf32> -> vector<8x8xf32>
    %23 = vector.broadcast %19 : vector<1x8xf32> to vector<8x8xf32>
    %24 = arith.addf %22, %23 : vector<8x8xf32>
    %cst_27 = arith.constant dense<0.000000e+00> : vector<8x8xf32>
    %25 = tpu.matmul %5, %16, %cst_27 {dimension_numbers = #tpu.dot_dimension_numbers<[1], [0], [0], [1], [0, 0, 1, 1], [], []>} : vector<8x32xbf16>, vector<32x8xbf16>, vector<8x8xf32> -> vector<8x8xf32>
    %26 = vector.broadcast %20 : vector<1x8xf32> to vector<8x8xf32>
    %27 = arith.addf %25, %26 : vector<8x8xf32>
    %cst_28 = arith.constant dense<0.000000e+00> : vector<8x8xf32>
    %28 = tpu.matmul %4, %16, %cst_28 {dimension_numbers = #tpu.dot_dimension_numbers<[1], [0], [0], [1], [0, 0, 1, 1], [], []>} : vector<8x32xbf16>, vector<32x8xbf16>, vector<8x8xf32> -> vector<8x8xf32>
    %29 = vector.broadcast %20 : vector<1x8xf32> to vector<8x8xf32>
    %30 = arith.addf %28, %29 : vector<8x8xf32>
    %cst_29 = arith.constant dense<0.000000e+00> : vector<8x8xf32>
    %31 = tpu.matmul %5, %18, %cst_29 {dimension_numbers = #tpu.dot_dimension_numbers<[1], [0], [0], [1], [0, 0, 1, 1], [], []>} : vector<8x32xbf16>, vector<32x8xbf16>, vector<8x8xf32> -> vector<8x8xf32>
    %32 = vector.broadcast %21 : vector<1x8xf32> to vector<8x8xf32>
    %33 = arith.addf %31, %32 : vector<8x8xf32>
    %cst_30 = arith.constant dense<0.000000e+00> : vector<8x8xf32>
    %34 = tpu.matmul %4, %18, %cst_30 {dimension_numbers = #tpu.dot_dimension_numbers<[1], [0], [0], [1], [0, 0, 1, 1], [], []>} : vector<8x32xbf16>, vector<32x8xbf16>, vector<8x8xf32> -> vector<8x8xf32>
    %35 = vector.broadcast %21 : vector<1x8xf32> to vector<8x8xf32>
    %36 = arith.addf %34, %35 : vector<8x8xf32>
    %37 = arith.truncf %24 : vector<8x8xf32> to vector<8x8xbf16>
    %38 = vector.shape_cast %37 : vector<8x8xbf16> to vector<1x8x8xbf16>
    %39 = arith.truncf %27 : vector<8x8xf32> to vector<8x8xbf16>
    %40 = vector.shape_cast %39 : vector<8x8xbf16> to vector<1x8x8xbf16>
    %41 = arith.truncf %30 : vector<8x8xf32> to vector<8x8xbf16>
    %42 = vector.shape_cast %41 : vector<8x8xbf16> to vector<1x8x8xbf16>
    %43 = tpu.concatenate %40, %42 in 1 : vector<1x8x8xbf16>, vector<1x8x8xbf16> -> vector<1x16x8xbf16>
    %44 = arith.truncf %33 : vector<8x8xf32> to vector<8x8xbf16>
    %45 = vector.shape_cast %44 : vector<8x8xbf16> to vector<1x8x8xbf16>
    %46 = arith.truncf %36 : vector<8x8xf32> to vector<8x8xbf16>
    %47 = vector.shape_cast %46 : vector<8x8xbf16> to vector<1x8x8xbf16>
    %48 = tpu.concatenate %45, %47 in 1 : vector<1x8x8xbf16>, vector<1x8x8xbf16> -> vector<1x16x8xbf16>
    "tpu.trace_start"() <{level = 10 : i32, message = "bsd,bkd->bsk"}> : () -> ()
    %cst_31 = arith.constant dense<0.000000e+00> : vector<1x8x16xf32>
    %49 = tpu.matmul %38, %43, %cst_31 {dimension_numbers = #tpu.dot_dimension_numbers<[2], [2], [1], [1], [0, 0, 0, 1, 1, 1], [0], [0]>} : vector<1x8x8xbf16>, vector<1x16x8xbf16>, vector<1x8x16xf32> -> vector<1x8x16xf32>
    "tpu.trace_stop"() : () -> ()
    %c0_32 = arith.constant 0 : index
    %c0_33 = arith.constant 0 : index
    %c0_34 = arith.constant 0 : index
    %c0_35 = arith.constant 0 : index
    %50 = vector.load %arg3[%c0_32, %c0_33, %c0_34, %c0_35] : memref<1x4x8x16xbf16, #tpu.memory_space<vmem>>, vector<1x1x8x16xbf16>
    %51 = vector.shape_cast %50 : vector<1x1x8x16xbf16> to vector<1x8x16xbf16>
    %52 = arith.extf %51 : vector<1x8x16xbf16> to vector<1x8x16xf32>
    %53 = arith.addf %49, %52 : vector<1x8x16xf32>
    %cst_36 = arith.constant dense<0xFF800000> : vector<1x8xf32>
    %54 = vector.multi_reduction <maximumf>, %53, %cst_36 [2] : vector<1x8x16xf32> to vector<1x8xf32>
    %55 = vector.shape_cast %54 : vector<1x8xf32> to vector<1x8x1xf32>
    %56 = vector.broadcast %55 : vector<1x8x1xf32> to vector<1x8x16xf32>
    %57 = arith.subf %53, %56 : vector<1x8x16xf32>
    %58 = math.exp %57 : vector<1x8x16xf32>
    %cst_37 = arith.constant dense<0.000000e+00> : vector<1x8xf32>
    %59 = vector.multi_reduction <add>, %58, %cst_37 [2] : vector<1x8x16xf32> to vector<1x8xf32>
    %60 = vector.shape_cast %59 : vector<1x8xf32> to vector<1x8x1xf32>
    %61 = tpu.reciprocal %60 {approx = true} : vector<1x8x1xf32> -> vector<1x8x1xf32>
    %62 = vector.broadcast %61 : vector<1x8x1xf32> to vector<1x8x16xf32>
    %63 = arith.mulf %58, %62 : vector<1x8x16xf32>
    %64 = arith.truncf %63 : vector<1x8x16xf32> to vector<1x8x16xbf16>
    "tpu.trace_start"() <{level = 10 : i32, message = "bsk,bkd->bsd"}> : () -> ()
    %cst_38 = arith.constant dense<0.000000e+00> : vector<1x8x8xf32>
    %65 = tpu.matmul %64, %48, %cst_38 {dimension_numbers = #tpu.dot_dimension_numbers<[2], [1], [1], [2], [0, 0, 0, 1, 1, 2], [0], [0]>} : vector<1x8x16xbf16>, vector<1x16x8xbf16>, vector<1x8x8xf32> -> vector<1x8x8xf32>
    "tpu.trace_stop"() : () -> ()
    %66 = vector.shape_cast %65 : vector<1x8x8xf32> to vector<8x8xf32>
    %67 = arith.truncf %66 : vector<8x8xf32> to vector<8x8xbf16>
    %c0_39 = arith.constant 0 : index
    %c0_40 = arith.constant 0 : index
    %c0_41 = arith.constant 0 : index
    %68 = vector.load %arg7[%c0_39, %c0_40, %c0_41] : memref<4x8x32xbf16, #tpu.memory_space<vmem>>, vector<1x8x32xbf16>
    %69 = vector.shape_cast %68 : vector<1x8x32xbf16> to vector<8x32xbf16>
    %cst_42 = arith.constant dense<0.000000e+00> : vector<8x32xf32>
    %70 = tpu.matmul %67, %69, %cst_42 {dimension_numbers = #tpu.dot_dimension_numbers<[1], [0], [0], [1], [0, 0, 1, 1], [], []>} : vector<8x8xbf16>, vector<8x32xbf16>, vector<8x32xf32> -> vector<8x32xf32>
    %71 = arith.addf %12, %70 : vector<8x32xf32>
    %c1_43 = arith.constant 1 : index
    %c0_44 = arith.constant 0 : index
    %c0_45 = arith.constant 0 : index
    %72 = vector.load %arg4[%c1_43, %c0_44, %c0_45] : memref<4x32x8xbf16, #tpu.memory_space<vmem>>, vector<1x32x8xbf16>
    %73 = vector.shape_cast %72 : vector<1x32x8xbf16> to vector<32x8xbf16>
    %c1_46 = arith.constant 1 : index
    %c0_47 = arith.constant 0 : index
    %c0_48 = arith.constant 0 : index
    %74 = vector.load %arg5[%c1_46, %c0_47, %c0_48] : memref<4x32x8xbf16, #tpu.memory_space<vmem>>, vector<1x32x8xbf16>
    %75 = vector.shape_cast %74 : vector<1x32x8xbf16> to vector<32x8xbf16>
    %c1_49 = arith.constant 1 : index
    %c0_50 = arith.constant 0 : index
    %c0_51 = arith.constant 0 : index
    %76 = vector.load %arg6[%c1_49, %c0_50, %c0_51] : memref<4x32x8xbf16, #tpu.memory_space<vmem>>, vector<1x32x8xbf16>
    %77 = vector.shape_cast %76 : vector<1x32x8xbf16> to vector<32x8xbf16>
    %c1_52 = arith.constant 1 : index
    %c0_53 = arith.constant 0 : index
    %78 = vector.load %arg10[%c1_52, %c0_53] : memref<12x8xf32, #tpu.memory_space<vmem>>, vector<1x8xf32>
    %c5_54 = arith.constant 5 : index
    %c0_55 = arith.constant 0 : index
    %79 = vector.load %arg10[%c5_54, %c0_55] : memref<12x8xf32, #tpu.memory_space<vmem>>, vector<1x8xf32>
    %c9 = arith.constant 9 : index
    %c0_56 = arith.constant 0 : index
    %80 = vector.load %arg10[%c9, %c0_56] : memref<12x8xf32, #tpu.memory_space<vmem>>, vector<1x8xf32>
    %cst_57 = arith.constant dense<0.000000e+00> : vector<8x8xf32>
    %81 = tpu.matmul %4, %73, %cst_57 {dimension_numbers = #tpu.dot_dimension_numbers<[1], [0], [0], [1], [0, 0, 1, 1], [], []>} : vector<8x32xbf16>, vector<32x8xbf16>, vector<8x8xf32> -> vector<8x8xf32>
    %82 = vector.broadcast %78 : vector<1x8xf32> to vector<8x8xf32>
    %83 = arith.addf %81, %82 : vector<8x8xf32>
    %cst_58 = arith.constant dense<0.000000e+00> : vector<8x8xf32>
    %84 = tpu.matmul %5, %75, %cst_58 {dimension_numbers = #tpu.dot_dimension_numbers<[1], [0], [0], [1], [0, 0, 1, 1], [], []>} : vector<8x32xbf16>, vector<32x8xbf16>, vector<8x8xf32> -> vector<8x8xf32>
    %85 = vector.broadcast %79 : vector<1x8xf32> to vector<8x8xf32>
    %86 = arith.addf %84, %85 : vector<8x8xf32>
    %cst_59 = arith.constant dense<0.000000e+00> : vector<8x8xf32>
    %87 = tpu.matmul %4, %75, %cst_59 {dimension_numbers = #tpu.dot_dimension_numbers<[1], [0], [0], [1], [0, 0, 1, 1], [], []>} : vector<8x32xbf16>, vector<32x8xbf16>, vector<8x8xf32> -> vector<8x8xf32>
    %88 = vector.broadcast %79 : vector<1x8xf32> to vector<8x8xf32>
    %89 = arith.addf %87, %88 : vector<8x8xf32>
    %cst_60 = arith.constant dense<0.000000e+00> : vector<8x8xf32>
    %90 = tpu.matmul %5, %77, %cst_60 {dimension_numbers = #tpu.dot_dimension_numbers<[1], [0], [0], [1], [0, 0, 1, 1], [], []>} : vector<8x32xbf16>, vector<32x8xbf16>, vector<8x8xf32> -> vector<8x8xf32>
    %91 = vector.broadcast %80 : vector<1x8xf32> to vector<8x8xf32>
    %92 = arith.addf %90, %91 : vector<8x8xf32>
    %cst_61 = arith.constant dense<0.000000e+00> : vector<8x8xf32>
    %93 = tpu.matmul %4, %77, %cst_61 {dimension_numbers = #tpu.dot_dimension_numbers<[1], [0], [0], [1], [0, 0, 1, 1], [], []>} : vector<8x32xbf16>, vector<32x8xbf16>, vector<8x8xf32> -> vector<8x8xf32>
    %94 = vector.broadcast %80 : vector<1x8xf32> to vector<8x8xf32>
    %95 = arith.addf %93, %94 : vector<8x8xf32>
    %96 = arith.truncf %83 : vector<8x8xf32> to vector<8x8xbf16>
    %97 = vector.shape_cast %96 : vector<8x8xbf16> to vector<1x8x8xbf16>
    %98 = arith.truncf %86 : vector<8x8xf32> to vector<8x8xbf16>
    %99 = vector.shape_cast %98 : vector<8x8xbf16> to vector<1x8x8xbf16>
    %100 = arith.truncf %89 : vector<8x8xf32> to vector<8x8xbf16>
    %101 = vector.shape_cast %100 : vector<8x8xbf16> to vector<1x8x8xbf16>
    %102 = tpu.concatenate %99, %101 in 1 : vector<1x8x8xbf16>, vector<1x8x8xbf16> -> vector<1x16x8xbf16>
    %103 = arith.truncf %92 : vector<8x8xf32> to vector<8x8xbf16>
    %104 = vector.shape_cast %103 : vector<8x8xbf16> to vector<1x8x8xbf16>
    %105 = arith.truncf %95 : vector<8x8xf32> to vector<8x8xbf16>
    %106 = vector.shape_cast %105 : vector<8x8xbf16> to vector<1x8x8xbf16>
    %107 = tpu.concatenate %104, %106 in 1 : vector<1x8x8xbf16>, vector<1x8x8xbf16> -> vector<1x16x8xbf16>
    "tpu.trace_start"() <{level = 10 : i32, message = "bsd,bkd->bsk"}> : () -> ()
    %cst_62 = arith.constant dense<0.000000e+00> : vector<1x8x16xf32>
    %108 = tpu.matmul %97, %102, %cst_62 {dimension_numbers = #tpu.dot_dimension_numbers<[2], [2], [1], [1], [0, 0, 0, 1, 1, 1], [0], [0]>} : vector<1x8x8xbf16>, vector<1x16x8xbf16>, vector<1x8x16xf32> -> vector<1x8x16xf32>
    "tpu.trace_stop"() : () -> ()
    %c0_63 = arith.constant 0 : index
    %c1_64 = arith.constant 1 : index
    %c0_65 = arith.constant 0 : index
    %c0_66 = arith.constant 0 : index
    %109 = vector.load %arg3[%c0_63, %c1_64, %c0_65, %c0_66] : memref<1x4x8x16xbf16, #tpu.memory_space<vmem>>, vector<1x1x8x16xbf16>
    %110 = vector.shape_cast %109 : vector<1x1x8x16xbf16> to vector<1x8x16xbf16>
    %111 = arith.extf %110 : vector<1x8x16xbf16> to vector<1x8x16xf32>
    %112 = arith.addf %108, %111 : vector<1x8x16xf32>
    %cst_67 = arith.constant dense<0xFF800000> : vector<1x8xf32>
    %113 = vector.multi_reduction <maximumf>, %112, %cst_67 [2] : vector<1x8x16xf32> to vector<1x8xf32>
    %114 = vector.shape_cast %113 : vector<1x8xf32> to vector<1x8x1xf32>
    %115 = vector.broadcast %114 : vector<1x8x1xf32> to vector<1x8x16xf32>
    %116 = arith.subf %112, %115 : vector<1x8x16xf32>
    %117 = math.exp %116 : vector<1x8x16xf32>
    %cst_68 = arith.constant dense<0.000000e+00> : vector<1x8xf32>
    %118 = vector.multi_reduction <add>, %117, %cst_68 [2] : vector<1x8x16xf32> to vector<1x8xf32>
    %119 = vector.shape_cast %118 : vector<1x8xf32> to vector<1x8x1xf32>
    %120 = tpu.reciprocal %119 {approx = true} : vector<1x8x1xf32> -> vector<1x8x1xf32>
    %121 = vector.broadcast %120 : vector<1x8x1xf32> to vector<1x8x16xf32>
    %122 = arith.mulf %117, %121 : vector<1x8x16xf32>
    %123 = arith.truncf %122 : vector<1x8x16xf32> to vector<1x8x16xbf16>
    "tpu.trace_start"() <{level = 10 : i32, message = "bsk,bkd->bsd"}> : () -> ()
    %cst_69 = arith.constant dense<0.000000e+00> : vector<1x8x8xf32>
    %124 = tpu.matmul %123, %107, %cst_69 {dimension_numbers = #tpu.dot_dimension_numbers<[2], [1], [1], [2], [0, 0, 0, 1, 1, 2], [0], [0]>} : vector<1x8x16xbf16>, vector<1x16x8xbf16>, vector<1x8x8xf32> -> vector<1x8x8xf32>
    "tpu.trace_stop"() : () -> ()
    %125 = vector.shape_cast %124 : vector<1x8x8xf32> to vector<8x8xf32>
    %126 = arith.truncf %125 : vector<8x8xf32> to vector<8x8xbf16>
    %c1_70 = arith.constant 1 : index
    %c0_71 = arith.constant 0 : index
    %c0_72 = arith.constant 0 : index
    %127 = vector.load %arg7[%c1_70, %c0_71, %c0_72] : memref<4x8x32xbf16, #tpu.memory_space<vmem>>, vector<1x8x32xbf16>
    %128 = vector.shape_cast %127 : vector<1x8x32xbf16> to vector<8x32xbf16>
    %cst_73 = arith.constant dense<0.000000e+00> : vector<8x32xf32>
    %129 = tpu.matmul %126, %128, %cst_73 {dimension_numbers = #tpu.dot_dimension_numbers<[1], [0], [0], [1], [0, 0, 1, 1], [], []>} : vector<8x8xbf16>, vector<8x32xbf16>, vector<8x32xf32> -> vector<8x32xf32>
    %130 = arith.addf %71, %129 : vector<8x32xf32>
    %c2_74 = arith.constant 2 : index
    %c0_75 = arith.constant 0 : index
    %c0_76 = arith.constant 0 : index
    %131 = vector.load %arg4[%c2_74, %c0_75, %c0_76] : memref<4x32x8xbf16, #tpu.memory_space<vmem>>, vector<1x32x8xbf16>
    %132 = vector.shape_cast %131 : vector<1x32x8xbf16> to vector<32x8xbf16>
    %c2_77 = arith.constant 2 : index
    %c0_78 = arith.constant 0 : index
    %c0_79 = arith.constant 0 : index
    %133 = vector.load %arg5[%c2_77, %c0_78, %c0_79] : memref<4x32x8xbf16, #tpu.memory_space<vmem>>, vector<1x32x8xbf16>
    %134 = vector.shape_cast %133 : vector<1x32x8xbf16> to vector<32x8xbf16>
    %c2_80 = arith.constant 2 : index
    %c0_81 = arith.constant 0 : index
    %c0_82 = arith.constant 0 : index
    %135 = vector.load %arg6[%c2_80, %c0_81, %c0_82] : memref<4x32x8xbf16, #tpu.memory_space<vmem>>, vector<1x32x8xbf16>
    %136 = vector.shape_cast %135 : vector<1x32x8xbf16> to vector<32x8xbf16>
    %c2_83 = arith.constant 2 : index
    %c0_84 = arith.constant 0 : index
    %137 = vector.load %arg10[%c2_83, %c0_84] : memref<12x8xf32, #tpu.memory_space<vmem>>, vector<1x8xf32>
    %c6 = arith.constant 6 : index
    %c0_85 = arith.constant 0 : index
    %138 = vector.load %arg10[%c6, %c0_85] : memref<12x8xf32, #tpu.memory_space<vmem>>, vector<1x8xf32>
    %c10 = arith.constant 10 : index
    %c0_86 = arith.constant 0 : index
    %139 = vector.load %arg10[%c10, %c0_86] : memref<12x8xf32, #tpu.memory_space<vmem>>, vector<1x8xf32>
    %cst_87 = arith.constant dense<0.000000e+00> : vector<8x8xf32>
    %140 = tpu.matmul %4, %132, %cst_87 {dimension_numbers = #tpu.dot_dimension_numbers<[1], [0], [0], [1], [0, 0, 1, 1], [], []>} : vector<8x32xbf16>, vector<32x8xbf16>, vector<8x8xf32> -> vector<8x8xf32>
    %141 = vector.broadcast %137 : vector<1x8xf32> to vector<8x8xf32>
    %142 = arith.addf %140, %141 : vector<8x8xf32>
    %cst_88 = arith.constant dense<0.000000e+00> : vector<8x8xf32>
    %143 = tpu.matmul %5, %134, %cst_88 {dimension_numbers = #tpu.dot_dimension_numbers<[1], [0], [0], [1], [0, 0, 1, 1], [], []>} : vector<8x32xbf16>, vector<32x8xbf16>, vector<8x8xf32> -> vector<8x8xf32>
    %144 = vector.broadcast %138 : vector<1x8xf32> to vector<8x8xf32>
    %145 = arith.addf %143, %144 : vector<8x8xf32>
    %cst_89 = arith.constant dense<0.000000e+00> : vector<8x8xf32>
    %146 = tpu.matmul %4, %134, %cst_89 {dimension_numbers = #tpu.dot_dimension_numbers<[1], [0], [0], [1], [0, 0, 1, 1], [], []>} : vector<8x32xbf16>, vector<32x8xbf16>, vector<8x8xf32> -> vector<8x8xf32>
    %147 = vector.broadcast %138 : vector<1x8xf32> to vector<8x8xf32>
    %148 = arith.addf %146, %147 : vector<8x8xf32>
    %cst_90 = arith.constant dense<0.000000e+00> : vector<8x8xf32>
    %149 = tpu.matmul %5, %136, %cst_90 {dimension_numbers = #tpu.dot_dimension_numbers<[1], [0], [0], [1], [0, 0, 1, 1], [], []>} : vector<8x32xbf16>, vector<32x8xbf16>, vector<8x8xf32> -> vector<8x8xf32>
    %150 = vector.broadcast %139 : vector<1x8xf32> to vector<8x8xf32>
    %151 = arith.addf %149, %150 : vector<8x8xf32>
    %cst_91 = arith.constant dense<0.000000e+00> : vector<8x8xf32>
    %152 = tpu.matmul %4, %136, %cst_91 {dimension_numbers = #tpu.dot_dimension_numbers<[1], [0], [0], [1], [0, 0, 1, 1], [], []>} : vector<8x32xbf16>, vector<32x8xbf16>, vector<8x8xf32> -> vector<8x8xf32>
    %153 = vector.broadcast %139 : vector<1x8xf32> to vector<8x8xf32>
    %154 = arith.addf %152, %153 : vector<8x8xf32>
    %155 = arith.truncf %142 : vector<8x8xf32> to vector<8x8xbf16>
    %156 = vector.shape_cast %155 : vector<8x8xbf16> to vector<1x8x8xbf16>
    %157 = arith.truncf %145 : vector<8x8xf32> to vector<8x8xbf16>
    %158 = vector.shape_cast %157 : vector<8x8xbf16> to vector<1x8x8xbf16>
    %159 = arith.truncf %148 : vector<8x8xf32> to vector<8x8xbf16>
    %160 = vector.shape_cast %159 : vector<8x8xbf16> to vector<1x8x8xbf16>
    %161 = tpu.concatenate %158, %160 in 1 : vector<1x8x8xbf16>, vector<1x8x8xbf16> -> vector<1x16x8xbf16>
    %162 = arith.truncf %151 : vector<8x8xf32> to vector<8x8xbf16>
    %163 = vector.shape_cast %162 : vector<8x8xbf16> to vector<1x8x8xbf16>
    %164 = arith.truncf %154 : vector<8x8xf32> to vector<8x8xbf16>
    %165 = vector.shape_cast %164 : vector<8x8xbf16> to vector<1x8x8xbf16>
    %166 = tpu.concatenate %163, %165 in 1 : vector<1x8x8xbf16>, vector<1x8x8xbf16> -> vector<1x16x8xbf16>
    "tpu.trace_start"() <{level = 10 : i32, message = "bsd,bkd->bsk"}> : () -> ()
    %cst_92 = arith.constant dense<0.000000e+00> : vector<1x8x16xf32>
    %167 = tpu.matmul %156, %161, %cst_92 {dimension_numbers = #tpu.dot_dimension_numbers<[2], [2], [1], [1], [0, 0, 0, 1, 1, 1], [0], [0]>} : vector<1x8x8xbf16>, vector<1x16x8xbf16>, vector<1x8x16xf32> -> vector<1x8x16xf32>
    "tpu.trace_stop"() : () -> ()
    %c0_93 = arith.constant 0 : index
    %c2_94 = arith.constant 2 : index
    %c0_95 = arith.constant 0 : index
    %c0_96 = arith.constant 0 : index
    %168 = vector.load %arg3[%c0_93, %c2_94, %c0_95, %c0_96] : memref<1x4x8x16xbf16, #tpu.memory_space<vmem>>, vector<1x1x8x16xbf16>
    %169 = vector.shape_cast %168 : vector<1x1x8x16xbf16> to vector<1x8x16xbf16>
    %170 = arith.extf %169 : vector<1x8x16xbf16> to vector<1x8x16xf32>
    %171 = arith.addf %167, %170 : vector<1x8x16xf32>
    %cst_97 = arith.constant dense<0xFF800000> : vector<1x8xf32>
    %172 = vector.multi_reduction <maximumf>, %171, %cst_97 [2] : vector<1x8x16xf32> to vector<1x8xf32>
    %173 = vector.shape_cast %172 : vector<1x8xf32> to vector<1x8x1xf32>
    %174 = vector.broadcast %173 : vector<1x8x1xf32> to vector<1x8x16xf32>
    %175 = arith.subf %171, %174 : vector<1x8x16xf32>
    %176 = math.exp %175 : vector<1x8x16xf32>
    %cst_98 = arith.constant dense<0.000000e+00> : vector<1x8xf32>
    %177 = vector.multi_reduction <add>, %176, %cst_98 [2] : vector<1x8x16xf32> to vector<1x8xf32>
    %178 = vector.shape_cast %177 : vector<1x8xf32> to vector<1x8x1xf32>
    %179 = tpu.reciprocal %178 {approx = true} : vector<1x8x1xf32> -> vector<1x8x1xf32>
    %180 = vector.broadcast %179 : vector<1x8x1xf32> to vector<1x8x16xf32>
    %181 = arith.mulf %176, %180 : vector<1x8x16xf32>
    %182 = arith.truncf %181 : vector<1x8x16xf32> to vector<1x8x16xbf16>
    "tpu.trace_start"() <{level = 10 : i32, message = "bsk,bkd->bsd"}> : () -> ()
    %cst_99 = arith.constant dense<0.000000e+00> : vector<1x8x8xf32>
    %183 = tpu.matmul %182, %166, %cst_99 {dimension_numbers = #tpu.dot_dimension_numbers<[2], [1], [1], [2], [0, 0, 0, 1, 1, 2], [0], [0]>} : vector<1x8x16xbf16>, vector<1x16x8xbf16>, vector<1x8x8xf32> -> vector<1x8x8xf32>
    "tpu.trace_stop"() : () -> ()
    %184 = vector.shape_cast %183 : vector<1x8x8xf32> to vector<8x8xf32>
    %185 = arith.truncf %184 : vector<8x8xf32> to vector<8x8xbf16>
    %c2_100 = arith.constant 2 : index
    %c0_101 = arith.constant 0 : index
    %c0_102 = arith.constant 0 : index
    %186 = vector.load %arg7[%c2_100, %c0_101, %c0_102] : memref<4x8x32xbf16, #tpu.memory_space<vmem>>, vector<1x8x32xbf16>
    %187 = vector.shape_cast %186 : vector<1x8x32xbf16> to vector<8x32xbf16>
    %cst_103 = arith.constant dense<0.000000e+00> : vector<8x32xf32>
    %188 = tpu.matmul %185, %187, %cst_103 {dimension_numbers = #tpu.dot_dimension_numbers<[1], [0], [0], [1], [0, 0, 1, 1], [], []>} : vector<8x8xbf16>, vector<8x32xbf16>, vector<8x32xf32> -> vector<8x32xf32>
    %189 = arith.addf %130, %188 : vector<8x32xf32>
    %c3_104 = arith.constant 3 : index
    %c0_105 = arith.constant 0 : index
    %c0_106 = arith.constant 0 : index
    %190 = vector.load %arg4[%c3_104, %c0_105, %c0_106] : memref<4x32x8xbf16, #tpu.memory_space<vmem>>, vector<1x32x8xbf16>
    %191 = vector.shape_cast %190 : vector<1x32x8xbf16> to vector<32x8xbf16>
    %c3_107 = arith.constant 3 : index
    %c0_108 = arith.constant 0 : index
    %c0_109 = arith.constant 0 : index
    %192 = vector.load %arg5[%c3_107, %c0_108, %c0_109] : memref<4x32x8xbf16, #tpu.memory_space<vmem>>, vector<1x32x8xbf16>
    %193 = vector.shape_cast %192 : vector<1x32x8xbf16> to vector<32x8xbf16>
    %c3_110 = arith.constant 3 : index
    %c0_111 = arith.constant 0 : index
    %c0_112 = arith.constant 0 : index
    %194 = vector.load %arg6[%c3_110, %c0_111, %c0_112] : memref<4x32x8xbf16, #tpu.memory_space<vmem>>, vector<1x32x8xbf16>
    %195 = vector.shape_cast %194 : vector<1x32x8xbf16> to vector<32x8xbf16>
    %c3_113 = arith.constant 3 : index
    %c0_114 = arith.constant 0 : index
    %196 = vector.load %arg10[%c3_113, %c0_114] : memref<12x8xf32, #tpu.memory_space<vmem>>, vector<1x8xf32>
    %c7 = arith.constant 7 : index
    %c0_115 = arith.constant 0 : index
    %197 = vector.load %arg10[%c7, %c0_115] : memref<12x8xf32, #tpu.memory_space<vmem>>, vector<1x8xf32>
    %c11 = arith.constant 11 : index
    %c0_116 = arith.constant 0 : index
    %198 = vector.load %arg10[%c11, %c0_116] : memref<12x8xf32, #tpu.memory_space<vmem>>, vector<1x8xf32>
    %cst_117 = arith.constant dense<0.000000e+00> : vector<8x8xf32>
    %199 = tpu.matmul %4, %191, %cst_117 {dimension_numbers = #tpu.dot_dimension_numbers<[1], [0], [0], [1], [0, 0, 1, 1], [], []>} : vector<8x32xbf16>, vector<32x8xbf16>, vector<8x8xf32> -> vector<8x8xf32>
    %200 = vector.broadcast %196 : vector<1x8xf32> to vector<8x8xf32>
    %201 = arith.addf %199, %200 : vector<8x8xf32>
    %cst_118 = arith.constant dense<0.000000e+00> : vector<8x8xf32>
    %202 = tpu.matmul %5, %193, %cst_118 {dimension_numbers = #tpu.dot_dimension_numbers<[1], [0], [0], [1], [0, 0, 1, 1], [], []>} : vector<8x32xbf16>, vector<32x8xbf16>, vector<8x8xf32> -> vector<8x8xf32>
    %203 = vector.broadcast %197 : vector<1x8xf32> to vector<8x8xf32>
    %204 = arith.addf %202, %203 : vector<8x8xf32>
    %cst_119 = arith.constant dense<0.000000e+00> : vector<8x8xf32>
    %205 = tpu.matmul %4, %193, %cst_119 {dimension_numbers = #tpu.dot_dimension_numbers<[1], [0], [0], [1], [0, 0, 1, 1], [], []>} : vector<8x32xbf16>, vector<32x8xbf16>, vector<8x8xf32> -> vector<8x8xf32>
    %206 = vector.broadcast %197 : vector<1x8xf32> to vector<8x8xf32>
    %207 = arith.addf %205, %206 : vector<8x8xf32>
    %cst_120 = arith.constant dense<0.000000e+00> : vector<8x8xf32>
    %208 = tpu.matmul %5, %195, %cst_120 {dimension_numbers = #tpu.dot_dimension_numbers<[1], [0], [0], [1], [0, 0, 1, 1], [], []>} : vector<8x32xbf16>, vector<32x8xbf16>, vector<8x8xf32> -> vector<8x8xf32>
    %209 = vector.broadcast %198 : vector<1x8xf32> to vector<8x8xf32>
    %210 = arith.addf %208, %209 : vector<8x8xf32>
    %cst_121 = arith.constant dense<0.000000e+00> : vector<8x8xf32>
    %211 = tpu.matmul %4, %195, %cst_121 {dimension_numbers = #tpu.dot_dimension_numbers<[1], [0], [0], [1], [0, 0, 1, 1], [], []>} : vector<8x32xbf16>, vector<32x8xbf16>, vector<8x8xf32> -> vector<8x8xf32>
    %212 = vector.broadcast %198 : vector<1x8xf32> to vector<8x8xf32>
    %213 = arith.addf %211, %212 : vector<8x8xf32>
    %214 = arith.truncf %201 : vector<8x8xf32> to vector<8x8xbf16>
    %215 = vector.shape_cast %214 : vector<8x8xbf16> to vector<1x8x8xbf16>
    %216 = arith.truncf %204 : vector<8x8xf32> to vector<8x8xbf16>
    %217 = vector.shape_cast %216 : vector<8x8xbf16> to vector<1x8x8xbf16>
    %218 = arith.truncf %207 : vector<8x8xf32> to vector<8x8xbf16>
    %219 = vector.shape_cast %218 : vector<8x8xbf16> to vector<1x8x8xbf16>
    %220 = tpu.concatenate %217, %219 in 1 : vector<1x8x8xbf16>, vector<1x8x8xbf16> -> vector<1x16x8xbf16>
    %221 = arith.truncf %210 : vector<8x8xf32> to vector<8x8xbf16>
    %222 = vector.shape_cast %221 : vector<8x8xbf16> to vector<1x8x8xbf16>
    %223 = arith.truncf %213 : vector<8x8xf32> to vector<8x8xbf16>
    %224 = vector.shape_cast %223 : vector<8x8xbf16> to vector<1x8x8xbf16>
    %225 = tpu.concatenate %222, %224 in 1 : vector<1x8x8xbf16>, vector<1x8x8xbf16> -> vector<1x16x8xbf16>
    "tpu.trace_start"() <{level = 10 : i32, message = "bsd,bkd->bsk"}> : () -> ()
    %cst_122 = arith.constant dense<0.000000e+00> : vector<1x8x16xf32>
    %226 = tpu.matmul %215, %220, %cst_122 {dimension_numbers = #tpu.dot_dimension_numbers<[2], [2], [1], [1], [0, 0, 0, 1, 1, 1], [0], [0]>} : vector<1x8x8xbf16>, vector<1x16x8xbf16>, vector<1x8x16xf32> -> vector<1x8x16xf32>
    "tpu.trace_stop"() : () -> ()
    %c0_123 = arith.constant 0 : index
    %c3_124 = arith.constant 3 : index
    %c0_125 = arith.constant 0 : index
    %c0_126 = arith.constant 0 : index
    %227 = vector.load %arg3[%c0_123, %c3_124, %c0_125, %c0_126] : memref<1x4x8x16xbf16, #tpu.memory_space<vmem>>, vector<1x1x8x16xbf16>
    %228 = vector.shape_cast %227 : vector<1x1x8x16xbf16> to vector<1x8x16xbf16>
    %229 = arith.extf %228 : vector<1x8x16xbf16> to vector<1x8x16xf32>
    %230 = arith.addf %226, %229 : vector<1x8x16xf32>
    %cst_127 = arith.constant dense<0xFF800000> : vector<1x8xf32>
    %231 = vector.multi_reduction <maximumf>, %230, %cst_127 [2] : vector<1x8x16xf32> to vector<1x8xf32>
    %232 = vector.shape_cast %231 : vector<1x8xf32> to vector<1x8x1xf32>
    %233 = vector.broadcast %232 : vector<1x8x1xf32> to vector<1x8x16xf32>
    %234 = arith.subf %230, %233 : vector<1x8x16xf32>
    %235 = math.exp %234 : vector<1x8x16xf32>
    %cst_128 = arith.constant dense<0.000000e+00> : vector<1x8xf32>
    %236 = vector.multi_reduction <add>, %235, %cst_128 [2] : vector<1x8x16xf32> to vector<1x8xf32>
    %237 = vector.shape_cast %236 : vector<1x8xf32> to vector<1x8x1xf32>
    %238 = tpu.reciprocal %237 {approx = true} : vector<1x8x1xf32> -> vector<1x8x1xf32>
    %239 = vector.broadcast %238 : vector<1x8x1xf32> to vector<1x8x16xf32>
    %240 = arith.mulf %235, %239 : vector<1x8x16xf32>
    %241 = arith.truncf %240 : vector<1x8x16xf32> to vector<1x8x16xbf16>
    "tpu.trace_start"() <{level = 10 : i32, message = "bsk,bkd->bsd"}> : () -> ()
    %cst_129 = arith.constant dense<0.000000e+00> : vector<1x8x8xf32>
    %242 = tpu.matmul %241, %225, %cst_129 {dimension_numbers = #tpu.dot_dimension_numbers<[2], [1], [1], [2], [0, 0, 0, 1, 1, 2], [0], [0]>} : vector<1x8x16xbf16>, vector<1x16x8xbf16>, vector<1x8x8xf32> -> vector<1x8x8xf32>
    "tpu.trace_stop"() : () -> ()
    %243 = vector.shape_cast %242 : vector<1x8x8xf32> to vector<8x8xf32>
    %244 = arith.truncf %243 : vector<8x8xf32> to vector<8x8xbf16>
    %c3_130 = arith.constant 3 : index
    %c0_131 = arith.constant 0 : index
    %c0_132 = arith.constant 0 : index
    %245 = vector.load %arg7[%c3_130, %c0_131, %c0_132] : memref<4x8x32xbf16, #tpu.memory_space<vmem>>, vector<1x8x32xbf16>
    %246 = vector.shape_cast %245 : vector<1x8x32xbf16> to vector<8x32xbf16>
    %cst_133 = arith.constant dense<0.000000e+00> : vector<8x32xf32>
    %247 = tpu.matmul %244, %246, %cst_133 {dimension_numbers = #tpu.dot_dimension_numbers<[1], [0], [0], [1], [0, 0, 1, 1], [], []>} : vector<8x8xbf16>, vector<8x32xbf16>, vector<8x32xf32> -> vector<8x32xf32>
    %248 = arith.addf %189, %247 : vector<8x32xf32>
    %249 = vector.broadcast %6 : vector<1x32xf32> to vector<8x32xf32>
    %250 = arith.addf %248, %249 : vector<8x32xf32>
    %251 = vector.shape_cast %0 : vector<1x8x32xf32> to vector<8x32xf32>
    %252 = arith.addf %251, %250 : vector<8x32xf32>
    %cst_134 = arith.constant dense<0.000000e+00> : vector<8xf32>
    %253 = vector.multi_reduction <add>, %252, %cst_134 [1] : vector<8x32xf32> to vector<8xf32>
    %254 = vector.shape_cast %253 : vector<8xf32> to vector<8x1xf32>
    %cst_135 = arith.constant 3.200000e+01 : f32
    %255 = vector.broadcast %cst_135 : f32 to vector<8x1xf32>
    %256 = arith.divf %254, %255 : vector<8x1xf32>
    %257 = vector.broadcast %256 : vector<8x1xf32> to vector<8x32xf32>
    %258 = arith.subf %252, %257 : vector<8x32xf32>
    %259 = arith.mulf %258, %258 : vector<8x32xf32>
    %cst_136 = arith.constant dense<0.000000e+00> : vector<8xf32>
    %260 = vector.multi_reduction <add>, %259, %cst_136 [1] : vector<8x32xf32> to vector<8xf32>
    %261 = vector.shape_cast %260 : vector<8xf32> to vector<8x1xf32>
    %cst_137 = arith.constant 3.200000e+01 : f32
    %262 = vector.broadcast %cst_137 : f32 to vector<8x1xf32>
    %263 = arith.divf %261, %262 : vector<8x1xf32>
    %264 = vector.broadcast %256 : vector<8x1xf32> to vector<8x32xf32>
    %265 = arith.subf %252, %264 : vector<8x32xf32>
    %cst_138 = arith.constant 9.99999974E-6 : f32
    %266 = vector.broadcast %cst_138 : f32 to vector<8x1xf32>
    %267 = arith.addf %263, %266 : vector<8x1xf32>
    %268 = math.rsqrt %267 : vector<8x1xf32>
    %269 = vector.broadcast %268 : vector<8x1xf32> to vector<8x32xf32>
    %270 = arith.mulf %265, %269 : vector<8x32xf32>
    %271 = vector.broadcast %8 : vector<1x32xf32> to vector<8x32xf32>
    %272 = arith.mulf %270, %271 : vector<8x32xf32>
    %273 = vector.broadcast %9 : vector<1x32xf32> to vector<8x32xf32>
    %274 = arith.addf %272, %273 : vector<8x32xf32>
    %275 = arith.truncf %274 : vector<8x32xf32> to vector<8x32xbf16>
    %c0_139 = arith.constant 0 : index
    %c0_140 = arith.constant 0 : index
    %276 = vector.load %arg8[%c0_139, %c0_140] : memref<32x64xbf16, #tpu.memory_space<vmem>>, vector<32x64xbf16>
    %cst_141 = arith.constant dense<0.000000e+00> : vector<8x64xf32>
    %277 = tpu.matmul %275, %276, %cst_141 {dimension_numbers = #tpu.dot_dimension_numbers<[1], [0], [0], [1], [0, 0, 1, 1], [], []>} : vector<8x32xbf16>, vector<32x64xbf16>, vector<8x64xf32> -> vector<8x64xf32>
    %c0_142 = arith.constant 0 : index
    %c0_143 = arith.constant 0 : index
    %278 = vector.load %arg12[%c0_142, %c0_143] : memref<1x64xf32, #tpu.memory_space<vmem>>, vector<1x64xf32>
    %279 = vector.broadcast %278 : vector<1x64xf32> to vector<8x64xf32>
    %280 = arith.addf %277, %279 : vector<8x64xf32>
    %cst_144 = arith.constant 0.000000e+00 : f32
    %281 = vector.broadcast %cst_144 : f32 to vector<8x64xf32>
    %282 = arith.maximumf %280, %281 : vector<8x64xf32>
    %283 = arith.truncf %282 : vector<8x64xf32> to vector<8x64xbf16>
    %c0_145 = arith.constant 0 : index
    %c0_146 = arith.constant 0 : index
    %284 = vector.load %arg9[%c0_145, %c0_146] : memref<64x32xbf16, #tpu.memory_space<vmem>>, vector<64x32xbf16>
    %cst_147 = arith.constant dense<0.000000e+00> : vector<8x32xf32>
    %285 = tpu.matmul %283, %284, %cst_147 {dimension_numbers = #tpu.dot_dimension_numbers<[1], [0], [0], [1], [0, 0, 1, 1], [], []>} : vector<8x64xbf16>, vector<64x32xbf16>, vector<8x32xf32> -> vector<8x32xf32>
    %286 = vector.broadcast %7 : vector<1x32xf32> to vector<8x32xf32>
    %287 = arith.addf %285, %286 : vector<8x32xf32>
    %288 = arith.addf %274, %287 : vector<8x32xf32>
    %cst_148 = arith.constant dense<0.000000e+00> : vector<8xf32>
    %289 = vector.multi_reduction <add>, %288, %cst_148 [1] : vector<8x32xf32> to vector<8xf32>
    %290 = vector.shape_cast %289 : vector<8xf32> to vector<8x1xf32>
    %cst_149 = arith.constant 3.200000e+01 : f32
    %291 = vector.broadcast %cst_149 : f32 to vector<8x1xf32>
    %292 = arith.divf %290, %291 : vector<8x1xf32>
    %293 = vector.broadcast %292 : vector<8x1xf32> to vector<8x32xf32>
    %294 = arith.subf %288, %293 : vector<8x32xf32>
    %295 = arith.mulf %294, %294 : vector<8x32xf32>
    %cst_150 = arith.constant dense<0.000000e+00> : vector<8xf32>
    %296 = vector.multi_reduction <add>, %295, %cst_150 [1] : vector<8x32xf32> to vector<8xf32>
    %297 = vector.shape_cast %296 : vector<8xf32> to vector<8x1xf32>
    %cst_151 = arith.constant 3.200000e+01 : f32
    %298 = vector.broadcast %cst_151 : f32 to vector<8x1xf32>
    %299 = arith.divf %297, %298 : vector<8x1xf32>
    %300 = vector.broadcast %292 : vector<8x1xf32> to vector<8x32xf32>
    %301 = arith.subf %288, %300 : vector<8x32xf32>
    %cst_152 = arith.constant 9.99999974E-6 : f32
    %302 = vector.broadcast %cst_152 : f32 to vector<8x1xf32>
    %303 = arith.addf %299, %302 : vector<8x1xf32>
    %304 = math.rsqrt %303 : vector<8x1xf32>
    %305 = vector.broadcast %304 : vector<8x1xf32> to vector<8x32xf32>
    %306 = arith.mulf %301, %305 : vector<8x32xf32>
    %307 = vector.broadcast %10 : vector<1x32xf32> to vector<8x32xf32>
    %308 = arith.mulf %306, %307 : vector<8x32xf32>
    %309 = vector.broadcast %11 : vector<1x32xf32> to vector<8x32xf32>
    %310 = arith.addf %308, %309 : vector<8x32xf32>
    %311 = vector.shape_cast %310 : vector<8x32xf32> to vector<1x8x32xf32>
    %c0_153 = arith.constant 0 : index
    %c0_154 = arith.constant 0 : index
    %c0_155 = arith.constant 0 : index
    %312 = vector.load %arg13[%c0_153, %c0_154, %c0_155] : memref<1x8x32xf32, #tpu.memory_space<vmem>>, vector<1x8x32xf32>
    tpu.vector_store %arg13[%c0_153, %c0_154, %c0_155], %311 {strides = array<i32>} : memref<1x8x32xf32, #tpu.memory_space<vmem>>, vector<1x8x32xf32>,
    return
  }
  func.func @transform_0(%arg0: i32) -> (i32, i32, i32) {
    %c0_i32 = arith.constant 0 : i32
    %c0_i32_0 = arith.constant 0 : i32
    %c0_i32_1 = arith.constant 0 : i32
    return %arg0, %c0_i32, %c0_i32_0 : i32, i32, i32
  }
  func.func @transform_1(%arg0: i32) -> (i32, i32, i32) {
    %c0_i32 = arith.constant 0 : i32
    %c0_i32_0 = arith.constant 0 : i32
    %c0_i32_1 = arith.constant 0 : i32
    return %arg0, %c0_i32, %c0_i32_0 : i32, i32, i32
  }
  func.func @transform_2(%arg0: i32) -> (i32, i32, i32, i32) {
    %c0_i32 = arith.constant 0 : i32
    %c0_i32_0 = arith.constant 0 : i32
    %c0_i32_1 = arith.constant 0 : i32
    %c0_i32_2 = arith.constant 0 : i32
    return %arg0, %c0_i32, %c0_i32_0, %c0_i32_1 : i32, i32, i32, i32
  }
  func.func @transform_3(%arg0: i32) -> (i32, i32, i32) {
    %c0_i32 = arith.constant 0 : i32
    %c0_i32_0 = arith.constant 0 : i32
    %c0_i32_1 = arith.constant 0 : i32
    %c0_i32_2 = arith.constant 0 : i32
    return %c0_i32, %c0_i32_0, %c0_i32_1 : i32, i32, i32
  }
  func.func @transform_4(%arg0: i32) -> (i32, i32, i32) {
    %c0_i32 = arith.constant 0 : i32
    %c0_i32_0 = arith.constant 0 : i32
    %c0_i32_1 = arith.constant 0 : i32
    %c0_i32_2 = arith.constant 0 : i32
    return %c0_i32, %c0_i32_0, %c0_i32_1 : i32, i32, i32
  }
  func.func @transform_5(%arg0: i32) -> (i32, i32, i32) {
    %c0_i32 = arith.constant 0 : i32
    %c0_i32_0 = arith.constant 0 : i32
    %c0_i32_1 = arith.constant 0 : i32
    %c0_i32_2 = arith.constant 0 : i32
    return %c0_i32, %c0_i32_0, %c0_i32_1 : i32, i32, i32
  }
  func.func @transform_6(%arg0: i32) -> (i32, i32, i32) {
    %c0_i32 = arith.constant 0 : i32
    %c0_i32_0 = arith.constant 0 : i32
    %c0_i32_1 = arith.constant 0 : i32
    %c0_i32_2 = arith.constant 0 : i32
    return %c0_i32, %c0_i32_0, %c0_i32_1 : i32, i32, i32
  }
  func.func @transform_7(%arg0: i32) -> (i32, i32) {
    %c0_i32 = arith.constant 0 : i32
    %c0_i32_0 = arith.constant 0 : i32
    %c0_i32_1 = arith.constant 0 : i32
    return %c0_i32, %c0_i32_0 : i32, i32
  }
  func.func @transform_8(%arg0: i32) -> (i32, i32) {
    %c0_i32 = arith.constant 0 : i32
    %c0_i32_0 = arith.constant 0 : i32
    %c0_i32_1 = arith.constant 0 : i32
    return %c0_i32, %c0_i32_0 : i32, i32
  }
  func.func @transform_9(%arg0: i32) -> (i32, i32) {
    %c0_i32 = arith.constant 0 : i32
    %c0_i32_0 = arith.constant 0 : i32
    %c0_i32_1 = arith.constant 0 : i32
    return %c0_i32, %c0_i32_0 : i32, i32
  }
  func.func @transform_10(%arg0: i32) -> (i32, i32) {
    %c0_i32 = arith.constant 0 : i32
    %c0_i32_0 = arith.constant 0 : i32
    %c0_i32_1 = arith.constant 0 : i32
    return %c0_i32, %c0_i32_0 : i32, i32
  }
  func.func @transform_11(%arg0: i32) -> (i32, i32) {
    %c0_i32 = arith.constant 0 : i32
    %c0_i32_0 = arith.constant 0 : i32
    %c0_i32_1 = arith.constant 0 : i32
    return %c0_i32, %c0_i32_0 : i32, i32
  }
  func.func @transform_12(%arg0: i32) -> (i32, i32, i32) {
    %c0_i32 = arith.constant 0 : i32
    %c0_i32_0 = arith.constant 0 : i32
    %c0_i32_1 = arith.constant 0 : i32
    return %arg0, %c0_i32, %c0_i32_0 : i32, i32, i32
  }
}

module attributes {stable_mosaic.version = 11 : i64} {
  func.func @_layer_kernel(%arg0: i32, %arg1: memref<1x8x32xf32, #tpu.memory_space<vmem>>, %arg2: memref<1x8x32xf32, #tpu.memory_space<vmem>>, %arg3: memref<1x4x8x16xbf16, #tpu.memory_space<vmem>>, %arg4: memref<4x32x8xbf16, #tpu.memory_space<vmem>>, %arg5: memref<4x32x8xbf16, #tpu.memory_space<vmem>>, %arg6: memref<4x32x8xbf16, #tpu.memory_space<vmem>>, %arg7: memref<4x8x32xbf16, #tpu.memory_space<vmem>>, %arg8: memref<32x64xbf16, #tpu.memory_space<vmem>>, %arg9: memref<64x32xbf16, #tpu.memory_space<vmem>>, %arg10: memref<12x8xf32, #tpu.memory_space<vmem>>, %arg11: memref<6x32xf32, #tpu.memory_space<vmem>>, %arg12: memref<1x64xf32, #tpu.memory_space<vmem>>, %arg13: memref<1x8x32xf32, #tpu.memory_space<vmem>>) attributes {dimension_semantics = [#tpu.dimension_semantics<parallel>], iteration_bounds = array<i64: 2>, scalar_prefetch = 0 : i64, scratch_operands = 0 : i64, tpu.core_type = #tpu.core_type<tc>, window_params = [{transform_indices = @transform_0, window_bounds = array<i64: 1, 8, 32>}, {transform_indices = @transform_1, window_bounds = array<i64: 1, 8, 32>}, {transform_indices = @transform_2, window_bounds = array<i64: 1, 4, 8, 16>}, {pipeline_mode = #tpu.pipeline_mode<synchronous>, transform_indices = @transform_3, window_bounds = array<i64: 4, 32, 8>}, {pipeline_mode = #tpu.pipeline_mode<synchronous>, transform_indices = @transform_4, window_bounds = array<i64: 4, 32, 8>}, {pipeline_mode = #tpu.pipeline_mode<synchronous>, transform_indices = @transform_5, window_bounds = array<i64: 4, 32, 8>}, {pipeline_mode = #tpu.pipeline_mode<synchronous>, transform_indices = @transform_6, window_bounds = array<i64: 4, 8, 32>}, {pipeline_mode = #tpu.pipeline_mode<synchronous>, transform_indices = @transform_7, window_bounds = array<i64: 32, 64>}, {pipeline_mode = #tpu.pipeline_mode<synchronous>, transform_indices = @transform_8, window_bounds = array<i64: 64, 32>}, {pipeline_mode = #tpu.pipeline_mode<synchronous>, transform_indices = @transform_9, window_bounds = array<i64: 12, 8>}, {pipeline_mode = #tpu.pipeline_mode<synchronous>, transform_indices = @transform_10, window_bounds = array<i64: 6, 32>}, {pipeline_mode = #tpu.pipeline_mode<synchronous>, transform_indices = @transform_11, window_bounds = array<i64: 1, 64>}, {transform_indices = @transform_12, window_bounds = array<i64: 1, 8, 32>}]} {
    %c0 = arith.constant 0 : index
    %c0_0 = arith.constant 0 : index
    %c0_1 = arith.constant 0 : index
    %0 = vector.load %arg1[%c0, %c0_0, %c0_1] : memref<1x8x32xf32, #tpu.memory_space<vmem>>, vector<1x8x32xf32>
    %1 = arith.truncf %0 : vector<1x8x32xf32> to vector<1x8x32xbf16>
    %c0_2 = arith.constant 0 : index
    %c0_3 = arith.constant 0 : index
    %c0_4 = arith.constant 0 : index
    %2 = vector.load %arg2[%c0_2, %c0_3, %c0_4] : memref<1x8x32xf32, #tpu.memory_space<vmem>>, vector<1x8x32xf32>
    %3 = arith.truncf %2 : vector<1x8x32xf32> to vector<1x8x32xbf16>
    %4 = vector.shape_cast %1 : vector<1x8x32xbf16> to vector<8x32xbf16>
    %5 = vector.shape_cast %3 : vector<1x8x32xbf16> to vector<8x32xbf16>
    %c0_5 = arith.constant 0 : index
    %c0_6 = arith.constant 0 : index
    %6 = vector.load %arg11[%c0_5, %c0_6] : memref<6x32xf32, #tpu.memory_space<vmem>>, vector<1x32xf32>
    %c1 = arith.constant 1 : index
    %c0_7 = arith.constant 0 : index
    %7 = vector.load %arg11[%c1, %c0_7] : memref<6x32xf32, #tpu.memory_space<vmem>>, vector<1x32xf32>
    %c2 = arith.constant 2 : index
    %c0_8 = arith.constant 0 : index
    %8 = vector.load %arg11[%c2, %c0_8] : memref<6x32xf32, #tpu.memory_space<vmem>>, vector<1x32xf32>
    %c3 = arith.constant 3 : index
    %c0_9 = arith.constant 0 : index
    %9 = vector.load %arg11[%c3, %c0_9] : memref<6x32xf32, #tpu.memory_space<vmem>>, vector<1x32xf32>
    %c4 = arith.constant 4 : index
    %c0_10 = arith.constant 0 : index
    %10 = vector.load %arg11[%c4, %c0_10] : memref<6x32xf32, #tpu.memory_space<vmem>>, vector<1x32xf32>
    %c5 = arith.constant 5 : index
    %c0_11 = arith.constant 0 : index
    %11 = vector.load %arg11[%c5, %c0_11] : memref<6x32xf32, #tpu.memory_space<vmem>>, vector<1x32xf32>
    %cst = arith.constant 0.000000e+00 : f32
    %12 = vector.broadcast %cst : f32 to vector<8x32xf32>
    %c0_12 = arith.constant 0 : index
    %c0_13 = arith.constant 0 : index
    %c0_14 = arith.constant 0 : index
    %13 = vector.load %arg4[%c0_12, %c0_13, %c0_14] : memref<4x32x8xbf16, #tpu.memory_space<vmem>>, vector<1x32x8xbf16>
    %14 = vector.shape_cast %13 : vector<1x32x8xbf16> to vector<32x8xbf16>
    %c0_15 = arith.constant 0 : index
    %c0_16 = arith.constant 0 : index
    %c0_17 = arith.constant 0 : index
    %15 = vector.load %arg5[%c0_15, %c0_16, %c0_17] : memref<4x32x8xbf16, #tpu.memory_space<vmem>>, vector<1x32x8xbf16>
    %16 = vector.shape_cast %15 : vector<1x32x8xbf16> to vector<32x8xbf16>
    %c0_18 = arith.constant 0 : index
    %c0_19 = arith.constant 0 : index
    %c0_20 = arith.constant 0 : index
    %17 = vector.load %arg6[%c0_18, %c0_19, %c0_20] : memref<4x32x8xbf16, #tpu.memory_space<vmem>>, vector<1x32x8xbf16>
    %18 = vector.shape_cast %17 : vector<1x32x8xbf16> to vector<32x8xbf16>
    %c0_21 = arith.constant 0 : index
    %c0_22 = arith.constant 0 : index
    %19 = vector.load %arg10[%c0_21, %c0_22] : memref<12x8xf32, #tpu.memory_space<vmem>>, vector<1x8xf32>
    %c4_23 = arith.constant 4 : index
    %c0_24 = arith.constant 0 : index
    %20 = vector.load %arg10[%c4_23, %c0_24] : memref<12x8xf32, #tpu.memory_space<vmem>>, vector<1x8xf32>
    %c8 = arith.constant 8 : index
    %c0_25 = arith.constant 0 : index
    %21 = vector.load %arg10[%c8, %c0_25] : memref<12x8xf32, #tpu.memory_space<vmem>>, vector<1x8xf32>
    %cst_26 = arith.constant dense<0.000000e+00> : vector<8x8xf32>
    %22 = tpu.matmul %4, %14, %cst_26 {dimension_numbers = #tpu.dot_dimension_numbers<[1], [0], [0], [1], [0, 0, 1, 1], [], []>} : vector<8x32xbf16>, vector<32x8xbf16>, vector<8x8xf32> -> vector<8x8xf32>
    %23 = vector.broadcast %19 : vector<1x8xf32> to vector<8x8xf32>
    %24 = arith.addf %22, %23 : vector<8x8xf32>
    %cst_27 = arith.constant dense<0.000000e+00> : vector<8x8xf32>
    %25 = tpu.matmul %5, %16, %cst_27 {dimension_numbers = #tpu.dot_dimension_numbers<[1], [0], [0], [1], [0, 0, 1, 1], [], []>} : vector<8x32xbf16>, vector<32x8xbf16>, vector<8x8xf32> -> vector<8x8xf32>
    %26 = vector.broadcast %20 : vector<1x8xf32> to vector<8x8xf32>
    %27 = arith.addf %25, %26 : vector<8x8xf32>
    %cst_28 = arith.constant dense<0.000000e+00> : vector<8x8xf32>
    %28 = tpu.matmul %4, %16, %cst_28 {dimension_numbers = #tpu.dot_dimension_numbers<[1], [0], [0], [1], [0, 0, 1, 1], [], []>} : vector<8x32xbf16>, vector<32x8xbf16>, vector<8x8xf32> -> vector<8x8xf32>
    %29 = vector.broadcast %20 : vector<1x8xf32> to vector<8x8xf32>
    %30 = arith.addf %28, %29 : vector<8x8xf32>
    %cst_29 = arith.constant dense<0.000000e+00> : vector<8x8xf32>
    %31 = tpu.matmul %5, %18, %cst_29 {dimension_numbers = #tpu.dot_dimension_numbers<[1], [0], [0], [1], [0, 0, 1, 1], [], []>} : vector<8x32xbf16>, vector<32x8xbf16>, vector<8x8xf32> -> vector<8x8xf32>
    %32 = vector.broadcast %21 : vector<1x8xf32> to vector<8x8xf32>
    %33 = arith.addf %31, %32 : vector<8x8xf32>
    %cst_30 = arith.constant dense<0.000000e+00> : vector<8x8xf32>
    %34 = tpu.matmul %4, %18, %cst_30 {dimension_numbers = #tpu.dot_dimension_numbers<[1], [0], [0], [1], [0, 0, 1, 1], [], []>} : vector<8x32xbf16>, vector<32x8xbf16>, vector<8x8xf32> -> vector<8x8xf32>
    %35 = vector.broadcast %21 : vector<1x8xf32> to vector<8x8xf32>
    %36 = arith.addf %34, %35 : vector<8x8xf32>
    %37 = arith.truncf %24 : vector<8x8xf32> to vector<8x8xbf16>
    %38 = vector.shape_cast %37 : vector<8x8xbf16> to vector<1x8x8xbf16>
    %39 = arith.truncf %27 : vector<8x8xf32> to vector<8x8xbf16>
    %40 = vector.shape_cast %39 : vector<8x8xbf16> to vector<1x8x8xbf16>
    %41 = arith.truncf %30 : vector<8x8xf32> to vector<8x8xbf16>
    %42 = vector.shape_cast %41 : vector<8x8xbf16> to vector<1x8x8xbf16>
    %43 = tpu.concatenate %40, %42 in 1 : vector<1x8x8xbf16>, vector<1x8x8xbf16> -> vector<1x16x8xbf16>
    %44 = arith.truncf %33 : vector<8x8xf32> to vector<8x8xbf16>
    %45 = vector.shape_cast %44 : vector<8x8xbf16> to vector<1x8x8xbf16>
    %46 = arith.truncf %36 : vector<8x8xf32> to vector<8x8xbf16>
    %47 = vector.shape_cast %46 : vector<8x8xbf16> to vector<1x8x8xbf16>
    %48 = tpu.concatenate %45, %47 in 1 : vector<1x8x8xbf16>, vector<1x8x8xbf16> -> vector<1x16x8xbf16>
    "tpu.trace_start"() <{level = 10 : i32, message = "bsd,bkd->bsk"}> : () -> ()
    %cst_31 = arith.constant dense<0.000000e+00> : vector<1x8x16xf32>
    %49 = tpu.matmul %38, %43, %cst_31 {dimension_numbers = #tpu.dot_dimension_numbers<[2], [2], [1], [1], [0, 0, 0, 1, 1, 1], [0], [0]>} : vector<1x8x8xbf16>, vector<1x16x8xbf16>, vector<1x8x16xf32> -> vector<1x8x16xf32>
    "tpu.trace_stop"() : () -> ()
    %c0_32 = arith.constant 0 : index
    %c0_33 = arith.constant 0 : index
    %c0_34 = arith.constant 0 : index
    %c0_35 = arith.constant 0 : index
    %50 = vector.load %arg3[%c0_32, %c0_33, %c0_34, %c0_35] : memref<1x4x8x16xbf16, #tpu.memory_space<vmem>>, vector<1x1x8x16xbf16>
    %51 = vector.shape_cast %50 : vector<1x1x8x16xbf16> to vector<1x8x16xbf16>
    %52 = arith.extf %51 : vector<1x8x16xbf16> to vector<1x8x16xf32>
    %53 = arith.addf %49, %52 : vector<1x8x16xf32>
    %cst_36 = arith.constant dense<0xFF800000> : vector<1x8xf32>
    %54 = vector.multi_reduction <maximumf>, %53, %cst_36 [2] : vector<1x8x16xf32> to vector<1x8xf32>
    %55 = vector.shape_cast %54 : vector<1x8xf32> to vector<1x8x1xf32>
    %56 = vector.broadcast %55 : vector<1x8x1xf32> to vector<1x8x16xf32>
    %57 = arith.subf %53, %56 : vector<1x8x16xf32>
    %58 = math.exp %57 : vector<1x8x16xf32>
    %cst_37 = arith.constant dense<0.000000e+00> : vector<1x8xf32>
    %59 = vector.multi_reduction <add>, %58, %cst_37 [2] : vector<1x8x16xf32> to vector<1x8xf32>
    %60 = vector.shape_cast %59 : vector<1x8xf32> to vector<1x8x1xf32>
    %61 = tpu.reciprocal %60 {approx = true} : vector<1x8x1xf32> -> vector<1x8x1xf32>
    %62 = vector.broadcast %61 : vector<1x8x1xf32> to vector<1x8x16xf32>
    %63 = arith.mulf %58, %62 : vector<1x8x16xf32>
    %64 = arith.truncf %63 : vector<1x8x16xf32> to vector<1x8x16xbf16>
    "tpu.trace_start"() <{level = 10 : i32, message = "bsk,bkd->bsd"}> : () -> ()
    %cst_38 = arith.constant dense<0.000000e+00> : vector<1x8x8xf32>
    %65 = tpu.matmul %64, %48, %cst_38 {dimension_numbers = #tpu.dot_dimension_numbers<[2], [1], [1], [2], [0, 0, 0, 1, 1, 2], [0], [0]>} : vector<1x8x16xbf16>, vector<1x16x8xbf16>, vector<1x8x8xf32> -> vector<1x8x8xf32>
    "tpu.trace_stop"() : () -> ()
    %66 = vector.shape_cast %65 : vector<1x8x8xf32> to vector<8x8xf32>
    %67 = arith.truncf %66 : vector<8x8xf32> to vector<8x8xbf16>
    %c0_39 = arith.constant 0 : index
    %c0_40 = arith.constant 0 : index
    %c0_41 = arith.constant 0 : index
    %68 = vector.load %arg7[%c0_39, %c0_40, %c0_41] : memref<4x8x32xbf16, #tpu.memory_space<vmem>>, vector<1x8x32xbf16>
    %69 = vector.shape_cast %68 : vector<1x8x32xbf16> to vector<8x32xbf16>
    %cst_42 = arith.constant dense<0.000000e+00> : vector<8x32xf32>
    %70 = tpu.matmul %67, %69, %cst_42 {dimension_numbers = #tpu.dot_dimension_numbers<[1], [0], [0], [1], [0, 0, 1, 1], [], []>} : vector<8x8xbf16>, vector<8x32xbf16>, vector<8x32xf32> -> vector<8x32xf32>
    %71 = arith.addf %12, %70 : vector<8x32xf32>
    %c1_43 = arith.constant 1 : index
    %c0_44 = arith.constant 0 : index
    %c0_45 = arith.constant 0 : index
    %72 = vector.load %arg4[%c1_43, %c0_44, %c0_45] : memref<4x32x8xbf16, #tpu.memory_space<vmem>>, vector<1x32x8xbf16>
    %73 = vector.shape_cast %72 : vector<1x32x8xbf16> to vector<32x8xbf16>
    %c1_46 = arith.constant 1 : index
    %c0_47 = arith.constant 0 : index
    %c0_48 = arith.constant 0 : index
    %74 = vector.load %arg5[%c1_46, %c0_47, %c0_48] : memref<4x32x8xbf16, #tpu.memory_space<vmem>>, vector<1x32x8xbf16>
    %75 = vector.shape_cast %74 : vector<1x32x8xbf16> to vector<32x8xbf16>
    %c1_49 = arith.constant 1 : index
    %c0_50 = arith.constant 0 : index
    %c0_51 = arith.constant 0 : index
    %76 = vector.load %arg6[%c1_49, %c0_50, %c0_51] : memref<4x32x8xbf16, #tpu.memory_space<vmem>>, vector<1x32x8xbf16>
    %77 = vector.shape_cast %76 : vector<1x32x8xbf16> to vector<32x8xbf16>
    %c1_52 = arith.constant 1 : index
    %c0_53 = arith.constant 0 : index
    %78 = vector.load %arg10[%c1_52, %c0_53] : memref<12x8xf32, #tpu.memory_space<vmem>>, vector<1x8xf32>
    %c5_54 = arith.constant 5 : index
    %c0_55 = arith.constant 0 : index
    %79 = vector.load %arg10[%c5_54, %c0_55] : memref<12x8xf32, #tpu.memory_space<vmem>>, vector<1x8xf32>
    %c9 = arith.constant 9 : index
    %c0_56 = arith.constant 0 : index
    %80 = vector.load %arg10[%c9, %c0_56] : memref<12x8xf32, #tpu.memory_space<vmem>>, vector<1x8xf32>
    %cst_57 = arith.constant dense<0.000000e+00> : vector<8x8xf32>
    %81 = tpu.matmul %4, %73, %cst_57 {dimension_numbers = #tpu.dot_dimension_numbers<[1], [0], [0], [1], [0, 0, 1, 1], [], []>} : vector<8x32xbf16>, vector<32x8xbf16>, vector<8x8xf32> -> vector<8x8xf32>
    %82 = vector.broadcast %78 : vector<1x8xf32> to vector<8x8xf32>
    %83 = arith.addf %81, %82 : vector<8x8xf32>
    %cst_58 = arith.constant dense<0.000000e+00> : vector<8x8xf32>
    %84 = tpu.matmul %5, %75, %cst_58 {dimension_numbers = #tpu.dot_dimension_numbers<[1], [0], [0], [1], [0, 0, 1, 1], [], []>} : vector<8x32xbf16>, vector<32x8xbf16>, vector<8x8xf32> -> vector<8x8xf32>
    %85 = vector.broadcast %79 : vector<1x8xf32> to vector<8x8xf32>
    %86 = arith.addf %84, %85 : vector<8x8xf32>
    %cst_59 = arith.constant dense<0.000000e+00> : vector<8x8xf32>
    %87 = tpu.matmul %4, %75, %cst_59 {dimension_numbers = #tpu.dot_dimension_numbers<[1], [0], [0], [1], [0, 0, 1, 1], [], []>} : vector<8x32xbf16>, vector<32x8xbf16>, vector<8x8xf32> -> vector<8x8xf32>
    %88 = vector.broadcast %79 : vector<1x8xf32> to vector<8x8xf32>
    %89 = arith.addf %87, %88 : vector<8x8xf32>
    %cst_60 = arith.constant dense<0.000000e+00> : vector<8x8xf32>
    %90 = tpu.matmul %5, %77, %cst_60 {dimension_numbers = #tpu.dot_dimension_numbers<[1], [0], [0], [1], [0, 0, 1, 1], [], []>} : vector<8x32xbf16>, vector<32x8xbf16>, vector<8x8xf32> -> vector<8x8xf32>
    %91 = vector.broadcast %80 : vector<1x8xf32> to vector<8x8xf32>
    %92 = arith.addf %90, %91 : vector<8x8xf32>
    %cst_61 = arith.constant dense<0.000000e+00> : vector<8x8xf32>
    %93 = tpu.matmul %4, %77, %cst_61 {dimension_numbers = #tpu.dot_dimension_numbers<[1], [0], [0], [1], [0, 0, 1, 1], [], []>} : vector<8x32xbf16>, vector<32x8xbf16>, vector<8x8xf32> -> vector<8x8xf32>
    %94 = vector.broadcast %80 : vector<1x8xf32> to vector<8x8xf32>
    %95 = arith.addf %93, %94 : vector<8x8xf32>
    %96 = arith.truncf %83 : vector<8x8xf32> to vector<8x8xbf16>
    %97 = vector.shape_cast %96 : vector<8x8xbf16> to vector<1x8x8xbf16>
    %98 = arith.truncf %86 : vector<8x8xf32> to vector<8x8xbf16>
    %99 = vector.shape_cast %98 : vector<8x8xbf16> to vector<1x8x8xbf16>
    %100 = arith.truncf %89 : vector<8x8xf32> to vector<8x8xbf16>
    %101 = vector.shape_cast %100 : vector<8x8xbf16> to vector<1x8x8xbf16>
    %102 = tpu.concatenate %99, %101 in 1 : vector<1x8x8xbf16>, vector<1x8x8xbf16> -> vector<1x16x8xbf16>
    %103 = arith.truncf %92 : vector<8x8xf32> to vector<8x8xbf16>
    %104 = vector.shape_cast %103 : vector<8x8xbf16> to vector<1x8x8xbf16>
    %105 = arith.truncf %95 : vector<8x8xf32> to vector<8x8xbf16>
    %106 = vector.shape_cast %105 : vector<8x8xbf16> to vector<1x8x8xbf16>
    %107 = tpu.concatenate %104, %106 in 1 : vector<1x8x8xbf16>, vector<1x8x8xbf16> -> vector<1x16x8xbf16>
    "tpu.trace_start"() <{level = 10 : i32, message = "bsd,bkd->bsk"}> : () -> ()
    %cst_62 = arith.constant dense<0.000000e+00> : vector<1x8x16xf32>
    %108 = tpu.matmul %97, %102, %cst_62 {dimension_numbers = #tpu.dot_dimension_numbers<[2], [2], [1], [1], [0, 0, 0, 1, 1, 1], [0], [0]>} : vector<1x8x8xbf16>, vector<1x16x8xbf16>, vector<1x8x16xf32> -> vector<1x8x16xf32>
    "tpu.trace_stop"() : () -> ()
    %c0_63 = arith.constant 0 : index
    %c1_64 = arith.constant 1 : index
    %c0_65 = arith.constant 0 : index
    %c0_66 = arith.constant 0 : index
    %109 = vector.load %arg3[%c0_63, %c1_64, %c0_65, %c0_66] : memref<1x4x8x16xbf16, #tpu.memory_space<vmem>>, vector<1x1x8x16xbf16>
    %110 = vector.shape_cast %109 : vector<1x1x8x16xbf16> to vector<1x8x16xbf16>
    %111 = arith.extf %110 : vector<1x8x16xbf16> to vector<1x8x16xf32>
    %112 = arith.addf %108, %111 : vector<1x8x16xf32>
    %cst_67 = arith.constant dense<0xFF800000> : vector<1x8xf32>
    %113 = vector.multi_reduction <maximumf>, %112, %cst_67 [2] : vector<1x8x16xf32> to vector<1x8xf32>
    %114 = vector.shape_cast %113 : vector<1x8xf32> to vector<1x8x1xf32>
    %115 = vector.broadcast %114 : vector<1x8x1xf32> to vector<1x8x16xf32>
    %116 = arith.subf %112, %115 : vector<1x8x16xf32>
    %117 = math.exp %116 : vector<1x8x16xf32>
    %cst_68 = arith.constant dense<0.000000e+00> : vector<1x8xf32>
    %118 = vector.multi_reduction <add>, %117, %cst_68 [2] : vector<1x8x16xf32> to vector<1x8xf32>
    %119 = vector.shape_cast %118 : vector<1x8xf32> to vector<1x8x1xf32>
    %120 = tpu.reciprocal %119 {approx = true} : vector<1x8x1xf32> -> vector<1x8x1xf32>
    %121 = vector.broadcast %120 : vector<1x8x1xf32> to vector<1x8x16xf32>
    %122 = arith.mulf %117, %121 : vector<1x8x16xf32>
    %123 = arith.truncf %122 : vector<1x8x16xf32> to vector<1x8x16xbf16>
    "tpu.trace_start"() <{level = 10 : i32, message = "bsk,bkd->bsd"}> : () -> ()
    %cst_69 = arith.constant dense<0.000000e+00> : vector<1x8x8xf32>
    %124 = tpu.matmul %123, %107, %cst_69 {dimension_numbers = #tpu.dot_dimension_numbers<[2], [1], [1], [2], [0, 0, 0, 1, 1, 2], [0], [0]>} : vector<1x8x16xbf16>, vector<1x16x8xbf16>, vector<1x8x8xf32> -> vector<1x8x8xf32>
    "tpu.trace_stop"() : () -> ()
    %125 = vector.shape_cast %124 : vector<1x8x8xf32> to vector<8x8xf32>
    %126 = arith.truncf %125 : vector<8x8xf32> to vector<8x8xbf16>
    %c1_70 = arith.constant 1 : index
    %c0_71 = arith.constant 0 : index
    %c0_72 = arith.constant 0 : index
    %127 = vector.load %arg7[%c1_70, %c0_71, %c0_72] : memref<4x8x32xbf16, #tpu.memory_space<vmem>>, vector<1x8x32xbf16>
    %128 = vector.shape_cast %127 : vector<1x8x32xbf16> to vector<8x32xbf16>
    %cst_73 = arith.constant dense<0.000000e+00> : vector<8x32xf32>
    %129 = tpu.matmul %126, %128, %cst_73 {dimension_numbers = #tpu.dot_dimension_numbers<[1], [0], [0], [1], [0, 0, 1, 1], [], []>} : vector<8x8xbf16>, vector<8x32xbf16>, vector<8x32xf32> -> vector<8x32xf32>
    %130 = arith.addf %71, %129 : vector<8x32xf32>
    %c2_74 = arith.constant 2 : index
    %c0_75 = arith.constant 0 : index
    %c0_76 = arith.constant 0 : index
    %131 = vector.load %arg4[%c2_74, %c0_75, %c0_76] : memref<4x32x8xbf16, #tpu.memory_space<vmem>>, vector<1x32x8xbf16>
    %132 = vector.shape_cast %131 : vector<1x32x8xbf16> to vector<32x8xbf16>
    %c2_77 = arith.constant 2 : index
    %c0_78 = arith.constant 0 : index
    %c0_79 = arith.constant 0 : index
    %133 = vector.load %arg5[%c2_77, %c0_78, %c0_79] : memref<4x32x8xbf16, #tpu.memory_space<vmem>>, vector<1x32x8xbf16>
    %134 = vector.shape_cast %133 : vector<1x32x8xbf16> to vector<32x8xbf16>
    %c2_80 = arith.constant 2 : index
    %c0_81 = arith.constant 0 : index
    %c0_82 = arith.constant 0 : index
    %135 = vector.load %arg6[%c2_80, %c0_81, %c0_82] : memref<4x32x8xbf16, #tpu.memory_space<vmem>>, vector<1x32x8xbf16>
    %136 = vector.shape_cast %135 : vector<1x32x8xbf16> to vector<32x8xbf16>
    %c2_83 = arith.constant 2 : index
    %c0_84 = arith.constant 0 : index
    %137 = vector.load %arg10[%c2_83, %c0_84] : memref<12x8xf32, #tpu.memory_space<vmem>>, vector<1x8xf32>
    %c6 = arith.constant 6 : index
    %c0_85 = arith.constant 0 : index
    %138 = vector.load %arg10[%c6, %c0_85] : memref<12x8xf32, #tpu.memory_space<vmem>>, vector<1x8xf32>
    %c10 = arith.constant 10 : index
    %c0_86 = arith.constant 0 : index
    %139 = vector.load %arg10[%c10, %c0_86] : memref<12x8xf32, #tpu.memory_space<vmem>>, vector<1x8xf32>
    %cst_87 = arith.constant dense<0.000000e+00> : vector<8x8xf32>
    %140 = tpu.matmul %4, %132, %cst_87 {dimension_numbers = #tpu.dot_dimension_numbers<[1], [0], [0], [1], [0, 0, 1, 1], [], []>} : vector<8x32xbf16>, vector<32x8xbf16>, vector<8x8xf32> -> vector<8x8xf32>
    %141 = vector.broadcast %137 : vector<1x8xf32> to vector<8x8xf32>
    %142 = arith.addf %140, %141 : vector<8x8xf32>
    %cst_88 = arith.constant dense<0.000000e+00> : vector<8x8xf32>
    %143 = tpu.matmul %5, %134, %cst_88 {dimension_numbers = #tpu.dot_dimension_numbers<[1], [0], [0], [1], [0, 0, 1, 1], [], []>} : vector<8x32xbf16>, vector<32x8xbf16>, vector<8x8xf32> -> vector<8x8xf32>
    %144 = vector.broadcast %138 : vector<1x8xf32> to vector<8x8xf32>
    %145 = arith.addf %143, %144 : vector<8x8xf32>
    %cst_89 = arith.constant dense<0.000000e+00> : vector<8x8xf32>
    %146 = tpu.matmul %4, %134, %cst_89 {dimension_numbers = #tpu.dot_dimension_numbers<[1], [0], [0], [1], [0, 0, 1, 1], [], []>} : vector<8x32xbf16>, vector<32x8xbf16>, vector<8x8xf32> -> vector<8x8xf32>
    %147 = vector.broadcast %138 : vector<1x8xf32> to vector<8x8xf32>
    %148 = arith.addf %146, %147 : vector<8x8xf32>
    %cst_90 = arith.constant dense<0.000000e+00> : vector<8x8xf32>
    %149 = tpu.matmul %5, %136, %cst_90 {dimension_numbers = #tpu.dot_dimension_numbers<[1], [0], [0], [1], [0, 0, 1, 1], [], []>} : vector<8x32xbf16>, vector<32x8xbf16>, vector<8x8xf32> -> vector<8x8xf32>
    %150 = vector.broadcast %139 : vector<1x8xf32> to vector<8x8xf32>
    %151 = arith.addf %149, %150 : vector<8x8xf32>
    %cst_91 = arith.constant dense<0.000000e+00> : vector<8x8xf32>
    %152 = tpu.matmul %4, %136, %cst_91 {dimension_numbers = #tpu.dot_dimension_numbers<[1], [0], [0], [1], [0, 0, 1, 1], [], []>} : vector<8x32xbf16>, vector<32x8xbf16>, vector<8x8xf32> -> vector<8x8xf32>
    %153 = vector.broadcast %139 : vector<1x8xf32> to vector<8x8xf32>
    %154 = arith.addf %152, %153 : vector<8x8xf32>
    %155 = arith.truncf %142 : vector<8x8xf32> to vector<8x8xbf16>
    %156 = vector.shape_cast %155 : vector<8x8xbf16> to vector<1x8x8xbf16>
    %157 = arith.truncf %145 : vector<8x8xf32> to vector<8x8xbf16>
    %158 = vector.shape_cast %157 : vector<8x8xbf16> to vector<1x8x8xbf16>
    %159 = arith.truncf %148 : vector<8x8xf32> to vector<8x8xbf16>
    %160 = vector.shape_cast %159 : vector<8x8xbf16> to vector<1x8x8xbf16>
    %161 = tpu.concatenate %158, %160 in 1 : vector<1x8x8xbf16>, vector<1x8x8xbf16> -> vector<1x16x8xbf16>
    %162 = arith.truncf %151 : vector<8x8xf32> to vector<8x8xbf16>
    %163 = vector.shape_cast %162 : vector<8x8xbf16> to vector<1x8x8xbf16>
    %164 = arith.truncf %154 : vector<8x8xf32> to vector<8x8xbf16>
    %165 = vector.shape_cast %164 : vector<8x8xbf16> to vector<1x8x8xbf16>
    %166 = tpu.concatenate %163, %165 in 1 : vector<1x8x8xbf16>, vector<1x8x8xbf16> -> vector<1x16x8xbf16>
    "tpu.trace_start"() <{level = 10 : i32, message = "bsd,bkd->bsk"}> : () -> ()
    %cst_92 = arith.constant dense<0.000000e+00> : vector<1x8x16xf32>
    %167 = tpu.matmul %156, %161, %cst_92 {dimension_numbers = #tpu.dot_dimension_numbers<[2], [2], [1], [1], [0, 0, 0, 1, 1, 1], [0], [0]>} : vector<1x8x8xbf16>, vector<1x16x8xbf16>, vector<1x8x16xf32> -> vector<1x8x16xf32>
    "tpu.trace_stop"() : () -> ()
    %c0_93 = arith.constant 0 : index
    %c2_94 = arith.constant 2 : index
    %c0_95 = arith.constant 0 : index
    %c0_96 = arith.constant 0 : index
    %168 = vector.load %arg3[%c0_93, %c2_94, %c0_95, %c0_96] : memref<1x4x8x16xbf16, #tpu.memory_space<vmem>>, vector<1x1x8x16xbf16>
    %169 = vector.shape_cast %168 : vector<1x1x8x16xbf16> to vector<1x8x16xbf16>
    %170 = arith.extf %169 : vector<1x8x16xbf16> to vector<1x8x16xf32>
    %171 = arith.addf %167, %170 : vector<1x8x16xf32>
    %cst_97 = arith.constant dense<0xFF800000> : vector<1x8xf32>
    %172 = vector.multi_reduction <maximumf>, %171, %cst_97 [2] : vector<1x8x16xf32> to vector<1x8xf32>
    %173 = vector.shape_cast %172 : vector<1x8xf32> to vector<1x8x1xf32>
    %174 = vector.broadcast %173 : vector<1x8x1xf32> to vector<1x8x16xf32>
    %175 = arith.subf %171, %174 : vector<1x8x16xf32>
    %176 = math.exp %175 : vector<1x8x16xf32>
    %cst_98 = arith.constant dense<0.000000e+00> : vector<1x8xf32>
    %177 = vector.multi_reduction <add>, %176, %cst_98 [2] : vector<1x8x16xf32> to vector<1x8xf32>
    %178 = vector.shape_cast %177 : vector<1x8xf32> to vector<1x8x1xf32>
    %179 = tpu.reciprocal %178 {approx = true} : vector<1x8x1xf32> -> vector<1x8x1xf32>
    %180 = vector.broadcast %179 : vector<1x8x1xf32> to vector<1x8x16xf32>
    %181 = arith.mulf %176, %180 : vector<1x8x16xf32>
    %182 = arith.truncf %181 : vector<1x8x16xf32> to vector<1x8x16xbf16>
    "tpu.trace_start"() <{level = 10 : i32, message = "bsk,bkd->bsd"}> : () -> ()
    %cst_99 = arith.constant dense<0.000000e+00> : vector<1x8x8xf32>
    %183 = tpu.matmul %182, %166, %cst_99 {dimension_numbers = #tpu.dot_dimension_numbers<[2], [1], [1], [2], [0, 0, 0, 1, 1, 2], [0], [0]>} : vector<1x8x16xbf16>, vector<1x16x8xbf16>, vector<1x8x8xf32> -> vector<1x8x8xf32>
    "tpu.trace_stop"() : () -> ()
    %184 = vector.shape_cast %183 : vector<1x8x8xf32> to vector<8x8xf32>
    %185 = arith.truncf %184 : vector<8x8xf32> to vector<8x8xbf16>
    %c2_100 = arith.constant 2 : index
    %c0_101 = arith.constant 0 : index
    %c0_102 = arith.constant 0 : index
    %186 = vector.load %arg7[%c2_100, %c0_101, %c0_102] : memref<4x8x32xbf16, #tpu.memory_space<vmem>>, vector<1x8x32xbf16>
    %187 = vector.shape_cast %186 : vector<1x8x32xbf16> to vector<8x32xbf16>
    %cst_103 = arith.constant dense<0.000000e+00> : vector<8x32xf32>
    %188 = tpu.matmul %185, %187, %cst_103 {dimension_numbers = #tpu.dot_dimension_numbers<[1], [0], [0], [1], [0, 0, 1, 1], [], []>} : vector<8x8xbf16>, vector<8x32xbf16>, vector<8x32xf32> -> vector<8x32xf32>
    %189 = arith.addf %130, %188 : vector<8x32xf32>
    %c3_104 = arith.constant 3 : index
    %c0_105 = arith.constant 0 : index
    %c0_106 = arith.constant 0 : index
    %190 = vector.load %arg4[%c3_104, %c0_105, %c0_106] : memref<4x32x8xbf16, #tpu.memory_space<vmem>>, vector<1x32x8xbf16>
    %191 = vector.shape_cast %190 : vector<1x32x8xbf16> to vector<32x8xbf16>
    %c3_107 = arith.constant 3 : index
    %c0_108 = arith.constant 0 : index
    %c0_109 = arith.constant 0 : index
    %192 = vector.load %arg5[%c3_107, %c0_108, %c0_109] : memref<4x32x8xbf16, #tpu.memory_space<vmem>>, vector<1x32x8xbf16>
    %193 = vector.shape_cast %192 : vector<1x32x8xbf16> to vector<32x8xbf16>
    %c3_110 = arith.constant 3 : index
    %c0_111 = arith.constant 0 : index
    %c0_112 = arith.constant 0 : index
    %194 = vector.load %arg6[%c3_110, %c0_111, %c0_112] : memref<4x32x8xbf16, #tpu.memory_space<vmem>>, vector<1x32x8xbf16>
    %195 = vector.shape_cast %194 : vector<1x32x8xbf16> to vector<32x8xbf16>
    %c3_113 = arith.constant 3 : index
    %c0_114 = arith.constant 0 : index
    %196 = vector.load %arg10[%c3_113, %c0_114] : memref<12x8xf32, #tpu.memory_space<vmem>>, vector<1x8xf32>
    %c7 = arith.constant 7 : index
    %c0_115 = arith.constant 0 : index
    %197 = vector.load %arg10[%c7, %c0_115] : memref<12x8xf32, #tpu.memory_space<vmem>>, vector<1x8xf32>
    %c11 = arith.constant 11 : index
    %c0_116 = arith.constant 0 : index
    %198 = vector.load %arg10[%c11, %c0_116] : memref<12x8xf32, #tpu.memory_space<vmem>>, vector<1x8xf32>
    %cst_117 = arith.constant dense<0.000000e+00> : vector<8x8xf32>
    %199 = tpu.matmul %4, %191, %cst_117 {dimension_numbers = #tpu.dot_dimension_numbers<[1], [0], [0], [1], [0, 0, 1, 1], [], []>} : vector<8x32xbf16>, vector<32x8xbf16>, vector<8x8xf32> -> vector<8x8xf32>
    %200 = vector.broadcast %196 : vector<1x8xf32> to vector<8x8xf32>
    %201 = arith.addf %199, %200 : vector<8x8xf32>
    %cst_118 = arith.constant dense<0.000000e+00> : vector<8x8xf32>
    %202 = tpu.matmul %5, %193, %cst_118 {dimension_numbers = #tpu.dot_dimension_numbers<[1], [0], [0], [1], [0, 0, 1, 1], [], []>} : vector<8x32xbf16>, vector<32x8xbf16>, vector<8x8xf32> -> vector<8x8xf32>
    %203 = vector.broadcast %197 : vector<1x8xf32> to vector<8x8xf32>
    %204 = arith.addf %202, %203 : vector<8x8xf32>
    %cst_119 = arith.constant dense<0.000000e+00> : vector<8x8xf32>
    %205 = tpu.matmul %4, %193, %cst_119 {dimension_numbers = #tpu.dot_dimension_numbers<[1], [0], [0], [1], [0, 0, 1, 1], [], []>} : vector<8x32xbf16>, vector<32x8xbf16>, vector<8x8xf32> -> vector<8x8xf32>
    %206 = vector.broadcast %197 : vector<1x8xf32> to vector<8x8xf32>
    %207 = arith.addf %205, %206 : vector<8x8xf32>
    %cst_120 = arith.constant dense<0.000000e+00> : vector<8x8xf32>
    %208 = tpu.matmul %5, %195, %cst_120 {dimension_numbers = #tpu.dot_dimension_numbers<[1], [0], [0], [1], [0, 0, 1, 1], [], []>} : vector<8x32xbf16>, vector<32x8xbf16>, vector<8x8xf32> -> vector<8x8xf32>
    %209 = vector.broadcast %198 : vector<1x8xf32> to vector<8x8xf32>
    %210 = arith.addf %208, %209 : vector<8x8xf32>
    %cst_121 = arith.constant dense<0.000000e+00> : vector<8x8xf32>
    %211 = tpu.matmul %4, %195, %cst_121 {dimension_numbers = #tpu.dot_dimension_numbers<[1], [0], [0], [1], [0, 0, 1, 1], [], []>} : vector<8x32xbf16>, vector<32x8xbf16>, vector<8x8xf32> -> vector<8x8xf32>
    %212 = vector.broadcast %198 : vector<1x8xf32> to vector<8x8xf32>
    %213 = arith.addf %211, %212 : vector<8x8xf32>
    %214 = arith.truncf %201 : vector<8x8xf32> to vector<8x8xbf16>
    %215 = vector.shape_cast %214 : vector<8x8xbf16> to vector<1x8x8xbf16>
    %216 = arith.truncf %204 : vector<8x8xf32> to vector<8x8xbf16>
    %217 = vector.shape_cast %216 : vector<8x8xbf16> to vector<1x8x8xbf16>
    %218 = arith.truncf %207 : vector<8x8xf32> to vector<8x8xbf16>
    %219 = vector.shape_cast %218 : vector<8x8xbf16> to vector<1x8x8xbf16>
    %220 = tpu.concatenate %217, %219 in 1 : vector<1x8x8xbf16>, vector<1x8x8xbf16> -> vector<1x16x8xbf16>
    %221 = arith.truncf %210 : vector<8x8xf32> to vector<8x8xbf16>
    %222 = vector.shape_cast %221 : vector<8x8xbf16> to vector<1x8x8xbf16>
    %223 = arith.truncf %213 : vector<8x8xf32> to vector<8x8xbf16>
    %224 = vector.shape_cast %223 : vector<8x8xbf16> to vector<1x8x8xbf16>
    %225 = tpu.concatenate %222, %224 in 1 : vector<1x8x8xbf16>, vector<1x8x8xbf16> -> vector<1x16x8xbf16>
    "tpu.trace_start"() <{level = 10 : i32, message = "bsd,bkd->bsk"}> : () -> ()
    %cst_122 = arith.constant dense<0.000000e+00> : vector<1x8x16xf32>
    %226 = tpu.matmul %215, %220, %cst_122 {dimension_numbers = #tpu.dot_dimension_numbers<[2], [2], [1], [1], [0, 0, 0, 1, 1, 1], [0], [0]>} : vector<1x8x8xbf16>, vector<1x16x8xbf16>, vector<1x8x16xf32> -> vector<1x8x16xf32>
    "tpu.trace_stop"() : () -> ()
    %c0_123 = arith.constant 0 : index
    %c3_124 = arith.constant 3 : index
    %c0_125 = arith.constant 0 : index
    %c0_126 = arith.constant 0 : index
    %227 = vector.load %arg3[%c0_123, %c3_124, %c0_125, %c0_126] : memref<1x4x8x16xbf16, #tpu.memory_space<vmem>>, vector<1x1x8x16xbf16>
    %228 = vector.shape_cast %227 : vector<1x1x8x16xbf16> to vector<1x8x16xbf16>
    %229 = arith.extf %228 : vector<1x8x16xbf16> to vector<1x8x16xf32>
    %230 = arith.addf %226, %229 : vector<1x8x16xf32>
    %cst_127 = arith.constant dense<0xFF800000> : vector<1x8xf32>
    %231 = vector.multi_reduction <maximumf>, %230, %cst_127 [2] : vector<1x8x16xf32> to vector<1x8xf32>
    %232 = vector.shape_cast %231 : vector<1x8xf32> to vector<1x8x1xf32>
    %233 = vector.broadcast %232 : vector<1x8x1xf32> to vector<1x8x16xf32>
    %234 = arith.subf %230, %233 : vector<1x8x16xf32>
    %235 = math.exp %234 : vector<1x8x16xf32>
    %cst_128 = arith.constant dense<0.000000e+00> : vector<1x8xf32>
    %236 = vector.multi_reduction <add>, %235, %cst_128 [2] : vector<1x8x16xf32> to vector<1x8xf32>
    %237 = vector.shape_cast %236 : vector<1x8xf32> to vector<1x8x1xf32>
    %238 = tpu.reciprocal %237 {approx = true} : vector<1x8x1xf32> -> vector<1x8x1xf32>
    %239 = vector.broadcast %238 : vector<1x8x1xf32> to vector<1x8x16xf32>
    %240 = arith.mulf %235, %239 : vector<1x8x16xf32>
    %241 = arith.truncf %240 : vector<1x8x16xf32> to vector<1x8x16xbf16>
    "tpu.trace_start"() <{level = 10 : i32, message = "bsk,bkd->bsd"}> : () -> ()
    %cst_129 = arith.constant dense<0.000000e+00> : vector<1x8x8xf32>
    %242 = tpu.matmul %241, %225, %cst_129 {dimension_numbers = #tpu.dot_dimension_numbers<[2], [1], [1], [2], [0, 0, 0, 1, 1, 2], [0], [0]>} : vector<1x8x16xbf16>, vector<1x16x8xbf16>, vector<1x8x8xf32> -> vector<1x8x8xf32>
    "tpu.trace_stop"() : () -> ()
    %243 = vector.shape_cast %242 : vector<1x8x8xf32> to vector<8x8xf32>
    %244 = arith.truncf %243 : vector<8x8xf32> to vector<8x8xbf16>
    %c3_130 = arith.constant 3 : index
    %c0_131 = arith.constant 0 : index
    %c0_132 = arith.constant 0 : index
    %245 = vector.load %arg7[%c3_130, %c0_131, %c0_132] : memref<4x8x32xbf16, #tpu.memory_space<vmem>>, vector<1x8x32xbf16>
    %246 = vector.shape_cast %245 : vector<1x8x32xbf16> to vector<8x32xbf16>
    %cst_133 = arith.constant dense<0.000000e+00> : vector<8x32xf32>
    %247 = tpu.matmul %244, %246, %cst_133 {dimension_numbers = #tpu.dot_dimension_numbers<[1], [0], [0], [1], [0, 0, 1, 1], [], []>} : vector<8x8xbf16>, vector<8x32xbf16>, vector<8x32xf32> -> vector<8x32xf32>
    %248 = arith.addf %189, %247 : vector<8x32xf32>
    %249 = vector.broadcast %6 : vector<1x32xf32> to vector<8x32xf32>
    %250 = arith.addf %248, %249 : vector<8x32xf32>
    %251 = vector.shape_cast %0 : vector<1x8x32xf32> to vector<8x32xf32>
    %252 = arith.addf %251, %250 : vector<8x32xf32>
    %cst_134 = arith.constant dense<0.000000e+00> : vector<8xf32>
    %253 = vector.multi_reduction <add>, %252, %cst_134 [1] : vector<8x32xf32> to vector<8xf32>
    %254 = vector.shape_cast %253 : vector<8xf32> to vector<8x1xf32>
    %cst_135 = arith.constant 3.200000e+01 : f32
    %255 = vector.broadcast %cst_135 : f32 to vector<8x1xf32>
    %256 = arith.divf %254, %255 : vector<8x1xf32>
    %257 = vector.broadcast %256 : vector<8x1xf32> to vector<8x32xf32>
    %258 = arith.subf %252, %257 : vector<8x32xf32>
    %259 = arith.mulf %258, %258 : vector<8x32xf32>
    %cst_136 = arith.constant dense<0.000000e+00> : vector<8xf32>
    %260 = vector.multi_reduction <add>, %259, %cst_136 [1] : vector<8x32xf32> to vector<8xf32>
    %261 = vector.shape_cast %260 : vector<8xf32> to vector<8x1xf32>
    %cst_137 = arith.constant 3.200000e+01 : f32
    %262 = vector.broadcast %cst_137 : f32 to vector<8x1xf32>
    %263 = arith.divf %261, %262 : vector<8x1xf32>
    %264 = vector.broadcast %256 : vector<8x1xf32> to vector<8x32xf32>
    %265 = arith.subf %252, %264 : vector<8x32xf32>
    %cst_138 = arith.constant 9.99999974E-6 : f32
    %266 = vector.broadcast %cst_138 : f32 to vector<8x1xf32>
    %267 = arith.addf %263, %266 : vector<8x1xf32>
    %268 = math.rsqrt %267 : vector<8x1xf32>
    %269 = vector.broadcast %268 : vector<8x1xf32> to vector<8x32xf32>
    %270 = arith.mulf %265, %269 : vector<8x32xf32>
    %271 = vector.broadcast %8 : vector<1x32xf32> to vector<8x32xf32>
    %272 = arith.mulf %270, %271 : vector<8x32xf32>
    %273 = vector.broadcast %9 : vector<1x32xf32> to vector<8x32xf32>
    %274 = arith.addf %272, %273 : vector<8x32xf32>
    %275 = arith.truncf %274 : vector<8x32xf32> to vector<8x32xbf16>
    %c0_139 = arith.constant 0 : index
    %c0_140 = arith.constant 0 : index
    %276 = vector.load %arg8[%c0_139, %c0_140] : memref<32x64xbf16, #tpu.memory_space<vmem>>, vector<32x64xbf16>
    %cst_141 = arith.constant dense<0.000000e+00> : vector<8x64xf32>
    %277 = tpu.matmul %275, %276, %cst_141 {dimension_numbers = #tpu.dot_dimension_numbers<[1], [0], [0], [1], [0, 0, 1, 1], [], []>} : vector<8x32xbf16>, vector<32x64xbf16>, vector<8x64xf32> -> vector<8x64xf32>
    %c0_142 = arith.constant 0 : index
    %c0_143 = arith.constant 0 : index
    %278 = vector.load %arg12[%c0_142, %c0_143] : memref<1x64xf32, #tpu.memory_space<vmem>>, vector<1x64xf32>
    %279 = vector.broadcast %278 : vector<1x64xf32> to vector<8x64xf32>
    %280 = arith.addf %277, %279 : vector<8x64xf32>
    %cst_144 = arith.constant 0.000000e+00 : f32
    %281 = vector.broadcast %cst_144 : f32 to vector<8x64xf32>
    %282 = arith.maximumf %280, %281 : vector<8x64xf32>
    %283 = arith.truncf %282 : vector<8x64xf32> to vector<8x64xbf16>
    %c0_145 = arith.constant 0 : index
    %c0_146 = arith.constant 0 : index
    %284 = vector.load %arg9[%c0_145, %c0_146] : memref<64x32xbf16, #tpu.memory_space<vmem>>, vector<64x32xbf16>
    %cst_147 = arith.constant dense<0.000000e+00> : vector<8x32xf32>
    %285 = tpu.matmul %283, %284, %cst_147 {dimension_numbers = #tpu.dot_dimension_numbers<[1], [0], [0], [1], [0, 0, 1, 1], [], []>} : vector<8x64xbf16>, vector<64x32xbf16>, vector<8x32xf32> -> vector<8x32xf32>
    %286 = vector.broadcast %7 : vector<1x32xf32> to vector<8x32xf32>
    %287 = arith.addf %285, %286 : vector<8x32xf32>
    %288 = arith.addf %274, %287 : vector<8x32xf32>
    %cst_148 = arith.constant dense<0.000000e+00> : vector<8xf32>
    %289 = vector.multi_reduction <add>, %288, %cst_148 [1] : vector<8x32xf32> to vector<8xf32>
    %290 = vector.shape_cast %289 : vector<8xf32> to vector<8x1xf32>
    %cst_149 = arith.constant 3.200000e+01 : f32
    %291 = vector.broadcast %cst_149 : f32 to vector<8x1xf32>
    %292 = arith.divf %290, %291 : vector<8x1xf32>
    %293 = vector.broadcast %292 : vector<8x1xf32> to vector<8x32xf32>
    %294 = arith.subf %288, %293 : vector<8x32xf32>
    %295 = arith.mulf %294, %294 : vector<8x32xf32>
    %cst_150 = arith.constant dense<0.000000e+00> : vector<8xf32>
    %296 = vector.multi_reduction <add>, %295, %cst_150 [1] : vector<8x32xf32> to vector<8xf32>
    %297 = vector.shape_cast %296 : vector<8xf32> to vector<8x1xf32>
    %cst_151 = arith.constant 3.200000e+01 : f32
    %298 = vector.broadcast %cst_151 : f32 to vector<8x1xf32>
    %299 = arith.divf %297, %298 : vector<8x1xf32>
    %300 = vector.broadcast %292 : vector<8x1xf32> to vector<8x32xf32>
    %301 = arith.subf %288, %300 : vector<8x32xf32>
    %cst_152 = arith.constant 9.99999974E-6 : f32
    %302 = vector.broadcast %cst_152 : f32 to vector<8x1xf32>
    %303 = arith.addf %299, %302 : vector<8x1xf32>
    %304 = math.rsqrt %303 : vector<8x1xf32>
    %305 = vector.broadcast %304 : vector<8x1xf32> to vector<8x32xf32>
    %306 = arith.mulf %301, %305 : vector<8x32xf32>
    %307 = vector.broadcast %10 : vector<1x32xf32> to vector<8x32xf32>
    %308 = arith.mulf %306, %307 : vector<8x32xf32>
    %309 = vector.broadcast %11 : vector<1x32xf32> to vector<8x32xf32>
    %310 = arith.addf %308, %309 : vector<8x32xf32>
    %311 = vector.shape_cast %310 : vector<8x32xf32> to vector<1x8x32xf32>
    %c0_153 = arith.constant 0 : index
    %c0_154 = arith.constant 0 : index
    %c0_155 = arith.constant 0 : index
    %312 = vector.load %arg13[%c0_153, %c0_154, %c0_155] : memref<1x8x32xf32, #tpu.memory_space<vmem>>, vector<1x8x32xf32>
    tpu.vector_store %arg13[%c0_153, %c0_154, %c0_155], %311 {strides = array<i32>} : memref<1x8x32xf32, #tpu.memory_space<vmem>>, vector<1x8x32xf32>,
    return
  }
  func.func @transform_0(%arg0: i32) -> (i32, i32, i32) {
    %c0_i32 = arith.constant 0 : i32
    %c0_i32_0 = arith.constant 0 : i32
    %c0_i32_1 = arith.constant 0 : i32
    return %arg0, %c0_i32, %c0_i32_0 : i32, i32, i32
  }
  func.func @transform_1(%arg0: i32) -> (i32, i32, i32) {
    %c0_i32 = arith.constant 0 : i32
    %c0_i32_0 = arith.constant 0 : i32
    %c0_i32_1 = arith.constant 0 : i32
    return %arg0, %c0_i32, %c0_i32_0 : i32, i32, i32
  }
  func.func @transform_2(%arg0: i32) -> (i32, i32, i32, i32) {
    %c0_i32 = arith.constant 0 : i32
    %c0_i32_0 = arith.constant 0 : i32
    %c0_i32_1 = arith.constant 0 : i32
    %c0_i32_2 = arith.constant 0 : i32
    return %arg0, %c0_i32, %c0_i32_0, %c0_i32_1 : i32, i32, i32, i32
  }
  func.func @transform_3(%arg0: i32) -> (i32, i32, i32) {
    %c0_i32 = arith.constant 0 : i32
    %c0_i32_0 = arith.constant 0 : i32
    %c0_i32_1 = arith.constant 0 : i32
    %c0_i32_2 = arith.constant 0 : i32
    return %c0_i32, %c0_i32_0, %c0_i32_1 : i32, i32, i32
  }
  func.func @transform_4(%arg0: i32) -> (i32, i32, i32) {
    %c0_i32 = arith.constant 0 : i32
    %c0_i32_0 = arith.constant 0 : i32
    %c0_i32_1 = arith.constant 0 : i32
    %c0_i32_2 = arith.constant 0 : i32
    return %c0_i32, %c0_i32_0, %c0_i32_1 : i32, i32, i32
  }
  func.func @transform_5(%arg0: i32) -> (i32, i32, i32) {
    %c0_i32 = arith.constant 0 : i32
    %c0_i32_0 = arith.constant 0 : i32
    %c0_i32_1 = arith.constant 0 : i32
    %c0_i32_2 = arith.constant 0 : i32
    return %c0_i32, %c0_i32_0, %c0_i32_1 : i32, i32, i32
  }
  func.func @transform_6(%arg0: i32) -> (i32, i32, i32) {
    %c0_i32 = arith.constant 0 : i32
    %c0_i32_0 = arith.constant 0 : i32
    %c0_i32_1 = arith.constant 0 : i32
    %c0_i32_2 = arith.constant 0 : i32
    return %c0_i32, %c0_i32_0, %c0_i32_1 : i32, i32, i32
  }
  func.func @transform_7(%arg0: i32) -> (i32, i32) {
    %c0_i32 = arith.constant 0 : i32
    %c0_i32_0 = arith.constant 0 : i32
    %c0_i32_1 = arith.constant 0 : i32
    return %c0_i32, %c0_i32_0 : i32, i32
  }
  func.func @transform_8(%arg0: i32) -> (i32, i32) {
    %c0_i32 = arith.constant 0 : i32
    %c0_i32_0 = arith.constant 0 : i32
    %c0_i32_1 = arith.constant 0 : i32
    return %c0_i32, %c0_i32_0 : i32, i32
  }
  func.func @transform_9(%arg0: i32) -> (i32, i32) {
    %c0_i32 = arith.constant 0 : i32
    %c0_i32_0 = arith.constant 0 : i32
    %c0_i32_1 = arith.constant 0 : i32
    return %c0_i32, %c0_i32_0 : i32, i32
  }
  func.func @transform_10(%arg0: i32) -> (i32, i32) {
    %c0_i32 = arith.constant 0 : i32
    %c0_i32_0 = arith.constant 0 : i32
    %c0_i32_1 = arith.constant 0 : i32
    return %c0_i32, %c0_i32_0 : i32, i32
  }
  func.func @transform_11(%arg0: i32) -> (i32, i32) {
    %c0_i32 = arith.constant 0 : i32
    %c0_i32_0 = arith.constant 0 : i32
    %c0_i32_1 = arith.constant 0 : i32
    return %c0_i32, %c0_i32_0 : i32, i32
  }
  func.func @transform_12(%arg0: i32) -> (i32, i32, i32) {
    %c0_i32 = arith.constant 0 : i32
    %c0_i32_0 = arith.constant 0 : i32
    %c0_i32_1 = arith.constant 0 : i32
    return %arg0, %c0_i32, %c0_i32_0 : i32, i32, i32
  }
}

</mosaic_0001>

<llo_original>
// kernel: tpu_custom_call.1
$region0: #{tpu_custom_call.1}
  #allocation0 [shape = 'u32[]', space=smem, size = 0x4, offset = 0x4, fixed_abs, tag = 'smem constant byte address 0x4 - core index']
  #allocation1 [shape = 'u32[144,128]{1,0:T(1,128)}', space=vmem, size = 0x12000, scoped, tag = 'internal scratch']
  %s0 = inlined_call_operand.hbm [shape: f32[2,8,32], index: 0, kind: input, shape index: {}]
  %s1 = inlined_call_operand.hbm [shape: f32[2,8,32], index: 1, kind: input, shape index: {}]
  %s2 = inlined_call_operand.hbm [shape: bf16[2,4,8,16], index: 2, kind: input, shape index: {}]
  %s3 = inlined_call_operand.hbm [shape: bf16[4,32,8], index: 3, kind: input, shape index: {}]
  %s4 = inlined_call_operand.hbm [shape: bf16[4,32,8], index: 4, kind: input, shape index: {}]
  %s5 = inlined_call_operand.hbm [shape: bf16[4,32,8], index: 5, kind: input, shape index: {}]
  %s6 = inlined_call_operand.hbm [shape: bf16[4,8,32], index: 6, kind: input, shape index: {}]
  %s7 = inlined_call_operand.hbm [shape: bf16[32,64], index: 7, kind: input, shape index: {}]
  %s8 = inlined_call_operand.hbm [shape: bf16[64,32], index: 8, kind: input, shape index: {}]
  %s9 = inlined_call_operand.hbm [shape: f32[12,8], index: 9, kind: input, shape index: {}]
  %s10 = inlined_call_operand.hbm [shape: f32[6,32], index: 10, kind: input, shape index: {}]
  %s11 = inlined_call_operand.hbm [shape: f32[1,64], index: 11, kind: input, shape index: {}]
  %s12 = inlined_call_operand.hbm [shape: f32[2,8,32], index: 12, kind: output, shape index: {}]
  %s13 = sld [smem:[#allocation0]]
  $region129: #{tpu_custom_call.1} parent=0
    _
  %s15 = ssub.s32 1, %s13
  %s16 = scalar_select 0, %s15, %s13
  $region1: #{tpu_custom_call.1} parent=0
    #allocation2 [shape = 'u8[8192]{0}', space=vmem, size = 0x2000, scoped, tag = 'input window, operand 0']
    #allocation3 [shape = 's32[2]{0}', space=sflag, size = 0x8, scoped, tag = 'scoped memory for tpu_custom_call.1']
    #allocation4 [shape = 's32[2]{0}', space=sflag, size = 0x8, scoped, tag = 'scoped memory for tpu_custom_call.1']
    #allocation5 [shape = 'u8[8192]{0}', space=vmem, size = 0x2000, scoped, tag = 'input window, operand 1']
    #allocation6 [shape = 's32[2]{0}', space=sflag, size = 0x8, scoped, tag = 'scoped memory for tpu_custom_call.1']
    #allocation7 [shape = 'u8[16384]{0}', space=vmem, size = 0x4000, scoped, tag = 'input window, operand 2']
    #allocation8 [shape = 'u8[32768]{0}', space=vmem, size = 0x8000, scoped, tag = 'input window, operand 3, single buffered']
    #allocation9 [shape = 's32[1]{0}', space=sflag, size = 0x4, scoped, tag = 'scoped memory for tpu_custom_call.1']
    #allocation10 [shape = 'u8[32768]{0}', space=vmem, size = 0x8000, scoped, tag = 'input window, operand 4, single buffered']
    #allocation11 [shape = 'u8[32768]{0}', space=vmem, size = 0x8000, scoped, tag = 'input window, operand 5, single buffered']
    #allocation12 [shape = 's32[1]{0}', space=sflag, size = 0x4, scoped, tag = 'scoped memory for tpu_custom_call.1']
    #allocation13 [shape = 'u8[8192]{0}', space=vmem, size = 0x2000, scoped, tag = 'input window, operand 6, single buffered']
    #allocation14 [shape = 'u8[8192]{0}', space=vmem, size = 0x2000, scoped, tag = 'input window, operand 7, single buffered']
    #allocation15 [shape = 's32[1]{0}', space=sflag, size = 0x4, scoped, tag = 'scoped memory for tpu_custom_call.1']
    #allocation16 [shape = 'u8[16384]{0}', space=vmem, size = 0x4000, scoped, tag = 'input window, operand 8, single buffered']
    #allocation17 [shape = 'u8[8192]{0}', space=vmem, size = 0x2000, scoped, tag = 'input window, operand 9, single buffered']
    #allocation18 [shape = 's32[1]{0}', space=sflag, size = 0x4, scoped, tag = 'scoped memory for tpu_custom_call.1']
    #allocation19 [shape = 'u8[4096]{0}', space=vmem, size = 0x1000, scoped, tag = 'input window, operand 10, single buffered']
    #allocation20 [shape = 'u8[512]{0}', space=vmem, size = 0x400, scoped, tag = 'input window, operand 11, single buffered']
    #allocation21 [shape = 's32[1]{0}', space=sflag, size = 0x4, scoped, tag = 'scoped memory for tpu_custom_call.1']
    #allocation22 [shape = 'u8[8192]{0}', space=vmem, size = 0x2000, scoped, tag = 'output window, operand 0']
    %17 = vsyncpa [#allocation3], 0
    %s18 = scalar_lea.sflag [#allocation3], 1
    %19 = vsyncpa %s18, 0
    %20 = vsyncpa [#allocation6], 0
    %s21 = scalar_lea.sflag [#allocation6], 1
    %22 = vsyncpa %s21, 0
    %23 = vsyncpa [#allocation9], 0
    %24 = vsyncpa [#allocation12], 0
    %25 = vsyncpa [#allocation15], 0
    %26 = vsyncpa [#allocation18], 0
    %27 = vsyncpa [#allocation21], 0
    %28 = vsyncpa [#allocation4], 0
    %s29 = scalar_lea.sflag [#allocation4], 1
    %30 = vsyncpa %s29, 0
    loop: start=0, step=1, limit=4
    $region2: #{tpu_custom_call.1} parent=1 // loop_pre_header
      _
    $region3: #{tpu_custom_call.1} parent=1 // loop_header
      %s32 = sphi 0, %s36
      %p33 = scmp.ge.s32.totalorder %s32, 4
      %s42 = sphi 0, %s44
      %s45 = sphi 0, %s42
      %s46 = sphi 0, %s45
      %s62 = sphi 0, %s46
      %s68 = sphi 0, %s70
      %s71 = sphi 0, %s68
      %s72 = sphi 0, %s71
      %s88 = sphi 0, %s72
      %s94 = sphi 0, %s96
      %s97 = sphi 0, %s94
      %s98 = sphi 0, %s97
      %s114 = sphi 0, %s98
      %s118 = sphi 0, %s118
      %s120 = sphi 0, %s118
      %s121 = sphi 0, %s120
      %s135 = sphi 0, %s121
      %s139 = sphi 0, %s139
      %s141 = sphi 0, %s139
      %s142 = sphi 0, %s141
      %s156 = sphi 0, %s142
      %s160 = sphi 0, %s160
      %s162 = sphi 0, %s160
      %s163 = sphi 0, %s162
      %s177 = sphi 0, %s163
      %s181 = sphi 0, %s181
      %s183 = sphi 0, %s181
      %s184 = sphi 0, %s183
      %s198 = sphi 0, %s184
      %s202 = sphi 0, %s202
      %s204 = sphi 0, %s202
      %s205 = sphi 0, %s204
      %s219 = sphi 0, %s205
      %s223 = sphi 0, %s223
      %s225 = sphi 0, %s223
      %s226 = sphi 0, %s225
      %s240 = sphi 0, %s226
      %s244 = sphi 0, %s244
      %s246 = sphi 0, %s244
      %s247 = sphi 0, %s246
      %s261 = sphi 0, %s247
      %s265 = sphi 0, %s265
      %s267 = sphi 0, %s265
      %s268 = sphi 0, %s267
      %s282 = sphi 0, %s268
      %s286 = sphi 0, %s286
      %s288 = sphi 0, %s286
      %s289 = sphi 0, %s288
      %s303 = sphi 0, %s289
      %s309 = sphi 0, %s311
      %s312 = sphi 0, %s309
      %s313 = sphi 0, %s312
      %s329 = sphi 0, %s313
    $region4: #{tpu_custom_call.1} parent=1 // loop_header_branch
      %35 = sbr.rel (%p33) target = $region8
    $region5: #{tpu_custom_call.1} parent=1 // loop_body
      %s37 = ssub.s32 %s32, 1
      %s38 = ssub.s32 %s32, 2
      %s39 = sadd.s32 %s32, 1
      %s40 = ssub.s32 %s32, %s39
      %p41 = scmp.eq.s32.totalorder %s40, 0
      %s43 = sadd.s32 %s42, 1
      %s44 = scalar_select %p41, %s42, %s43
      %p47 = pneg %p41
      %p48 = scmp.eq.s32.totalorder %s32, 1
      %p49 = por %p47, %p48
      %p50 = scmp.ne.s32.totalorder %s42, %s45
      %p51 = scmp.eq.s32.totalorder %s32, 0
      %p52 = por %p50, %p51
      %p53 = scmp.ne.s32.totalorder %s42, %s45
      %p54 = scmp.eq.s32.totalorder %s37, 1
      %p55 = por %p53, %p54
      %p56 = scmp.ne.s32.totalorder %s45, %s46
      %p57 = scmp.eq.s32.totalorder %s37, 0
      %p58 = por %p56, %p57
      %p59 = scmp.ne.s32.totalorder %s45, %s46
      %p60 = scmp.eq.s32.totalorder %s38, 1
      %p61 = por %p59, %p60
      %p63 = scmp.ne.s32.totalorder %s46, %s62
      %p64 = scmp.eq.s32.totalorder %s38, 0
      %p65 = por %p63, %p64
      %s66 = ssub.s32 %s32, %s39
      %p67 = scmp.eq.s32.totalorder %s66, 0
      %s69 = sadd.s32 %s68, 1
      %s70 = scalar_select %p67, %s68, %s69
      %p73 = pneg %p67
      %p74 = scmp.eq.s32.totalorder %s32, 1
      %p75 = por %p73, %p74
      %p76 = scmp.ne.s32.totalorder %s68, %s71
      %p77 = scmp.eq.s32.totalorder %s32, 0
      %p78 = por %p76, %p77
      %p79 = scmp.ne.s32.totalorder %s68, %s71
      %p80 = scmp.eq.s32.totalorder %s37, 1
      %p81 = por %p79, %p80
      %p82 = scmp.ne.s32.totalorder %s71, %s72
      %p83 = scmp.eq.s32.totalorder %s37, 0
      %p84 = por %p82, %p83
      %p85 = scmp.ne.s32.totalorder %s71, %s72
      %p86 = scmp.eq.s32.totalorder %s38, 1
      %p87 = por %p85, %p86
      %p89 = scmp.ne.s32.totalorder %s72, %s88
      %p90 = scmp.eq.s32.totalorder %s38, 0
      %p91 = por %p89, %p90
      %s92 = ssub.s32 %s32, %s39
      %p93 = scmp.eq.s32.totalorder %s92, 0
      %s95 = sadd.s32 %s94, 1
      %s96 = scalar_select %p93, %s94, %s95
      %p99 = pneg %p93
      %p100 = scmp.eq.s32.totalorder %s32, 1
      %p101 = por %p99, %p100
      %p102 = scmp.ne.s32.totalorder %s94, %s97
      %p103 = scmp.eq.s32.totalorder %s32, 0
      %p104 = por %p102, %p103
      %p105 = scmp.ne.s32.totalorder %s94, %s97
      %p106 = scmp.eq.s32.totalorder %s37, 1
      %p107 = por %p105, %p106
      %p108 = scmp.ne.s32.totalorder %s97, %s98
      %p109 = scmp.eq.s32.totalorder %s37, 0
      %p110 = por %p108, %p109
      %p111 = scmp.ne.s32.totalorder %s97, %s98
      %p112 = scmp.eq.s32.totalorder %s38, 1
      %p113 = por %p111, %p112
      %p115 = scmp.ne.s32.totalorder %s98, %s114
      %p116 = scmp.eq.s32.totalorder %s38, 0
      %p117 = por %p115, %p116
      %s119 = sadd.s32 %s118, 1
      %p122 = scmp.eq.s32.totalorder %s32, 1
      %p123 = scmp.ne.s32.totalorder %s118, %s120
      %p124 = scmp.eq.s32.totalorder %s32, 0
      %p125 = por %p123, %p124
      %p126 = scmp.ne.s32.totalorder %s118, %s120
      %p127 = scmp.eq.s32.totalorder %s37, 1
      %p128 = por %p126, %p127
      %p129 = scmp.ne.s32.totalorder %s120, %s121
      %p130 = scmp.eq.s32.totalorder %s37, 0
      %p131 = por %p129, %p130
      %p132 = scmp.ne.s32.totalorder %s120, %s121
      %p133 = scmp.eq.s32.totalorder %s38, 1
      %p134 = por %p132, %p133
      %p136 = scmp.ne.s32.totalorder %s121, %s135
      %p137 = scmp.eq.s32.totalorder %s38, 0
      %p138 = por %p136, %p137
      %s140 = sadd.s32 %s139, 1
      %p143 = scmp.eq.s32.totalorder %s32, 1
      %p144 = scmp.ne.s32.totalorder %s139, %s141
      %p145 = scmp.eq.s32.totalorder %s32, 0
      %p146 = por %p144, %p145
      %p147 = scmp.ne.s32.totalorder %s139, %s141
      %p148 = scmp.eq.s32.totalorder %s37, 1
      %p149 = por %p147, %p148
      %p150 = scmp.ne.s32.totalorder %s141, %s142
      %p151 = scmp.eq.s32.totalorder %s37, 0
      %p152 = por %p150, %p151
      %p153 = scmp.ne.s32.totalorder %s141, %s142
      %p154 = scmp.eq.s32.totalorder %s38, 1
      %p155 = por %p153, %p154
      %p157 = scmp.ne.s32.totalorder %s142, %s156
      %p158 = scmp.eq.s32.totalorder %s38, 0
      %p159 = por %p157, %p158
      %s161 = sadd.s32 %s160, 1
      %p164 = scmp.eq.s32.totalorder %s32, 1
      %p165 = scmp.ne.s32.totalorder %s160, %s162
      %p166 = scmp.eq.s32.totalorder %s32, 0
      %p167 = por %p165, %p166
      %p168 = scmp.ne.s32.totalorder %s160, %s162
      %p169 = scmp.eq.s32.totalorder %s37, 1
      %p170 = por %p168, %p169
      %p171 = scmp.ne.s32.totalorder %s162, %s163
      %p172 = scmp.eq.s32.totalorder %s37, 0
      %p173 = por %p171, %p172
      %p174 = scmp.ne.s32.totalorder %s162, %s163
      %p175 = scmp.eq.s32.totalorder %s38, 1
      %p176 = por %p174, %p175
      %p178 = scmp.ne.s32.totalorder %s163, %s177
      %p179 = scmp.eq.s32.totalorder %s38, 0
      %p180 = por %p178, %p179
      %s182 = sadd.s32 %s181, 1
      %p185 = scmp.eq.s32.totalorder %s32, 1
      %p186 = scmp.ne.s32.totalorder %s181, %s183
      %p187 = scmp.eq.s32.totalorder %s32, 0
      %p188 = por %p186, %p187
      %p189 = scmp.ne.s32.totalorder %s181, %s183
      %p190 = scmp.eq.s32.totalorder %s37, 1
      %p191 = por %p189, %p190
      %p192 = scmp.ne.s32.totalorder %s183, %s184
      %p193 = scmp.eq.s32.totalorder %s37, 0
      %p194 = por %p192, %p193
      %p195 = scmp.ne.s32.totalorder %s183, %s184
      %p196 = scmp.eq.s32.totalorder %s38, 1
      %p197 = por %p195, %p196
      %p199 = scmp.ne.s32.totalorder %s184, %s198
      %p200 = scmp.eq.s32.totalorder %s38, 0
      %p201 = por %p199, %p200
      %s203 = sadd.s32 %s202, 1
      %p206 = scmp.eq.s32.totalorder %s32, 1
      %p207 = scmp.ne.s32.totalorder %s202, %s204
      %p208 = scmp.eq.s32.totalorder %s32, 0
      %p209 = por %p207, %p208
      %p210 = scmp.ne.s32.totalorder %s202, %s204
      %p211 = scmp.eq.s32.totalorder %s37, 1
      %p212 = por %p210, %p211
      %p213 = scmp.ne.s32.totalorder %s204, %s205
      %p214 = scmp.eq.s32.totalorder %s37, 0
      %p215 = por %p213, %p214
      %p216 = scmp.ne.s32.totalorder %s204, %s205
      %p217 = scmp.eq.s32.totalorder %s38, 1
      %p218 = por %p216, %p217
      %p220 = scmp.ne.s32.totalorder %s205, %s219
      %p221 = scmp.eq.s32.totalorder %s38, 0
      %p222 = por %p220, %p221
      %s224 = sadd.s32 %s223, 1
      %p227 = scmp.eq.s32.totalorder %s32, 1
      %p228 = scmp.ne.s32.totalorder %s223, %s225
      %p229 = scmp.eq.s32.totalorder %s32, 0
      %p230 = por %p228, %p229
      %p231 = scmp.ne.s32.totalorder %s223, %s225
      %p232 = scmp.eq.s32.totalorder %s37, 1
      %p233 = por %p231, %p232
      %p234 = scmp.ne.s32.totalorder %s225, %s226
      %p235 = scmp.eq.s32.totalorder %s37, 0
      %p236 = por %p234, %p235
      %p237 = scmp.ne.s32.totalorder %s225, %s226
      %p238 = scmp.eq.s32.totalorder %s38, 1
      %p239 = por %p237, %p238
      %p241 = scmp.ne.s32.totalorder %s226, %s240
      %p242 = scmp.eq.s32.totalorder %s38, 0
      %p243 = por %p241, %p242
      %s245 = sadd.s32 %s244, 1
      %p248 = scmp.eq.s32.totalorder %s32, 1
      %p249 = scmp.ne.s32.totalorder %s244, %s246
      %p250 = scmp.eq.s32.totalorder %s32, 0
      %p251 = por %p249, %p250
      %p252 = scmp.ne.s32.totalorder %s244, %s246
      %p253 = scmp.eq.s32.totalorder %s37, 1
      %p254 = por %p252, %p253
      %p255 = scmp.ne.s32.totalorder %s246, %s247
      %p256 = scmp.eq.s32.totalorder %s37, 0
      %p257 = por %p255, %p256
      %p258 = scmp.ne.s32.totalorder %s246, %s247
      %p259 = scmp.eq.s32.totalorder %s38, 1
      %p260 = por %p258, %p259
      %p262 = scmp.ne.s32.totalorder %s247, %s261
      %p263 = scmp.eq.s32.totalorder %s38, 0
      %p264 = por %p262, %p263
      %s266 = sadd.s32 %s265, 1
      %p269 = scmp.eq.s32.totalorder %s32, 1
      %p270 = scmp.ne.s32.totalorder %s265, %s267
      %p271 = scmp.eq.s32.totalorder %s32, 0
      %p272 = por %p270, %p271
      %p273 = scmp.ne.s32.totalorder %s265, %s267
      %p274 = scmp.eq.s32.totalorder %s37, 1
      %p275 = por %p273, %p274
      %p276 = scmp.ne.s32.totalorder %s267, %s268
      %p277 = scmp.eq.s32.totalorder %s37, 0
      %p278 = por %p276, %p277
      %p279 = scmp.ne.s32.totalorder %s267, %s268
      %p280 = scmp.eq.s32.totalorder %s38, 1
      %p281 = por %p279, %p280
      %p283 = scmp.ne.s32.totalorder %s268, %s282
      %p284 = scmp.eq.s32.totalorder %s38, 0
      %p285 = por %p283, %p284
      %s287 = sadd.s32 %s286, 1
      %p290 = scmp.eq.s32.totalorder %s32, 1
      %p291 = scmp.ne.s32.totalorder %s286, %s288
      %p292 = scmp.eq.s32.totalorder %s32, 0
      %p293 = por %p291, %p292
      %p294 = scmp.ne.s32.totalorder %s286, %s288
      %p295 = scmp.eq.s32.totalorder %s37, 1
      %p296 = por %p294, %p295
      %p297 = scmp.ne.s32.totalorder %s288, %s289
      %p298 = scmp.eq.s32.totalorder %s37, 0
      %p299 = por %p297, %p298
      %p300 = scmp.ne.s32.totalorder %s288, %s289
      %p301 = scmp.eq.s32.totalorder %s38, 1
      %p302 = por %p300, %p301
      %p304 = scmp.ne.s32.totalorder %s289, %s303
      %p305 = scmp.eq.s32.totalorder %s38, 0
      %p306 = por %p304, %p305
      %s307 = ssub.s32 %s32, %s39
      %p308 = scmp.eq.s32.totalorder %s307, 0
      %s310 = sadd.s32 %s309, 1
      %s311 = scalar_select %p308, %s309, %s310
      %p314 = pneg %p308
      %p315 = scmp.eq.s32.totalorder %s32, 1
      %p316 = por %p314, %p315
      %p317 = scmp.ne.s32.totalorder %s309, %s312
      %p318 = scmp.eq.s32.totalorder %s32, 0
      %p319 = por %p317, %p318
      %p320 = scmp.ne.s32.totalorder %s309, %s312
      %p321 = scmp.eq.s32.totalorder %s37, 1
      %p322 = por %p320, %p321
      %p323 = scmp.ne.s32.totalorder %s312, %s313
      %p324 = scmp.eq.s32.totalorder %s37, 0
      %p325 = por %p323, %p324
      %p326 = scmp.ne.s32.totalorder %s312, %s313
      %p327 = scmp.eq.s32.totalorder %s38, 1
      %p328 = por %p326, %p327
      %p330 = scmp.ne.s32.totalorder %s313, %s329
      %p331 = scmp.eq.s32.totalorder %s38, 0
      %p332 = por %p330, %p331
      %p333 = scmp.le.s32.totalorder 1, %s32
      %p334 = scmp.lt.s32.totalorder %s32, 3
      %p335 = pnand %p333, %p334
      %p336 = pneg %p335
      // Predicated region
      $region9: #{tpu_custom_call.1} parent=5 // pred_check
        _
      $region10: #{tpu_custom_call.1} parent=5 // pred_check_branch
        %338 = sbr.rel (%p335) target = $region12
      $region11: #{tpu_custom_call.1} parent=5 // pred_region
        %s339 = ssub.s32 %s32, 1
        // Predicated region
        $region13: #{tpu_custom_call.1} parent=11 // pred_check
          %p340 = pneg %p131
        $region14: #{tpu_custom_call.1} parent=11 // pred_check_branch
          %342 = sbr.rel (%p340) target = $region16
        $region15: #{tpu_custom_call.1} parent=11 // pred_region
          %s344 = ssub.s32 1024, 1024
          %345 = vsyncadd [#allocation9], %s344
          %s346 = sshll.u32 [#allocation8], 4
          %s347 = int_to_ptr.vmem [resolvable:$true] %s346
          %352 = dma.hbm_to_vmem [thread:$0]  %s3, 1024, %s347, [#allocation9], 64, 64, 4
        $region16: #{tpu_custom_call.1} parent=11 // pred_fallthru
          _
        // Predicated region
        $region17: #{tpu_custom_call.1} parent=11 // pred_check
          %p353 = pneg %p152
        $region18: #{tpu_custom_call.1} parent=11 // pred_check_branch
          %355 = sbr.rel (%p353) target = $region20
        $region19: #{tpu_custom_call.1} parent=11 // pred_region
          %s357 = ssub.s32 1024, 1024
          %358 = vsyncadd [#allocation9], %s357
          %s359 = sshll.u32 [#allocation10], 4
          %s360 = int_to_ptr.vmem [resolvable:$true] %s359
          %365 = dma.hbm_to_vmem [thread:$0]  %s4, 1024, %s360, [#allocation9], 64, 64, 4
        $region20: #{tpu_custom_call.1} parent=11 // pred_fallthru
          _
        // Predicated region
        $region21: #{tpu_custom_call.1} parent=11 // pred_check
          %p366 = pneg %p173
        $region22: #{tpu_custom_call.1} parent=11 // pred_check_branch
          %368 = sbr.rel (%p366) target = $region24
        $region23: #{tpu_custom_call.1} parent=11 // pred_region
          %s370 = ssub.s32 1024, 1024
          %371 = vsyncadd [#allocation12], %s370
          %s372 = sshll.u32 [#allocation11], 4
          %s373 = int_to_ptr.vmem [resolvable:$true] %s372
          %378 = dma.hbm_to_vmem [thread:$0]  %s5, 1024, %s373, [#allocation12], 64, 64, 4
        $region24: #{tpu_custom_call.1} parent=11 // pred_fallthru
          _
        // Predicated region
        $region25: #{tpu_custom_call.1} parent=11 // pred_check
          %p379 = pneg %p194
        $region26: #{tpu_custom_call.1} parent=11 // pred_check_branch
          %381 = sbr.rel (%p379) target = $region28
        $region27: #{tpu_custom_call.1} parent=11 // pred_region
          %s383 = ssub.s32 256, 256
          %384 = vsyncadd [#allocation12], %s383
          %s385 = sshll.u32 [#allocation13], 4
          %s386 = int_to_ptr.vmem [resolvable:$true] %s385
          %391 = dma.hbm_to_vmem [thread:$0]  %s6, 256, %s386, [#allocation12], 64, 64, 4
        $region28: #{tpu_custom_call.1} parent=11 // pred_fallthru
          _
        // Predicated region
        $region29: #{tpu_custom_call.1} parent=11 // pred_check
          %p392 = pneg %p215
        $region30: #{tpu_custom_call.1} parent=11 // pred_check_branch
          %394 = sbr.rel (%p392) target = $region32
        $region31: #{tpu_custom_call.1} parent=11 // pred_region
          %s396 = ssub.s32 256, 256
          %397 = vsyncadd [#allocation15], %s396
          %s398 = sshll.u32 [#allocation14], 4
          %s399 = int_to_ptr.vmem [resolvable:$true] %s398
          %404 = dma.hbm_to_vmem [thread:$0]  %s7, 256, %s399, [#allocation15], 64, 64, 4
        $region32: #{tpu_custom_call.1} parent=11 // pred_fallthru
          _
        // Predicated region
        $region33: #{tpu_custom_call.1} parent=11 // pred_check
          %p405 = pneg %p236
        $region34: #{tpu_custom_call.1} parent=11 // pred_check_branch
          %407 = sbr.rel (%p405) target = $region36
        $region35: #{tpu_custom_call.1} parent=11 // pred_region
          %s409 = ssub.s32 512, 512
          %410 = vsyncadd [#allocation15], %s409
          %s411 = sshll.u32 [#allocation16], 4
          %s412 = int_to_ptr.vmem [resolvable:$true] %s411
          %417 = dma.hbm_to_vmem [thread:$0]  %s8, 512, %s412, [#allocation15], 64, 64, 4
        $region36: #{tpu_custom_call.1} parent=11 // pred_fallthru
          _
        // Predicated region
        $region37: #{tpu_custom_call.1} parent=11 // pred_check
          %p418 = pneg %p257
        $region38: #{tpu_custom_call.1} parent=11 // pred_check_branch
          %420 = sbr.rel (%p418) target = $region40
        $region39: #{tpu_custom_call.1} parent=11 // pred_region
          %s422 = ssub.s32 256, 256
          %423 = vsyncadd [#allocation18], %s422
          %s424 = sshll.u32 [#allocation17], 4
          %s425 = int_to_ptr.vmem [resolvable:$true] %s424
          %430 = dma.hbm_to_vmem [thread:$0]  %s9, 256, %s425, [#allocation18], 128, 128, 8
        $region40: #{tpu_custom_call.1} parent=11 // pred_fallthru
          _
        // Predicated region
        $region41: #{tpu_custom_call.1} parent=11 // pred_check
          %p431 = pneg %p278
        $region42: #{tpu_custom_call.1} parent=11 // pred_check_branch
          %433 = sbr.rel (%p431) target = $region44
        $region43: #{tpu_custom_call.1} parent=11 // pred_region
          %s435 = ssub.s32 128, 128
          %436 = vsyncadd [#allocation18], %s435
          %s438 = sshll.u32 [#allocation19], 4
          %s439 = int_to_ptr.vmem [resolvable:$true] %s438
          %441 = dma.hbm_to_vmem [thread:$0]  %s10, 128, %s439, [#allocation18]
        $region44: #{tpu_custom_call.1} parent=11 // pred_fallthru
          _
        // Predicated region
        $region45: #{tpu_custom_call.1} parent=11 // pred_check
          %p442 = pneg %p299
        $region46: #{tpu_custom_call.1} parent=11 // pred_check_branch
          %444 = sbr.rel (%p442) target = $region48
        $region47: #{tpu_custom_call.1} parent=11 // pred_region
          %s446 = ssub.s32 16, 16
          %447 = vsyncadd [#allocation21], %s446
          %s449 = sshll.u32 [#allocation20], 4
          %s450 = int_to_ptr.vmem [resolvable:$true] %s449
          %452 = dma.hbm_to_vmem [thread:$0]  %s11, 16, %s450, [#allocation21]
        $region48: #{tpu_custom_call.1} parent=11 // pred_fallthru
          _
      $region12: #{tpu_custom_call.1} parent=5 // pred_fallthru
        _
      %p453 = scmp.lt.s32.totalorder %s32, 2
      // Predicated region
      $region49: #{tpu_custom_call.1} parent=5 // pred_check
        %p454 = pneg %p453
      $region50: #{tpu_custom_call.1} parent=5 // pred_check_branch
        %456 = sbr.rel (%p454) target = $region52
      $region51: #{tpu_custom_call.1} parent=5 // pred_region
        // Predicated region
        $region53: #{tpu_custom_call.1} parent=51 // pred_check
          %p457 = pneg %p52
        $region54: #{tpu_custom_call.1} parent=51 // pred_check_branch
          %459 = sbr.rel (%p457) target = $region56
        $region55: #{tpu_custom_call.1} parent=51 // pred_region
          %s460 = sand.u32 %s42, 1
          %s461 = scalar_lea.sflag [#allocation3], %s460
          %s462 = sand.u32 %s42, 1
          %s463 = smul.addr %s462, 8
          %s464 = scalar_lea.vmem [#allocation2], %s463
          %s466 = ssub.s32 128, 128
          %467 = vsyncadd %s461, %s466
          %s468 = smul.addr %s32, 128
          %s469 = scalar_lea.hbm %s0, %s468
          %s471 = sshll.u32 %s464, 4
          %s472 = int_to_ptr.vmem [resolvable:$true] %s471
          %474 = dma.hbm_to_vmem [thread:$0]  %s469, 128, %s472, %s461
        $region56: #{tpu_custom_call.1} parent=51 // pred_fallthru
          _
        // Predicated region
        $region57: #{tpu_custom_call.1} parent=51 // pred_check
          %p475 = pneg %p78
        $region58: #{tpu_custom_call.1} parent=51 // pred_check_branch
          %477 = sbr.rel (%p475) target = $region60
        $region59: #{tpu_custom_call.1} parent=51 // pred_region
          %s478 = sand.u32 %s32, 1
          %s479 = scalar_lea.sflag [#allocation6], %s478
          %s480 = sand.u32 %s68, 1
          %s481 = smul.addr %s480, 8
          %s482 = scalar_lea.vmem [#allocation5], %s481
          %s484 = ssub.s32 128, 128
          %485 = vsyncadd %s479, %s484
          %s486 = smul.addr %s32, 128
          %s487 = scalar_lea.hbm %s1, %s486
          %s489 = sshll.u32 %s482, 4
          %s490 = int_to_ptr.vmem [resolvable:$true] %s489
          %492 = dma.hbm_to_vmem [thread:$0]  %s487, 128, %s490, %s479
        $region60: #{tpu_custom_call.1} parent=51 // pred_fallthru
          _
        // Predicated region
        $region61: #{tpu_custom_call.1} parent=51 // pred_check
          %p493 = pneg %p104
        $region62: #{tpu_custom_call.1} parent=51 // pred_check_branch
          %495 = sbr.rel (%p493) target = $region64
        $region63: #{tpu_custom_call.1} parent=51 // pred_region
          %s496 = sand.u32 %s32, 1
          %s497 = scalar_lea.sflag [#allocation6], %s496
          %s498 = sand.u32 %s94, 1
          %s499 = smul.addr %s498, 16
          %s500 = scalar_lea.vmem [#allocation7], %s499
          %s502 = ssub.s32 256, 256
          %503 = vsyncadd %s497, %s502
          %s504 = smul.addr %s32, 4
          %s505 = smul.addr %s504, 64
          %s506 = scalar_lea.hbm %s2, %s505
          %s507 = sshll.u32 %s500, 4
          %s508 = int_to_ptr.vmem [resolvable:$true] %s507
          %513 = dma.hbm_to_vmem [thread:$0]  %s506, 256, %s508, %s497, 64, 64, 4
        $region64: #{tpu_custom_call.1} parent=51 // pred_fallthru
          _
      $region52: #{tpu_custom_call.1} parent=5 // pred_fallthru
        _
      %p514 = scmp.le.s32.totalorder 1, %s32
      %p515 = scmp.lt.s32.totalorder %s32, 3
      %p516 = pnand %p514, %p515
      %p517 = pneg %p516
      // Predicated region
      $region65: #{tpu_custom_call.1} parent=5 // pred_check
        _
      $region66: #{tpu_custom_call.1} parent=5 // pred_check_branch
        %519 = sbr.rel (%p516) target = $region68
      $region67: #{tpu_custom_call.1} parent=5 // pred_region
        %s520 = ssub.s32 %s32, 1
        %s521 = sand.u32 %s45, 1
        %s522 = scalar_lea.sflag [#allocation3], %s521
        %s523 = sand.u32 %s45, 1
        %s524 = smul.addr %s523, 8
        %s525 = scalar_lea.vmem [#allocation2], %s524
        // Predicated region
        $region69: #{tpu_custom_call.1} parent=67 // pred_check
          %p526 = pneg %p58
        $region70: #{tpu_custom_call.1} parent=67 // pred_check_branch
          %528 = sbr.rel (%p526) target = $region72
        $region71: #{tpu_custom_call.1} parent=67 // pred_region
          %529 = dma.done %s522, 128
        $region72: #{tpu_custom_call.1} parent=67 // pred_fallthru
          _
        %s530 = sand.u32 %s37, 1
        %s531 = scalar_lea.sflag [#allocation6], %s530
        %s532 = sand.u32 %s71, 1
        %s533 = smul.addr %s532, 8
        %s534 = scalar_lea.vmem [#allocation5], %s533
        // Predicated region
        $region73: #{tpu_custom_call.1} parent=67 // pred_check
          %p535 = pneg %p84
        $region74: #{tpu_custom_call.1} parent=67 // pred_check_branch
          %537 = sbr.rel (%p535) target = $region76
        $region75: #{tpu_custom_call.1} parent=67 // pred_region
          %538 = dma.done %s531, 128
        $region76: #{tpu_custom_call.1} parent=67 // pred_fallthru
          _
        %s539 = sand.u32 %s37, 1
        %s540 = scalar_lea.sflag [#allocation6], %s539
        %s541 = sand.u32 %s97, 1
        %s542 = smul.addr %s541, 16
        %s543 = scalar_lea.vmem [#allocation7], %s542
        // Predicated region
        $region77: #{tpu_custom_call.1} parent=67 // pred_check
          %p544 = pneg %p110
        $region78: #{tpu_custom_call.1} parent=67 // pred_check_branch
          %546 = sbr.rel (%p544) target = $region80
        $region79: #{tpu_custom_call.1} parent=67 // pred_region
          %547 = dma.done %s540, 256
        $region80: #{tpu_custom_call.1} parent=67 // pred_fallthru
          _
        // Predicated region
        $region81: #{tpu_custom_call.1} parent=67 // pred_check
          %p548 = pneg %p131
        $region82: #{tpu_custom_call.1} parent=67 // pred_check_branch
          %550 = sbr.rel (%p548) target = $region84
        $region83: #{tpu_custom_call.1} parent=67 // pred_region
          %551 = dma.done [#allocation9], 1024
        $region84: #{tpu_custom_call.1} parent=67 // pred_fallthru
          _
        // Predicated region
        $region85: #{tpu_custom_call.1} parent=67 // pred_check
          %p552 = pneg %p152
        $region86: #{tpu_custom_call.1} parent=67 // pred_check_branch
          %554 = sbr.rel (%p552) target = $region88
        $region87: #{tpu_custom_call.1} parent=67 // pred_region
          %555 = dma.done [#allocation9], 1024
        $region88: #{tpu_custom_call.1} parent=67 // pred_fallthru
          _
        // Predicated region
        $region89: #{tpu_custom_call.1} parent=67 // pred_check
          %p556 = pneg %p173
        $region90: #{tpu_custom_call.1} parent=67 // pred_check_branch
          %558 = sbr.rel (%p556) target = $region92
        $region91: #{tpu_custom_call.1} parent=67 // pred_region
          %559 = dma.done [#allocation12], 1024
        $region92: #{tpu_custom_call.1} parent=67 // pred_fallthru
          _
        // Predicated region
        $region93: #{tpu_custom_call.1} parent=67 // pred_check
          %p560 = pneg %p194
        $region94: #{tpu_custom_call.1} parent=67 // pred_check_branch
          %562 = sbr.rel (%p560) target = $region96
        $region95: #{tpu_custom_call.1} parent=67 // pred_region
          %563 = dma.done [#allocation12], 256
        $region96: #{tpu_custom_call.1} parent=67 // pred_fallthru
          _
        // Predicated region
        $region97: #{tpu_custom_call.1} parent=67 // pred_check
          %p564 = pneg %p215
        $region98: #{tpu_custom_call.1} parent=67 // pred_check_branch
          %566 = sbr.rel (%p564) target = $region100
        $region99: #{tpu_custom_call.1} parent=67 // pred_region
          %567 = dma.done [#allocation15], 256
        $region100: #{tpu_custom_call.1} parent=67 // pred_fallthru
          _
        // Predicated region
        $region101: #{tpu_custom_call.1} parent=67 // pred_check
          %p568 = pneg %p236
        $region102: #{tpu_custom_call.1} parent=67 // pred_check_branch
          %570 = sbr.rel (%p568) target = $region104
        $region103: #{tpu_custom_call.1} parent=67 // pred_region
          %571 = dma.done [#allocation15], 512
        $region104: #{tpu_custom_call.1} parent=67 // pred_fallthru
          _
        // Predicated region
        $region105: #{tpu_custom_call.1} parent=67 // pred_check
          %p572 = pneg %p257
        $region106: #{tpu_custom_call.1} parent=67 // pred_check_branch
          %574 = sbr.rel (%p572) target = $region108
        $region107: #{tpu_custom_call.1} parent=67 // pred_region
          %575 = dma.done [#allocation18], 256
        $region108: #{tpu_custom_call.1} parent=67 // pred_fallthru
          _
        // Predicated region
        $region109: #{tpu_custom_call.1} parent=67 // pred_check
          %p576 = pneg %p278
        $region110: #{tpu_custom_call.1} parent=67 // pred_check_branch
          %578 = sbr.rel (%p576) target = $region112
        $region111: #{tpu_custom_call.1} parent=67 // pred_region
          %579 = dma.done [#allocation18], 128
        $region112: #{tpu_custom_call.1} parent=67 // pred_fallthru
          _
        // Predicated region
        $region113: #{tpu_custom_call.1} parent=67 // pred_check
          %p580 = pneg %p299
        $region114: #{tpu_custom_call.1} parent=67 // pred_check_branch
          %582 = sbr.rel (%p580) target = $region116
        $region115: #{tpu_custom_call.1} parent=67 // pred_region
          %583 = dma.done [#allocation21], 16
        $region116: #{tpu_custom_call.1} parent=67 // pred_fallthru
          _
        %s584 = sand.u32 %s45, 1
        %s585 = scalar_lea.sflag [#allocation3], %s584
        %s586 = sand.u32 %s45, 1
        %s587 = smul.addr %s586, 8
        %s588 = scalar_lea.vmem [#allocation2], %s587
        %p589 = pneg %p58
        %p590 = pneg %p55
        %s591 = sand.u32 %s37, 1
        %s592 = scalar_lea.sflag [#allocation6], %s591
        %s593 = sand.u32 %s71, 1
        %s594 = smul.addr %s593, 8
        %s595 = scalar_lea.vmem [#allocation5], %s594
        %p596 = pneg %p84
        %p597 = pneg %p81
        %s598 = sand.u32 %s37, 1
        %s599 = scalar_lea.sflag [#allocation6], %s598
        %s600 = sand.u32 %s97, 1
        %s601 = smul.addr %s600, 16
        %s602 = scalar_lea.vmem [#allocation7], %s601
        %p603 = pneg %p110
        %p604 = pneg %p107
        %p605 = pneg %p131
        %p606 = pneg %p128
        %p607 = pneg %p152
        %p608 = pneg %p149
        %p609 = pneg %p173
        %p610 = pneg %p170
        %p611 = pneg %p194
        %p612 = pneg %p191
        %p613 = pneg %p215
        %p614 = pneg %p212
        %p615 = pneg %p236
        %p616 = pneg %p233
        %p617 = pneg %p257
        %p618 = pneg %p254
        %p619 = pneg %p278
        %p620 = pneg %p275
        %p621 = pneg %p299
        %p622 = pneg %p296
        %p623 = pneg %p325
        %p624 = pneg %p322
        %s625 = sand.u32 %s312, 1
        %s626 = scalar_lea.sflag [#allocation4], %s625
        %s627 = sand.u32 %s312, 1
        %s628 = smul.addr %s627, 8
        %s629 = scalar_lea.vmem [#allocation22], %s628
        %v631 = vld [vmem:[%s525] sm:$0xff]
        %v632 = vpack.c.bf16 %v631, %v631
        %v633 = vld [vmem:[%s534] sm:$0xff]
        %v634 = vpack.c.bf16 %v633, %v633
        %v635 = vld [vmem:[#allocation19] sm:$0x1]
        %v636 = vld [vmem:[#allocation19 + $0x1] sm:$0x1]
        %v637 = vld [vmem:[#allocation19 + $0x2] sm:$0x1]
        %v638 = vld [vmem:[#allocation19 + $0x3] sm:$0x1]
        %v639 = vld [vmem:[#allocation19 + $0x4] sm:$0x1]
        %v640 = vld [vmem:[#allocation19 + $0x5] sm:$0x1]
        %v641 = vld [vmem:[#allocation8] sm:$0xf]
        %v642 = vld [vmem:[#allocation8 + $0x4] sm:$0xf]
        %v643 = vld [vmem:[#allocation8 + $0x8] sm:$0xf]
        %v644 = vld [vmem:[#allocation8 + $0xc] sm:$0xf]
        %v645 = vld [vmem:[#allocation10] sm:$0xf]
        %v646 = vld [vmem:[#allocation10 + $0x4] sm:$0xf]
        %v647 = vld [vmem:[#allocation10 + $0x8] sm:$0xf]
        %v648 = vld [vmem:[#allocation10 + $0xc] sm:$0xf]
        %v649 = vld [vmem:[#allocation11] sm:$0xf]
        %v650 = vld [vmem:[#allocation11 + $0x4] sm:$0xf]
        %v651 = vld [vmem:[#allocation11 + $0x8] sm:$0xf]
        %v652 = vld [vmem:[#allocation11 + $0xc] sm:$0xf]
        %v653 = vld [vmem:[#allocation17] sm:$0x1]
        %v654 = vld [vmem:[#allocation17 + $0x4] sm:$0x1]
        %v655 = vld [vmem:[#allocation17 + $0x8] sm:$0x1]
        %v656 = vlaneseq
        %v657 = vshrl.u32 %v656, 7
        %v658 = vsub.s32 0, %v657
        %v659 = vrot.slane %v653, %v658
        %v664 = vunpack.c.l.b16 %v641
        %v665 = vunpack.c.l.b16 %v642
        %v666 = vunpack.c.l.b16 %v643
        %v667 = vunpack.c.l.b16 %v644
        %v668 = vpack.c.b16 %v665, %v664
        %v669 = vpack.c.b16 %v667, %v666
        %vm672 = vcmask 261120
        %v674 = vsel %vm672, %v632, 0
        %676 = vmatprep.subr.bf16.mxu0 0
        %677 = vmatpush1.bf16.msra.mxu0 %v668
        %678 = vmatprep.subr.bf16.mxu0 0
        %679 = vmatpush1.bf16.msra.mxu0 %v669
        %680 = vmatprep.subr.bf16.mxu0 0
        %681 = vmatpush1.bf16.msra.mxu0 0
        %682 = vmatprep.subr.bf16.mxu0 0
        %683 = vmatpush1.bf16.msra.mxu0 0
        %684 = vmatprep.subr.bf16.mxu0 0
        %685 = vmatpush1.bf16.msra.mxu0 0
        %686 = vmatprep.subr.bf16.mxu0 0
        %687 = vmatpush1.bf16.msra.mxu0 0
        %688 = vmatprep.subr.bf16.mxu0 0
        %689 = vmatpush1.bf16.msra.mxu0 0
        %690 = vmatprep.subr.bf16.mxu0 0
        %691 = vmatpush1.bf16.msra.mxu0 0
        %692 = vmatprep.subr.bf16.mxu0 0
        %693 = vmatpush1.bf16.msra.mxu0 0
        %694 = vmatprep.subr.bf16.mxu0 0
        %695 = vmatpush1.bf16.msra.mxu0 0
        %696 = vmatprep.subr.bf16.mxu0 0
        %697 = vmatpush1.bf16.msra.mxu0 0
        %698 = vmatprep.subr.bf16.mxu0 0
        %699 = vmatpush1.bf16.msra.mxu0 0
        %700 = vmatprep.subr.bf16.mxu0 0
        %701 = vmatpush1.bf16.msra.mxu0 0
        %702 = vmatprep.subr.bf16.mxu0 0
        %703 = vmatpush1.bf16.msra.mxu0 0
        %704 = vmatprep.subr.bf16.mxu0 0
        %705 = vmatpush1.bf16.msra.mxu0 0
        %706 = vmatprep.subr.bf16.mxu0 0
        %707 = vmatpush1.bf16.msra.mxu0 0
        %708 = vmatprep.mubr.bf16.mxu0 0
        %709 = vmatmul.mubr.bf16.gmra.mrb[0].mxu0 %v674
        %v710 = vpop.f32.mrb[0].mxu0
        %v711 = vadd.f32 %v659, %v710
        %v712 = vpop.f32.mrb[0].mxu0
        %v713 = vpop.f32.mrb[0].mxu0
        %v714 = vpop.f32.mrb[0].mxu0
        %715 = vdwg.mxu0
        %v716 = vlaneseq
        %v717 = vshrl.u32 %v716, 7
        %v718 = vsub.s32 0, %v717
        %v719 = vrot.slane %v654, %v718
        %v724 = vunpack.c.l.b16 %v645
        %v725 = vunpack.c.l.b16 %v646
        %v726 = vunpack.c.l.b16 %v647
        %v727 = vunpack.c.l.b16 %v648
        %v728 = vpack.c.b16 %v725, %v724
        %v729 = vpack.c.b16 %v727, %v726
        %v733 = vsel %vm672, %v634, 0
        %735 = vmatprep.subr.bf16.mxu0 0
        %736 = vmatpush1.bf16.msra.mxu0 %v728
        %737 = vmatprep.subr.bf16.mxu0 0
        %738 = vmatpush1.bf16.msra.mxu0 %v729
        %739 = vmatprep.subr.bf16.mxu0 0
        %740 = vmatpush1.bf16.msra.mxu0 0
        %741 = vmatprep.subr.bf16.mxu0 0
        %742 = vmatpush1.bf16.msra.mxu0 0
        %743 = vmatprep.subr.bf16.mxu0 0
        %744 = vmatpush1.bf16.msra.mxu0 0
        %745 = vmatprep.subr.bf16.mxu0 0
        %746 = vmatpush1.bf16.msra.mxu0 0
        %747 = vmatprep.subr.bf16.mxu0 0
        %748 = vmatpush1.bf16.msra.mxu0 0
        %749 = vmatprep.subr.bf16.mxu0 0
        %750 = vmatpush1.bf16.msra.mxu0 0
        %751 = vmatprep.subr.bf16.mxu0 0
        %752 = vmatpush1.bf16.msra.mxu0 0
        %753 = vmatprep.subr.bf16.mxu0 0
        %754 = vmatpush1.bf16.msra.mxu0 0
        %755 = vmatprep.subr.bf16.mxu0 0
        %756 = vmatpush1.bf16.msra.mxu0 0
        %757 = vmatprep.subr.bf16.mxu0 0
        %758 = vmatpush1.bf16.msra.mxu0 0
        %759 = vmatprep.subr.bf16.mxu0 0
        %760 = vmatpush1.bf16.msra.mxu0 0
        %761 = vmatprep.subr.bf16.mxu0 0
        %762 = vmatpush1.bf16.msra.mxu0 0
        %763 = vmatprep.subr.bf16.mxu0 0
        %764 = vmatpush1.bf16.msra.mxu0 0
        %765 = vmatprep.subr.bf16.mxu0 0
        %766 = vmatpush1.bf16.msra.mxu0 0
        %767 = vmatprep.mubr.bf16.mxu0 0
        %768 = vmatmul.mubr.bf16.gmra.mrb[0].mxu0 %v733
        %v769 = vpop.f32.mrb[0].mxu0
        %v770 = vadd.f32 %v719, %v769
        %v771 = vpop.f32.mrb[0].mxu0
        %v772 = vpop.f32.mrb[0].mxu0
        %v773 = vpop.f32.mrb[0].mxu0
        %774 = vdwg.mxu0
        %775 = vmatprep.subr.bf16.mxu0 0
        %776 = vmatpush1.bf16.msra.mxu0 %v728
        %777 = vmatprep.subr.bf16.mxu0 0
        %778 = vmatpush1.bf16.msra.mxu0 %v729
        %779 = vmatprep.subr.bf16.mxu0 0
        %780 = vmatpush1.bf16.msra.mxu0 0
        %781 = vmatprep.subr.bf16.mxu0 0
        %782 = vmatpush1.bf16.msra.mxu0 0
        %783 = vmatprep.subr.bf16.mxu0 0
        %784 = vmatpush1.bf16.msra.mxu0 0
        %785 = vmatprep.subr.bf16.mxu0 0
        %786 = vmatpush1.bf16.msra.mxu0 0
        %787 = vmatprep.subr.bf16.mxu0 0
        %788 = vmatpush1.bf16.msra.mxu0 0
        %789 = vmatprep.subr.bf16.mxu0 0
        %790 = vmatpush1.bf16.msra.mxu0 0
        %791 = vmatprep.subr.bf16.mxu0 0
        %792 = vmatpush1.bf16.msra.mxu0 0
        %793 = vmatprep.subr.bf16.mxu0 0
        %794 = vmatpush1.bf16.msra.mxu0 0
        %795 = vmatprep.subr.bf16.mxu0 0
        %796 = vmatpush1.bf16.msra.mxu0 0
        %797 = vmatprep.subr.bf16.mxu0 0
        %798 = vmatpush1.bf16.msra.mxu0 0
        %799 = vmatprep.subr.bf16.mxu0 0
        %800 = vmatpush1.bf16.msra.mxu0 0
        %801 = vmatprep.subr.bf16.mxu0 0
        %802 = vmatpush1.bf16.msra.mxu0 0
        %803 = vmatprep.subr.bf16.mxu0 0
        %804 = vmatpush1.bf16.msra.mxu0 0
        %805 = vmatprep.subr.bf16.mxu0 0
        %806 = vmatpush1.bf16.msra.mxu0 0
        %807 = vmatprep.mubr.bf16.mxu0 0
        %808 = vmatmul.mubr.bf16.gmra.mrb[0].mxu0 %v674
        %v809 = vpop.f32.mrb[0].mxu0
        %v810 = vadd.f32 %v719, %v809
        %v811 = vpop.f32.mrb[0].mxu0
        %v812 = vpop.f32.mrb[0].mxu0
        %v813 = vpop.f32.mrb[0].mxu0
        %814 = vdwg.mxu0
        %v815 = vlaneseq
        %v816 = vshrl.u32 %v815, 7
        %v817 = vsub.s32 0, %v816
        %v818 = vrot.slane %v655, %v817
        %v823 = vunpack.c.l.b16 %v649
        %v824 = vunpack.c.l.b16 %v650
        %v825 = vunpack.c.l.b16 %v651
        %v826 = vunpack.c.l.b16 %v652
        %v827 = vpack.c.b16 %v824, %v823
        %v828 = vpack.c.b16 %v826, %v825
        %831 = vmatprep.subr.bf16.mxu0 0
        %832 = vmatpush1.bf16.msra.mxu0 %v827
        %833 = vmatprep.subr.bf16.mxu0 0
        %834 = vmatpush1.bf16.msra.mxu0 %v828
        %835 = vmatprep.subr.bf16.mxu0 0
        %836 = vmatpush1.bf16.msra.mxu0 0
        %837 = vmatprep.subr.bf16.mxu0 0
        %838 = vmatpush1.bf16.msra.mxu0 0
        %839 = vmatprep.subr.bf16.mxu0 0
        %840 = vmatpush1.bf16.msra.mxu0 0
        %841 = vmatprep.subr.bf16.mxu0 0
        %842 = vmatpush1.bf16.msra.mxu0 0
        %843 = vmatprep.subr.bf16.mxu0 0
        %844 = vmatpush1.bf16.msra.mxu0 0
        %845 = vmatprep.subr.bf16.mxu0 0
        %846 = vmatpush1.bf16.msra.mxu0 0
        %847 = vmatprep.subr.bf16.mxu0 0
        %848 = vmatpush1.bf16.msra.mxu0 0
        %849 = vmatprep.subr.bf16.mxu0 0
        %850 = vmatpush1.bf16.msra.mxu0 0
        %851 = vmatprep.subr.bf16.mxu0 0
        %852 = vmatpush1.bf16.msra.mxu0 0
        %853 = vmatprep.subr.bf16.mxu0 0
        %854 = vmatpush1.bf16.msra.mxu0 0
        %855 = vmatprep.subr.bf16.mxu0 0
        %856 = vmatpush1.bf16.msra.mxu0 0
        %857 = vmatprep.subr.bf16.mxu0 0
        %858 = vmatpush1.bf16.msra.mxu0 0
        %859 = vmatprep.subr.bf16.mxu0 0
        %860 = vmatpush1.bf16.msra.mxu0 0
        %861 = vmatprep.subr.bf16.mxu0 0
        %862 = vmatpush1.bf16.msra.mxu0 0
        %863 = vmatprep.mubr.bf16.mxu0 0
        %864 = vmatmul.mubr.bf16.gmra.mrb[0].mxu0 %v733
        %v865 = vpop.f32.mrb[0].mxu0
        %v866 = vadd.f32 %v818, %v865
        %v867 = vpop.f32.mrb[0].mxu0
        %v868 = vpop.f32.mrb[0].mxu0
        %v869 = vpop.f32.mrb[0].mxu0
        %870 = vdwg.mxu0
        %871 = vmatprep.subr.bf16.mxu0 0
        %872 = vmatpush1.bf16.msra.mxu0 %v827
        %873 = vmatprep.subr.bf16.mxu0 0
        %874 = vmatpush1.bf16.msra.mxu0 %v828
        %875 = vmatprep.subr.bf16.mxu0 0
        %876 = vmatpush1.bf16.msra.mxu0 0
        %877 = vmatprep.subr.bf16.mxu0 0
        %878 = vmatpush1.bf16.msra.mxu0 0
        %879 = vmatprep.subr.bf16.mxu0 0
        %880 = vmatpush1.bf16.msra.mxu0 0
        %881 = vmatprep.subr.bf16.mxu0 0
        %882 = vmatpush1.bf16.msra.mxu0 0
        %883 = vmatprep.subr.bf16.mxu0 0
        %884 = vmatpush1.bf16.msra.mxu0 0
        %885 = vmatprep.subr.bf16.mxu0 0
        %886 = vmatpush1.bf16.msra.mxu0 0
        %887 = vmatprep.subr.bf16.mxu0 0
        %888 = vmatpush1.bf16.msra.mxu0 0
        %889 = vmatprep.subr.bf16.mxu0 0
        %890 = vmatpush1.bf16.msra.mxu0 0
        %891 = vmatprep.subr.bf16.mxu0 0
        %892 = vmatpush1.bf16.msra.mxu0 0
        %893 = vmatprep.subr.bf16.mxu0 0
        %894 = vmatpush1.bf16.msra.mxu0 0
        %895 = vmatprep.subr.bf16.mxu0 0
        %896 = vmatpush1.bf16.msra.mxu0 0
        %897 = vmatprep.subr.bf16.mxu0 0
        %898 = vmatpush1.bf16.msra.mxu0 0
        %899 = vmatprep.subr.bf16.mxu0 0
        %900 = vmatpush1.bf16.msra.mxu0 0
        %901 = vmatprep.subr.bf16.mxu0 0
        %902 = vmatpush1.bf16.msra.mxu0 0
        %903 = vmatprep.mubr.bf16.mxu0 0
        %904 = vmatmul.mubr.bf16.gmra.mrb[0].mxu0 %v674
        %v905 = vpop.f32.mrb[0].mxu0
        %v906 = vadd.f32 %v818, %v905
        %v907 = vpop.f32.mrb[0].mxu0
        %v908 = vpop.f32.mrb[0].mxu0
        %v909 = vpop.f32.mrb[0].mxu0
        %910 = vdwg.mxu0
        %v911 = vpack.c.bf16 %v711, %v711
        %v912 = vpack.c.bf16 %v770, %v770
        %v913 = vpack.c.bf16 %v810, %v810
        %v915 = vrot.slane %v913, 4
        %vm916 = vcmask 1043456
        %v919 = vsel %vm916, %v912, %v915
        %v920 = vpack.c.bf16 %v866, %v866
        %v921 = vpack.c.bf16 %v906, %v906
        %v923 = vrot.slane %v921, 4
        %v926 = vsel %vm916, %v920, %v923
        %v928 = vld [vmem:[%s543] sm:$0xf]
        %v929 = vunpack.c.l.bf16 %v928
        %vm930 = vcmask 64512
        %v932 = vsel %vm930, %v911, 0
        %v934 = vsel %vm930, %v919, 0
        %936 = vmatprep.subr.bf16.mxu0 0
        %937 = vmatpush1.bf16.xpose.msra.mxu0 %v934
        %938 = vmatprep.subr.bf16.mxu0 0
        %939 = vmatpush1.bf16.xpose.msra.mxu0 0
        %940 = vmatprep.subr.bf16.mxu0 0
        %941 = vmatpush1.bf16.xpose.msra.mxu0 0
        %942 = vmatprep.subr.bf16.mxu0 0
        %943 = vmatpush1.bf16.xpose.msra.mxu0 0
        %944 = vmatprep.subr.bf16.mxu0 0
        %945 = vmatpush1.bf16.xpose.msra.mxu0 0
        %946 = vmatprep.subr.bf16.mxu0 0
        %947 = vmatpush1.bf16.xpose.msra.mxu0 0
        %948 = vmatprep.subr.bf16.mxu0 0
        %949 = vmatpush1.bf16.xpose.msra.mxu0 0
        %950 = vmatprep.subr.bf16.mxu0 0
        %951 = vmatpush1.bf16.xpose.msra.mxu0 0
        %952 = vmatprep.subr.bf16.mxu0 0
        %953 = vmatpush1.bf16.xpose.msra.mxu0 0
        %954 = vmatprep.subr.bf16.mxu0 0
        %955 = vmatpush1.bf16.xpose.msra.mxu0 0
        %956 = vmatprep.subr.bf16.mxu0 0
        %957 = vmatpush1.bf16.xpose.msra.mxu0 0
        %958 = vmatprep.subr.bf16.mxu0 0
        %959 = vmatpush1.bf16.xpose.msra.mxu0 0
        %960 = vmatprep.subr.bf16.mxu0 0
        %961 = vmatpush1.bf16.xpose.msra.mxu0 0
        %962 = vmatprep.subr.bf16.mxu0 0
        %963 = vmatpush1.bf16.xpose.msra.mxu0 0
        %964 = vmatprep.subr.bf16.mxu0 0
        %965 = vmatpush1.bf16.xpose.msra.mxu0 0
        %966 = vmatprep.subr.bf16.mxu0 0
        %967 = vmatpush1.bf16.xpose.msra.mxu0 0
        %968 = vmatprep.mubr.bf16.mxu0 0
        %969 = vmatmul.mubr.bf16.gmra.mrb[0].mxu0 %v932
        %v970 = vpop.f32.mrb[0].mxu0
        %v971 = vadd.f32 %v929, %v970
        %v972 = vpop.f32.mrb[0].mxu0
        %v973 = vpop.f32.mrb[0].mxu0
        %v974 = vpop.f32.mrb[0].mxu0
        %975 = vdwg.mxu0
        %vm976 = vcmask 130048
        %v977 = vsel %vm976, %v971, -inf
        %978 = vmax.xlane.f32.xlu0 %v977
        %v979 = vpop.xlane.xlu0 %978
        %v980 = vsub.f32 %v971, %v979
        %v981 = vmul.f32 %v980, 1.442695
        %v982 = vpow.pop %v981
        %v983 = vsel %vm976, %v982, 0.0
        %984 = vadd.xlane.f32.xlu0 %v983
        %v985 = vpop.xlane.xlu0 %984
        %v986 = vrcp.pop %v985
        %v987 = vmul.f32 %v982, %v986
        %v988 = vpack.c.bf16 %v987, %v987
        %v990 = vsel %vm976, %v988, 0
        %992 = vmatprep.subr.bf16.mxu0 0
        %993 = vmatpush1.bf16.msra.mxu0 %v926
        %994 = vmatprep.subr.bf16.mxu0 0
        %995 = vmatpush1.bf16.msra.mxu0 0
        %996 = vmatprep.subr.bf16.mxu0 0
        %997 = vmatpush1.bf16.msra.mxu0 0
        %998 = vmatprep.subr.bf16.mxu0 0
        %999 = vmatpush1.bf16.msra.mxu0 0
        %1000 = vmatprep.subr.bf16.mxu0 0
        %1001 = vmatpush1.bf16.msra.mxu0 0
        %1002 = vmatprep.subr.bf16.mxu0 0
        %1003 = vmatpush1.bf16.msra.mxu0 0
        %1004 = vmatprep.subr.bf16.mxu0 0
        %1005 = vmatpush1.bf16.msra.mxu0 0
        %1006 = vmatprep.subr.bf16.mxu0 0
        %1007 = vmatpush1.bf16.msra.mxu0 0
        %1008 = vmatprep.subr.bf16.mxu0 0
        %1009 = vmatpush1.bf16.msra.mxu0 0
        %1010 = vmatprep.subr.bf16.mxu0 0
        %1011 = vmatpush1.bf16.msra.mxu0 0
        %1012 = vmatprep.subr.bf16.mxu0 0
        %1013 = vmatpush1.bf16.msra.mxu0 0
        %1014 = vmatprep.subr.bf16.mxu0 0
        %1015 = vmatpush1.bf16.msra.mxu0 0
        %1016 = vmatprep.subr.bf16.mxu0 0
        %1017 = vmatpush1.bf16.msra.mxu0 0
        %1018 = vmatprep.subr.bf16.mxu0 0
        %1019 = vmatpush1.bf16.msra.mxu0 0
        %1020 = vmatprep.subr.bf16.mxu0 0
        %1021 = vmatpush1.bf16.msra.mxu0 0
        %1022 = vmatprep.subr.bf16.mxu0 0
        %1023 = vmatpush1.bf16.msra.mxu0 0
        %1024 = vmatprep.mubr.bf16.mxu0 0
        %1025 = vmatmul.mubr.bf16.gmra.mrb[0].mxu0 %v990
        %v1026 = vpop.f32.mrb[0].mxu0
        %v1027 = vadd.f32 0.0, %v1026
        %v1028 = vpop.f32.mrb[0].mxu0
        %v1029 = vpop.f32.mrb[0].mxu0
        %v1030 = vpop.f32.mrb[0].mxu0
        %1031 = vdwg.mxu0
        %v1032 = vpack.c.bf16 %v1027, %v1027
        %v1033 = vld [vmem:[#allocation13] sm:$0xf]
        %s1034 = scalar_lea.vmem [#allocation8], 16
        %v1035 = vld [vmem:[%s1034] sm:$0xf]
        %v1036 = vld [vmem:[%s1034 + $0x4] sm:$0xf]
        %v1037 = vld [vmem:[%s1034 + $0x8] sm:$0xf]
        %v1038 = vld [vmem:[%s1034 + $0xc] sm:$0xf]
        %s1039 = scalar_lea.vmem [#allocation10], 16
        %v1040 = vld [vmem:[%s1039] sm:$0xf]
        %v1041 = vld [vmem:[%s1039 + $0x4] sm:$0xf]
        %v1042 = vld [vmem:[%s1039 + $0x8] sm:$0xf]
        %v1043 = vld [vmem:[%s1039 + $0xc] sm:$0xf]
        %s1044 = scalar_lea.vmem [#allocation11], 16
        %v1045 = vld [vmem:[%s1044] sm:$0xf]
        %v1046 = vld [vmem:[%s1044 + $0x4] sm:$0xf]
        %v1047 = vld [vmem:[%s1044 + $0x8] sm:$0xf]
        %v1048 = vld [vmem:[%s1044 + $0xc] sm:$0xf]
        %v1049 = vld [vmem:[#allocation17 + $0x1] sm:$0x1]
        %v1050 = vld [vmem:[#allocation17 + $0x5] sm:$0x1]
        %v1051 = vld [vmem:[#allocation17 + $0x9] sm:$0x1]
        %v1052 = vlaneseq
        %v1053 = vshrl.u32 %v1052, 7
        %v1054 = vsub.s32 0, %v1053
        %v1055 = vrot.slane %v1049, %v1054
        %v1060 = vunpack.c.l.b16 %v1035
        %v1061 = vunpack.c.l.b16 %v1036
        %v1062 = vunpack.c.l.b16 %v1037
        %v1063 = vunpack.c.l.b16 %v1038
        %v1064 = vpack.c.b16 %v1061, %v1060
        %v1065 = vpack.c.b16 %v1063, %v1062
        %1068 = vmatprep.subr.bf16.mxu0 0
        %1069 = vmatpush1.bf16.msra.mxu0 %v1064
        %1070 = vmatprep.subr.bf16.mxu0 0
        %1071 = vmatpush1.bf16.msra.mxu0 %v1065
        %1072 = vmatprep.subr.bf16.mxu0 0
        %1073 = vmatpush1.bf16.msra.mxu0 0
        %1074 = vmatprep.subr.bf16.mxu0 0
        %1075 = vmatpush1.bf16.msra.mxu0 0
        %1076 = vmatprep.subr.bf16.mxu0 0
        %1077 = vmatpush1.bf16.msra.mxu0 0
        %1078 = vmatprep.subr.bf16.mxu0 0
        %1079 = vmatpush1.bf16.msra.mxu0 0
        %1080 = vmatprep.subr.bf16.mxu0 0
        %1081 = vmatpush1.bf16.msra.mxu0 0
        %1082 = vmatprep.subr.bf16.mxu0 0
        %1083 = vmatpush1.bf16.msra.mxu0 0
        %1084 = vmatprep.subr.bf16.mxu0 0
        %1085 = vmatpush1.bf16.msra.mxu0 0
        %1086 = vmatprep.subr.bf16.mxu0 0
        %1087 = vmatpush1.bf16.msra.mxu0 0
        %1088 = vmatprep.subr.bf16.mxu0 0
        %1089 = vmatpush1.bf16.msra.mxu0 0
        %1090 = vmatprep.subr.bf16.mxu0 0
        %1091 = vmatpush1.bf16.msra.mxu0 0
        %1092 = vmatprep.subr.bf16.mxu0 0
        %1093 = vmatpush1.bf16.msra.mxu0 0
        %1094 = vmatprep.subr.bf16.mxu0 0
        %1095 = vmatpush1.bf16.msra.mxu0 0
        %1096 = vmatprep.subr.bf16.mxu0 0
        %1097 = vmatpush1.bf16.msra.mxu0 0
        %1098 = vmatprep.subr.bf16.mxu0 0
        %1099 = vmatpush1.bf16.msra.mxu0 0
        %1100 = vmatprep.mubr.bf16.mxu0 0
        %1101 = vmatmul.mubr.bf16.gmra.mrb[0].mxu0 %v674
        %v1102 = vpop.f32.mrb[0].mxu0
        %v1103 = vadd.f32 %v1055, %v1102
        %v1104 = vpop.f32.mrb[0].mxu0
        %v1105 = vpop.f32.mrb[0].mxu0
        %v1106 = vpop.f32.mrb[0].mxu0
        %1107 = vdwg.mxu0
        %v1108 = vlaneseq
        %v1109 = vshrl.u32 %v1108, 7
        %v1110 = vsub.s32 0, %v1109
        %v1111 = vrot.slane %v1050, %v1110
        %v1116 = vunpack.c.l.b16 %v1040
        %v1117 = vunpack.c.l.b16 %v1041
        %v1118 = vunpack.c.l.b16 %v1042
        %v1119 = vunpack.c.l.b16 %v1043
        %v1120 = vpack.c.b16 %v1117, %v1116
        %v1121 = vpack.c.b16 %v1119, %v1118
        %1124 = vmatprep.subr.bf16.mxu0 0
        %1125 = vmatpush1.bf16.msra.mxu0 %v1120
        %1126 = vmatprep.subr.bf16.mxu0 0
        %1127 = vmatpush1.bf16.msra.mxu0 %v1121
        %1128 = vmatprep.subr.bf16.mxu0 0
        %1129 = vmatpush1.bf16.msra.mxu0 0
        %1130 = vmatprep.subr.bf16.mxu0 0
        %1131 = vmatpush1.bf16.msra.mxu0 0
        %1132 = vmatprep.subr.bf16.mxu0 0
        %1133 = vmatpush1.bf16.msra.mxu0 0
        %1134 = vmatprep.subr.bf16.mxu0 0
        %1135 = vmatpush1.bf16.msra.mxu0 0
        %1136 = vmatprep.subr.bf16.mxu0 0
        %1137 = vmatpush1.bf16.msra.mxu0 0
        %1138 = vmatprep.subr.bf16.mxu0 0
        %1139 = vmatpush1.bf16.msra.mxu0 0
        %1140 = vmatprep.subr.bf16.mxu0 0
        %1141 = vmatpush1.bf16.msra.mxu0 0
        %1142 = vmatprep.subr.bf16.mxu0 0
        %1143 = vmatpush1.bf16.msra.mxu0 0
        %1144 = vmatprep.subr.bf16.mxu0 0
        %1145 = vmatpush1.bf16.msra.mxu0 0
        %1146 = vmatprep.subr.bf16.mxu0 0
        %1147 = vmatpush1.bf16.msra.mxu0 0
        %1148 = vmatprep.subr.bf16.mxu0 0
        %1149 = vmatpush1.bf16.msra.mxu0 0
        %1150 = vmatprep.subr.bf16.mxu0 0
        %1151 = vmatpush1.bf16.msra.mxu0 0
        %1152 = vmatprep.subr.bf16.mxu0 0
        %1153 = vmatpush1.bf16.msra.mxu0 0
        %1154 = vmatprep.subr.bf16.mxu0 0
        %1155 = vmatpush1.bf16.msra.mxu0 0
        %1156 = vmatprep.mubr.bf16.mxu0 0
        %1157 = vmatmul.mubr.bf16.gmra.mrb[0].mxu0 %v733
        %v1158 = vpop.f32.mrb[0].mxu0
        %v1159 = vadd.f32 %v1111, %v1158
        %v1160 = vpop.f32.mrb[0].mxu0
        %v1161 = vpop.f32.mrb[0].mxu0
        %v1162 = vpop.f32.mrb[0].mxu0
        %1163 = vdwg.mxu0
        %1164 = vmatprep.subr.bf16.mxu0 0
        %1165 = vmatpush1.bf16.msra.mxu0 %v1120
        %1166 = vmatprep.subr.bf16.mxu0 0
        %1167 = vmatpush1.bf16.msra.mxu0 %v1121
        %1168 = vmatprep.subr.bf16.mxu0 0
        %1169 = vmatpush1.bf16.msra.mxu0 0
        %1170 = vmatprep.subr.bf16.mxu0 0
        %1171 = vmatpush1.bf16.msra.mxu0 0
        %1172 = vmatprep.subr.bf16.mxu0 0
        %1173 = vmatpush1.bf16.msra.mxu0 0
        %1174 = vmatprep.subr.bf16.mxu0 0
        %1175 = vmatpush1.bf16.msra.mxu0 0
        %1176 = vmatprep.subr.bf16.mxu0 0
        %1177 = vmatpush1.bf16.msra.mxu0 0
        %1178 = vmatprep.subr.bf16.mxu0 0
        %1179 = vmatpush1.bf16.msra.mxu0 0
        %1180 = vmatprep.subr.bf16.mxu0 0
        %1181 = vmatpush1.bf16.msra.mxu0 0
        %1182 = vmatprep.subr.bf16.mxu0 0
        %1183 = vmatpush1.bf16.msra.mxu0 0
        %1184 = vmatprep.subr.bf16.mxu0 0
        %1185 = vmatpush1.bf16.msra.mxu0 0
        %1186 = vmatprep.subr.bf16.mxu0 0
        %1187 = vmatpush1.bf16.msra.mxu0 0
        %1188 = vmatprep.subr.bf16.mxu0 0
        %1189 = vmatpush1.bf16.msra.mxu0 0
        %1190 = vmatprep.subr.bf16.mxu0 0
        %1191 = vmatpush1.bf16.msra.mxu0 0
        %1192 = vmatprep.subr.bf16.mxu0 0
        %1193 = vmatpush1.bf16.msra.mxu0 0
        %1194 = vmatprep.subr.bf16.mxu0 0
        %1195 = vmatpush1.bf16.msra.mxu0 0
        %1196 = vmatprep.mubr.bf16.mxu0 0
        %1197 = vmatmul.mubr.bf16.gmra.mrb[0].mxu0 %v674
        %v1198 = vpop.f32.mrb[0].mxu0
        %v1199 = vadd.f32 %v1111, %v1198
        %v1200 = vpop.f32.mrb[0].mxu0
        %v1201 = vpop.f32.mrb[0].mxu0
        %v1202 = vpop.f32.mrb[0].mxu0
        %1203 = vdwg.mxu0
        %v1204 = vlaneseq
        %v1205 = vshrl.u32 %v1204, 7
        %v1206 = vsub.s32 0, %v1205
        %v1207 = vrot.slane %v1051, %v1206
        %v1212 = vunpack.c.l.b16 %v1045
        %v1213 = vunpack.c.l.b16 %v1046
        %v1214 = vunpack.c.l.b16 %v1047
        %v1215 = vunpack.c.l.b16 %v1048
        %v1216 = vpack.c.b16 %v1213, %v1212
        %v1217 = vpack.c.b16 %v1215, %v1214
        %1220 = vmatprep.subr.bf16.mxu0 0
        %1221 = vmatpush1.bf16.msra.mxu0 %v1216
        %1222 = vmatprep.subr.bf16.mxu0 0
        %1223 = vmatpush1.bf16.msra.mxu0 %v1217
        %1224 = vmatprep.subr.bf16.mxu0 0
        %1225 = vmatpush1.bf16.msra.mxu0 0
        %1226 = vmatprep.subr.bf16.mxu0 0
        %1227 = vmatpush1.bf16.msra.mxu0 0
        %1228 = vmatprep.subr.bf16.mxu0 0
        %1229 = vmatpush1.bf16.msra.mxu0 0
        %1230 = vmatprep.subr.bf16.mxu0 0
        %1231 = vmatpush1.bf16.msra.mxu0 0
        %1232 = vmatprep.subr.bf16.mxu0 0
        %1233 = vmatpush1.bf16.msra.mxu0 0
        %1234 = vmatprep.subr.bf16.mxu0 0
        %1235 = vmatpush1.bf16.msra.mxu0 0
        %1236 = vmatprep.subr.bf16.mxu0 0
        %1237 = vmatpush1.bf16.msra.mxu0 0
        %1238 = vmatprep.subr.bf16.mxu0 0
        %1239 = vmatpush1.bf16.msra.mxu0 0
        %1240 = vmatprep.subr.bf16.mxu0 0
        %1241 = vmatpush1.bf16.msra.mxu0 0
        %1242 = vmatprep.subr.bf16.mxu0 0
        %1243 = vmatpush1.bf16.msra.mxu0 0
        %1244 = vmatprep.subr.bf16.mxu0 0
        %1245 = vmatpush1.bf16.msra.mxu0 0
        %1246 = vmatprep.subr.bf16.mxu0 0
        %1247 = vmatpush1.bf16.msra.mxu0 0
        %1248 = vmatprep.subr.bf16.mxu0 0
        %1249 = vmatpush1.bf16.msra.mxu0 0
        %1250 = vmatprep.subr.bf16.mxu0 0
        %1251 = vmatpush1.bf16.msra.mxu0 0
        %1252 = vmatprep.mubr.bf16.mxu0 0
        %1253 = vmatmul.mubr.bf16.gmra.mrb[0].mxu0 %v733
        %v1254 = vpop.f32.mrb[0].mxu0
        %v1255 = vadd.f32 %v1207, %v1254
        %v1256 = vpop.f32.mrb[0].mxu0
        %v1257 = vpop.f32.mrb[0].mxu0
        %v1258 = vpop.f32.mrb[0].mxu0
        %1259 = vdwg.mxu0
        %1260 = vmatprep.subr.bf16.mxu0 0
        %1261 = vmatpush1.bf16.msra.mxu0 %v1216
        %1262 = vmatprep.subr.bf16.mxu0 0
        %1263 = vmatpush1.bf16.msra.mxu0 %v1217
        %1264 = vmatprep.subr.bf16.mxu0 0
        %1265 = vmatpush1.bf16.msra.mxu0 0
        %1266 = vmatprep.subr.bf16.mxu0 0
        %1267 = vmatpush1.bf16.msra.mxu0 0
        %1268 = vmatprep.subr.bf16.mxu0 0
        %1269 = vmatpush1.bf16.msra.mxu0 0
        %1270 = vmatprep.subr.bf16.mxu0 0
        %1271 = vmatpush1.bf16.msra.mxu0 0
        %1272 = vmatprep.subr.bf16.mxu0 0
        %1273 = vmatpush1.bf16.msra.mxu0 0
        %1274 = vmatprep.subr.bf16.mxu0 0
        %1275 = vmatpush1.bf16.msra.mxu0 0
        %1276 = vmatprep.subr.bf16.mxu0 0
        %1277 = vmatpush1.bf16.msra.mxu0 0
        %1278 = vmatprep.subr.bf16.mxu0 0
        %1279 = vmatpush1.bf16.msra.mxu0 0
        %1280 = vmatprep.subr.bf16.mxu0 0
        %1281 = vmatpush1.bf16.msra.mxu0 0
        %1282 = vmatprep.subr.bf16.mxu0 0
        %1283 = vmatpush1.bf16.msra.mxu0 0
        %1284 = vmatprep.subr.bf16.mxu0 0
        %1285 = vmatpush1.bf16.msra.mxu0 0
        %1286 = vmatprep.subr.bf16.mxu0 0
        %1287 = vmatpush1.bf16.msra.mxu0 0
        %1288 = vmatprep.subr.bf16.mxu0 0
        %1289 = vmatpush1.bf16.msra.mxu0 0
        %1290 = vmatprep.subr.bf16.mxu0 0
        %1291 = vmatpush1.bf16.msra.mxu0 0
        %1292 = vmatprep.mubr.bf16.mxu0 0
        %1293 = vmatmul.mubr.bf16.gmra.mrb[0].mxu0 %v674
        %v1294 = vpop.f32.mrb[0].mxu0
        %v1295 = vadd.f32 %v1207, %v1294
        %v1296 = vpop.f32.mrb[0].mxu0
        %v1297 = vpop.f32.mrb[0].mxu0
        %v1298 = vpop.f32.mrb[0].mxu0
        %1299 = vdwg.mxu0
        %v1300 = vpack.c.bf16 %v1103, %v1103
        %v1301 = vpack.c.bf16 %v1159, %v1159
        %v1302 = vpack.c.bf16 %v1199, %v1199
        %v1304 = vrot.slane %v1302, 4
        %v1307 = vsel %vm916, %v1301, %v1304
        %v1308 = vpack.c.bf16 %v1255, %v1255
        %v1309 = vpack.c.bf16 %v1295, %v1295
        %v1311 = vrot.slane %v1309, 4
        %v1314 = vsel %vm916, %v1308, %v1311
        %s1316 = scalar_lea.vmem %s543, 4 [#allocation7]
        %v1317 = vld [vmem:[%s1316] sm:$0xf]
        %v1318 = vunpack.c.l.bf16 %v1317
        %v1320 = vsel %vm930, %v1300, 0
        %v1322 = vsel %vm930, %v1307, 0
        %1324 = vmatprep.subr.bf16.mxu0 0
        %1325 = vmatpush1.bf16.xpose.msra.mxu0 %v1322
        %1326 = vmatprep.subr.bf16.mxu0 0
        %1327 = vmatpush1.bf16.xpose.msra.mxu0 0
        %1328 = vmatprep.subr.bf16.mxu0 0
        %1329 = vmatpush1.bf16.xpose.msra.mxu0 0
        %1330 = vmatprep.subr.bf16.mxu0 0
        %1331 = vmatpush1.bf16.xpose.msra.mxu0 0
        %1332 = vmatprep.subr.bf16.mxu0 0
        %1333 = vmatpush1.bf16.xpose.msra.mxu0 0
        %1334 = vmatprep.subr.bf16.mxu0 0
        %1335 = vmatpush1.bf16.xpose.msra.mxu0 0
        %1336 = vmatprep.subr.bf16.mxu0 0
        %1337 = vmatpush1.bf16.xpose.msra.mxu0 0
        %1338 = vmatprep.subr.bf16.mxu0 0
        %1339 = vmatpush1.bf16.xpose.msra.mxu0 0
        %1340 = vmatprep.subr.bf16.mxu0 0
        %1341 = vmatpush1.bf16.xpose.msra.mxu0 0
        %1342 = vmatprep.subr.bf16.mxu0 0
        %1343 = vmatpush1.bf16.xpose.msra.mxu0 0
        %1344 = vmatprep.subr.bf16.mxu0 0
        %1345 = vmatpush1.bf16.xpose.msra.mxu0 0
        %1346 = vmatprep.subr.bf16.mxu0 0
        %1347 = vmatpush1.bf16.xpose.msra.mxu0 0
        %1348 = vmatprep.subr.bf16.mxu0 0
        %1349 = vmatpush1.bf16.xpose.msra.mxu0 0
        %1350 = vmatprep.subr.bf16.mxu0 0
        %1351 = vmatpush1.bf16.xpose.msra.mxu0 0
        %1352 = vmatprep.subr.bf16.mxu0 0
        %1353 = vmatpush1.bf16.xpose.msra.mxu0 0
        %1354 = vmatprep.subr.bf16.mxu0 0
        %1355 = vmatpush1.bf16.xpose.msra.mxu0 0
        %1356 = vmatprep.mubr.bf16.mxu0 0
        %1357 = vmatmul.mubr.bf16.gmra.mrb[0].mxu0 %v1320
        %v1358 = vpop.f32.mrb[0].mxu0
        %v1359 = vadd.f32 %v1318, %v1358
        %v1360 = vpop.f32.mrb[0].mxu0
        %v1361 = vpop.f32.mrb[0].mxu0
        %v1362 = vpop.f32.mrb[0].mxu0
        %1363 = vdwg.mxu0
        %v1364 = vsel %vm976, %v1359, -inf
        %1365 = vmax.xlane.f32.xlu0 %v1364
        %v1366 = vpop.xlane.xlu0 %1365
        %v1367 = vsub.f32 %v1359, %v1366
        %v1368 = vmul.f32 %v1367, 1.442695
        %v1369 = vpow.pop %v1368
        %v1370 = vsel %vm976, %v1369, 0.0
        %1371 = vadd.xlane.f32.xlu0 %v1370
        %v1372 = vpop.xlane.xlu0 %1371
        %v1373 = vrcp.pop %v1372
        %v1374 = vmul.f32 %v1369, %v1373
        %v1375 = vpack.c.bf16 %v1374, %v1374
        %v1377 = vsel %vm976, %v1375, 0
        %1379 = vmatprep.subr.bf16.mxu0 0
        %1380 = vmatpush1.bf16.msra.mxu0 %v1314
        %1381 = vmatprep.subr.bf16.mxu0 0
        %1382 = vmatpush1.bf16.msra.mxu0 0
        %1383 = vmatprep.subr.bf16.mxu0 0
        %1384 = vmatpush1.bf16.msra.mxu0 0
        %1385 = vmatprep.subr.bf16.mxu0 0
        %1386 = vmatpush1.bf16.msra.mxu0 0
        %1387 = vmatprep.subr.bf16.mxu0 0
        %1388 = vmatpush1.bf16.msra.mxu0 0
        %1389 = vmatprep.subr.bf16.mxu0 0
        %1390 = vmatpush1.bf16.msra.mxu0 0
        %1391 = vmatprep.subr.bf16.mxu0 0
        %1392 = vmatpush1.bf16.msra.mxu0 0
        %1393 = vmatprep.subr.bf16.mxu0 0
        %1394 = vmatpush1.bf16.msra.mxu0 0
        %1395 = vmatprep.subr.bf16.mxu0 0
        %1396 = vmatpush1.bf16.msra.mxu0 0
        %1397 = vmatprep.subr.bf16.mxu0 0
        %1398 = vmatpush1.bf16.msra.mxu0 0
        %1399 = vmatprep.subr.bf16.mxu0 0
        %1400 = vmatpush1.bf16.msra.mxu0 0
        %1401 = vmatprep.subr.bf16.mxu0 0
        %1402 = vmatpush1.bf16.msra.mxu0 0
        %1403 = vmatprep.subr.bf16.mxu0 0
        %1404 = vmatpush1.bf16.msra.mxu0 0
        %1405 = vmatprep.subr.bf16.mxu0 0
        %1406 = vmatpush1.bf16.msra.mxu0 0
        %1407 = vmatprep.subr.bf16.mxu0 0
        %1408 = vmatpush1.bf16.msra.mxu0 0
        %1409 = vmatprep.subr.bf16.mxu0 0
        %1410 = vmatpush1.bf16.msra.mxu0 0
        %1411 = vmatprep.mubr.bf16.mxu0 0
        %1412 = vmatmul.mubr.bf16.gmra.mrb[0].mxu0 %v1377
        %v1413 = vpop.f32.mrb[0].mxu0
        %v1414 = vadd.f32 0.0, %v1413
        %v1415 = vpop.f32.mrb[0].mxu0
        %v1416 = vpop.f32.mrb[0].mxu0
        %v1417 = vpop.f32.mrb[0].mxu0
        %1418 = vdwg.mxu0
        %v1419 = vpack.c.bf16 %v1414, %v1414
        %s1420 = scalar_lea.vmem [#allocation13], 4
        %v1421 = vld [vmem:[%s1420] sm:$0xf]
        %v1423 = vsel %vm930, %v1419, 0
        %v1426 = vsel %vm916, %v1421, 0
        %1428 = vmatprep.subr.bf16.mxu0 0
        %1429 = vmatpush1.bf16.msra.mxu0 %v1426
        %1430 = vmatprep.subr.bf16.mxu0 0
        %1431 = vmatpush1.bf16.msra.mxu0 0
        %1432 = vmatprep.subr.bf16.mxu0 0
        %1433 = vmatpush1.bf16.msra.mxu0 0
        %1434 = vmatprep.subr.bf16.mxu0 0
        %1435 = vmatpush1.bf16.msra.mxu0 0
        %1436 = vmatprep.subr.bf16.mxu0 0
        %1437 = vmatpush1.bf16.msra.mxu0 0
        %1438 = vmatprep.subr.bf16.mxu0 0
        %1439 = vmatpush1.bf16.msra.mxu0 0
        %1440 = vmatprep.subr.bf16.mxu0 0
        %1441 = vmatpush1.bf16.msra.mxu0 0
        %1442 = vmatprep.subr.bf16.mxu0 0
        %1443 = vmatpush1.bf16.msra.mxu0 0
        %1444 = vmatprep.subr.bf16.mxu0 0
        %1445 = vmatpush1.bf16.msra.mxu0 0
        %1446 = vmatprep.subr.bf16.mxu0 0
        %1447 = vmatpush1.bf16.msra.mxu0 0
        %1448 = vmatprep.subr.bf16.mxu0 0
        %1449 = vmatpush1.bf16.msra.mxu0 0
        %1450 = vmatprep.subr.bf16.mxu0 0
        %1451 = vmatpush1.bf16.msra.mxu0 0
        %1452 = vmatprep.subr.bf16.mxu0 0
        %1453 = vmatpush1.bf16.msra.mxu0 0
        %1454 = vmatprep.subr.bf16.mxu0 0
        %1455 = vmatpush1.bf16.msra.mxu0 0
        %1456 = vmatprep.subr.bf16.mxu0 0
        %1457 = vmatpush1.bf16.msra.mxu0 0
        %1458 = vmatprep.subr.bf16.mxu0 0
        %1459 = vmatpush1.bf16.msra.mxu0 0
        %1460 = vmatprep.mubr.bf16.mxu0 0
        %1461 = vmatmul.mubr.bf16.gmra.mrb[0].mxu0 %v1423
        %v1462 = vpop.f32.mrb[0].mxu0
        %v1463 = vadd.f32 0.0, %v1462
        %v1464 = vpop.f32.mrb[0].mxu0
        %v1465 = vpop.f32.mrb[0].mxu0
        %v1466 = vpop.f32.mrb[0].mxu0
        %1467 = vdwg.mxu0
        %v1469 = vsel %vm930, %v1032, 0
        %v1472 = vsel %vm916, %v1033, 0
        %1474 = vmatprep.subr.bf16.mxu0 0
        %1475 = vmatpush1.bf16.msra.mxu0 %v1472
        %1476 = vmatprep.subr.bf16.mxu0 0
        %1477 = vmatpush1.bf16.msra.mxu0 0
        %1478 = vmatprep.subr.bf16.mxu0 0
        %1479 = vmatpush1.bf16.msra.mxu0 0
        %1480 = vmatprep.subr.bf16.mxu0 0
        %1481 = vmatpush1.bf16.msra.mxu0 0
        %1482 = vmatprep.subr.bf16.mxu0 0
        %1483 = vmatpush1.bf16.msra.mxu0 0
        %1484 = vmatprep.subr.bf16.mxu0 0
        %1485 = vmatpush1.bf16.msra.mxu0 0
        %1486 = vmatprep.subr.bf16.mxu0 0
        %1487 = vmatpush1.bf16.msra.mxu0 0
        %1488 = vmatprep.subr.bf16.mxu0 0
        %1489 = vmatpush1.bf16.msra.mxu0 0
        %1490 = vmatprep.subr.bf16.mxu0 0
        %1491 = vmatpush1.bf16.msra.mxu0 0
        %1492 = vmatprep.subr.bf16.mxu0 0
        %1493 = vmatpush1.bf16.msra.mxu0 0
        %1494 = vmatprep.subr.bf16.mxu0 0
        %1495 = vmatpush1.bf16.msra.mxu0 0
        %1496 = vmatprep.subr.bf16.mxu0 0
        %1497 = vmatpush1.bf16.msra.mxu0 0
        %1498 = vmatprep.subr.bf16.mxu0 0
        %1499 = vmatpush1.bf16.msra.mxu0 0
        %1500 = vmatprep.subr.bf16.mxu0 0
        %1501 = vmatpush1.bf16.msra.mxu0 0
        %1502 = vmatprep.subr.bf16.mxu0 0
        %1503 = vmatpush1.bf16.msra.mxu0 0
        %1504 = vmatprep.subr.bf16.mxu0 0
        %1505 = vmatpush1.bf16.msra.mxu0 0
        %1506 = vmatprep.mubr.bf16.mxu0 0
        %1507 = vmatmul.mubr.bf16.gmra.mrb[0].mxu0 %v1469
        %v1508 = vpop.f32.mrb[0].mxu0
        %v1509 = vadd.f32 %v1463, %v1508
        %v1510 = vpop.f32.mrb[0].mxu0
        %v1511 = vpop.f32.mrb[0].mxu0
        %v1512 = vpop.f32.mrb[0].mxu0
        %1513 = vdwg.mxu0
        %s1514 = scalar_lea.vmem [#allocation8], 32
        %v1515 = vld [vmem:[%s1514] sm:$0xf]
        %v1516 = vld [vmem:[%s1514 + $0x4] sm:$0xf]
        %v1517 = vld [vmem:[%s1514 + $0x8] sm:$0xf]
        %v1518 = vld [vmem:[%s1514 + $0xc] sm:$0xf]
        %s1519 = scalar_lea.vmem [#allocation10], 32
        %v1520 = vld [vmem:[%s1519] sm:$0xf]
        %v1521 = vld [vmem:[%s1519 + $0x4] sm:$0xf]
        %v1522 = vld [vmem:[%s1519 + $0x8] sm:$0xf]
        %v1523 = vld [vmem:[%s1519 + $0xc] sm:$0xf]
        %s1524 = scalar_lea.vmem [#allocation11], 32
        %v1525 = vld [vmem:[%s1524] sm:$0xf]
        %v1526 = vld [vmem:[%s1524 + $0x4] sm:$0xf]
        %v1527 = vld [vmem:[%s1524 + $0x8] sm:$0xf]
        %v1528 = vld [vmem:[%s1524 + $0xc] sm:$0xf]
        %v1529 = vld [vmem:[#allocation17 + $0x2] sm:$0x1]
        %v1530 = vld [vmem:[#allocation17 + $0x6] sm:$0x1]
        %v1531 = vld [vmem:[#allocation17 + $0xa] sm:$0x1]
        %v1532 = vlaneseq
        %v1533 = vshrl.u32 %v1532, 7
        %v1534 = vsub.s32 0, %v1533
        %v1535 = vrot.slane %v1529, %v1534
        %v1540 = vunpack.c.l.b16 %v1515
        %v1541 = vunpack.c.l.b16 %v1516
        %v1542 = vunpack.c.l.b16 %v1517
        %v1543 = vunpack.c.l.b16 %v1518
        %v1544 = vpack.c.b16 %v1541, %v1540
        %v1545 = vpack.c.b16 %v1543, %v1542
        %1548 = vmatprep.subr.bf16.mxu0 0
        %1549 = vmatpush1.bf16.msra.mxu0 %v1544
        %1550 = vmatprep.subr.bf16.mxu0 0
        %1551 = vmatpush1.bf16.msra.mxu0 %v1545
        %1552 = vmatprep.subr.bf16.mxu0 0
        %1553 = vmatpush1.bf16.msra.mxu0 0
        %1554 = vmatprep.subr.bf16.mxu0 0
        %1555 = vmatpush1.bf16.msra.mxu0 0
        %1556 = vmatprep.subr.bf16.mxu0 0
        %1557 = vmatpush1.bf16.msra.mxu0 0
        %1558 = vmatprep.subr.bf16.mxu0 0
        %1559 = vmatpush1.bf16.msra.mxu0 0
        %1560 = vmatprep.subr.bf16.mxu0 0
        %1561 = vmatpush1.bf16.msra.mxu0 0
        %1562 = vmatprep.subr.bf16.mxu0 0
        %1563 = vmatpush1.bf16.msra.mxu0 0
        %1564 = vmatprep.subr.bf16.mxu0 0
        %1565 = vmatpush1.bf16.msra.mxu0 0
        %1566 = vmatprep.subr.bf16.mxu0 0
        %1567 = vmatpush1.bf16.msra.mxu0 0
        %1568 = vmatprep.subr.bf16.mxu0 0
        %1569 = vmatpush1.bf16.msra.mxu0 0
        %1570 = vmatprep.subr.bf16.mxu0 0
        %1571 = vmatpush1.bf16.msra.mxu0 0
        %1572 = vmatprep.subr.bf16.mxu0 0
        %1573 = vmatpush1.bf16.msra.mxu0 0
        %1574 = vmatprep.subr.bf16.mxu0 0
        %1575 = vmatpush1.bf16.msra.mxu0 0
        %1576 = vmatprep.subr.bf16.mxu0 0
        %1577 = vmatpush1.bf16.msra.mxu0 0
        %1578 = vmatprep.subr.bf16.mxu0 0
        %1579 = vmatpush1.bf16.msra.mxu0 0
        %1580 = vmatprep.mubr.bf16.mxu0 0
        %1581 = vmatmul.mubr.bf16.gmra.mrb[0].mxu0 %v674
        %v1582 = vpop.f32.mrb[0].mxu0
        %v1583 = vadd.f32 %v1535, %v1582
        %v1584 = vpop.f32.mrb[0].mxu0
        %v1585 = vpop.f32.mrb[0].mxu0
        %v1586 = vpop.f32.mrb[0].mxu0
        %1587 = vdwg.mxu0
        %v1588 = vlaneseq
        %v1589 = vshrl.u32 %v1588, 7
        %v1590 = vsub.s32 0, %v1589
        %v1591 = vrot.slane %v1530, %v1590
        %v1596 = vunpack.c.l.b16 %v1520
        %v1597 = vunpack.c.l.b16 %v1521
        %v1598 = vunpack.c.l.b16 %v1522
        %v1599 = vunpack.c.l.b16 %v1523
        %v1600 = vpack.c.b16 %v1597, %v1596
        %v1601 = vpack.c.b16 %v1599, %v1598
        %1604 = vmatprep.subr.bf16.mxu0 0
        %1605 = vmatpush1.bf16.msra.mxu0 %v1600
        %1606 = vmatprep.subr.bf16.mxu0 0
        %1607 = vmatpush1.bf16.msra.mxu0 %v1601
        %1608 = vmatprep.subr.bf16.mxu0 0
        %1609 = vmatpush1.bf16.msra.mxu0 0
        %1610 = vmatprep.subr.bf16.mxu0 0
        %1611 = vmatpush1.bf16.msra.mxu0 0
        %1612 = vmatprep.subr.bf16.mxu0 0
        %1613 = vmatpush1.bf16.msra.mxu0 0
        %1614 = vmatprep.subr.bf16.mxu0 0
        %1615 = vmatpush1.bf16.msra.mxu0 0
        %1616 = vmatprep.subr.bf16.mxu0 0
        %1617 = vmatpush1.bf16.msra.mxu0 0
        %1618 = vmatprep.subr.bf16.mxu0 0
        %1619 = vmatpush1.bf16.msra.mxu0 0
        %1620 = vmatprep.subr.bf16.mxu0 0
        %1621 = vmatpush1.bf16.msra.mxu0 0
        %1622 = vmatprep.subr.bf16.mxu0 0
        %1623 = vmatpush1.bf16.msra.mxu0 0
        %1624 = vmatprep.subr.bf16.mxu0 0
        %1625 = vmatpush1.bf16.msra.mxu0 0
        %1626 = vmatprep.subr.bf16.mxu0 0
        %1627 = vmatpush1.bf16.msra.mxu0 0
        %1628 = vmatprep.subr.bf16.mxu0 0
        %1629 = vmatpush1.bf16.msra.mxu0 0
        %1630 = vmatprep.subr.bf16.mxu0 0
        %1631 = vmatpush1.bf16.msra.mxu0 0
        %1632 = vmatprep.subr.bf16.mxu0 0
        %1633 = vmatpush1.bf16.msra.mxu0 0
        %1634 = vmatprep.subr.bf16.mxu0 0
        %1635 = vmatpush1.bf16.msra.mxu0 0
        %1636 = vmatprep.mubr.bf16.mxu0 0
        %1637 = vmatmul.mubr.bf16.gmra.mrb[0].mxu0 %v733
        %v1638 = vpop.f32.mrb[0].mxu0
        %v1639 = vadd.f32 %v1591, %v1638
        %v1640 = vpop.f32.mrb[0].mxu0
        %v1641 = vpop.f32.mrb[0].mxu0
        %v1642 = vpop.f32.mrb[0].mxu0
        %1643 = vdwg.mxu0
        %1644 = vmatprep.subr.bf16.mxu0 0
        %1645 = vmatpush1.bf16.msra.mxu0 %v1600
        %1646 = vmatprep.subr.bf16.mxu0 0
        %1647 = vmatpush1.bf16.msra.mxu0 %v1601
        %1648 = vmatprep.subr.bf16.mxu0 0
        %1649 = vmatpush1.bf16.msra.mxu0 0
        %1650 = vmatprep.subr.bf16.mxu0 0
        %1651 = vmatpush1.bf16.msra.mxu0 0
        %1652 = vmatprep.subr.bf16.mxu0 0
        %1653 = vmatpush1.bf16.msra.mxu0 0
        %1654 = vmatprep.subr.bf16.mxu0 0
        %1655 = vmatpush1.bf16.msra.mxu0 0
        %1656 = vmatprep.subr.bf16.mxu0 0
        %1657 = vmatpush1.bf16.msra.mxu0 0
        %1658 = vmatprep.subr.bf16.mxu0 0
        %1659 = vmatpush1.bf16.msra.mxu0 0
        %1660 = vmatprep.subr.bf16.mxu0 0
        %1661 = vmatpush1.bf16.msra.mxu0 0
        %1662 = vmatprep.subr.bf16.mxu0 0
        %1663 = vmatpush1.bf16.msra.mxu0 0
        %1664 = vmatprep.subr.bf16.mxu0 0
        %1665 = vmatpush1.bf16.msra.mxu0 0
        %1666 = vmatprep.subr.bf16.mxu0 0
        %1667 = vmatpush1.bf16.msra.mxu0 0
        %1668 = vmatprep.subr.bf16.mxu0 0
        %1669 = vmatpush1.bf16.msra.mxu0 0
        %1670 = vmatprep.subr.bf16.mxu0 0
        %1671 = vmatpush1.bf16.msra.mxu0 0
        %1672 = vmatprep.subr.bf16.mxu0 0
        %1673 = vmatpush1.bf16.msra.mxu0 0
        %1674 = vmatprep.subr.bf16.mxu0 0
        %1675 = vmatpush1.bf16.msra.mxu0 0
        %1676 = vmatprep.mubr.bf16.mxu0 0
        %1677 = vmatmul.mubr.bf16.gmra.mrb[0].mxu0 %v674
        %v1678 = vpop.f32.mrb[0].mxu0
        %v1679 = vadd.f32 %v1591, %v1678
        %v1680 = vpop.f32.mrb[0].mxu0
        %v1681 = vpop.f32.mrb[0].mxu0
        %v1682 = vpop.f32.mrb[0].mxu0
        %1683 = vdwg.mxu0
        %v1684 = vlaneseq
        %v1685 = vshrl.u32 %v1684, 7
        %v1686 = vsub.s32 0, %v1685
        %v1687 = vrot.slane %v1531, %v1686
        %v1692 = vunpack.c.l.b16 %v1525
        %v1693 = vunpack.c.l.b16 %v1526
        %v1694 = vunpack.c.l.b16 %v1527
        %v1695 = vunpack.c.l.b16 %v1528
        %v1696 = vpack.c.b16 %v1693, %v1692
        %v1697 = vpack.c.b16 %v1695, %v1694
        %1700 = vmatprep.subr.bf16.mxu0 0
        %1701 = vmatpush1.bf16.msra.mxu0 %v1696
        %1702 = vmatprep.subr.bf16.mxu0 0
        %1703 = vmatpush1.bf16.msra.mxu0 %v1697
        %1704 = vmatprep.subr.bf16.mxu0 0
        %1705 = vmatpush1.bf16.msra.mxu0 0
        %1706 = vmatprep.subr.bf16.mxu0 0
        %1707 = vmatpush1.bf16.msra.mxu0 0
        %1708 = vmatprep.subr.bf16.mxu0 0
        %1709 = vmatpush1.bf16.msra.mxu0 0
        %1710 = vmatprep.subr.bf16.mxu0 0
        %1711 = vmatpush1.bf16.msra.mxu0 0
        %1712 = vmatprep.subr.bf16.mxu0 0
        %1713 = vmatpush1.bf16.msra.mxu0 0
        %1714 = vmatprep.subr.bf16.mxu0 0
        %1715 = vmatpush1.bf16.msra.mxu0 0
        %1716 = vmatprep.subr.bf16.mxu0 0
        %1717 = vmatpush1.bf16.msra.mxu0 0
        %1718 = vmatprep.subr.bf16.mxu0 0
        %1719 = vmatpush1.bf16.msra.mxu0 0
        %1720 = vmatprep.subr.bf16.mxu0 0
        %1721 = vmatpush1.bf16.msra.mxu0 0
        %1722 = vmatprep.subr.bf16.mxu0 0
        %1723 = vmatpush1.bf16.msra.mxu0 0
        %1724 = vmatprep.subr.bf16.mxu0 0
        %1725 = vmatpush1.bf16.msra.mxu0 0
        %1726 = vmatprep.subr.bf16.mxu0 0
        %1727 = vmatpush1.bf16.msra.mxu0 0
        %1728 = vmatprep.subr.bf16.mxu0 0
        %1729 = vmatpush1.bf16.msra.mxu0 0
        %1730 = vmatprep.subr.bf16.mxu0 0
        %1731 = vmatpush1.bf16.msra.mxu0 0
        %1732 = vmatprep.mubr.bf16.mxu0 0
        %1733 = vmatmul.mubr.bf16.gmra.mrb[0].mxu0 %v733
        %v1734 = vpop.f32.mrb[0].mxu0
        %v1735 = vadd.f32 %v1687, %v1734
        %v1736 = vpop.f32.mrb[0].mxu0
        %v1737 = vpop.f32.mrb[0].mxu0
        %v1738 = vpop.f32.mrb[0].mxu0
        %1739 = vdwg.mxu0
        %1740 = vmatprep.subr.bf16.mxu0 0
        %1741 = vmatpush1.bf16.msra.mxu0 %v1696
        %1742 = vmatprep.subr.bf16.mxu0 0
        %1743 = vmatpush1.bf16.msra.mxu0 %v1697
        %1744 = vmatprep.subr.bf16.mxu0 0
        %1745 = vmatpush1.bf16.msra.mxu0 0
        %1746 = vmatprep.subr.bf16.mxu0 0
        %1747 = vmatpush1.bf16.msra.mxu0 0
        %1748 = vmatprep.subr.bf16.mxu0 0
        %1749 = vmatpush1.bf16.msra.mxu0 0
        %1750 = vmatprep.subr.bf16.mxu0 0
        %1751 = vmatpush1.bf16.msra.mxu0 0
        %1752 = vmatprep.subr.bf16.mxu0 0
        %1753 = vmatpush1.bf16.msra.mxu0 0
        %1754 = vmatprep.subr.bf16.mxu0 0
        %1755 = vmatpush1.bf16.msra.mxu0 0
        %1756 = vmatprep.subr.bf16.mxu0 0
        %1757 = vmatpush1.bf16.msra.mxu0 0
        %1758 = vmatprep.subr.bf16.mxu0 0
        %1759 = vmatpush1.bf16.msra.mxu0 0
        %1760 = vmatprep.subr.bf16.mxu0 0
        %1761 = vmatpush1.bf16.msra.mxu0 0
        %1762 = vmatprep.subr.bf16.mxu0 0
        %1763 = vmatpush1.bf16.msra.mxu0 0
        %1764 = vmatprep.subr.bf16.mxu0 0
        %1765 = vmatpush1.bf16.msra.mxu0 0
        %1766 = vmatprep.subr.bf16.mxu0 0
        %1767 = vmatpush1.bf16.msra.mxu0 0
        %1768 = vmatprep.subr.bf16.mxu0 0
        %1769 = vmatpush1.bf16.msra.mxu0 0
        %1770 = vmatprep.subr.bf16.mxu0 0
        %1771 = vmatpush1.bf16.msra.mxu0 0
        %1772 = vmatprep.mubr.bf16.mxu0 0
        %1773 = vmatmul.mubr.bf16.gmra.mrb[0].mxu0 %v674
        %v1774 = vpop.f32.mrb[0].mxu0
        %v1775 = vadd.f32 %v1687, %v1774
        %v1776 = vpop.f32.mrb[0].mxu0
        %v1777 = vpop.f32.mrb[0].mxu0
        %v1778 = vpop.f32.mrb[0].mxu0
        %1779 = vdwg.mxu0
        %v1780 = vpack.c.bf16 %v1583, %v1583
        %v1781 = vpack.c.bf16 %v1639, %v1639
        %v1782 = vpack.c.bf16 %v1679, %v1679
        %v1784 = vrot.slane %v1782, 4
        %v1787 = vsel %vm916, %v1781, %v1784
        %v1788 = vpack.c.bf16 %v1735, %v1735
        %v1789 = vpack.c.bf16 %v1775, %v1775
        %v1791 = vrot.slane %v1789, 4
        %v1794 = vsel %vm916, %v1788, %v1791
        %s1796 = scalar_lea.vmem %s543, 8 [#allocation7]
        %v1797 = vld [vmem:[%s1796] sm:$0xf]
        %v1798 = vunpack.c.l.bf16 %v1797
        %v1800 = vsel %vm930, %v1780, 0
        %v1802 = vsel %vm930, %v1787, 0
        %1804 = vmatprep.subr.bf16.mxu0 0
        %1805 = vmatpush1.bf16.xpose.msra.mxu0 %v1802
        %1806 = vmatprep.subr.bf16.mxu0 0
        %1807 = vmatpush1.bf16.xpose.msra.mxu0 0
        %1808 = vmatprep.subr.bf16.mxu0 0
        %1809 = vmatpush1.bf16.xpose.msra.mxu0 0
        %1810 = vmatprep.subr.bf16.mxu0 0
        %1811 = vmatpush1.bf16.xpose.msra.mxu0 0
        %1812 = vmatprep.subr.bf16.mxu0 0
        %1813 = vmatpush1.bf16.xpose.msra.mxu0 0
        %1814 = vmatprep.subr.bf16.mxu0 0
        %1815 = vmatpush1.bf16.xpose.msra.mxu0 0
        %1816 = vmatprep.subr.bf16.mxu0 0
        %1817 = vmatpush1.bf16.xpose.msra.mxu0 0
        %1818 = vmatprep.subr.bf16.mxu0 0
        %1819 = vmatpush1.bf16.xpose.msra.mxu0 0
        %1820 = vmatprep.subr.bf16.mxu0 0
        %1821 = vmatpush1.bf16.xpose.msra.mxu0 0
        %1822 = vmatprep.subr.bf16.mxu0 0
        %1823 = vmatpush1.bf16.xpose.msra.mxu0 0
        %1824 = vmatprep.subr.bf16.mxu0 0
        %1825 = vmatpush1.bf16.xpose.msra.mxu0 0
        %1826 = vmatprep.subr.bf16.mxu0 0
        %1827 = vmatpush1.bf16.xpose.msra.mxu0 0
        %1828 = vmatprep.subr.bf16.mxu0 0
        %1829 = vmatpush1.bf16.xpose.msra.mxu0 0
        %1830 = vmatprep.subr.bf16.mxu0 0
        %1831 = vmatpush1.bf16.xpose.msra.mxu0 0
        %1832 = vmatprep.subr.bf16.mxu0 0
        %1833 = vmatpush1.bf16.xpose.msra.mxu0 0
        %1834 = vmatprep.subr.bf16.mxu0 0
        %1835 = vmatpush1.bf16.xpose.msra.mxu0 0
        %1836 = vmatprep.mubr.bf16.mxu0 0
        %1837 = vmatmul.mubr.bf16.gmra.mrb[0].mxu0 %v1800
        %v1838 = vpop.f32.mrb[0].mxu0
        %v1839 = vadd.f32 %v1798, %v1838
        %v1840 = vpop.f32.mrb[0].mxu0
        %v1841 = vpop.f32.mrb[0].mxu0
        %v1842 = vpop.f32.mrb[0].mxu0
        %1843 = vdwg.mxu0
        %v1844 = vsel %vm976, %v1839, -inf
        %1845 = vmax.xlane.f32.xlu0 %v1844
        %v1846 = vpop.xlane.xlu0 %1845
        %v1847 = vsub.f32 %v1839, %v1846
        %v1848 = vmul.f32 %v1847, 1.442695
        %v1849 = vpow.pop %v1848
        %v1850 = vsel %vm976, %v1849, 0.0
        %1851 = vadd.xlane.f32.xlu0 %v1850
        %v1852 = vpop.xlane.xlu0 %1851
        %v1853 = vrcp.pop %v1852
        %v1854 = vmul.f32 %v1849, %v1853
        %v1855 = vpack.c.bf16 %v1854, %v1854
        %v1857 = vsel %vm976, %v1855, 0
        %1859 = vmatprep.subr.bf16.mxu0 0
        %1860 = vmatpush1.bf16.msra.mxu0 %v1794
        %1861 = vmatprep.subr.bf16.mxu0 0
        %1862 = vmatpush1.bf16.msra.mxu0 0
        %1863 = vmatprep.subr.bf16.mxu0 0
        %1864 = vmatpush1.bf16.msra.mxu0 0
        %1865 = vmatprep.subr.bf16.mxu0 0
        %1866 = vmatpush1.bf16.msra.mxu0 0
        %1867 = vmatprep.subr.bf16.mxu0 0
        %1868 = vmatpush1.bf16.msra.mxu0 0
        %1869 = vmatprep.subr.bf16.mxu0 0
        %1870 = vmatpush1.bf16.msra.mxu0 0
        %1871 = vmatprep.subr.bf16.mxu0 0
        %1872 = vmatpush1.bf16.msra.mxu0 0
        %1873 = vmatprep.subr.bf16.mxu0 0
        %1874 = vmatpush1.bf16.msra.mxu0 0
        %1875 = vmatprep.subr.bf16.mxu0 0
        %1876 = vmatpush1.bf16.msra.mxu0 0
        %1877 = vmatprep.subr.bf16.mxu0 0
        %1878 = vmatpush1.bf16.msra.mxu0 0
        %1879 = vmatprep.subr.bf16.mxu0 0
        %1880 = vmatpush1.bf16.msra.mxu0 0
        %1881 = vmatprep.subr.bf16.mxu0 0
        %1882 = vmatpush1.bf16.msra.mxu0 0
        %1883 = vmatprep.subr.bf16.mxu0 0
        %1884 = vmatpush1.bf16.msra.mxu0 0
        %1885 = vmatprep.subr.bf16.mxu0 0
        %1886 = vmatpush1.bf16.msra.mxu0 0
        %1887 = vmatprep.subr.bf16.mxu0 0
        %1888 = vmatpush1.bf16.msra.mxu0 0
        %1889 = vmatprep.subr.bf16.mxu0 0
        %1890 = vmatpush1.bf16.msra.mxu0 0
        %1891 = vmatprep.mubr.bf16.mxu0 0
        %1892 = vmatmul.mubr.bf16.gmra.mrb[0].mxu0 %v1857
        %v1893 = vpop.f32.mrb[0].mxu0
        %v1894 = vadd.f32 0.0, %v1893
        %v1895 = vpop.f32.mrb[0].mxu0
        %v1896 = vpop.f32.mrb[0].mxu0
        %v1897 = vpop.f32.mrb[0].mxu0
        %1898 = vdwg.mxu0
        %v1899 = vpack.c.bf16 %v1894, %v1894
        %s1900 = scalar_lea.vmem [#allocation13], 8
        %v1901 = vld [vmem:[%s1900] sm:$0xf]
        %v1903 = vsel %vm930, %v1899, 0
        %v1906 = vsel %vm916, %v1901, 0
        %1908 = vmatprep.subr.bf16.mxu0 0
        %1909 = vmatpush1.bf16.msra.mxu0 %v1906
        %1910 = vmatprep.subr.bf16.mxu0 0
        %1911 = vmatpush1.bf16.msra.mxu0 0
        %1912 = vmatprep.subr.bf16.mxu0 0
        %1913 = vmatpush1.bf16.msra.mxu0 0
        %1914 = vmatprep.subr.bf16.mxu0 0
        %1915 = vmatpush1.bf16.msra.mxu0 0
        %1916 = vmatprep.subr.bf16.mxu0 0
        %1917 = vmatpush1.bf16.msra.mxu0 0
        %1918 = vmatprep.subr.bf16.mxu0 0
        %1919 = vmatpush1.bf16.msra.mxu0 0
        %1920 = vmatprep.subr.bf16.mxu0 0
        %1921 = vmatpush1.bf16.msra.mxu0 0
        %1922 = vmatprep.subr.bf16.mxu0 0
        %1923 = vmatpush1.bf16.msra.mxu0 0
        %1924 = vmatprep.subr.bf16.mxu0 0
        %1925 = vmatpush1.bf16.msra.mxu0 0
        %1926 = vmatprep.subr.bf16.mxu0 0
        %1927 = vmatpush1.bf16.msra.mxu0 0
        %1928 = vmatprep.subr.bf16.mxu0 0
        %1929 = vmatpush1.bf16.msra.mxu0 0
        %1930 = vmatprep.subr.bf16.mxu0 0
        %1931 = vmatpush1.bf16.msra.mxu0 0
        %1932 = vmatprep.subr.bf16.mxu0 0
        %1933 = vmatpush1.bf16.msra.mxu0 0
        %1934 = vmatprep.subr.bf16.mxu0 0
        %1935 = vmatpush1.bf16.msra.mxu0 0
        %1936 = vmatprep.subr.bf16.mxu0 0
        %1937 = vmatpush1.bf16.msra.mxu0 0
        %1938 = vmatprep.subr.bf16.mxu0 0
        %1939 = vmatpush1.bf16.msra.mxu0 0
        %1940 = vmatprep.mubr.bf16.mxu0 0
        %1941 = vmatmul.mubr.bf16.gmra.mrb[0].mxu0 %v1903
        %v1942 = vpop.f32.mrb[0].mxu0
        %v1943 = vadd.f32 0.0, %v1942
        %v1944 = vpop.f32.mrb[0].mxu0
        %v1945 = vpop.f32.mrb[0].mxu0
        %v1946 = vpop.f32.mrb[0].mxu0
        %1947 = vdwg.mxu0
        %v1948 = vadd.f32 %v1509, %v1943
        %s1949 = scalar_lea.vmem [#allocation8], 48
        %v1950 = vld [vmem:[%s1949] sm:$0xf]
        %v1951 = vld [vmem:[%s1949 + $0x4] sm:$0xf]
        %v1952 = vld [vmem:[%s1949 + $0x8] sm:$0xf]
        %v1953 = vld [vmem:[%s1949 + $0xc] sm:$0xf]
        %s1954 = scalar_lea.vmem [#allocation10], 48
        %v1955 = vld [vmem:[%s1954] sm:$0xf]
        %v1956 = vld [vmem:[%s1954 + $0x4] sm:$0xf]
        %v1957 = vld [vmem:[%s1954 + $0x8] sm:$0xf]
        %v1958 = vld [vmem:[%s1954 + $0xc] sm:$0xf]
        %s1959 = scalar_lea.vmem [#allocation11], 48
        %v1960 = vld [vmem:[%s1959] sm:$0xf]
        %v1961 = vld [vmem:[%s1959 + $0x4] sm:$0xf]
        %v1962 = vld [vmem:[%s1959 + $0x8] sm:$0xf]
        %v1963 = vld [vmem:[%s1959 + $0xc] sm:$0xf]
        %v1964 = vld [vmem:[#allocation17 + $0x3] sm:$0x1]
        %v1965 = vld [vmem:[#allocation17 + $0x7] sm:$0x1]
        %v1966 = vld [vmem:[#allocation17 + $0xb] sm:$0x1]
        %v1967 = vlaneseq
        %v1968 = vshrl.u32 %v1967, 7
        %v1969 = vsub.s32 0, %v1968
        %v1970 = vrot.slane %v1964, %v1969
        %v1975 = vunpack.c.l.b16 %v1950
        %v1976 = vunpack.c.l.b16 %v1951
        %v1977 = vunpack.c.l.b16 %v1952
        %v1978 = vunpack.c.l.b16 %v1953
        %v1979 = vpack.c.b16 %v1976, %v1975
        %v1980 = vpack.c.b16 %v1978, %v1977
        %1983 = vmatprep.subr.bf16.mxu0 0
        %1984 = vmatpush1.bf16.msra.mxu0 %v1979
        %1985 = vmatprep.subr.bf16.mxu0 0
        %1986 = vmatpush1.bf16.msra.mxu0 %v1980
        %1987 = vmatprep.subr.bf16.mxu0 0
        %1988 = vmatpush1.bf16.msra.mxu0 0
        %1989 = vmatprep.subr.bf16.mxu0 0
        %1990 = vmatpush1.bf16.msra.mxu0 0
        %1991 = vmatprep.subr.bf16.mxu0 0
        %1992 = vmatpush1.bf16.msra.mxu0 0
        %1993 = vmatprep.subr.bf16.mxu0 0
        %1994 = vmatpush1.bf16.msra.mxu0 0
        %1995 = vmatprep.subr.bf16.mxu0 0
        %1996 = vmatpush1.bf16.msra.mxu0 0
        %1997 = vmatprep.subr.bf16.mxu0 0
        %1998 = vmatpush1.bf16.msra.mxu0 0
        %1999 = vmatprep.subr.bf16.mxu0 0
        %2000 = vmatpush1.bf16.msra.mxu0 0
        %2001 = vmatprep.subr.bf16.mxu0 0
        %2002 = vmatpush1.bf16.msra.mxu0 0
        %2003 = vmatprep.subr.bf16.mxu0 0
        %2004 = vmatpush1.bf16.msra.mxu0 0
        %2005 = vmatprep.subr.bf16.mxu0 0
        %2006 = vmatpush1.bf16.msra.mxu0 0
        %2007 = vmatprep.subr.bf16.mxu0 0
        %2008 = vmatpush1.bf16.msra.mxu0 0
        %2009 = vmatprep.subr.bf16.mxu0 0
        %2010 = vmatpush1.bf16.msra.mxu0 0
        %2011 = vmatprep.subr.bf16.mxu0 0
        %2012 = vmatpush1.bf16.msra.mxu0 0
        %2013 = vmatprep.subr.bf16.mxu0 0
        %2014 = vmatpush1.bf16.msra.mxu0 0
        %2015 = vmatprep.mubr.bf16.mxu0 0
        %2016 = vmatmul.mubr.bf16.gmra.mrb[0].mxu0 %v674
        %v2017 = vpop.f32.mrb[0].mxu0
        %v2018 = vadd.f32 %v1970, %v2017
        %v2019 = vpop.f32.mrb[0].mxu0
        %v2020 = vpop.f32.mrb[0].mxu0
        %v2021 = vpop.f32.mrb[0].mxu0
        %2022 = vdwg.mxu0
        %v2023 = vlaneseq
        %v2024 = vshrl.u32 %v2023, 7
        %v2025 = vsub.s32 0, %v2024
        %v2026 = vrot.slane %v1965, %v2025
        %v2031 = vunpack.c.l.b16 %v1955
        %v2032 = vunpack.c.l.b16 %v1956
        %v2033 = vunpack.c.l.b16 %v1957
        %v2034 = vunpack.c.l.b16 %v1958
        %v2035 = vpack.c.b16 %v2032, %v2031
        %v2036 = vpack.c.b16 %v2034, %v2033
        %2039 = vmatprep.subr.bf16.mxu0 0
        %2040 = vmatpush1.bf16.msra.mxu0 %v2035
        %2041 = vmatprep.subr.bf16.mxu0 0
        %2042 = vmatpush1.bf16.msra.mxu0 %v2036
        %2043 = vmatprep.subr.bf16.mxu0 0
        %2044 = vmatpush1.bf16.msra.mxu0 0
        %2045 = vmatprep.subr.bf16.mxu0 0
        %2046 = vmatpush1.bf16.msra.mxu0 0
        %2047 = vmatprep.subr.bf16.mxu0 0
        %2048 = vmatpush1.bf16.msra.mxu0 0
        %2049 = vmatprep.subr.bf16.mxu0 0
        %2050 = vmatpush1.bf16.msra.mxu0 0
        %2051 = vmatprep.subr.bf16.mxu0 0
        %2052 = vmatpush1.bf16.msra.mxu0 0
        %2053 = vmatprep.subr.bf16.mxu0 0
        %2054 = vmatpush1.bf16.msra.mxu0 0
        %2055 = vmatprep.subr.bf16.mxu0 0
        %2056 = vmatpush1.bf16.msra.mxu0 0
        %2057 = vmatprep.subr.bf16.mxu0 0
        %2058 = vmatpush1.bf16.msra.mxu0 0
        %2059 = vmatprep.subr.bf16.mxu0 0
        %2060 = vmatpush1.bf16.msra.mxu0 0
        %2061 = vmatprep.subr.bf16.mxu0 0
        %2062 = vmatpush1.bf16.msra.mxu0 0
        %2063 = vmatprep.subr.bf16.mxu0 0
        %2064 = vmatpush1.bf16.msra.mxu0 0
        %2065 = vmatprep.subr.bf16.mxu0 0
        %2066 = vmatpush1.bf16.msra.mxu0 0
        %2067 = vmatprep.subr.bf16.mxu0 0
        %2068 = vmatpush1.bf16.msra.mxu0 0
        %2069 = vmatprep.subr.bf16.mxu0 0
        %2070 = vmatpush1.bf16.msra.mxu0 0
        %2071 = vmatprep.mubr.bf16.mxu0 0
        %2072 = vmatmul.mubr.bf16.gmra.mrb[0].mxu0 %v733
        %v2073 = vpop.f32.mrb[0].mxu0
        %v2074 = vadd.f32 %v2026, %v2073
        %v2075 = vpop.f32.mrb[0].mxu0
        %v2076 = vpop.f32.mrb[0].mxu0
        %v2077 = vpop.f32.mrb[0].mxu0
        %2078 = vdwg.mxu0
        %2079 = vmatprep.subr.bf16.mxu0 0
        %2080 = vmatpush1.bf16.msra.mxu0 %v2035
        %2081 = vmatprep.subr.bf16.mxu0 0
        %2082 = vmatpush1.bf16.msra.mxu0 %v2036
        %2083 = vmatprep.subr.bf16.mxu0 0
        %2084 = vmatpush1.bf16.msra.mxu0 0
        %2085 = vmatprep.subr.bf16.mxu0 0
        %2086 = vmatpush1.bf16.msra.mxu0 0
        %2087 = vmatprep.subr.bf16.mxu0 0
        %2088 = vmatpush1.bf16.msra.mxu0 0
        %2089 = vmatprep.subr.bf16.mxu0 0
        %2090 = vmatpush1.bf16.msra.mxu0 0
        %2091 = vmatprep.subr.bf16.mxu0 0
        %2092 = vmatpush1.bf16.msra.mxu0 0
        %2093 = vmatprep.subr.bf16.mxu0 0
        %2094 = vmatpush1.bf16.msra.mxu0 0
        %2095 = vmatprep.subr.bf16.mxu0 0
        %2096 = vmatpush1.bf16.msra.mxu0 0
        %2097 = vmatprep.subr.bf16.mxu0 0
        %2098 = vmatpush1.bf16.msra.mxu0 0
        %2099 = vmatprep.subr.bf16.mxu0 0
        %2100 = vmatpush1.bf16.msra.mxu0 0
        %2101 = vmatprep.subr.bf16.mxu0 0
        %2102 = vmatpush1.bf16.msra.mxu0 0
        %2103 = vmatprep.subr.bf16.mxu0 0
        %2104 = vmatpush1.bf16.msra.mxu0 0
        %2105 = vmatprep.subr.bf16.mxu0 0
        %2106 = vmatpush1.bf16.msra.mxu0 0
        %2107 = vmatprep.subr.bf16.mxu0 0
        %2108 = vmatpush1.bf16.msra.mxu0 0
        %2109 = vmatprep.subr.bf16.mxu0 0
        %2110 = vmatpush1.bf16.msra.mxu0 0
        %2111 = vmatprep.mubr.bf16.mxu0 0
        %2112 = vmatmul.mubr.bf16.gmra.mrb[0].mxu0 %v674
        %v2113 = vpop.f32.mrb[0].mxu0
        %v2114 = vadd.f32 %v2026, %v2113
        %v2115 = vpop.f32.mrb[0].mxu0
        %v2116 = vpop.f32.mrb[0].mxu0
        %v2117 = vpop.f32.mrb[0].mxu0
        %2118 = vdwg.mxu0
        %v2119 = vlaneseq
        %v2120 = vshrl.u32 %v2119, 7
        %v2121 = vsub.s32 0, %v2120
        %v2122 = vrot.slane %v1966, %v2121
        %v2127 = vunpack.c.l.b16 %v1960
        %v2128 = vunpack.c.l.b16 %v1961
        %v2129 = vunpack.c.l.b16 %v1962
        %v2130 = vunpack.c.l.b16 %v1963
        %v2131 = vpack.c.b16 %v2128, %v2127
        %v2132 = vpack.c.b16 %v2130, %v2129
        %2135 = vmatprep.subr.bf16.mxu0 0
        %2136 = vmatpush1.bf16.msra.mxu0 %v2131
        %2137 = vmatprep.subr.bf16.mxu0 0
        %2138 = vmatpush1.bf16.msra.mxu0 %v2132
        %2139 = vmatprep.subr.bf16.mxu0 0
        %2140 = vmatpush1.bf16.msra.mxu0 0
        %2141 = vmatprep.subr.bf16.mxu0 0
        %2142 = vmatpush1.bf16.msra.mxu0 0
        %2143 = vmatprep.subr.bf16.mxu0 0
        %2144 = vmatpush1.bf16.msra.mxu0 0
        %2145 = vmatprep.subr.bf16.mxu0 0
        %2146 = vmatpush1.bf16.msra.mxu0 0
        %2147 = vmatprep.subr.bf16.mxu0 0
        %2148 = vmatpush1.bf16.msra.mxu0 0
        %2149 = vmatprep.subr.bf16.mxu0 0
        %2150 = vmatpush1.bf16.msra.mxu0 0
        %2151 = vmatprep.subr.bf16.mxu0 0
        %2152 = vmatpush1.bf16.msra.mxu0 0
        %2153 = vmatprep.subr.bf16.mxu0 0
        %2154 = vmatpush1.bf16.msra.mxu0 0
        %2155 = vmatprep.subr.bf16.mxu0 0
        %2156 = vmatpush1.bf16.msra.mxu0 0
        %2157 = vmatprep.subr.bf16.mxu0 0
        %2158 = vmatpush1.bf16.msra.mxu0 0
        %2159 = vmatprep.subr.bf16.mxu0 0
        %2160 = vmatpush1.bf16.msra.mxu0 0
        %2161 = vmatprep.subr.bf16.mxu0 0
        %2162 = vmatpush1.bf16.msra.mxu0 0
        %2163 = vmatprep.subr.bf16.mxu0 0
        %2164 = vmatpush1.bf16.msra.mxu0 0
        %2165 = vmatprep.subr.bf16.mxu0 0
        %2166 = vmatpush1.bf16.msra.mxu0 0
        %2167 = vmatprep.mubr.bf16.mxu0 0
        %2168 = vmatmul.mubr.bf16.gmra.mrb[0].mxu0 %v733
        %v2169 = vpop.f32.mrb[0].mxu0
        %v2170 = vadd.f32 %v2122, %v2169
        %v2171 = vpop.f32.mrb[0].mxu0
        %v2172 = vpop.f32.mrb[0].mxu0
        %v2173 = vpop.f32.mrb[0].mxu0
        %2174 = vdwg.mxu0
        %2175 = vmatprep.subr.bf16.mxu0 0
        %2176 = vmatpush1.bf16.msra.mxu0 %v2131
        %2177 = vmatprep.subr.bf16.mxu0 0
        %2178 = vmatpush1.bf16.msra.mxu0 %v2132
        %2179 = vmatprep.subr.bf16.mxu0 0
        %2180 = vmatpush1.bf16.msra.mxu0 0
        %2181 = vmatprep.subr.bf16.mxu0 0
        %2182 = vmatpush1.bf16.msra.mxu0 0
        %2183 = vmatprep.subr.bf16.mxu0 0
        %2184 = vmatpush1.bf16.msra.mxu0 0
        %2185 = vmatprep.subr.bf16.mxu0 0
        %2186 = vmatpush1.bf16.msra.mxu0 0
        %2187 = vmatprep.subr.bf16.mxu0 0
        %2188 = vmatpush1.bf16.msra.mxu0 0
        %2189 = vmatprep.subr.bf16.mxu0 0
        %2190 = vmatpush1.bf16.msra.mxu0 0
        %2191 = vmatprep.subr.bf16.mxu0 0
        %2192 = vmatpush1.bf16.msra.mxu0 0
        %2193 = vmatprep.subr.bf16.mxu0 0
        %2194 = vmatpush1.bf16.msra.mxu0 0
        %2195 = vmatprep.subr.bf16.mxu0 0
        %2196 = vmatpush1.bf16.msra.mxu0 0
        %2197 = vmatprep.subr.bf16.mxu0 0
        %2198 = vmatpush1.bf16.msra.mxu0 0
        %2199 = vmatprep.subr.bf16.mxu0 0
        %2200 = vmatpush1.bf16.msra.mxu0 0
        %2201 = vmatprep.subr.bf16.mxu0 0
        %2202 = vmatpush1.bf16.msra.mxu0 0
        %2203 = vmatprep.subr.bf16.mxu0 0
        %2204 = vmatpush1.bf16.msra.mxu0 0
        %2205 = vmatprep.subr.bf16.mxu0 0
        %2206 = vmatpush1.bf16.msra.mxu0 0
        %2207 = vmatprep.mubr.bf16.mxu0 0
        %2208 = vmatmul.mubr.bf16.gmra.mrb[0].mxu0 %v674
        %v2209 = vpop.f32.mrb[0].mxu0
        %v2210 = vadd.f32 %v2122, %v2209
        %v2211 = vpop.f32.mrb[0].mxu0
        %v2212 = vpop.f32.mrb[0].mxu0
        %v2213 = vpop.f32.mrb[0].mxu0
        %2214 = vdwg.mxu0
        %v2215 = vpack.c.bf16 %v2018, %v2018
        %v2216 = vpack.c.bf16 %v2074, %v2074
        %v2217 = vpack.c.bf16 %v2114, %v2114
        %v2219 = vrot.slane %v2217, 4
        %v2222 = vsel %vm916, %v2216, %v2219
        %v2223 = vpack.c.bf16 %v2170, %v2170
        %v2224 = vpack.c.bf16 %v2210, %v2210
        %v2226 = vrot.slane %v2224, 4
        %v2229 = vsel %vm916, %v2223, %v2226
        %s2231 = scalar_lea.vmem %s543, 12 [#allocation7]
        %v2232 = vld [vmem:[%s2231] sm:$0xf]
        %v2233 = vunpack.c.l.bf16 %v2232
        %v2235 = vsel %vm930, %v2215, 0
        %v2237 = vsel %vm930, %v2222, 0
        %2239 = vmatprep.subr.bf16.mxu0 0
        %2240 = vmatpush1.bf16.xpose.msra.mxu0 %v2237
        %2241 = vmatprep.subr.bf16.mxu0 0
        %2242 = vmatpush1.bf16.xpose.msra.mxu0 0
        %2243 = vmatprep.subr.bf16.mxu0 0
        %2244 = vmatpush1.bf16.xpose.msra.mxu0 0
        %2245 = vmatprep.subr.bf16.mxu0 0
        %2246 = vmatpush1.bf16.xpose.msra.mxu0 0
        %2247 = vmatprep.subr.bf16.mxu0 0
        %2248 = vmatpush1.bf16.xpose.msra.mxu0 0
        %2249 = vmatprep.subr.bf16.mxu0 0
        %2250 = vmatpush1.bf16.xpose.msra.mxu0 0
        %2251 = vmatprep.subr.bf16.mxu0 0
        %2252 = vmatpush1.bf16.xpose.msra.mxu0 0
        %2253 = vmatprep.subr.bf16.mxu0 0
        %2254 = vmatpush1.bf16.xpose.msra.mxu0 0
        %2255 = vmatprep.subr.bf16.mxu0 0
        %2256 = vmatpush1.bf16.xpose.msra.mxu0 0
        %2257 = vmatprep.subr.bf16.mxu0 0
        %2258 = vmatpush1.bf16.xpose.msra.mxu0 0
        %2259 = vmatprep.subr.bf16.mxu0 0
        %2260 = vmatpush1.bf16.xpose.msra.mxu0 0
        %2261 = vmatprep.subr.bf16.mxu0 0
        %2262 = vmatpush1.bf16.xpose.msra.mxu0 0
        %2263 = vmatprep.subr.bf16.mxu0 0
        %2264 = vmatpush1.bf16.xpose.msra.mxu0 0
        %2265 = vmatprep.subr.bf16.mxu0 0
        %2266 = vmatpush1.bf16.xpose.msra.mxu0 0
        %2267 = vmatprep.subr.bf16.mxu0 0
        %2268 = vmatpush1.bf16.xpose.msra.mxu0 0
        %2269 = vmatprep.subr.bf16.mxu0 0
        %2270 = vmatpush1.bf16.xpose.msra.mxu0 0
        %2271 = vmatprep.mubr.bf16.mxu0 0
        %2272 = vmatmul.mubr.bf16.gmra.mrb[0].mxu0 %v2235
        %v2273 = vpop.f32.mrb[0].mxu0
        %v2274 = vadd.f32 %v2233, %v2273
        %v2275 = vpop.f32.mrb[0].mxu0
        %v2276 = vpop.f32.mrb[0].mxu0
        %v2277 = vpop.f32.mrb[0].mxu0
        %2278 = vdwg.mxu0
        %v2279 = vsel %vm976, %v2274, -inf
        %2280 = vmax.xlane.f32.xlu0 %v2279
        %v2281 = vpop.xlane.xlu0 %2280
        %v2282 = vsub.f32 %v2274, %v2281
        %v2283 = vmul.f32 %v2282, 1.442695
        %v2284 = vpow.pop %v2283
        %v2285 = vsel %vm976, %v2284, 0.0
        %2286 = vadd.xlane.f32.xlu0 %v2285
        %v2287 = vpop.xlane.xlu0 %2286
        %v2288 = vrcp.pop %v2287
        %v2289 = vmul.f32 %v2284, %v2288
        %v2290 = vpack.c.bf16 %v2289, %v2289
        %v2292 = vsel %vm976, %v2290, 0
        %2294 = vmatprep.subr.bf16.mxu0 0
        %2295 = vmatpush1.bf16.msra.mxu0 %v2229
        %2296 = vmatprep.subr.bf16.mxu0 0
        %2297 = vmatpush1.bf16.msra.mxu0 0
        %2298 = vmatprep.subr.bf16.mxu0 0
        %2299 = vmatpush1.bf16.msra.mxu0 0
        %2300 = vmatprep.subr.bf16.mxu0 0
        %2301 = vmatpush1.bf16.msra.mxu0 0
        %2302 = vmatprep.subr.bf16.mxu0 0
        %2303 = vmatpush1.bf16.msra.mxu0 0
        %2304 = vmatprep.subr.bf16.mxu0 0
        %2305 = vmatpush1.bf16.msra.mxu0 0
        %2306 = vmatprep.subr.bf16.mxu0 0
        %2307 = vmatpush1.bf16.msra.mxu0 0
        %2308 = vmatprep.subr.bf16.mxu0 0
        %2309 = vmatpush1.bf16.msra.mxu0 0
        %2310 = vmatprep.subr.bf16.mxu0 0
        %2311 = vmatpush1.bf16.msra.mxu0 0
        %2312 = vmatprep.subr.bf16.mxu0 0
        %2313 = vmatpush1.bf16.msra.mxu0 0
        %2314 = vmatprep.subr.bf16.mxu0 0
        %2315 = vmatpush1.bf16.msra.mxu0 0
        %2316 = vmatprep.subr.bf16.mxu0 0
        %2317 = vmatpush1.bf16.msra.mxu0 0
        %2318 = vmatprep.subr.bf16.mxu0 0
        %2319 = vmatpush1.bf16.msra.mxu0 0
        %2320 = vmatprep.subr.bf16.mxu0 0
        %2321 = vmatpush1.bf16.msra.mxu0 0
        %2322 = vmatprep.subr.bf16.mxu0 0
        %2323 = vmatpush1.bf16.msra.mxu0 0
        %2324 = vmatprep.subr.bf16.mxu0 0
        %2325 = vmatpush1.bf16.msra.mxu0 0
        %2326 = vmatprep.mubr.bf16.mxu0 0
        %2327 = vmatmul.mubr.bf16.gmra.mrb[0].mxu0 %v2292
        %v2328 = vpop.f32.mrb[0].mxu0
        %v2329 = vadd.f32 0.0, %v2328
        %v2330 = vpop.f32.mrb[0].mxu0
        %v2331 = vpop.f32.mrb[0].mxu0
        %v2332 = vpop.f32.mrb[0].mxu0
        %2333 = vdwg.mxu0
        %v2334 = vpack.c.bf16 %v2329, %v2329
        %s2335 = scalar_lea.vmem [#allocation13], 12
        %v2336 = vld [vmem:[%s2335] sm:$0xf]
        %v2338 = vsel %vm930, %v2334, 0
        %v2341 = vsel %vm916, %v2336, 0
        %2343 = vmatprep.subr.bf16.mxu0 0
        %2344 = vmatpush1.bf16.msra.mxu0 %v2341
        %2345 = vmatprep.subr.bf16.mxu0 0
        %2346 = vmatpush1.bf16.msra.mxu0 0
        %2347 = vmatprep.subr.bf16.mxu0 0
        %2348 = vmatpush1.bf16.msra.mxu0 0
        %2349 = vmatprep.subr.bf16.mxu0 0
        %2350 = vmatpush1.bf16.msra.mxu0 0
        %2351 = vmatprep.subr.bf16.mxu0 0
        %2352 = vmatpush1.bf16.msra.mxu0 0
        %2353 = vmatprep.subr.bf16.mxu0 0
        %2354 = vmatpush1.bf16.msra.mxu0 0
        %2355 = vmatprep.subr.bf16.mxu0 0
        %2356 = vmatpush1.bf16.msra.mxu0 0
        %2357 = vmatprep.subr.bf16.mxu0 0
        %2358 = vmatpush1.bf16.msra.mxu0 0
        %2359 = vmatprep.subr.bf16.mxu0 0
        %2360 = vmatpush1.bf16.msra.mxu0 0
        %2361 = vmatprep.subr.bf16.mxu0 0
        %2362 = vmatpush1.bf16.msra.mxu0 0
        %2363 = vmatprep.subr.bf16.mxu0 0
        %2364 = vmatpush1.bf16.msra.mxu0 0
        %2365 = vmatprep.subr.bf16.mxu0 0
        %2366 = vmatpush1.bf16.msra.mxu0 0
        %2367 = vmatprep.subr.bf16.mxu0 0
        %2368 = vmatpush1.bf16.msra.mxu0 0
        %2369 = vmatprep.subr.bf16.mxu0 0
        %2370 = vmatpush1.bf16.msra.mxu0 0
        %2371 = vmatprep.subr.bf16.mxu0 0
        %2372 = vmatpush1.bf16.msra.mxu0 0
        %2373 = vmatprep.subr.bf16.mxu0 0
        %2374 = vmatpush1.bf16.msra.mxu0 0
        %2375 = vmatprep.mubr.bf16.mxu0 0
        %2376 = vmatmul.mubr.bf16.gmra.mrb[0].mxu0 %v2338
        %v2377 = vpop.f32.mrb[0].mxu0
        %v2378 = vadd.f32 0.0, %v2377
        %v2379 = vpop.f32.mrb[0].mxu0
        %v2380 = vpop.f32.mrb[0].mxu0
        %v2381 = vpop.f32.mrb[0].mxu0
        %2382 = vdwg.mxu0
        %v2383 = vadd.f32 %v1948, %v2378
        %v2384 = vlaneseq
        %v2385 = vshrl.u32 %v2384, 7
        %v2386 = vsub.s32 0, %v2385
        %v2387 = vrot.slane %v635, %v2386
        %v2388 = vadd.f32 %v2383, %v2387
        %v2389 = vadd.f32 %v631, %v2388
        %v2390 = vsel %vm672, %v2389, 0.0
        %2391 = vadd.xlane.f32.xlu0 %v2390
        %v2392 = vpop.xlane.xlu0 %2391
        %v2393 = vrcp.pop 32.0
        %v2394 = vmul.f32 %v2392, %v2393
        %v2395 = vsub.f32 %v2389, %v2394
        %v2396 = vmul.f32 %v2395, %v2395
        %v2397 = vsel %vm672, %v2396, 0.0
        %2398 = vadd.xlane.f32.xlu0 %v2397
        %v2399 = vpop.xlane.xlu0 %2398
        %v2400 = vmul.f32 %v2399, %v2393
        %v2401 = vadd.f32 %v2400, 1e-05
        %v2402 = vrsqrt.pop %v2401
        %v2403 = vmul.f32 %v2395, %v2402
        %v2404 = vlaneseq
        %v2405 = vshrl.u32 %v2404, 7
        %v2406 = vsub.s32 0, %v2405
        %v2407 = vrot.slane %v637, %v2406
        %v2408 = vmul.f32 %v2403, %v2407
        %v2409 = vlaneseq
        %v2410 = vshrl.u32 %v2409, 7
        %v2411 = vsub.s32 0, %v2410
        %v2412 = vrot.slane %v638, %v2411
        %v2413 = vadd.f32 %v2408, %v2412
        %v2414 = vpack.c.bf16 %v2413, %v2413
        %v2415 = vld [vmem:[#allocation14] sm:$0xf]
        %v2416 = vld [vmem:[#allocation14 + $0x4] sm:$0xf]
        %v2417 = vld [vmem:[#allocation14 + $0x8] sm:$0xf]
        %v2418 = vld [vmem:[#allocation14 + $0xc] sm:$0xf]
        %v2419 = vld [vmem:[#allocation20] sm:$0x1]
        %v2421 = vlaneseq
        %v2422 = vshrl.u32 %v2421, 7
        %v2423 = vsub.s32 0, %v2422
        %v2424 = vrot.slane %v2419, %v2423
        %v2430 = vunpack.c.l.b16 %v2415
        %v2431 = vunpack.c.l.b16 %v2416
        %v2432 = vunpack.c.l.b16 %v2417
        %v2433 = vunpack.c.l.b16 %v2418
        %v2434 = vpack.c.b16 %v2431, %v2430
        %v2435 = vpack.c.b16 %v2433, %v2432
        %v2439 = vsel %vm672, %v2414, 0
        %2441 = vmatprep.subr.bf16.mxu0 0
        %2442 = vmatpush1.bf16.msra.mxu0 %v2434
        %2443 = vmatprep.subr.bf16.mxu0 0
        %2444 = vmatpush1.bf16.msra.mxu0 %v2435
        %2445 = vmatprep.subr.bf16.mxu0 0
        %2446 = vmatpush1.bf16.msra.mxu0 0
        %2447 = vmatprep.subr.bf16.mxu0 0
        %2448 = vmatpush1.bf16.msra.mxu0 0
        %2449 = vmatprep.subr.bf16.mxu0 0
        %2450 = vmatpush1.bf16.msra.mxu0 0
        %2451 = vmatprep.subr.bf16.mxu0 0
        %2452 = vmatpush1.bf16.msra.mxu0 0
        %2453 = vmatprep.subr.bf16.mxu0 0
        %2454 = vmatpush1.bf16.msra.mxu0 0
        %2455 = vmatprep.subr.bf16.mxu0 0
        %2456 = vmatpush1.bf16.msra.mxu0 0
        %2457 = vmatprep.subr.bf16.mxu0 0
        %2458 = vmatpush1.bf16.msra.mxu0 0
        %2459 = vmatprep.subr.bf16.mxu0 0
        %2460 = vmatpush1.bf16.msra.mxu0 0
        %2461 = vmatprep.subr.bf16.mxu0 0
        %2462 = vmatpush1.bf16.msra.mxu0 0
        %2463 = vmatprep.subr.bf16.mxu0 0
        %2464 = vmatpush1.bf16.msra.mxu0 0
        %2465 = vmatprep.subr.bf16.mxu0 0
        %2466 = vmatpush1.bf16.msra.mxu0 0
        %2467 = vmatprep.subr.bf16.mxu0 0
        %2468 = vmatpush1.bf16.msra.mxu0 0
        %2469 = vmatprep.subr.bf16.mxu0 0
        %2470 = vmatpush1.bf16.msra.mxu0 0
        %2471 = vmatprep.subr.bf16.mxu0 0
        %2472 = vmatpush1.bf16.msra.mxu0 0
        %2473 = vmatprep.mubr.bf16.mxu0 0
        %2474 = vmatmul.mubr.bf16.gmra.mrb[0].mxu0 %v2439
        %v2475 = vpop.f32.mrb[0].mxu0
        %v2476 = vadd.f32 %v2424, %v2475
        %v2477 = vpop.f32.mrb[0].mxu0
        %v2478 = vpop.f32.mrb[0].mxu0
        %v2479 = vpop.f32.mrb[0].mxu0
        %2480 = vdwg.mxu0
        %v2481 = vmax.f32 %v2476, 0.0
        %v2482 = vpack.c.bf16 %v2481, %v2481
        %v2483 = vld [vmem:[#allocation16] sm:$0xf]
        %v2484 = vld [vmem:[#allocation16 + $0x4] sm:$0xf]
        %v2485 = vld [vmem:[#allocation16 + $0x8] sm:$0xf]
        %v2486 = vld [vmem:[#allocation16 + $0xc] sm:$0xf]
        %v2487 = vld [vmem:[#allocation16 + $0x10] sm:$0xf]
        %v2488 = vld [vmem:[#allocation16 + $0x14] sm:$0xf]
        %v2489 = vld [vmem:[#allocation16 + $0x18] sm:$0xf]
        %v2490 = vld [vmem:[#allocation16 + $0x1c] sm:$0xf]
        %v2491 = vlaneseq
        %v2492 = vshrl.u32 %v2491, 7
        %v2493 = vsub.s32 0, %v2492
        %v2494 = vrot.slane %v636, %v2493
        %v2503 = vunpack.c.l.b16 %v2483
        %v2504 = vunpack.c.l.b16 %v2484
        %v2505 = vunpack.c.l.b16 %v2485
        %v2506 = vunpack.c.l.b16 %v2486
        %v2507 = vunpack.c.l.b16 %v2487
        %v2508 = vunpack.c.l.b16 %v2488
        %v2509 = vunpack.c.l.b16 %v2489
        %v2510 = vunpack.c.l.b16 %v2490
        %v2511 = vpack.c.b16 %v2504, %v2503
        %v2512 = vpack.c.b16 %v2506, %v2505
        %v2513 = vpack.c.b16 %v2508, %v2507
        %v2514 = vpack.c.b16 %v2510, %v2509
        %vm2519 = vcmask 523264
        %v2521 = vsel %vm2519, %v2482, 0
        %2523 = vmatprep.subr.bf16.mxu0 0
        %2524 = vmatpush1.bf16.msra.mxu0 %v2511
        %2525 = vmatprep.subr.bf16.mxu0 0
        %2526 = vmatpush1.bf16.msra.mxu0 %v2512
        %2527 = vmatprep.subr.bf16.mxu0 0
        %2528 = vmatpush1.bf16.msra.mxu0 %v2513
        %2529 = vmatprep.subr.bf16.mxu0 0
        %2530 = vmatpush1.bf16.msra.mxu0 %v2514
        %2531 = vmatprep.subr.bf16.mxu0 0
        %2532 = vmatpush1.bf16.msra.mxu0 0
        %2533 = vmatprep.subr.bf16.mxu0 0
        %2534 = vmatpush1.bf16.msra.mxu0 0
        %2535 = vmatprep.subr.bf16.mxu0 0
        %2536 = vmatpush1.bf16.msra.mxu0 0
        %2537 = vmatprep.subr.bf16.mxu0 0
        %2538 = vmatpush1.bf16.msra.mxu0 0
        %2539 = vmatprep.subr.bf16.mxu0 0
        %2540 = vmatpush1.bf16.msra.mxu0 0
        %2541 = vmatprep.subr.bf16.mxu0 0
        %2542 = vmatpush1.bf16.msra.mxu0 0
        %2543 = vmatprep.subr.bf16.mxu0 0
        %2544 = vmatpush1.bf16.msra.mxu0 0
        %2545 = vmatprep.subr.bf16.mxu0 0
        %2546 = vmatpush1.bf16.msra.mxu0 0
        %2547 = vmatprep.subr.bf16.mxu0 0
        %2548 = vmatpush1.bf16.msra.mxu0 0
        %2549 = vmatprep.subr.bf16.mxu0 0
        %2550 = vmatpush1.bf16.msra.mxu0 0
        %2551 = vmatprep.subr.bf16.mxu0 0
        %2552 = vmatpush1.bf16.msra.mxu0 0
        %2553 = vmatprep.subr.bf16.mxu0 0
        %2554 = vmatpush1.bf16.msra.mxu0 0
        %2555 = vmatprep.mubr.bf16.mxu0 0
        %2556 = vmatmul.mubr.bf16.gmra.mrb[0].mxu0 %v2521
        %v2557 = vpop.f32.mrb[0].mxu0
        %v2558 = vadd.f32 %v2494, %v2557
        %v2559 = vpop.f32.mrb[0].mxu0
        %v2560 = vpop.f32.mrb[0].mxu0
        %v2561 = vpop.f32.mrb[0].mxu0
        %2562 = vdwg.mxu0
        %v2563 = vadd.f32 %v2413, %v2558
        %v2564 = vsel %vm672, %v2563, 0.0
        %2565 = vadd.xlane.f32.xlu0 %v2564
        %v2566 = vpop.xlane.xlu0 %2565
        %v2567 = vmul.f32 %v2566, %v2393
        %v2568 = vsub.f32 %v2563, %v2567
        %v2569 = vmul.f32 %v2568, %v2568
        %v2570 = vsel %vm672, %v2569, 0.0
        %2571 = vadd.xlane.f32.xlu0 %v2570
        %v2572 = vpop.xlane.xlu0 %2571
        %v2573 = vmul.f32 %v2572, %v2393
        %v2574 = vadd.f32 %v2573, 1e-05
        %v2575 = vrsqrt.pop %v2574
        %v2576 = vmul.f32 %v2568, %v2575
        %v2577 = vlaneseq
        %v2578 = vshrl.u32 %v2577, 7
        %v2579 = vsub.s32 0, %v2578
        %v2580 = vrot.slane %v639, %v2579
        %v2581 = vmul.f32 %v2576, %v2580
        %v2582 = vlaneseq
        %v2583 = vshrl.u32 %v2582, 7
        %v2584 = vsub.s32 0, %v2583
        %v2585 = vrot.slane %v640, %v2584
        %v2586 = vadd.f32 %v2581, %v2585
        %2587 = vst.msk [vmem:[%s629] sm:$0xff] %vm672, %v2586
        %s2588 = sand.u32 %s312, 1
        %s2589 = scalar_lea.sflag [#allocation4], %s2588
        %s2590 = sand.u32 %s312, 1
        %s2591 = smul.addr %s2590, 8
        %s2592 = scalar_lea.vmem [#allocation22], %s2591
        // Predicated region
        $region117: #{tpu_custom_call.1} parent=67 // pred_check
          %p2593 = pneg %p322
        $region118: #{tpu_custom_call.1} parent=67 // pred_check_branch
          %2595 = sbr.rel (%p2593) target = $region120
        $region119: #{tpu_custom_call.1} parent=67 // pred_region
          %s2597 = ssub.s32 128, 128
          %2598 = vsyncadd %s2589, %s2597
          %s2599 = smul.addr %s37, 128
          %s2600 = scalar_lea.hbm %s12, %s2599
          %s2602 = sshll.u32 %s2592, 4
          %s2603 = int_to_ptr.vmem [resolvable:$true] %s2602
          %2605 = dma.vmem_to_hbm [thread:$0]  %s2603, 128, %s2600, %s2589
        $region120: #{tpu_custom_call.1} parent=67 // pred_fallthru
          _
      $region68: #{tpu_custom_call.1} parent=5 // pred_fallthru
        _
      %p2606 = scmp.le.s32.totalorder 2, %s32
      // Predicated region
      $region121: #{tpu_custom_call.1} parent=5 // pred_check
        %p2607 = pneg %p2606
      $region122: #{tpu_custom_call.1} parent=5 // pred_check_branch
        %2609 = sbr.rel (%p2607) target = $region124
      $region123: #{tpu_custom_call.1} parent=5 // pred_region
        %s2610 = ssub.s32 %s32, 2
        // Predicated region
        $region125: #{tpu_custom_call.1} parent=123 // pred_check
          %p2611 = pneg %p328
        $region126: #{tpu_custom_call.1} parent=123 // pred_check_branch
          %2613 = sbr.rel (%p2611) target = $region128
        $region127: #{tpu_custom_call.1} parent=123 // pred_region
          %s2614 = sand.u32 %s313, 1
          %s2615 = scalar_lea.sflag [#allocation4], %s2614
          %s2616 = sand.u32 %s313, 1
          %s2617 = smul.addr %s2616, 8
          %s2618 = scalar_lea.vmem [#allocation22], %s2617
          %2619 = dma.done %s2615, 128
        $region128: #{tpu_custom_call.1} parent=123 // pred_fallthru
          _
      $region124: #{tpu_custom_call.1} parent=5 // pred_fallthru
        _
    $region6: #{tpu_custom_call.1} parent=1 // loop_footer
      %s36 = sadd.s32 1, %s32
    $region7: #{tpu_custom_call.1} parent=1 // loop_footer_branch
      %31 = sbr.rel target = $region3
    $region8: #{tpu_custom_call.1} parent=1 // loop_exit
      _
    %2620 = vsyncpa [#allocation3], 1
    %s2621 = scalar_lea.sflag [#allocation3], 1
    %2622 = vsyncpa %s2621, 1
    %2623 = vsyncpa [#allocation6], 1
    %s2624 = scalar_lea.sflag [#allocation6], 1
    %2625 = vsyncpa %s2624, 1
    %2626 = vsyncpa [#allocation9], 1
    %2627 = vsyncpa [#allocation12], 1
    %2628 = vsyncpa [#allocation15], 1
    %2629 = vsyncpa [#allocation18], 1
    %2630 = vsyncpa [#allocation21], 1
    %2631 = vsyncpa [#allocation4], 1
    %s2632 = scalar_lea.sflag [#allocation4], 1
    %2633 = vsyncpa %s2632, 1

// kernel: tpu_custom_call.1
$region0: #{tpu_custom_call.1}
  #allocation0 [shape = 'u32[]', space=smem, size = 0x4, offset = 0x4, fixed_abs, tag = 'smem constant byte address 0x4 - core index']
  #allocation1 [shape = 'u32[144,128]{1,0:T(1,128)}', space=vmem, size = 0x12000, scoped, tag = 'internal scratch']
  %s0 = inlined_call_operand.hbm [shape: f32[2,8,32], index: 0, kind: input, shape index: {}]
  %s1 = inlined_call_operand.hbm [shape: f32[2,8,32], index: 1, kind: input, shape index: {}]
  %s2 = inlined_call_operand.hbm [shape: bf16[2,4,8,16], index: 2, kind: input, shape index: {}]
  %s3 = inlined_call_operand.hbm [shape: bf16[4,32,8], index: 3, kind: input, shape index: {}]
  %s4 = inlined_call_operand.hbm [shape: bf16[4,32,8], index: 4, kind: input, shape index: {}]
  %s5 = inlined_call_operand.hbm [shape: bf16[4,32,8], index: 5, kind: input, shape index: {}]
  %s6 = inlined_call_operand.hbm [shape: bf16[4,8,32], index: 6, kind: input, shape index: {}]
  %s7 = inlined_call_operand.hbm [shape: bf16[32,64], index: 7, kind: input, shape index: {}]
  %s8 = inlined_call_operand.hbm [shape: bf16[64,32], index: 8, kind: input, shape index: {}]
  %s9 = inlined_call_operand.hbm [shape: f32[12,8], index: 9, kind: input, shape index: {}]
  %s10 = inlined_call_operand.hbm [shape: f32[6,32], index: 10, kind: input, shape index: {}]
  %s11 = inlined_call_operand.hbm [shape: f32[1,64], index: 11, kind: input, shape index: {}]
  %s12 = inlined_call_operand.hbm [shape: f32[2,8,32], index: 12, kind: output, shape index: {}]
  %s13 = sld [smem:[#allocation0]]
  $region129: #{tpu_custom_call.1} parent=0
    _
  %s15 = ssub.s32 1, %s13
  %s16 = scalar_select 0, %s15, %s13
  $region1: #{tpu_custom_call.1} parent=0
    #allocation2 [shape = 'u8[8192]{0}', space=vmem, size = 0x2000, scoped, tag = 'input window, operand 0']
    #allocation3 [shape = 's32[2]{0}', space=sflag, size = 0x8, scoped, tag = 'scoped memory for tpu_custom_call.1']
    #allocation4 [shape = 's32[2]{0}', space=sflag, size = 0x8, scoped, tag = 'scoped memory for tpu_custom_call.1']
    #allocation5 [shape = 'u8[8192]{0}', space=vmem, size = 0x2000, scoped, tag = 'input window, operand 1']
    #allocation6 [shape = 's32[2]{0}', space=sflag, size = 0x8, scoped, tag = 'scoped memory for tpu_custom_call.1']
    #allocation7 [shape = 'u8[16384]{0}', space=vmem, size = 0x4000, scoped, tag = 'input window, operand 2']
    #allocation8 [shape = 'u8[32768]{0}', space=vmem, size = 0x8000, scoped, tag = 'input window, operand 3, single buffered']
    #allocation9 [shape = 's32[1]{0}', space=sflag, size = 0x4, scoped, tag = 'scoped memory for tpu_custom_call.1']
    #allocation10 [shape = 'u8[32768]{0}', space=vmem, size = 0x8000, scoped, tag = 'input window, operand 4, single buffered']
    #allocation11 [shape = 'u8[32768]{0}', space=vmem, size = 0x8000, scoped, tag = 'input window, operand 5, single buffered']
    #allocation12 [shape = 's32[1]{0}', space=sflag, size = 0x4, scoped, tag = 'scoped memory for tpu_custom_call.1']
    #allocation13 [shape = 'u8[8192]{0}', space=vmem, size = 0x2000, scoped, tag = 'input window, operand 6, single buffered']
    #allocation14 [shape = 'u8[8192]{0}', space=vmem, size = 0x2000, scoped, tag = 'input window, operand 7, single buffered']
    #allocation15 [shape = 's32[1]{0}', space=sflag, size = 0x4, scoped, tag = 'scoped memory for tpu_custom_call.1']
    #allocation16 [shape = 'u8[16384]{0}', space=vmem, size = 0x4000, scoped, tag = 'input window, operand 8, single buffered']
    #allocation17 [shape = 'u8[8192]{0}', space=vmem, size = 0x2000, scoped, tag = 'input window, operand 9, single buffered']
    #allocation18 [shape = 's32[1]{0}', space=sflag, size = 0x4, scoped, tag = 'scoped memory for tpu_custom_call.1']
    #allocation19 [shape = 'u8[4096]{0}', space=vmem, size = 0x1000, scoped, tag = 'input window, operand 10, single buffered']
    #allocation20 [shape = 'u8[512]{0}', space=vmem, size = 0x400, scoped, tag = 'input window, operand 11, single buffered']
    #allocation21 [shape = 's32[1]{0}', space=sflag, size = 0x4, scoped, tag = 'scoped memory for tpu_custom_call.1']
    #allocation22 [shape = 'u8[8192]{0}', space=vmem, size = 0x2000, scoped, tag = 'output window, operand 0']
    %17 = vsyncpa [#allocation3], 0
    %s18 = scalar_lea.sflag [#allocation3], 1
    %19 = vsyncpa %s18, 0
    %20 = vsyncpa [#allocation6], 0
    %s21 = scalar_lea.sflag [#allocation6], 1
    %22 = vsyncpa %s21, 0
    %23 = vsyncpa [#allocation9], 0
    %24 = vsyncpa [#allocation12], 0
    %25 = vsyncpa [#allocation15], 0
    %26 = vsyncpa [#allocation18], 0
    %27 = vsyncpa [#allocation21], 0
    %28 = vsyncpa [#allocation4], 0
    %s29 = scalar_lea.sflag [#allocation4], 1
    %30 = vsyncpa %s29, 0
    loop: start=0, step=1, limit=4
    $region2: #{tpu_custom_call.1} parent=1 // loop_pre_header
      _
    $region3: #{tpu_custom_call.1} parent=1 // loop_header
      %s32 = sphi 0, %s36
      %p33 = scmp.ge.s32.totalorder %s32, 4
      %s42 = sphi 0, %s44
      %s45 = sphi 0, %s42
      %s46 = sphi 0, %s45
      %s62 = sphi 0, %s46
      %s68 = sphi 0, %s70
      %s71 = sphi 0, %s68
      %s72 = sphi 0, %s71
      %s88 = sphi 0, %s72
      %s94 = sphi 0, %s96
      %s97 = sphi 0, %s94
      %s98 = sphi 0, %s97
      %s114 = sphi 0, %s98
      %s118 = sphi 0, %s118
      %s120 = sphi 0, %s118
      %s121 = sphi 0, %s120
      %s135 = sphi 0, %s121
      %s139 = sphi 0, %s139
      %s141 = sphi 0, %s139
      %s142 = sphi 0, %s141
      %s156 = sphi 0, %s142
      %s160 = sphi 0, %s160
      %s162 = sphi 0, %s160
      %s163 = sphi 0, %s162
      %s177 = sphi 0, %s163
      %s181 = sphi 0, %s181
      %s183 = sphi 0, %s181
      %s184 = sphi 0, %s183
      %s198 = sphi 0, %s184
      %s202 = sphi 0, %s202
      %s204 = sphi 0, %s202
      %s205 = sphi 0, %s204
      %s219 = sphi 0, %s205
      %s223 = sphi 0, %s223
      %s225 = sphi 0, %s223
      %s226 = sphi 0, %s225
      %s240 = sphi 0, %s226
      %s244 = sphi 0, %s244
      %s246 = sphi 0, %s244
      %s247 = sphi 0, %s246
      %s261 = sphi 0, %s247
      %s265 = sphi 0, %s265
      %s267 = sphi 0, %s265
      %s268 = sphi 0, %s267
      %s282 = sphi 0, %s268
      %s286 = sphi 0, %s286
      %s288 = sphi 0, %s286
      %s289 = sphi 0, %s288
      %s303 = sphi 0, %s289
      %s309 = sphi 0, %s311
      %s312 = sphi 0, %s309
      %s313 = sphi 0, %s312
      %s329 = sphi 0, %s313
    $region4: #{tpu_custom_call.1} parent=1 // loop_header_branch
      %35 = sbr.rel (%p33) target = $region8
    $region5: #{tpu_custom_call.1} parent=1 // loop_body
      %s37 = ssub.s32 %s32, 1
      %s38 = ssub.s32 %s32, 2
      %s39 = sadd.s32 %s32, 1
      %s40 = ssub.s32 %s32, %s39
      %p41 = scmp.eq.s32.totalorder %s40, 0
      %s43 = sadd.s32 %s42, 1
      %s44 = scalar_select %p41, %s42, %s43
      %p47 = pneg %p41
      %p48 = scmp.eq.s32.totalorder %s32, 1
      %p49 = por %p47, %p48
      %p50 = scmp.ne.s32.totalorder %s42, %s45
      %p51 = scmp.eq.s32.totalorder %s32, 0
      %p52 = por %p50, %p51
      %p53 = scmp.ne.s32.totalorder %s42, %s45
      %p54 = scmp.eq.s32.totalorder %s37, 1
      %p55 = por %p53, %p54
      %p56 = scmp.ne.s32.totalorder %s45, %s46
      %p57 = scmp.eq.s32.totalorder %s37, 0
      %p58 = por %p56, %p57
      %p59 = scmp.ne.s32.totalorder %s45, %s46
      %p60 = scmp.eq.s32.totalorder %s38, 1
      %p61 = por %p59, %p60
      %p63 = scmp.ne.s32.totalorder %s46, %s62
      %p64 = scmp.eq.s32.totalorder %s38, 0
      %p65 = por %p63, %p64
      %s66 = ssub.s32 %s32, %s39
      %p67 = scmp.eq.s32.totalorder %s66, 0
      %s69 = sadd.s32 %s68, 1
      %s70 = scalar_select %p67, %s68, %s69
      %p73 = pneg %p67
      %p74 = scmp.eq.s32.totalorder %s32, 1
      %p75 = por %p73, %p74
      %p76 = scmp.ne.s32.totalorder %s68, %s71
      %p77 = scmp.eq.s32.totalorder %s32, 0
      %p78 = por %p76, %p77
      %p79 = scmp.ne.s32.totalorder %s68, %s71
      %p80 = scmp.eq.s32.totalorder %s37, 1
      %p81 = por %p79, %p80
      %p82 = scmp.ne.s32.totalorder %s71, %s72
      %p83 = scmp.eq.s32.totalorder %s37, 0
      %p84 = por %p82, %p83
      %p85 = scmp.ne.s32.totalorder %s71, %s72
      %p86 = scmp.eq.s32.totalorder %s38, 1
      %p87 = por %p85, %p86
      %p89 = scmp.ne.s32.totalorder %s72, %s88
      %p90 = scmp.eq.s32.totalorder %s38, 0
      %p91 = por %p89, %p90
      %s92 = ssub.s32 %s32, %s39
      %p93 = scmp.eq.s32.totalorder %s92, 0
      %s95 = sadd.s32 %s94, 1
      %s96 = scalar_select %p93, %s94, %s95
      %p99 = pneg %p93
      %p100 = scmp.eq.s32.totalorder %s32, 1
      %p101 = por %p99, %p100
      %p102 = scmp.ne.s32.totalorder %s94, %s97
      %p103 = scmp.eq.s32.totalorder %s32, 0
      %p104 = por %p102, %p103
      %p105 = scmp.ne.s32.totalorder %s94, %s97
      %p106 = scmp.eq.s32.totalorder %s37, 1
      %p107 = por %p105, %p106
      %p108 = scmp.ne.s32.totalorder %s97, %s98
      %p109 = scmp.eq.s32.totalorder %s37, 0
      %p110 = por %p108, %p109
      %p111 = scmp.ne.s32.totalorder %s97, %s98
      %p112 = scmp.eq.s32.totalorder %s38, 1
      %p113 = por %p111, %p112
      %p115 = scmp.ne.s32.totalorder %s98, %s114
      %p116 = scmp.eq.s32.totalorder %s38, 0
      %p117 = por %p115, %p116
      %s119 = sadd.s32 %s118, 1
      %p122 = scmp.eq.s32.totalorder %s32, 1
      %p123 = scmp.ne.s32.totalorder %s118, %s120
      %p124 = scmp.eq.s32.totalorder %s32, 0
      %p125 = por %p123, %p124
      %p126 = scmp.ne.s32.totalorder %s118, %s120
      %p127 = scmp.eq.s32.totalorder %s37, 1
      %p128 = por %p126, %p127
      %p129 = scmp.ne.s32.totalorder %s120, %s121
      %p130 = scmp.eq.s32.totalorder %s37, 0
      %p131 = por %p129, %p130
      %p132 = scmp.ne.s32.totalorder %s120, %s121
      %p133 = scmp.eq.s32.totalorder %s38, 1
      %p134 = por %p132, %p133
      %p136 = scmp.ne.s32.totalorder %s121, %s135
      %p137 = scmp.eq.s32.totalorder %s38, 0
      %p138 = por %p136, %p137
      %s140 = sadd.s32 %s139, 1
      %p143 = scmp.eq.s32.totalorder %s32, 1
      %p144 = scmp.ne.s32.totalorder %s139, %s141
      %p145 = scmp.eq.s32.totalorder %s32, 0
      %p146 = por %p144, %p145
      %p147 = scmp.ne.s32.totalorder %s139, %s141
      %p148 = scmp.eq.s32.totalorder %s37, 1
      %p149 = por %p147, %p148
      %p150 = scmp.ne.s32.totalorder %s141, %s142
      %p151 = scmp.eq.s32.totalorder %s37, 0
      %p152 = por %p150, %p151
      %p153 = scmp.ne.s32.totalorder %s141, %s142
      %p154 = scmp.eq.s32.totalorder %s38, 1
      %p155 = por %p153, %p154
      %p157 = scmp.ne.s32.totalorder %s142, %s156
      %p158 = scmp.eq.s32.totalorder %s38, 0
      %p159 = por %p157, %p158
      %s161 = sadd.s32 %s160, 1
      %p164 = scmp.eq.s32.totalorder %s32, 1
      %p165 = scmp.ne.s32.totalorder %s160, %s162
      %p166 = scmp.eq.s32.totalorder %s32, 0
      %p167 = por %p165, %p166
      %p168 = scmp.ne.s32.totalorder %s160, %s162
      %p169 = scmp.eq.s32.totalorder %s37, 1
      %p170 = por %p168, %p169
      %p171 = scmp.ne.s32.totalorder %s162, %s163
      %p172 = scmp.eq.s32.totalorder %s37, 0
      %p173 = por %p171, %p172
      %p174 = scmp.ne.s32.totalorder %s162, %s163
      %p175 = scmp.eq.s32.totalorder %s38, 1
      %p176 = por %p174, %p175
      %p178 = scmp.ne.s32.totalorder %s163, %s177
      %p179 = scmp.eq.s32.totalorder %s38, 0
      %p180 = por %p178, %p179
      %s182 = sadd.s32 %s181, 1
      %p185 = scmp.eq.s32.totalorder %s32, 1
      %p186 = scmp.ne.s32.totalorder %s181, %s183
      %p187 = scmp.eq.s32.totalorder %s32, 0
      %p188 = por %p186, %p187
      %p189 = scmp.ne.s32.totalorder %s181, %s183
      %p190 = scmp.eq.s32.totalorder %s37, 1
      %p191 = por %p189, %p190
      %p192 = scmp.ne.s32.totalorder %s183, %s184
      %p193 = scmp.eq.s32.totalorder %s37, 0
      %p194 = por %p192, %p193
      %p195 = scmp.ne.s32.totalorder %s183, %s184
      %p196 = scmp.eq.s32.totalorder %s38, 1
      %p197 = por %p195, %p196
      %p199 = scmp.ne.s32.totalorder %s184, %s198
      %p200 = scmp.eq.s32.totalorder %s38, 0
      %p201 = por %p199, %p200
      %s203 = sadd.s32 %s202, 1
      %p206 = scmp.eq.s32.totalorder %s32, 1
      %p207 = scmp.ne.s32.totalorder %s202, %s204
      %p208 = scmp.eq.s32.totalorder %s32, 0
      %p209 = por %p207, %p208
      %p210 = scmp.ne.s32.totalorder %s202, %s204
      %p211 = scmp.eq.s32.totalorder %s37, 1
      %p212 = por %p210, %p211
      %p213 = scmp.ne.s32.totalorder %s204, %s205
      %p214 = scmp.eq.s32.totalorder %s37, 0
      %p215 = por %p213, %p214
      %p216 = scmp.ne.s32.totalorder %s204, %s205
      %p217 = scmp.eq.s32.totalorder %s38, 1
      %p218 = por %p216, %p217
      %p220 = scmp.ne.s32.totalorder %s205, %s219
      %p221 = scmp.eq.s32.totalorder %s38, 0
      %p222 = por %p220, %p221
      %s224 = sadd.s32 %s223, 1
      %p227 = scmp.eq.s32.totalorder %s32, 1
      %p228 = scmp.ne.s32.totalorder %s223, %s225
      %p229 = scmp.eq.s32.totalorder %s32, 0
      %p230 = por %p228, %p229
      %p231 = scmp.ne.s32.totalorder %s223, %s225
      %p232 = scmp.eq.s32.totalorder %s37, 1
      %p233 = por %p231, %p232
      %p234 = scmp.ne.s32.totalorder %s225, %s226
      %p235 = scmp.eq.s32.totalorder %s37, 0
      %p236 = por %p234, %p235
      %p237 = scmp.ne.s32.totalorder %s225, %s226
      %p238 = scmp.eq.s32.totalorder %s38, 1
      %p239 = por %p237, %p238
      %p241 = scmp.ne.s32.totalorder %s226, %s240
      %p242 = scmp.eq.s32.totalorder %s38, 0
      %p243 = por %p241, %p242
      %s245 = sadd.s32 %s244, 1
      %p248 = scmp.eq.s32.totalorder %s32, 1
      %p249 = scmp.ne.s32.totalorder %s244, %s246
      %p250 = scmp.eq.s32.totalorder %s32, 0
      %p251 = por %p249, %p250
      %p252 = scmp.ne.s32.totalorder %s244, %s246
      %p253 = scmp.eq.s32.totalorder %s37, 1
      %p254 = por %p252, %p253
      %p255 = scmp.ne.s32.totalorder %s246, %s247
      %p256 = scmp.eq.s32.totalorder %s37, 0
      %p257 = por %p255, %p256
      %p258 = scmp.ne.s32.totalorder %s246, %s247
      %p259 = scmp.eq.s32.totalorder %s38, 1
      %p260 = por %p258, %p259
      %p262 = scmp.ne.s32.totalorder %s247, %s261
      %p263 = scmp.eq.s32.totalorder %s38, 0
      %p264 = por %p262, %p263
      %s266 = sadd.s32 %s265, 1
      %p269 = scmp.eq.s32.totalorder %s32, 1
      %p270 = scmp.ne.s32.totalorder %s265, %s267
      %p271 = scmp.eq.s32.totalorder %s32, 0
      %p272 = por %p270, %p271
      %p273 = scmp.ne.s32.totalorder %s265, %s267
      %p274 = scmp.eq.s32.totalorder %s37, 1
      %p275 = por %p273, %p274
      %p276 = scmp.ne.s32.totalorder %s267, %s268
      %p277 = scmp.eq.s32.totalorder %s37, 0
      %p278 = por %p276, %p277
      %p279 = scmp.ne.s32.totalorder %s267, %s268
      %p280 = scmp.eq.s32.totalorder %s38, 1
      %p281 = por %p279, %p280
      %p283 = scmp.ne.s32.totalorder %s268, %s282
      %p284 = scmp.eq.s32.totalorder %s38, 0
      %p285 = por %p283, %p284
      %s287 = sadd.s32 %s286, 1
      %p290 = scmp.eq.s32.totalorder %s32, 1
      %p291 = scmp.ne.s32.totalorder %s286, %s288
      %p292 = scmp.eq.s32.totalorder %s32, 0
      %p293 = por %p291, %p292
      %p294 = scmp.ne.s32.totalorder %s286, %s288
      %p295 = scmp.eq.s32.totalorder %s37, 1
      %p296 = por %p294, %p295
      %p297 = scmp.ne.s32.totalorder %s288, %s289
      %p298 = scmp.eq.s32.totalorder %s37, 0
      %p299 = por %p297, %p298
      %p300 = scmp.ne.s32.totalorder %s288, %s289
      %p301 = scmp.eq.s32.totalorder %s38, 1
      %p302 = por %p300, %p301
      %p304 = scmp.ne.s32.totalorder %s289, %s303
      %p305 = scmp.eq.s32.totalorder %s38, 0
      %p306 = por %p304, %p305
      %s307 = ssub.s32 %s32, %s39
      %p308 = scmp.eq.s32.totalorder %s307, 0
      %s310 = sadd.s32 %s309, 1
      %s311 = scalar_select %p308, %s309, %s310
      %p314 = pneg %p308
      %p315 = scmp.eq.s32.totalorder %s32, 1
      %p316 = por %p314, %p315
      %p317 = scmp.ne.s32.totalorder %s309, %s312
      %p318 = scmp.eq.s32.totalorder %s32, 0
      %p319 = por %p317, %p318
      %p320 = scmp.ne.s32.totalorder %s309, %s312
      %p321 = scmp.eq.s32.totalorder %s37, 1
      %p322 = por %p320, %p321
      %p323 = scmp.ne.s32.totalorder %s312, %s313
      %p324 = scmp.eq.s32.totalorder %s37, 0
      %p325 = por %p323, %p324
      %p326 = scmp.ne.s32.totalorder %s312, %s313
      %p327 = scmp.eq.s32.totalorder %s38, 1
      %p328 = por %p326, %p327
      %p330 = scmp.ne.s32.totalorder %s313, %s329
      %p331 = scmp.eq.s32.totalorder %s38, 0
      %p332 = por %p330, %p331
      %p333 = scmp.le.s32.totalorder 1, %s32
      %p334 = scmp.lt.s32.totalorder %s32, 3
      %p335 = pnand %p333, %p334
      %p336 = pneg %p335
      // Predicated region
      $region9: #{tpu_custom_call.1} parent=5 // pred_check
        _
      $region10: #{tpu_custom_call.1} parent=5 // pred_check_branch
        %338 = sbr.rel (%p335) target = $region12
      $region11: #{tpu_custom_call.1} parent=5 // pred_region
        %s339 = ssub.s32 %s32, 1
        // Predicated region
        $region13: #{tpu_custom_call.1} parent=11 // pred_check
          %p340 = pneg %p131
        $region14: #{tpu_custom_call.1} parent=11 // pred_check_branch
          %342 = sbr.rel (%p340) target = $region16
        $region15: #{tpu_custom_call.1} parent=11 // pred_region
          %s344 = ssub.s32 1024, 1024
          %345 = vsyncadd [#allocation9], %s344
          %s346 = sshll.u32 [#allocation8], 4
          %s347 = int_to_ptr.vmem [resolvable:$true] %s346
          %352 = dma.hbm_to_vmem [thread:$0]  %s3, 1024, %s347, [#allocation9], 64, 64, 4
        $region16: #{tpu_custom_call.1} parent=11 // pred_fallthru
          _
        // Predicated region
        $region17: #{tpu_custom_call.1} parent=11 // pred_check
          %p353 = pneg %p152
        $region18: #{tpu_custom_call.1} parent=11 // pred_check_branch
          %355 = sbr.rel (%p353) target = $region20
        $region19: #{tpu_custom_call.1} parent=11 // pred_region
          %s357 = ssub.s32 1024, 1024
          %358 = vsyncadd [#allocation9], %s357
          %s359 = sshll.u32 [#allocation10], 4
          %s360 = int_to_ptr.vmem [resolvable:$true] %s359
          %365 = dma.hbm_to_vmem [thread:$0]  %s4, 1024, %s360, [#allocation9], 64, 64, 4
        $region20: #{tpu_custom_call.1} parent=11 // pred_fallthru
          _
        // Predicated region
        $region21: #{tpu_custom_call.1} parent=11 // pred_check
          %p366 = pneg %p173
        $region22: #{tpu_custom_call.1} parent=11 // pred_check_branch
          %368 = sbr.rel (%p366) target = $region24
        $region23: #{tpu_custom_call.1} parent=11 // pred_region
          %s370 = ssub.s32 1024, 1024
          %371 = vsyncadd [#allocation12], %s370
          %s372 = sshll.u32 [#allocation11], 4
          %s373 = int_to_ptr.vmem [resolvable:$true] %s372
          %378 = dma.hbm_to_vmem [thread:$0]  %s5, 1024, %s373, [#allocation12], 64, 64, 4
        $region24: #{tpu_custom_call.1} parent=11 // pred_fallthru
          _
        // Predicated region
        $region25: #{tpu_custom_call.1} parent=11 // pred_check
          %p379 = pneg %p194
        $region26: #{tpu_custom_call.1} parent=11 // pred_check_branch
          %381 = sbr.rel (%p379) target = $region28
        $region27: #{tpu_custom_call.1} parent=11 // pred_region
          %s383 = ssub.s32 256, 256
          %384 = vsyncadd [#allocation12], %s383
          %s385 = sshll.u32 [#allocation13], 4
          %s386 = int_to_ptr.vmem [resolvable:$true] %s385
          %391 = dma.hbm_to_vmem [thread:$0]  %s6, 256, %s386, [#allocation12], 64, 64, 4
        $region28: #{tpu_custom_call.1} parent=11 // pred_fallthru
          _
        // Predicated region
        $region29: #{tpu_custom_call.1} parent=11 // pred_check
          %p392 = pneg %p215
        $region30: #{tpu_custom_call.1} parent=11 // pred_check_branch
          %394 = sbr.rel (%p392) target = $region32
        $region31: #{tpu_custom_call.1} parent=11 // pred_region
          %s396 = ssub.s32 256, 256
          %397 = vsyncadd [#allocation15], %s396
          %s398 = sshll.u32 [#allocation14], 4
          %s399 = int_to_ptr.vmem [resolvable:$true] %s398
          %404 = dma.hbm_to_vmem [thread:$0]  %s7, 256, %s399, [#allocation15], 64, 64, 4
        $region32: #{tpu_custom_call.1} parent=11 // pred_fallthru
          _
        // Predicated region
        $region33: #{tpu_custom_call.1} parent=11 // pred_check
          %p405 = pneg %p236
        $region34: #{tpu_custom_call.1} parent=11 // pred_check_branch
          %407 = sbr.rel (%p405) target = $region36
        $region35: #{tpu_custom_call.1} parent=11 // pred_region
          %s409 = ssub.s32 512, 512
          %410 = vsyncadd [#allocation15], %s409
          %s411 = sshll.u32 [#allocation16], 4
          %s412 = int_to_ptr.vmem [resolvable:$true] %s411
          %417 = dma.hbm_to_vmem [thread:$0]  %s8, 512, %s412, [#allocation15], 64, 64, 4
        $region36: #{tpu_custom_call.1} parent=11 // pred_fallthru
          _
        // Predicated region
        $region37: #{tpu_custom_call.1} parent=11 // pred_check
          %p418 = pneg %p257
        $region38: #{tpu_custom_call.1} parent=11 // pred_check_branch
          %420 = sbr.rel (%p418) target = $region40
        $region39: #{tpu_custom_call.1} parent=11 // pred_region
          %s422 = ssub.s32 256, 256
          %423 = vsyncadd [#allocation18], %s422
          %s424 = sshll.u32 [#allocation17], 4
          %s425 = int_to_ptr.vmem [resolvable:$true] %s424
          %430 = dma.hbm_to_vmem [thread:$0]  %s9, 256, %s425, [#allocation18], 128, 128, 8
        $region40: #{tpu_custom_call.1} parent=11 // pred_fallthru
          _
        // Predicated region
        $region41: #{tpu_custom_call.1} parent=11 // pred_check
          %p431 = pneg %p278
        $region42: #{tpu_custom_call.1} parent=11 // pred_check_branch
          %433 = sbr.rel (%p431) target = $region44
        $region43: #{tpu_custom_call.1} parent=11 // pred_region
          %s435 = ssub.s32 128, 128
          %436 = vsyncadd [#allocation18], %s435
          %s438 = sshll.u32 [#allocation19], 4
          %s439 = int_to_ptr.vmem [resolvable:$true] %s438
          %441 = dma.hbm_to_vmem [thread:$0]  %s10, 128, %s439, [#allocation18]
        $region44: #{tpu_custom_call.1} parent=11 // pred_fallthru
          _
        // Predicated region
        $region45: #{tpu_custom_call.1} parent=11 // pred_check
          %p442 = pneg %p299
        $region46: #{tpu_custom_call.1} parent=11 // pred_check_branch
          %444 = sbr.rel (%p442) target = $region48
        $region47: #{tpu_custom_call.1} parent=11 // pred_region
          %s446 = ssub.s32 16, 16
          %447 = vsyncadd [#allocation21], %s446
          %s449 = sshll.u32 [#allocation20], 4
          %s450 = int_to_ptr.vmem [resolvable:$true] %s449
          %452 = dma.hbm_to_vmem [thread:$0]  %s11, 16, %s450, [#allocation21]
        $region48: #{tpu_custom_call.1} parent=11 // pred_fallthru
          _
      $region12: #{tpu_custom_call.1} parent=5 // pred_fallthru
        _
      %p453 = scmp.lt.s32.totalorder %s32, 2
      // Predicated region
      $region49: #{tpu_custom_call.1} parent=5 // pred_check
        %p454 = pneg %p453
      $region50: #{tpu_custom_call.1} parent=5 // pred_check_branch
        %456 = sbr.rel (%p454) target = $region52
      $region51: #{tpu_custom_call.1} parent=5 // pred_region
        // Predicated region
        $region53: #{tpu_custom_call.1} parent=51 // pred_check
          %p457 = pneg %p52
        $region54: #{tpu_custom_call.1} parent=51 // pred_check_branch
          %459 = sbr.rel (%p457) target = $region56
        $region55: #{tpu_custom_call.1} parent=51 // pred_region
          %s460 = sand.u32 %s42, 1
          %s461 = scalar_lea.sflag [#allocation3], %s460
          %s462 = sand.u32 %s42, 1
          %s463 = smul.addr %s462, 8
          %s464 = scalar_lea.vmem [#allocation2], %s463
          %s466 = ssub.s32 128, 128
          %467 = vsyncadd %s461, %s466
          %s468 = smul.addr %s32, 128
          %s469 = scalar_lea.hbm %s0, %s468
          %s471 = sshll.u32 %s464, 4
          %s472 = int_to_ptr.vmem [resolvable:$true] %s471
          %474 = dma.hbm_to_vmem [thread:$0]  %s469, 128, %s472, %s461
        $region56: #{tpu_custom_call.1} parent=51 // pred_fallthru
          _
        // Predicated region
        $region57: #{tpu_custom_call.1} parent=51 // pred_check
          %p475 = pneg %p78
        $region58: #{tpu_custom_call.1} parent=51 // pred_check_branch
          %477 = sbr.rel (%p475) target = $region60
        $region59: #{tpu_custom_call.1} parent=51 // pred_region
          %s478 = sand.u32 %s32, 1
          %s479 = scalar_lea.sflag [#allocation6], %s478
          %s480 = sand.u32 %s68, 1
          %s481 = smul.addr %s480, 8
          %s482 = scalar_lea.vmem [#allocation5], %s481
          %s484 = ssub.s32 128, 128
          %485 = vsyncadd %s479, %s484
          %s486 = smul.addr %s32, 128
          %s487 = scalar_lea.hbm %s1, %s486
          %s489 = sshll.u32 %s482, 4
          %s490 = int_to_ptr.vmem [resolvable:$true] %s489
          %492 = dma.hbm_to_vmem [thread:$0]  %s487, 128, %s490, %s479
        $region60: #{tpu_custom_call.1} parent=51 // pred_fallthru
          _
        // Predicated region
        $region61: #{tpu_custom_call.1} parent=51 // pred_check
          %p493 = pneg %p104
        $region62: #{tpu_custom_call.1} parent=51 // pred_check_branch
          %495 = sbr.rel (%p493) target = $region64
        $region63: #{tpu_custom_call.1} parent=51 // pred_region
          %s496 = sand.u32 %s32, 1
          %s497 = scalar_lea.sflag [#allocation6], %s496
          %s498 = sand.u32 %s94, 1
          %s499 = smul.addr %s498, 16
          %s500 = scalar_lea.vmem [#allocation7], %s499
          %s502 = ssub.s32 256, 256
          %503 = vsyncadd %s497, %s502
          %s504 = smul.addr %s32, 4
          %s505 = smul.addr %s504, 64
          %s506 = scalar_lea.hbm %s2, %s505
          %s507 = sshll.u32 %s500, 4
          %s508 = int_to_ptr.vmem [resolvable:$true] %s507
          %513 = dma.hbm_to_vmem [thread:$0]  %s506, 256, %s508, %s497, 64, 64, 4
        $region64: #{tpu_custom_call.1} parent=51 // pred_fallthru
          _
      $region52: #{tpu_custom_call.1} parent=5 // pred_fallthru
        _
      %p514 = scmp.le.s32.totalorder 1, %s32
      %p515 = scmp.lt.s32.totalorder %s32, 3
      %p516 = pnand %p514, %p515
      %p517 = pneg %p516
      // Predicated region
      $region65: #{tpu_custom_call.1} parent=5 // pred_check
        _
      $region66: #{tpu_custom_call.1} parent=5 // pred_check_branch
        %519 = sbr.rel (%p516) target = $region68
      $region67: #{tpu_custom_call.1} parent=5 // pred_region
        %s520 = ssub.s32 %s32, 1
        %s521 = sand.u32 %s45, 1
        %s522 = scalar_lea.sflag [#allocation3], %s521
        %s523 = sand.u32 %s45, 1
        %s524 = smul.addr %s523, 8
        %s525 = scalar_lea.vmem [#allocation2], %s524
        // Predicated region
        $region69: #{tpu_custom_call.1} parent=67 // pred_check
          %p526 = pneg %p58
        $region70: #{tpu_custom_call.1} parent=67 // pred_check_branch
          %528 = sbr.rel (%p526) target = $region72
        $region71: #{tpu_custom_call.1} parent=67 // pred_region
          %529 = dma.done %s522, 128
        $region72: #{tpu_custom_call.1} parent=67 // pred_fallthru
          _
        %s530 = sand.u32 %s37, 1
        %s531 = scalar_lea.sflag [#allocation6], %s530
        %s532 = sand.u32 %s71, 1
        %s533 = smul.addr %s532, 8
        %s534 = scalar_lea.vmem [#allocation5], %s533
        // Predicated region
        $region73: #{tpu_custom_call.1} parent=67 // pred_check
          %p535 = pneg %p84
        $region74: #{tpu_custom_call.1} parent=67 // pred_check_branch
          %537 = sbr.rel (%p535) target = $region76
        $region75: #{tpu_custom_call.1} parent=67 // pred_region
          %538 = dma.done %s531, 128
        $region76: #{tpu_custom_call.1} parent=67 // pred_fallthru
          _
        %s539 = sand.u32 %s37, 1
        %s540 = scalar_lea.sflag [#allocation6], %s539
        %s541 = sand.u32 %s97, 1
        %s542 = smul.addr %s541, 16
        %s543 = scalar_lea.vmem [#allocation7], %s542
        // Predicated region
        $region77: #{tpu_custom_call.1} parent=67 // pred_check
          %p544 = pneg %p110
        $region78: #{tpu_custom_call.1} parent=67 // pred_check_branch
          %546 = sbr.rel (%p544) target = $region80
        $region79: #{tpu_custom_call.1} parent=67 // pred_region
          %547 = dma.done %s540, 256
        $region80: #{tpu_custom_call.1} parent=67 // pred_fallthru
          _
        // Predicated region
        $region81: #{tpu_custom_call.1} parent=67 // pred_check
          %p548 = pneg %p131
        $region82: #{tpu_custom_call.1} parent=67 // pred_check_branch
          %550 = sbr.rel (%p548) target = $region84
        $region83: #{tpu_custom_call.1} parent=67 // pred_region
          %551 = dma.done [#allocation9], 1024
        $region84: #{tpu_custom_call.1} parent=67 // pred_fallthru
          _
        // Predicated region
        $region85: #{tpu_custom_call.1} parent=67 // pred_check
          %p552 = pneg %p152
        $region86: #{tpu_custom_call.1} parent=67 // pred_check_branch
          %554 = sbr.rel (%p552) target = $region88
        $region87: #{tpu_custom_call.1} parent=67 // pred_region
          %555 = dma.done [#allocation9], 1024
        $region88: #{tpu_custom_call.1} parent=67 // pred_fallthru
          _
        // Predicated region
        $region89: #{tpu_custom_call.1} parent=67 // pred_check
          %p556 = pneg %p173
        $region90: #{tpu_custom_call.1} parent=67 // pred_check_branch
          %558 = sbr.rel (%p556) target = $region92
        $region91: #{tpu_custom_call.1} parent=67 // pred_region
          %559 = dma.done [#allocation12], 1024
        $region92: #{tpu_custom_call.1} parent=67 // pred_fallthru
          _
        // Predicated region
        $region93: #{tpu_custom_call.1} parent=67 // pred_check
          %p560 = pneg %p194
        $region94: #{tpu_custom_call.1} parent=67 // pred_check_branch
          %562 = sbr.rel (%p560) target = $region96
        $region95: #{tpu_custom_call.1} parent=67 // pred_region
          %563 = dma.done [#allocation12], 256
        $region96: #{tpu_custom_call.1} parent=67 // pred_fallthru
          _
        // Predicated region
        $region97: #{tpu_custom_call.1} parent=67 // pred_check
          %p564 = pneg %p215
        $region98: #{tpu_custom_call.1} parent=67 // pred_check_branch
          %566 = sbr.rel (%p564) target = $region100
        $region99: #{tpu_custom_call.1} parent=67 // pred_region
          %567 = dma.done [#allocation15], 256
        $region100: #{tpu_custom_call.1} parent=67 // pred_fallthru
          _
        // Predicated region
        $region101: #{tpu_custom_call.1} parent=67 // pred_check
          %p568 = pneg %p236
        $region102: #{tpu_custom_call.1} parent=67 // pred_check_branch
          %570 = sbr.rel (%p568) target = $region104
        $region103: #{tpu_custom_call.1} parent=67 // pred_region
          %571 = dma.done [#allocation15], 512
        $region104: #{tpu_custom_call.1} parent=67 // pred_fallthru
          _
        // Predicated region
        $region105: #{tpu_custom_call.1} parent=67 // pred_check
          %p572 = pneg %p257
        $region106: #{tpu_custom_call.1} parent=67 // pred_check_branch
          %574 = sbr.rel (%p572) target = $region108
        $region107: #{tpu_custom_call.1} parent=67 // pred_region
          %575 = dma.done [#allocation18], 256
        $region108: #{tpu_custom_call.1} parent=67 // pred_fallthru
          _
        // Predicated region
        $region109: #{tpu_custom_call.1} parent=67 // pred_check
          %p576 = pneg %p278
        $region110: #{tpu_custom_call.1} parent=67 // pred_check_branch
          %578 = sbr.rel (%p576) target = $region112
        $region111: #{tpu_custom_call.1} parent=67 // pred_region
          %579 = dma.done [#allocation18], 128
        $region112: #{tpu_custom_call.1} parent=67 // pred_fallthru
          _
        // Predicated region
        $region113: #{tpu_custom_call.1} parent=67 // pred_check
          %p580 = pneg %p299
        $region114: #{tpu_custom_call.1} parent=67 // pred_check_branch
          %582 = sbr.rel (%p580) target = $region116
        $region115: #{tpu_custom_call.1} parent=67 // pred_region
          %583 = dma.done [#allocation21], 16
        $region116: #{tpu_custom_call.1} parent=67 // pred_fallthru
          _
        %s584 = sand.u32 %s45, 1
        %s585 = scalar_lea.sflag [#allocation3], %s584
        %s586 = sand.u32 %s45, 1
        %s587 = smul.addr %s586, 8
        %s588 = scalar_lea.vmem [#allocation2], %s587
        %p589 = pneg %p58
        %p590 = pneg %p55
        %s591 = sand.u32 %s37, 1
        %s592 = scalar_lea.sflag [#allocation6], %s591
        %s593 = sand.u32 %s71, 1
        %s594 = smul.addr %s593, 8
        %s595 = scalar_lea.vmem [#allocation5], %s594
        %p596 = pneg %p84
        %p597 = pneg %p81
        %s598 = sand.u32 %s37, 1
        %s599 = scalar_lea.sflag [#allocation6], %s598
        %s600 = sand.u32 %s97, 1
        %s601 = smul.addr %s600, 16
        %s602 = scalar_lea.vmem [#allocation7], %s601
        %p603 = pneg %p110
        %p604 = pneg %p107
        %p605 = pneg %p131
        %p606 = pneg %p128
        %p607 = pneg %p152
        %p608 = pneg %p149
        %p609 = pneg %p173
        %p610 = pneg %p170
        %p611 = pneg %p194
        %p612 = pneg %p191
        %p613 = pneg %p215
        %p614 = pneg %p212
        %p615 = pneg %p236
        %p616 = pneg %p233
        %p617 = pneg %p257
        %p618 = pneg %p254
        %p619 = pneg %p278
        %p620 = pneg %p275
        %p621 = pneg %p299
        %p622 = pneg %p296
        %p623 = pneg %p325
        %p624 = pneg %p322
        %s625 = sand.u32 %s312, 1
        %s626 = scalar_lea.sflag [#allocation4], %s625
        %s627 = sand.u32 %s312, 1
        %s628 = smul.addr %s627, 8
        %s629 = scalar_lea.vmem [#allocation22], %s628
        %v631 = vld [vmem:[%s525] sm:$0xff]
        %v632 = vpack.c.bf16 %v631, %v631
        %v633 = vld [vmem:[%s534] sm:$0xff]
        %v634 = vpack.c.bf16 %v633, %v633
        %v635 = vld [vmem:[#allocation19] sm:$0x1]
        %v636 = vld [vmem:[#allocation19 + $0x1] sm:$0x1]
        %v637 = vld [vmem:[#allocation19 + $0x2] sm:$0x1]
        %v638 = vld [vmem:[#allocation19 + $0x3] sm:$0x1]
        %v639 = vld [vmem:[#allocation19 + $0x4] sm:$0x1]
        %v640 = vld [vmem:[#allocation19 + $0x5] sm:$0x1]
        %v641 = vld [vmem:[#allocation8] sm:$0xf]
        %v642 = vld [vmem:[#allocation8 + $0x4] sm:$0xf]
        %v643 = vld [vmem:[#allocation8 + $0x8] sm:$0xf]
        %v644 = vld [vmem:[#allocation8 + $0xc] sm:$0xf]
        %v645 = vld [vmem:[#allocation10] sm:$0xf]
        %v646 = vld [vmem:[#allocation10 + $0x4] sm:$0xf]
        %v647 = vld [vmem:[#allocation10 + $0x8] sm:$0xf]
        %v648 = vld [vmem:[#allocation10 + $0xc] sm:$0xf]
        %v649 = vld [vmem:[#allocation11] sm:$0xf]
        %v650 = vld [vmem:[#allocation11 + $0x4] sm:$0xf]
        %v651 = vld [vmem:[#allocation11 + $0x8] sm:$0xf]
        %v652 = vld [vmem:[#allocation11 + $0xc] sm:$0xf]
        %v653 = vld [vmem:[#allocation17] sm:$0x1]
        %v654 = vld [vmem:[#allocation17 + $0x4] sm:$0x1]
        %v655 = vld [vmem:[#allocation17 + $0x8] sm:$0x1]
        %v656 = vlaneseq
        %v657 = vshrl.u32 %v656, 7
        %v658 = vsub.s32 0, %v657
        %v659 = vrot.slane %v653, %v658
        %v664 = vunpack.c.l.b16 %v641
        %v665 = vunpack.c.l.b16 %v642
        %v666 = vunpack.c.l.b16 %v643
        %v667 = vunpack.c.l.b16 %v644
        %v668 = vpack.c.b16 %v665, %v664
        %v669 = vpack.c.b16 %v667, %v666
        %vm672 = vcmask 261120
        %v674 = vsel %vm672, %v632, 0
        %676 = vmatprep.subr.bf16.mxu0 0
        %677 = vmatpush1.bf16.msra.mxu0 %v668
        %678 = vmatprep.subr.bf16.mxu0 0
        %679 = vmatpush1.bf16.msra.mxu0 %v669
        %680 = vmatprep.subr.bf16.mxu0 0
        %681 = vmatpush1.bf16.msra.mxu0 0
        %682 = vmatprep.subr.bf16.mxu0 0
        %683 = vmatpush1.bf16.msra.mxu0 0
        %684 = vmatprep.subr.bf16.mxu0 0
        %685 = vmatpush1.bf16.msra.mxu0 0
        %686 = vmatprep.subr.bf16.mxu0 0
        %687 = vmatpush1.bf16.msra.mxu0 0
        %688 = vmatprep.subr.bf16.mxu0 0
        %689 = vmatpush1.bf16.msra.mxu0 0
        %690 = vmatprep.subr.bf16.mxu0 0
        %691 = vmatpush1.bf16.msra.mxu0 0
        %692 = vmatprep.subr.bf16.mxu0 0
        %693 = vmatpush1.bf16.msra.mxu0 0
        %694 = vmatprep.subr.bf16.mxu0 0
        %695 = vmatpush1.bf16.msra.mxu0 0
        %696 = vmatprep.subr.bf16.mxu0 0
        %697 = vmatpush1.bf16.msra.mxu0 0
        %698 = vmatprep.subr.bf16.mxu0 0
        %699 = vmatpush1.bf16.msra.mxu0 0
        %700 = vmatprep.subr.bf16.mxu0 0
        %701 = vmatpush1.bf16.msra.mxu0 0
        %702 = vmatprep.subr.bf16.mxu0 0
        %703 = vmatpush1.bf16.msra.mxu0 0
        %704 = vmatprep.subr.bf16.mxu0 0
        %705 = vmatpush1.bf16.msra.mxu0 0
        %706 = vmatprep.subr.bf16.mxu0 0
        %707 = vmatpush1.bf16.msra.mxu0 0
        %708 = vmatprep.mubr.bf16.mxu0 0
        %709 = vmatmul.mubr.bf16.gmra.mrb[0].mxu0 %v674
        %v710 = vpop.f32.mrb[0].mxu0
        %v711 = vadd.f32 %v659, %v710
        %v712 = vpop.f32.mrb[0].mxu0
        %v713 = vpop.f32.mrb[0].mxu0
        %v714 = vpop.f32.mrb[0].mxu0
        %715 = vdwg.mxu0
        %v716 = vlaneseq
        %v717 = vshrl.u32 %v716, 7
        %v718 = vsub.s32 0, %v717
        %v719 = vrot.slane %v654, %v718
        %v724 = vunpack.c.l.b16 %v645
        %v725 = vunpack.c.l.b16 %v646
        %v726 = vunpack.c.l.b16 %v647
        %v727 = vunpack.c.l.b16 %v648
        %v728 = vpack.c.b16 %v725, %v724
        %v729 = vpack.c.b16 %v727, %v726
        %v733 = vsel %vm672, %v634, 0
        %735 = vmatprep.subr.bf16.mxu0 0
        %736 = vmatpush1.bf16.msra.mxu0 %v728
        %737 = vmatprep.subr.bf16.mxu0 0
        %738 = vmatpush1.bf16.msra.mxu0 %v729
        %739 = vmatprep.subr.bf16.mxu0 0
        %740 = vmatpush1.bf16.msra.mxu0 0
        %741 = vmatprep.subr.bf16.mxu0 0
        %742 = vmatpush1.bf16.msra.mxu0 0
        %743 = vmatprep.subr.bf16.mxu0 0
        %744 = vmatpush1.bf16.msra.mxu0 0
        %745 = vmatprep.subr.bf16.mxu0 0
        %746 = vmatpush1.bf16.msra.mxu0 0
        %747 = vmatprep.subr.bf16.mxu0 0
        %748 = vmatpush1.bf16.msra.mxu0 0
        %749 = vmatprep.subr.bf16.mxu0 0
        %750 = vmatpush1.bf16.msra.mxu0 0
        %751 = vmatprep.subr.bf16.mxu0 0
        %752 = vmatpush1.bf16.msra.mxu0 0
        %753 = vmatprep.subr.bf16.mxu0 0
        %754 = vmatpush1.bf16.msra.mxu0 0
        %755 = vmatprep.subr.bf16.mxu0 0
        %756 = vmatpush1.bf16.msra.mxu0 0
        %757 = vmatprep.subr.bf16.mxu0 0
        %758 = vmatpush1.bf16.msra.mxu0 0
        %759 = vmatprep.subr.bf16.mxu0 0
        %760 = vmatpush1.bf16.msra.mxu0 0
        %761 = vmatprep.subr.bf16.mxu0 0
        %762 = vmatpush1.bf16.msra.mxu0 0
        %763 = vmatprep.subr.bf16.mxu0 0
        %764 = vmatpush1.bf16.msra.mxu0 0
        %765 = vmatprep.subr.bf16.mxu0 0
        %766 = vmatpush1.bf16.msra.mxu0 0
        %767 = vmatprep.mubr.bf16.mxu0 0
        %768 = vmatmul.mubr.bf16.gmra.mrb[0].mxu0 %v733
        %v769 = vpop.f32.mrb[0].mxu0
        %v770 = vadd.f32 %v719, %v769
        %v771 = vpop.f32.mrb[0].mxu0
        %v772 = vpop.f32.mrb[0].mxu0
        %v773 = vpop.f32.mrb[0].mxu0
        %774 = vdwg.mxu0
        %775 = vmatprep.subr.bf16.mxu0 0
        %776 = vmatpush1.bf16.msra.mxu0 %v728
        %777 = vmatprep.subr.bf16.mxu0 0
        %778 = vmatpush1.bf16.msra.mxu0 %v729
        %779 = vmatprep.subr.bf16.mxu0 0
        %780 = vmatpush1.bf16.msra.mxu0 0
        %781 = vmatprep.subr.bf16.mxu0 0
        %782 = vmatpush1.bf16.msra.mxu0 0
        %783 = vmatprep.subr.bf16.mxu0 0
        %784 = vmatpush1.bf16.msra.mxu0 0
        %785 = vmatprep.subr.bf16.mxu0 0
        %786 = vmatpush1.bf16.msra.mxu0 0
        %787 = vmatprep.subr.bf16.mxu0 0
        %788 = vmatpush1.bf16.msra.mxu0 0
        %789 = vmatprep.subr.bf16.mxu0 0
        %790 = vmatpush1.bf16.msra.mxu0 0
        %791 = vmatprep.subr.bf16.mxu0 0
        %792 = vmatpush1.bf16.msra.mxu0 0
        %793 = vmatprep.subr.bf16.mxu0 0
        %794 = vmatpush1.bf16.msra.mxu0 0
        %795 = vmatprep.subr.bf16.mxu0 0
        %796 = vmatpush1.bf16.msra.mxu0 0
        %797 = vmatprep.subr.bf16.mxu0 0
        %798 = vmatpush1.bf16.msra.mxu0 0
        %799 = vmatprep.subr.bf16.mxu0 0
        %800 = vmatpush1.bf16.msra.mxu0 0
        %801 = vmatprep.subr.bf16.mxu0 0
        %802 = vmatpush1.bf16.msra.mxu0 0
        %803 = vmatprep.subr.bf16.mxu0 0
        %804 = vmatpush1.bf16.msra.mxu0 0
        %805 = vmatprep.subr.bf16.mxu0 0
        %806 = vmatpush1.bf16.msra.mxu0 0
        %807 = vmatprep.mubr.bf16.mxu0 0
        %808 = vmatmul.mubr.bf16.gmra.mrb[0].mxu0 %v674
        %v809 = vpop.f32.mrb[0].mxu0
        %v810 = vadd.f32 %v719, %v809
        %v811 = vpop.f32.mrb[0].mxu0
        %v812 = vpop.f32.mrb[0].mxu0
        %v813 = vpop.f32.mrb[0].mxu0
        %814 = vdwg.mxu0
        %v815 = vlaneseq
        %v816 = vshrl.u32 %v815, 7
        %v817 = vsub.s32 0, %v816
        %v818 = vrot.slane %v655, %v817
        %v823 = vunpack.c.l.b16 %v649
        %v824 = vunpack.c.l.b16 %v650
        %v825 = vunpack.c.l.b16 %v651
        %v826 = vunpack.c.l.b16 %v652
        %v827 = vpack.c.b16 %v824, %v823
        %v828 = vpack.c.b16 %v826, %v825
        %831 = vmatprep.subr.bf16.mxu0 0
        %832 = vmatpush1.bf16.msra.mxu0 %v827
        %833 = vmatprep.subr.bf16.mxu0 0
        %834 = vmatpush1.bf16.msra.mxu0 %v828
        %835 = vmatprep.subr.bf16.mxu0 0
        %836 = vmatpush1.bf16.msra.mxu0 0
        %837 = vmatprep.subr.bf16.mxu0 0
        %838 = vmatpush1.bf16.msra.mxu0 0
        %839 = vmatprep.subr.bf16.mxu0 0
        %840 = vmatpush1.bf16.msra.mxu0 0
        %841 = vmatprep.subr.bf16.mxu0 0
        %842 = vmatpush1.bf16.msra.mxu0 0
        %843 = vmatprep.subr.bf16.mxu0 0
        %844 = vmatpush1.bf16.msra.mxu0 0
        %845 = vmatprep.subr.bf16.mxu0 0
        %846 = vmatpush1.bf16.msra.mxu0 0
        %847 = vmatprep.subr.bf16.mxu0 0
        %848 = vmatpush1.bf16.msra.mxu0 0
        %849 = vmatprep.subr.bf16.mxu0 0
        %850 = vmatpush1.bf16.msra.mxu0 0
        %851 = vmatprep.subr.bf16.mxu0 0
        %852 = vmatpush1.bf16.msra.mxu0 0
        %853 = vmatprep.subr.bf16.mxu0 0
        %854 = vmatpush1.bf16.msra.mxu0 0
        %855 = vmatprep.subr.bf16.mxu0 0
        %856 = vmatpush1.bf16.msra.mxu0 0
        %857 = vmatprep.subr.bf16.mxu0 0
        %858 = vmatpush1.bf16.msra.mxu0 0
        %859 = vmatprep.subr.bf16.mxu0 0
        %860 = vmatpush1.bf16.msra.mxu0 0
        %861 = vmatprep.subr.bf16.mxu0 0
        %862 = vmatpush1.bf16.msra.mxu0 0
        %863 = vmatprep.mubr.bf16.mxu0 0
        %864 = vmatmul.mubr.bf16.gmra.mrb[0].mxu0 %v733
        %v865 = vpop.f32.mrb[0].mxu0
        %v866 = vadd.f32 %v818, %v865
        %v867 = vpop.f32.mrb[0].mxu0
        %v868 = vpop.f32.mrb[0].mxu0
        %v869 = vpop.f32.mrb[0].mxu0
        %870 = vdwg.mxu0
        %871 = vmatprep.subr.bf16.mxu0 0
        %872 = vmatpush1.bf16.msra.mxu0 %v827
        %873 = vmatprep.subr.bf16.mxu0 0
        %874 = vmatpush1.bf16.msra.mxu0 %v828
        %875 = vmatprep.subr.bf16.mxu0 0
        %876 = vmatpush1.bf16.msra.mxu0 0
        %877 = vmatprep.subr.bf16.mxu0 0
        %878 = vmatpush1.bf16.msra.mxu0 0
        %879 = vmatprep.subr.bf16.mxu0 0
        %880 = vmatpush1.bf16.msra.mxu0 0
        %881 = vmatprep.subr.bf16.mxu0 0
        %882 = vmatpush1.bf16.msra.mxu0 0
        %883 = vmatprep.subr.bf16.mxu0 0
        %884 = vmatpush1.bf16.msra.mxu0 0
        %885 = vmatprep.subr.bf16.mxu0 0
        %886 = vmatpush1.bf16.msra.mxu0 0
        %887 = vmatprep.subr.bf16.mxu0 0
        %888 = vmatpush1.bf16.msra.mxu0 0
        %889 = vmatprep.subr.bf16.mxu0 0
        %890 = vmatpush1.bf16.msra.mxu0 0
        %891 = vmatprep.subr.bf16.mxu0 0
        %892 = vmatpush1.bf16.msra.mxu0 0
        %893 = vmatprep.subr.bf16.mxu0 0
        %894 = vmatpush1.bf16.msra.mxu0 0
        %895 = vmatprep.subr.bf16.mxu0 0
        %896 = vmatpush1.bf16.msra.mxu0 0
        %897 = vmatprep.subr.bf16.mxu0 0
        %898 = vmatpush1.bf16.msra.mxu0 0
        %899 = vmatprep.subr.bf16.mxu0 0
        %900 = vmatpush1.bf16.msra.mxu0 0
        %901 = vmatprep.subr.bf16.mxu0 0
        %902 = vmatpush1.bf16.msra.mxu0 0
        %903 = vmatprep.mubr.bf16.mxu0 0
        %904 = vmatmul.mubr.bf16.gmra.mrb[0].mxu0 %v674
        %v905 = vpop.f32.mrb[0].mxu0
        %v906 = vadd.f32 %v818, %v905
        %v907 = vpop.f32.mrb[0].mxu0
        %v908 = vpop.f32.mrb[0].mxu0
        %v909 = vpop.f32.mrb[0].mxu0
        %910 = vdwg.mxu0
        %v911 = vpack.c.bf16 %v711, %v711
        %v912 = vpack.c.bf16 %v770, %v770
        %v913 = vpack.c.bf16 %v810, %v810
        %v915 = vrot.slane %v913, 4
        %vm916 = vcmask 1043456
        %v919 = vsel %vm916, %v912, %v915
        %v920 = vpack.c.bf16 %v866, %v866
        %v921 = vpack.c.bf16 %v906, %v906
        %v923 = vrot.slane %v921, 4
        %v926 = vsel %vm916, %v920, %v923
        %v928 = vld [vmem:[%s543] sm:$0xf]
        %v929 = vunpack.c.l.bf16 %v928
        %vm930 = vcmask 64512
        %v932 = vsel %vm930, %v911, 0
        %v934 = vsel %vm930, %v919, 0
        %936 = vmatprep.subr.bf16.mxu0 0
        %937 = vmatpush1.bf16.xpose.msra.mxu0 %v934
        %938 = vmatprep.subr.bf16.mxu0 0
        %939 = vmatpush1.bf16.xpose.msra.mxu0 0
        %940 = vmatprep.subr.bf16.mxu0 0
        %941 = vmatpush1.bf16.xpose.msra.mxu0 0
        %942 = vmatprep.subr.bf16.mxu0 0
        %943 = vmatpush1.bf16.xpose.msra.mxu0 0
        %944 = vmatprep.subr.bf16.mxu0 0
        %945 = vmatpush1.bf16.xpose.msra.mxu0 0
        %946 = vmatprep.subr.bf16.mxu0 0
        %947 = vmatpush1.bf16.xpose.msra.mxu0 0
        %948 = vmatprep.subr.bf16.mxu0 0
        %949 = vmatpush1.bf16.xpose.msra.mxu0 0
        %950 = vmatprep.subr.bf16.mxu0 0
        %951 = vmatpush1.bf16.xpose.msra.mxu0 0
        %952 = vmatprep.subr.bf16.mxu0 0
        %953 = vmatpush1.bf16.xpose.msra.mxu0 0
        %954 = vmatprep.subr.bf16.mxu0 0
        %955 = vmatpush1.bf16.xpose.msra.mxu0 0
        %956 = vmatprep.subr.bf16.mxu0 0
        %957 = vmatpush1.bf16.xpose.msra.mxu0 0
        %958 = vmatprep.subr.bf16.mxu0 0
        %959 = vmatpush1.bf16.xpose.msra.mxu0 0
        %960 = vmatprep.subr.bf16.mxu0 0
        %961 = vmatpush1.bf16.xpose.msra.mxu0 0
        %962 = vmatprep.subr.bf16.mxu0 0
        %963 = vmatpush1.bf16.xpose.msra.mxu0 0
        %964 = vmatprep.subr.bf16.mxu0 0
        %965 = vmatpush1.bf16.xpose.msra.mxu0 0
        %966 = vmatprep.subr.bf16.mxu0 0
        %967 = vmatpush1.bf16.xpose.msra.mxu0 0
        %968 = vmatprep.mubr.bf16.mxu0 0
        %969 = vmatmul.mubr.bf16.gmra.mrb[0].mxu0 %v932
        %v970 = vpop.f32.mrb[0].mxu0
        %v971 = vadd.f32 %v929, %v970
        %v972 = vpop.f32.mrb[0].mxu0
        %v973 = vpop.f32.mrb[0].mxu0
        %v974 = vpop.f32.mrb[0].mxu0
        %975 = vdwg.mxu0
        %vm976 = vcmask 130048
        %v977 = vsel %vm976, %v971, -inf
        %978 = vmax.xlane.f32.xlu0 %v977
        %v979 = vpop.xlane.xlu0 %978
        %v980 = vsub.f32 %v971, %v979
        %v981 = vmul.f32 %v980, 1.442695
        %v982 = vpow.pop %v981
        %v983 = vsel %vm976, %v982, 0.0
        %984 = vadd.xlane.f32.xlu0 %v983
        %v985 = vpop.xlane.xlu0 %984
        %v986 = vrcp.pop %v985
        %v987 = vmul.f32 %v982, %v986
        %v988 = vpack.c.bf16 %v987, %v987
        %v990 = vsel %vm976, %v988, 0
        %992 = vmatprep.subr.bf16.mxu0 0
        %993 = vmatpush1.bf16.msra.mxu0 %v926
        %994 = vmatprep.subr.bf16.mxu0 0
        %995 = vmatpush1.bf16.msra.mxu0 0
        %996 = vmatprep.subr.bf16.mxu0 0
        %997 = vmatpush1.bf16.msra.mxu0 0
        %998 = vmatprep.subr.bf16.mxu0 0
        %999 = vmatpush1.bf16.msra.mxu0 0
        %1000 = vmatprep.subr.bf16.mxu0 0
        %1001 = vmatpush1.bf16.msra.mxu0 0
        %1002 = vmatprep.subr.bf16.mxu0 0
        %1003 = vmatpush1.bf16.msra.mxu0 0
        %1004 = vmatprep.subr.bf16.mxu0 0
        %1005 = vmatpush1.bf16.msra.mxu0 0
        %1006 = vmatprep.subr.bf16.mxu0 0
        %1007 = vmatpush1.bf16.msra.mxu0 0
        %1008 = vmatprep.subr.bf16.mxu0 0
        %1009 = vmatpush1.bf16.msra.mxu0 0
        %1010 = vmatprep.subr.bf16.mxu0 0
        %1011 = vmatpush1.bf16.msra.mxu0 0
        %1012 = vmatprep.subr.bf16.mxu0 0
        %1013 = vmatpush1.bf16.msra.mxu0 0
        %1014 = vmatprep.subr.bf16.mxu0 0
        %1015 = vmatpush1.bf16.msra.mxu0 0
        %1016 = vmatprep.subr.bf16.mxu0 0
        %1017 = vmatpush1.bf16.msra.mxu0 0
        %1018 = vmatprep.subr.bf16.mxu0 0
        %1019 = vmatpush1.bf16.msra.mxu0 0
        %1020 = vmatprep.subr.bf16.mxu0 0
        %1021 = vmatpush1.bf16.msra.mxu0 0
        %1022 = vmatprep.subr.bf16.mxu0 0
        %1023 = vmatpush1.bf16.msra.mxu0 0
        %1024 = vmatprep.mubr.bf16.mxu0 0
        %1025 = vmatmul.mubr.bf16.gmra.mrb[0].mxu0 %v990
        %v1026 = vpop.f32.mrb[0].mxu0
        %v1027 = vadd.f32 0.0, %v1026
        %v1028 = vpop.f32.mrb[0].mxu0
        %v1029 = vpop.f32.mrb[0].mxu0
        %v1030 = vpop.f32.mrb[0].mxu0
        %1031 = vdwg.mxu0
        %v1032 = vpack.c.bf16 %v1027, %v1027
        %v1033 = vld [vmem:[#allocation13] sm:$0xf]
        %s1034 = scalar_lea.vmem [#allocation8], 16
        %v1035 = vld [vmem:[%s1034] sm:$0xf]
        %v1036 = vld [vmem:[%s1034 + $0x4] sm:$0xf]
        %v1037 = vld [vmem:[%s1034 + $0x8] sm:$0xf]
        %v1038 = vld [vmem:[%s1034 + $0xc] sm:$0xf]
        %s1039 = scalar_lea.vmem [#allocation10], 16
        %v1040 = vld [vmem:[%s1039] sm:$0xf]
        %v1041 = vld [vmem:[%s1039 + $0x4] sm:$0xf]
        %v1042 = vld [vmem:[%s1039 + $0x8] sm:$0xf]
        %v1043 = vld [vmem:[%s1039 + $0xc] sm:$0xf]
        %s1044 = scalar_lea.vmem [#allocation11], 16
        %v1045 = vld [vmem:[%s1044] sm:$0xf]
        %v1046 = vld [vmem:[%s1044 + $0x4] sm:$0xf]
        %v1047 = vld [vmem:[%s1044 + $0x8] sm:$0xf]
        %v1048 = vld [vmem:[%s1044 + $0xc] sm:$0xf]
        %v1049 = vld [vmem:[#allocation17 + $0x1] sm:$0x1]
        %v1050 = vld [vmem:[#allocation17 + $0x5] sm:$0x1]
        %v1051 = vld [vmem:[#allocation17 + $0x9] sm:$0x1]
        %v1052 = vlaneseq
        %v1053 = vshrl.u32 %v1052, 7
        %v1054 = vsub.s32 0, %v1053
        %v1055 = vrot.slane %v1049, %v1054
        %v1060 = vunpack.c.l.b16 %v1035
        %v1061 = vunpack.c.l.b16 %v1036
        %v1062 = vunpack.c.l.b16 %v1037
        %v1063 = vunpack.c.l.b16 %v1038
        %v1064 = vpack.c.b16 %v1061, %v1060
        %v1065 = vpack.c.b16 %v1063, %v1062
        %1068 = vmatprep.subr.bf16.mxu0 0
        %1069 = vmatpush1.bf16.msra.mxu0 %v1064
        %1070 = vmatprep.subr.bf16.mxu0 0
        %1071 = vmatpush1.bf16.msra.mxu0 %v1065
        %1072 = vmatprep.subr.bf16.mxu0 0
        %1073 = vmatpush1.bf16.msra.mxu0 0
        %1074 = vmatprep.subr.bf16.mxu0 0
        %1075 = vmatpush1.bf16.msra.mxu0 0
        %1076 = vmatprep.subr.bf16.mxu0 0
        %1077 = vmatpush1.bf16.msra.mxu0 0
        %1078 = vmatprep.subr.bf16.mxu0 0
        %1079 = vmatpush1.bf16.msra.mxu0 0
        %1080 = vmatprep.subr.bf16.mxu0 0
        %1081 = vmatpush1.bf16.msra.mxu0 0
        %1082 = vmatprep.subr.bf16.mxu0 0
        %1083 = vmatpush1.bf16.msra.mxu0 0
        %1084 = vmatprep.subr.bf16.mxu0 0
        %1085 = vmatpush1.bf16.msra.mxu0 0
        %1086 = vmatprep.subr.bf16.mxu0 0
        %1087 = vmatpush1.bf16.msra.mxu0 0
        %1088 = vmatprep.subr.bf16.mxu0 0
        %1089 = vmatpush1.bf16.msra.mxu0 0
        %1090 = vmatprep.subr.bf16.mxu0 0
        %1091 = vmatpush1.bf16.msra.mxu0 0
        %1092 = vmatprep.subr.bf16.mxu0 0
        %1093 = vmatpush1.bf16.msra.mxu0 0
        %1094 = vmatprep.subr.bf16.mxu0 0
        %1095 = vmatpush1.bf16.msra.mxu0 0
        %1096 = vmatprep.subr.bf16.mxu0 0
        %1097 = vmatpush1.bf16.msra.mxu0 0
        %1098 = vmatprep.subr.bf16.mxu0 0
        %1099 = vmatpush1.bf16.msra.mxu0 0
        %1100 = vmatprep.mubr.bf16.mxu0 0
        %1101 = vmatmul.mubr.bf16.gmra.mrb[0].mxu0 %v674
        %v1102 = vpop.f32.mrb[0].mxu0
        %v1103 = vadd.f32 %v1055, %v1102
        %v1104 = vpop.f32.mrb[0].mxu0
        %v1105 = vpop.f32.mrb[0].mxu0
        %v1106 = vpop.f32.mrb[0].mxu0
        %1107 = vdwg.mxu0
        %v1108 = vlaneseq
        %v1109 = vshrl.u32 %v1108, 7
        %v1110 = vsub.s32 0, %v1109
        %v1111 = vrot.slane %v1050, %v1110
        %v1116 = vunpack.c.l.b16 %v1040
        %v1117 = vunpack.c.l.b16 %v1041
        %v1118 = vunpack.c.l.b16 %v1042
        %v1119 = vunpack.c.l.b16 %v1043
        %v1120 = vpack.c.b16 %v1117, %v1116
        %v1121 = vpack.c.b16 %v1119, %v1118
        %1124 = vmatprep.subr.bf16.mxu0 0
        %1125 = vmatpush1.bf16.msra.mxu0 %v1120
        %1126 = vmatprep.subr.bf16.mxu0 0
        %1127 = vmatpush1.bf16.msra.mxu0 %v1121
        %1128 = vmatprep.subr.bf16.mxu0 0
        %1129 = vmatpush1.bf16.msra.mxu0 0
        %1130 = vmatprep.subr.bf16.mxu0 0
        %1131 = vmatpush1.bf16.msra.mxu0 0
        %1132 = vmatprep.subr.bf16.mxu0 0
        %1133 = vmatpush1.bf16.msra.mxu0 0
        %1134 = vmatprep.subr.bf16.mxu0 0
        %1135 = vmatpush1.bf16.msra.mxu0 0
        %1136 = vmatprep.subr.bf16.mxu0 0
        %1137 = vmatpush1.bf16.msra.mxu0 0
        %1138 = vmatprep.subr.bf16.mxu0 0
        %1139 = vmatpush1.bf16.msra.mxu0 0
        %1140 = vmatprep.subr.bf16.mxu0 0
        %1141 = vmatpush1.bf16.msra.mxu0 0
        %1142 = vmatprep.subr.bf16.mxu0 0
        %1143 = vmatpush1.bf16.msra.mxu0 0
        %1144 = vmatprep.subr.bf16.mxu0 0
        %1145 = vmatpush1.bf16.msra.mxu0 0
        %1146 = vmatprep.subr.bf16.mxu0 0
        %1147 = vmatpush1.bf16.msra.mxu0 0
        %1148 = vmatprep.subr.bf16.mxu0 0
        %1149 = vmatpush1.bf16.msra.mxu0 0
        %1150 = vmatprep.subr.bf16.mxu0 0
        %1151 = vmatpush1.bf16.msra.mxu0 0
        %1152 = vmatprep.subr.bf16.mxu0 0
        %1153 = vmatpush1.bf16.msra.mxu0 0
        %1154 = vmatprep.subr.bf16.mxu0 0
        %1155 = vmatpush1.bf16.msra.mxu0 0
        %1156 = vmatprep.mubr.bf16.mxu0 0
        %1157 = vmatmul.mubr.bf16.gmra.mrb[0].mxu0 %v733
        %v1158 = vpop.f32.mrb[0].mxu0
        %v1159 = vadd.f32 %v1111, %v1158
        %v1160 = vpop.f32.mrb[0].mxu0
        %v1161 = vpop.f32.mrb[0].mxu0
        %v1162 = vpop.f32.mrb[0].mxu0
        %1163 = vdwg.mxu0
        %1164 = vmatprep.subr.bf16.mxu0 0
        %1165 = vmatpush1.bf16.msra.mxu0 %v1120
        %1166 = vmatprep.subr.bf16.mxu0 0
        %1167 = vmatpush1.bf16.msra.mxu0 %v1121
        %1168 = vmatprep.subr.bf16.mxu0 0
        %1169 = vmatpush1.bf16.msra.mxu0 0
        %1170 = vmatprep.subr.bf16.mxu0 0
        %1171 = vmatpush1.bf16.msra.mxu0 0
        %1172 = vmatprep.subr.bf16.mxu0 0
        %1173 = vmatpush1.bf16.msra.mxu0 0
        %1174 = vmatprep.subr.bf16.mxu0 0
        %1175 = vmatpush1.bf16.msra.mxu0 0
        %1176 = vmatprep.subr.bf16.mxu0 0
        %1177 = vmatpush1.bf16.msra.mxu0 0
        %1178 = vmatprep.subr.bf16.mxu0 0
        %1179 = vmatpush1.bf16.msra.mxu0 0
        %1180 = vmatprep.subr.bf16.mxu0 0
        %1181 = vmatpush1.bf16.msra.mxu0 0
        %1182 = vmatprep.subr.bf16.mxu0 0
        %1183 = vmatpush1.bf16.msra.mxu0 0
        %1184 = vmatprep.subr.bf16.mxu0 0
        %1185 = vmatpush1.bf16.msra.mxu0 0
        %1186 = vmatprep.subr.bf16.mxu0 0
        %1187 = vmatpush1.bf16.msra.mxu0 0
        %1188 = vmatprep.subr.bf16.mxu0 0
        %1189 = vmatpush1.bf16.msra.mxu0 0
        %1190 = vmatprep.subr.bf16.mxu0 0
        %1191 = vmatpush1.bf16.msra.mxu0 0
        %1192 = vmatprep.subr.bf16.mxu0 0
        %1193 = vmatpush1.bf16.msra.mxu0 0
        %1194 = vmatprep.subr.bf16.mxu0 0
        %1195 = vmatpush1.bf16.msra.mxu0 0
        %1196 = vmatprep.mubr.bf16.mxu0 0
        %1197 = vmatmul.mubr.bf16.gmra.mrb[0].mxu0 %v674
        %v1198 = vpop.f32.mrb[0].mxu0
        %v1199 = vadd.f32 %v1111, %v1198
        %v1200 = vpop.f32.mrb[0].mxu0
        %v1201 = vpop.f32.mrb[0].mxu0
        %v1202 = vpop.f32.mrb[0].mxu0
        %1203 = vdwg.mxu0
        %v1204 = vlaneseq
        %v1205 = vshrl.u32 %v1204, 7
        %v1206 = vsub.s32 0, %v1205
        %v1207 = vrot.slane %v1051, %v1206
        %v1212 = vunpack.c.l.b16 %v1045
        %v1213 = vunpack.c.l.b16 %v1046
        %v1214 = vunpack.c.l.b16 %v1047
        %v1215 = vunpack.c.l.b16 %v1048
        %v1216 = vpack.c.b16 %v1213, %v1212
        %v1217 = vpack.c.b16 %v1215, %v1214
        %1220 = vmatprep.subr.bf16.mxu0 0
        %1221 = vmatpush1.bf16.msra.mxu0 %v1216
        %1222 = vmatprep.subr.bf16.mxu0 0
        %1223 = vmatpush1.bf16.msra.mxu0 %v1217
        %1224 = vmatprep.subr.bf16.mxu0 0
        %1225 = vmatpush1.bf16.msra.mxu0 0
        %1226 = vmatprep.subr.bf16.mxu0 0
        %1227 = vmatpush1.bf16.msra.mxu0 0
        %1228 = vmatprep.subr.bf16.mxu0 0
        %1229 = vmatpush1.bf16.msra.mxu0 0
        %1230 = vmatprep.subr.bf16.mxu0 0
        %1231 = vmatpush1.bf16.msra.mxu0 0
        %1232 = vmatprep.subr.bf16.mxu0 0
        %1233 = vmatpush1.bf16.msra.mxu0 0
        %1234 = vmatprep.subr.bf16.mxu0 0
        %1235 = vmatpush1.bf16.msra.mxu0 0
        %1236 = vmatprep.subr.bf16.mxu0 0
        %1237 = vmatpush1.bf16.msra.mxu0 0
        %1238 = vmatprep.subr.bf16.mxu0 0
        %1239 = vmatpush1.bf16.msra.mxu0 0
        %1240 = vmatprep.subr.bf16.mxu0 0
        %1241 = vmatpush1.bf16.msra.mxu0 0
        %1242 = vmatprep.subr.bf16.mxu0 0
        %1243 = vmatpush1.bf16.msra.mxu0 0
        %1244 = vmatprep.subr.bf16.mxu0 0
        %1245 = vmatpush1.bf16.msra.mxu0 0
        %1246 = vmatprep.subr.bf16.mxu0 0
        %1247 = vmatpush1.bf16.msra.mxu0 0
        %1248 = vmatprep.subr.bf16.mxu0 0
        %1249 = vmatpush1.bf16.msra.mxu0 0
        %1250 = vmatprep.subr.bf16.mxu0 0
        %1251 = vmatpush1.bf16.msra.mxu0 0
        %1252 = vmatprep.mubr.bf16.mxu0 0
        %1253 = vmatmul.mubr.bf16.gmra.mrb[0].mxu0 %v733
        %v1254 = vpop.f32.mrb[0].mxu0
        %v1255 = vadd.f32 %v1207, %v1254
        %v1256 = vpop.f32.mrb[0].mxu0
        %v1257 = vpop.f32.mrb[0].mxu0
        %v1258 = vpop.f32.mrb[0].mxu0
        %1259 = vdwg.mxu0
        %1260 = vmatprep.subr.bf16.mxu0 0
        %1261 = vmatpush1.bf16.msra.mxu0 %v1216
        %1262 = vmatprep.subr.bf16.mxu0 0
        %1263 = vmatpush1.bf16.msra.mxu0 %v1217
        %1264 = vmatprep.subr.bf16.mxu0 0
        %1265 = vmatpush1.bf16.msra.mxu0 0
        %1266 = vmatprep.subr.bf16.mxu0 0
        %1267 = vmatpush1.bf16.msra.mxu0 0
        %1268 = vmatprep.subr.bf16.mxu0 0
        %1269 = vmatpush1.bf16.msra.mxu0 0
        %1270 = vmatprep.subr.bf16.mxu0 0
        %1271 = vmatpush1.bf16.msra.mxu0 0
        %1272 = vmatprep.subr.bf16.mxu0 0
        %1273 = vmatpush1.bf16.msra.mxu0 0
        %1274 = vmatprep.subr.bf16.mxu0 0
        %1275 = vmatpush1.bf16.msra.mxu0 0
        %1276 = vmatprep.subr.bf16.mxu0 0
        %1277 = vmatpush1.bf16.msra.mxu0 0
        %1278 = vmatprep.subr.bf16.mxu0 0
        %1279 = vmatpush1.bf16.msra.mxu0 0
        %1280 = vmatprep.subr.bf16.mxu0 0
        %1281 = vmatpush1.bf16.msra.mxu0 0
        %1282 = vmatprep.subr.bf16.mxu0 0
        %1283 = vmatpush1.bf16.msra.mxu0 0
        %1284 = vmatprep.subr.bf16.mxu0 0
        %1285 = vmatpush1.bf16.msra.mxu0 0
        %1286 = vmatprep.subr.bf16.mxu0 0
        %1287 = vmatpush1.bf16.msra.mxu0 0
        %1288 = vmatprep.subr.bf16.mxu0 0
        %1289 = vmatpush1.bf16.msra.mxu0 0
        %1290 = vmatprep.subr.bf16.mxu0 0
        %1291 = vmatpush1.bf16.msra.mxu0 0
        %1292 = vmatprep.mubr.bf16.mxu0 0
        %1293 = vmatmul.mubr.bf16.gmra.mrb[0].mxu0 %v674
        %v1294 = vpop.f32.mrb[0].mxu0
        %v1295 = vadd.f32 %v1207, %v1294
        %v1296 = vpop.f32.mrb[0].mxu0
        %v1297 = vpop.f32.mrb[0].mxu0
        %v1298 = vpop.f32.mrb[0].mxu0
        %1299 = vdwg.mxu0
        %v1300 = vpack.c.bf16 %v1103, %v1103
        %v1301 = vpack.c.bf16 %v1159, %v1159
        %v1302 = vpack.c.bf16 %v1199, %v1199
        %v1304 = vrot.slane %v1302, 4
        %v1307 = vsel %vm916, %v1301, %v1304
        %v1308 = vpack.c.bf16 %v1255, %v1255
        %v1309 = vpack.c.bf16 %v1295, %v1295
        %v1311 = vrot.slane %v1309, 4
        %v1314 = vsel %vm916, %v1308, %v1311
        %s1316 = scalar_lea.vmem %s543, 4 [#allocation7]
        %v1317 = vld [vmem:[%s1316] sm:$0xf]
        %v1318 = vunpack.c.l.bf16 %v1317
        %v1320 = vsel %vm930, %v1300, 0
        %v1322 = vsel %vm930, %v1307, 0
        %1324 = vmatprep.subr.bf16.mxu0 0
        %1325 = vmatpush1.bf16.xpose.msra.mxu0 %v1322
        %1326 = vmatprep.subr.bf16.mxu0 0
        %1327 = vmatpush1.bf16.xpose.msra.mxu0 0
        %1328 = vmatprep.subr.bf16.mxu0 0
        %1329 = vmatpush1.bf16.xpose.msra.mxu0 0
        %1330 = vmatprep.subr.bf16.mxu0 0
        %1331 = vmatpush1.bf16.xpose.msra.mxu0 0
        %1332 = vmatprep.subr.bf16.mxu0 0
        %1333 = vmatpush1.bf16.xpose.msra.mxu0 0
        %1334 = vmatprep.subr.bf16.mxu0 0
        %1335 = vmatpush1.bf16.xpose.msra.mxu0 0
        %1336 = vmatprep.subr.bf16.mxu0 0
        %1337 = vmatpush1.bf16.xpose.msra.mxu0 0
        %1338 = vmatprep.subr.bf16.mxu0 0
        %1339 = vmatpush1.bf16.xpose.msra.mxu0 0
        %1340 = vmatprep.subr.bf16.mxu0 0
        %1341 = vmatpush1.bf16.xpose.msra.mxu0 0
        %1342 = vmatprep.subr.bf16.mxu0 0
        %1343 = vmatpush1.bf16.xpose.msra.mxu0 0
        %1344 = vmatprep.subr.bf16.mxu0 0
        %1345 = vmatpush1.bf16.xpose.msra.mxu0 0
        %1346 = vmatprep.subr.bf16.mxu0 0
        %1347 = vmatpush1.bf16.xpose.msra.mxu0 0
        %1348 = vmatprep.subr.bf16.mxu0 0
        %1349 = vmatpush1.bf16.xpose.msra.mxu0 0
        %1350 = vmatprep.subr.bf16.mxu0 0
        %1351 = vmatpush1.bf16.xpose.msra.mxu0 0
        %1352 = vmatprep.subr.bf16.mxu0 0
        %1353 = vmatpush1.bf16.xpose.msra.mxu0 0
        %1354 = vmatprep.subr.bf16.mxu0 0
        %1355 = vmatpush1.bf16.xpose.msra.mxu0 0
        %1356 = vmatprep.mubr.bf16.mxu0 0
        %1357 = vmatmul.mubr.bf16.gmra.mrb[0].mxu0 %v1320
        %v1358 = vpop.f32.mrb[0].mxu0
        %v1359 = vadd.f32 %v1318, %v1358
        %v1360 = vpop.f32.mrb[0].mxu0
        %v1361 = vpop.f32.mrb[0].mxu0
        %v1362 = vpop.f32.mrb[0].mxu0
        %1363 = vdwg.mxu0
        %v1364 = vsel %vm976, %v1359, -inf
        %1365 = vmax.xlane.f32.xlu0 %v1364
        %v1366 = vpop.xlane.xlu0 %1365
        %v1367 = vsub.f32 %v1359, %v1366
        %v1368 = vmul.f32 %v1367, 1.442695
        %v1369 = vpow.pop %v1368
        %v1370 = vsel %vm976, %v1369, 0.0
        %1371 = vadd.xlane.f32.xlu0 %v1370
        %v1372 = vpop.xlane.xlu0 %1371
        %v1373 = vrcp.pop %v1372
        %v1374 = vmul.f32 %v1369, %v1373
        %v1375 = vpack.c.bf16 %v1374, %v1374
        %v1377 = vsel %vm976, %v1375, 0
        %1379 = vmatprep.subr.bf16.mxu0 0
        %1380 = vmatpush1.bf16.msra.mxu0 %v1314
        %1381 = vmatprep.subr.bf16.mxu0 0
        %1382 = vmatpush1.bf16.msra.mxu0 0
        %1383 = vmatprep.subr.bf16.mxu0 0
        %1384 = vmatpush1.bf16.msra.mxu0 0
        %1385 = vmatprep.subr.bf16.mxu0 0
        %1386 = vmatpush1.bf16.msra.mxu0 0
        %1387 = vmatprep.subr.bf16.mxu0 0
        %1388 = vmatpush1.bf16.msra.mxu0 0
        %1389 = vmatprep.subr.bf16.mxu0 0
        %1390 = vmatpush1.bf16.msra.mxu0 0
        %1391 = vmatprep.subr.bf16.mxu0 0
        %1392 = vmatpush1.bf16.msra.mxu0 0
        %1393 = vmatprep.subr.bf16.mxu0 0
        %1394 = vmatpush1.bf16.msra.mxu0 0
        %1395 = vmatprep.subr.bf16.mxu0 0
        %1396 = vmatpush1.bf16.msra.mxu0 0
        %1397 = vmatprep.subr.bf16.mxu0 0
        %1398 = vmatpush1.bf16.msra.mxu0 0
        %1399 = vmatprep.subr.bf16.mxu0 0
        %1400 = vmatpush1.bf16.msra.mxu0 0
        %1401 = vmatprep.subr.bf16.mxu0 0
        %1402 = vmatpush1.bf16.msra.mxu0 0
        %1403 = vmatprep.subr.bf16.mxu0 0
        %1404 = vmatpush1.bf16.msra.mxu0 0
        %1405 = vmatprep.subr.bf16.mxu0 0
        %1406 = vmatpush1.bf16.msra.mxu0 0
        %1407 = vmatprep.subr.bf16.mxu0 0
        %1408 = vmatpush1.bf16.msra.mxu0 0
        %1409 = vmatprep.subr.bf16.mxu0 0
        %1410 = vmatpush1.bf16.msra.mxu0 0
        %1411 = vmatprep.mubr.bf16.mxu0 0
        %1412 = vmatmul.mubr.bf16.gmra.mrb[0].mxu0 %v1377
        %v1413 = vpop.f32.mrb[0].mxu0
        %v1414 = vadd.f32 0.0, %v1413
        %v1415 = vpop.f32.mrb[0].mxu0
        %v1416 = vpop.f32.mrb[0].mxu0
        %v1417 = vpop.f32.mrb[0].mxu0
        %1418 = vdwg.mxu0
        %v1419 = vpack.c.bf16 %v1414, %v1414
        %s1420 = scalar_lea.vmem [#allocation13], 4
        %v1421 = vld [vmem:[%s1420] sm:$0xf]
        %v1423 = vsel %vm930, %v1419, 0
        %v1426 = vsel %vm916, %v1421, 0
        %1428 = vmatprep.subr.bf16.mxu0 0
        %1429 = vmatpush1.bf16.msra.mxu0 %v1426
        %1430 = vmatprep.subr.bf16.mxu0 0
        %1431 = vmatpush1.bf16.msra.mxu0 0
        %1432 = vmatprep.subr.bf16.mxu0 0
        %1433 = vmatpush1.bf16.msra.mxu0 0
        %1434 = vmatprep.subr.bf16.mxu0 0
        %1435 = vmatpush1.bf16.msra.mxu0 0
        %1436 = vmatprep.subr.bf16.mxu0 0
        %1437 = vmatpush1.bf16.msra.mxu0 0
        %1438 = vmatprep.subr.bf16.mxu0 0
        %1439 = vmatpush1.bf16.msra.mxu0 0
        %1440 = vmatprep.subr.bf16.mxu0 0
        %1441 = vmatpush1.bf16.msra.mxu0 0
        %1442 = vmatprep.subr.bf16.mxu0 0
        %1443 = vmatpush1.bf16.msra.mxu0 0
        %1444 = vmatprep.subr.bf16.mxu0 0
        %1445 = vmatpush1.bf16.msra.mxu0 0
        %1446 = vmatprep.subr.bf16.mxu0 0
        %1447 = vmatpush1.bf16.msra.mxu0 0
        %1448 = vmatprep.subr.bf16.mxu0 0
        %1449 = vmatpush1.bf16.msra.mxu0 0
        %1450 = vmatprep.subr.bf16.mxu0 0
        %1451 = vmatpush1.bf16.msra.mxu0 0
        %1452 = vmatprep.subr.bf16.mxu0 0
        %1453 = vmatpush1.bf16.msra.mxu0 0
        %1454 = vmatprep.subr.bf16.mxu0 0
        %1455 = vmatpush1.bf16.msra.mxu0 0
        %1456 = vmatprep.subr.bf16.mxu0 0
        %1457 = vmatpush1.bf16.msra.mxu0 0
        %1458 = vmatprep.subr.bf16.mxu0 0
        %1459 = vmatpush1.bf16.msra.mxu0 0
        %1460 = vmatprep.mubr.bf16.mxu0 0
        %1461 = vmatmul.mubr.bf16.gmra.mrb[0].mxu0 %v1423
        %v1462 = vpop.f32.mrb[0].mxu0
        %v1463 = vadd.f32 0.0, %v1462
        %v1464 = vpop.f32.mrb[0].mxu0
        %v1465 = vpop.f32.mrb[0].mxu0
        %v1466 = vpop.f32.mrb[0].mxu0
        %1467 = vdwg.mxu0
        %v1469 = vsel %vm930, %v1032, 0
        %v1472 = vsel %vm916, %v1033, 0
        %1474 = vmatprep.subr.bf16.mxu0 0
        %1475 = vmatpush1.bf16.msra.mxu0 %v1472
        %1476 = vmatprep.subr.bf16.mxu0 0
        %1477 = vmatpush1.bf16.msra.mxu0 0
        %1478 = vmatprep.subr.bf16.mxu0 0
        %1479 = vmatpush1.bf16.msra.mxu0 0
        %1480 = vmatprep.subr.bf16.mxu0 0
        %1481 = vmatpush1.bf16.msra.mxu0 0
        %1482 = vmatprep.subr.bf16.mxu0 0
        %1483 = vmatpush1.bf16.msra.mxu0 0
        %1484 = vmatprep.subr.bf16.mxu0 0
        %1485 = vmatpush1.bf16.msra.mxu0 0
        %1486 = vmatprep.subr.bf16.mxu0 0
        %1487 = vmatpush1.bf16.msra.mxu0 0
        %1488 = vmatprep.subr.bf16.mxu0 0
        %1489 = vmatpush1.bf16.msra.mxu0 0
        %1490 = vmatprep.subr.bf16.mxu0 0
        %1491 = vmatpush1.bf16.msra.mxu0 0
        %1492 = vmatprep.subr.bf16.mxu0 0
        %1493 = vmatpush1.bf16.msra.mxu0 0
        %1494 = vmatprep.subr.bf16.mxu0 0
        %1495 = vmatpush1.bf16.msra.mxu0 0
        %1496 = vmatprep.subr.bf16.mxu0 0
        %1497 = vmatpush1.bf16.msra.mxu0 0
        %1498 = vmatprep.subr.bf16.mxu0 0
        %1499 = vmatpush1.bf16.msra.mxu0 0
        %1500 = vmatprep.subr.bf16.mxu0 0
        %1501 = vmatpush1.bf16.msra.mxu0 0
        %1502 = vmatprep.subr.bf16.mxu0 0
        %1503 = vmatpush1.bf16.msra.mxu0 0
        %1504 = vmatprep.subr.bf16.mxu0 0
        %1505 = vmatpush1.bf16.msra.mxu0 0
        %1506 = vmatprep.mubr.bf16.mxu0 0
        %1507 = vmatmul.mubr.bf16.gmra.mrb[0].mxu0 %v1469
        %v1508 = vpop.f32.mrb[0].mxu0
        %v1509 = vadd.f32 %v1463, %v1508
        %v1510 = vpop.f32.mrb[0].mxu0
        %v1511 = vpop.f32.mrb[0].mxu0
        %v1512 = vpop.f32.mrb[0].mxu0
        %1513 = vdwg.mxu0
        %s1514 = scalar_lea.vmem [#allocation8], 32
        %v1515 = vld [vmem:[%s1514] sm:$0xf]
        %v1516 = vld [vmem:[%s1514 + $0x4] sm:$0xf]
        %v1517 = vld [vmem:[%s1514 + $0x8] sm:$0xf]
        %v1518 = vld [vmem:[%s1514 + $0xc] sm:$0xf]
        %s1519 = scalar_lea.vmem [#allocation10], 32
        %v1520 = vld [vmem:[%s1519] sm:$0xf]
        %v1521 = vld [vmem:[%s1519 + $0x4] sm:$0xf]
        %v1522 = vld [vmem:[%s1519 + $0x8] sm:$0xf]
        %v1523 = vld [vmem:[%s1519 + $0xc] sm:$0xf]
        %s1524 = scalar_lea.vmem [#allocation11], 32
        %v1525 = vld [vmem:[%s1524] sm:$0xf]
        %v1526 = vld [vmem:[%s1524 + $0x4] sm:$0xf]
        %v1527 = vld [vmem:[%s1524 + $0x8] sm:$0xf]
        %v1528 = vld [vmem:[%s1524 + $0xc] sm:$0xf]
        %v1529 = vld [vmem:[#allocation17 + $0x2] sm:$0x1]
        %v1530 = vld [vmem:[#allocation17 + $0x6] sm:$0x1]
        %v1531 = vld [vmem:[#allocation17 + $0xa] sm:$0x1]
        %v1532 = vlaneseq
        %v1533 = vshrl.u32 %v1532, 7
        %v1534 = vsub.s32 0, %v1533
        %v1535 = vrot.slane %v1529, %v1534
        %v1540 = vunpack.c.l.b16 %v1515
        %v1541 = vunpack.c.l.b16 %v1516
        %v1542 = vunpack.c.l.b16 %v1517
        %v1543 = vunpack.c.l.b16 %v1518
        %v1544 = vpack.c.b16 %v1541, %v1540
        %v1545 = vpack.c.b16 %v1543, %v1542
        %1548 = vmatprep.subr.bf16.mxu0 0
        %1549 = vmatpush1.bf16.msra.mxu0 %v1544
        %1550 = vmatprep.subr.bf16.mxu0 0
        %1551 = vmatpush1.bf16.msra.mxu0 %v1545
        %1552 = vmatprep.subr.bf16.mxu0 0
        %1553 = vmatpush1.bf16.msra.mxu0 0
        %1554 = vmatprep.subr.bf16.mxu0 0
        %1555 = vmatpush1.bf16.msra.mxu0 0
        %1556 = vmatprep.subr.bf16.mxu0 0
        %1557 = vmatpush1.bf16.msra.mxu0 0
        %1558 = vmatprep.subr.bf16.mxu0 0
        %1559 = vmatpush1.bf16.msra.mxu0 0
        %1560 = vmatprep.subr.bf16.mxu0 0
        %1561 = vmatpush1.bf16.msra.mxu0 0
        %1562 = vmatprep.subr.bf16.mxu0 0
        %1563 = vmatpush1.bf16.msra.mxu0 0
        %1564 = vmatprep.subr.bf16.mxu0 0
        %1565 = vmatpush1.bf16.msra.mxu0 0
        %1566 = vmatprep.subr.bf16.mxu0 0
        %1567 = vmatpush1.bf16.msra.mxu0 0
        %1568 = vmatprep.subr.bf16.mxu0 0
        %1569 = vmatpush1.bf16.msra.mxu0 0
        %1570 = vmatprep.subr.bf16.mxu0 0
        %1571 = vmatpush1.bf16.msra.mxu0 0
        %1572 = vmatprep.subr.bf16.mxu0 0
        %1573 = vmatpush1.bf16.msra.mxu0 0
        %1574 = vmatprep.subr.bf16.mxu0 0
        %1575 = vmatpush1.bf16.msra.mxu0 0
        %1576 = vmatprep.subr.bf16.mxu0 0
        %1577 = vmatpush1.bf16.msra.mxu0 0
        %1578 = vmatprep.subr.bf16.mxu0 0
        %1579 = vmatpush1.bf16.msra.mxu0 0
        %1580 = vmatprep.mubr.bf16.mxu0 0
        %1581 = vmatmul.mubr.bf16.gmra.mrb[0].mxu0 %v674
        %v1582 = vpop.f32.mrb[0].mxu0
        %v1583 = vadd.f32 %v1535, %v1582
        %v1584 = vpop.f32.mrb[0].mxu0
        %v1585 = vpop.f32.mrb[0].mxu0
        %v1586 = vpop.f32.mrb[0].mxu0
        %1587 = vdwg.mxu0
        %v1588 = vlaneseq
        %v1589 = vshrl.u32 %v1588, 7
        %v1590 = vsub.s32 0, %v1589
        %v1591 = vrot.slane %v1530, %v1590
        %v1596 = vunpack.c.l.b16 %v1520
        %v1597 = vunpack.c.l.b16 %v1521
        %v1598 = vunpack.c.l.b16 %v1522
        %v1599 = vunpack.c.l.b16 %v1523
        %v1600 = vpack.c.b16 %v1597, %v1596
        %v1601 = vpack.c.b16 %v1599, %v1598
        %1604 = vmatprep.subr.bf16.mxu0 0
        %1605 = vmatpush1.bf16.msra.mxu0 %v1600
        %1606 = vmatprep.subr.bf16.mxu0 0
        %1607 = vmatpush1.bf16.msra.mxu0 %v1601
        %1608 = vmatprep.subr.bf16.mxu0 0
        %1609 = vmatpush1.bf16.msra.mxu0 0
        %1610 = vmatprep.subr.bf16.mxu0 0
        %1611 = vmatpush1.bf16.msra.mxu0 0
        %1612 = vmatprep.subr.bf16.mxu0 0
        %1613 = vmatpush1.bf16.msra.mxu0 0
        %1614 = vmatprep.subr.bf16.mxu0 0
        %1615 = vmatpush1.bf16.msra.mxu0 0
        %1616 = vmatprep.subr.bf16.mxu0 0
        %1617 = vmatpush1.bf16.msra.mxu0 0
        %1618 = vmatprep.subr.bf16.mxu0 0
        %1619 = vmatpush1.bf16.msra.mxu0 0
        %1620 = vmatprep.subr.bf16.mxu0 0
        %1621 = vmatpush1.bf16.msra.mxu0 0
        %1622 = vmatprep.subr.bf16.mxu0 0
        %1623 = vmatpush1.bf16.msra.mxu0 0
        %1624 = vmatprep.subr.bf16.mxu0 0
        %1625 = vmatpush1.bf16.msra.mxu0 0
        %1626 = vmatprep.subr.bf16.mxu0 0
        %1627 = vmatpush1.bf16.msra.mxu0 0
        %1628 = vmatprep.subr.bf16.mxu0 0
        %1629 = vmatpush1.bf16.msra.mxu0 0
        %1630 = vmatprep.subr.bf16.mxu0 0
        %1631 = vmatpush1.bf16.msra.mxu0 0
        %1632 = vmatprep.subr.bf16.mxu0 0
        %1633 = vmatpush1.bf16.msra.mxu0 0
        %1634 = vmatprep.subr.bf16.mxu0 0
        %1635 = vmatpush1.bf16.msra.mxu0 0
        %1636 = vmatprep.mubr.bf16.mxu0 0
        %1637 = vmatmul.mubr.bf16.gmra.mrb[0].mxu0 %v733
        %v1638 = vpop.f32.mrb[0].mxu0
        %v1639 = vadd.f32 %v1591, %v1638
        %v1640 = vpop.f32.mrb[0].mxu0
        %v1641 = vpop.f32.mrb[0].mxu0
        %v1642 = vpop.f32.mrb[0].mxu0
        %1643 = vdwg.mxu0
        %1644 = vmatprep.subr.bf16.mxu0 0
        %1645 = vmatpush1.bf16.msra.mxu0 %v1600
        %1646 = vmatprep.subr.bf16.mxu0 0
        %1647 = vmatpush1.bf16.msra.mxu0 %v1601
        %1648 = vmatprep.subr.bf16.mxu0 0
        %1649 = vmatpush1.bf16.msra.mxu0 0
        %1650 = vmatprep.subr.bf16.mxu0 0
        %1651 = vmatpush1.bf16.msra.mxu0 0
        %1652 = vmatprep.subr.bf16.mxu0 0
        %1653 = vmatpush1.bf16.msra.mxu0 0
        %1654 = vmatprep.subr.bf16.mxu0 0
        %1655 = vmatpush1.bf16.msra.mxu0 0
        %1656 = vmatprep.subr.bf16.mxu0 0
        %1657 = vmatpush1.bf16.msra.mxu0 0
        %1658 = vmatprep.subr.bf16.mxu0 0
        %1659 = vmatpush1.bf16.msra.mxu0 0
        %1660 = vmatprep.subr.bf16.mxu0 0
        %1661 = vmatpush1.bf16.msra.mxu0 0
        %1662 = vmatprep.subr.bf16.mxu0 0
        %1663 = vmatpush1.bf16.msra.mxu0 0
        %1664 = vmatprep.subr.bf16.mxu0 0
        %1665 = vmatpush1.bf16.msra.mxu0 0
        %1666 = vmatprep.subr.bf16.mxu0 0
        %1667 = vmatpush1.bf16.msra.mxu0 0
        %1668 = vmatprep.subr.bf16.mxu0 0
        %1669 = vmatpush1.bf16.msra.mxu0 0
        %1670 = vmatprep.subr.bf16.mxu0 0
        %1671 = vmatpush1.bf16.msra.mxu0 0
        %1672 = vmatprep.subr.bf16.mxu0 0
        %1673 = vmatpush1.bf16.msra.mxu0 0
        %1674 = vmatprep.subr.bf16.mxu0 0
        %1675 = vmatpush1.bf16.msra.mxu0 0
        %1676 = vmatprep.mubr.bf16.mxu0 0
        %1677 = vmatmul.mubr.bf16.gmra.mrb[0].mxu0 %v674
        %v1678 = vpop.f32.mrb[0].mxu0
        %v1679 = vadd.f32 %v1591, %v1678
        %v1680 = vpop.f32.mrb[0].mxu0
        %v1681 = vpop.f32.mrb[0].mxu0
        %v1682 = vpop.f32.mrb[0].mxu0
        %1683 = vdwg.mxu0
        %v1684 = vlaneseq
        %v1685 = vshrl.u32 %v1684, 7
        %v1686 = vsub.s32 0, %v1685
        %v1687 = vrot.slane %v1531, %v1686
        %v1692 = vunpack.c.l.b16 %v1525
        %v1693 = vunpack.c.l.b16 %v1526
        %v1694 = vunpack.c.l.b16 %v1527
        %v1695 = vunpack.c.l.b16 %v1528
        %v1696 = vpack.c.b16 %v1693, %v1692
        %v1697 = vpack.c.b16 %v1695, %v1694
        %1700 = vmatprep.subr.bf16.mxu0 0
        %1701 = vmatpush1.bf16.msra.mxu0 %v1696
        %1702 = vmatprep.subr.bf16.mxu0 0
        %1703 = vmatpush1.bf16.msra.mxu0 %v1697
        %1704 = vmatprep.subr.bf16.mxu0 0
        %1705 = vmatpush1.bf16.msra.mxu0 0
        %1706 = vmatprep.subr.bf16.mxu0 0
        %1707 = vmatpush1.bf16.msra.mxu0 0
        %1708 = vmatprep.subr.bf16.mxu0 0
        %1709 = vmatpush1.bf16.msra.mxu0 0
        %1710 = vmatprep.subr.bf16.mxu0 0
        %1711 = vmatpush1.bf16.msra.mxu0 0
        %1712 = vmatprep.subr.bf16.mxu0 0
        %1713 = vmatpush1.bf16.msra.mxu0 0
        %1714 = vmatprep.subr.bf16.mxu0 0
        %1715 = vmatpush1.bf16.msra.mxu0 0
        %1716 = vmatprep.subr.bf16.mxu0 0
        %1717 = vmatpush1.bf16.msra.mxu0 0
        %1718 = vmatprep.subr.bf16.mxu0 0
        %1719 = vmatpush1.bf16.msra.mxu0 0
        %1720 = vmatprep.subr.bf16.mxu0 0
        %1721 = vmatpush1.bf16.msra.mxu0 0
        %1722 = vmatprep.subr.bf16.mxu0 0
        %1723 = vmatpush1.bf16.msra.mxu0 0
        %1724 = vmatprep.subr.bf16.mxu0 0
        %1725 = vmatpush1.bf16.msra.mxu0 0
        %1726 = vmatprep.subr.bf16.mxu0 0
        %1727 = vmatpush1.bf16.msra.mxu0 0
        %1728 = vmatprep.subr.bf16.mxu0 0
        %1729 = vmatpush1.bf16.msra.mxu0 0
        %1730 = vmatprep.subr.bf16.mxu0 0
        %1731 = vmatpush1.bf16.msra.mxu0 0
        %1732 = vmatprep.mubr.bf16.mxu0 0
        %1733 = vmatmul.mubr.bf16.gmra.mrb[0].mxu0 %v733
        %v1734 = vpop.f32.mrb[0].mxu0
        %v1735 = vadd.f32 %v1687, %v1734
        %v1736 = vpop.f32.mrb[0].mxu0
        %v1737 = vpop.f32.mrb[0].mxu0
        %v1738 = vpop.f32.mrb[0].mxu0
        %1739 = vdwg.mxu0
        %1740 = vmatprep.subr.bf16.mxu0 0
        %1741 = vmatpush1.bf16.msra.mxu0 %v1696
        %1742 = vmatprep.subr.bf16.mxu0 0
        %1743 = vmatpush1.bf16.msra.mxu0 %v1697
        %1744 = vmatprep.subr.bf16.mxu0 0
        %1745 = vmatpush1.bf16.msra.mxu0 0
        %1746 = vmatprep.subr.bf16.mxu0 0
        %1747 = vmatpush1.bf16.msra.mxu0 0
        %1748 = vmatprep.subr.bf16.mxu0 0
        %1749 = vmatpush1.bf16.msra.mxu0 0
        %1750 = vmatprep.subr.bf16.mxu0 0
        %1751 = vmatpush1.bf16.msra.mxu0 0
        %1752 = vmatprep.subr.bf16.mxu0 0
        %1753 = vmatpush1.bf16.msra.mxu0 0
        %1754 = vmatprep.subr.bf16.mxu0 0
        %1755 = vmatpush1.bf16.msra.mxu0 0
        %1756 = vmatprep.subr.bf16.mxu0 0
        %1757 = vmatpush1.bf16.msra.mxu0 0
        %1758 = vmatprep.subr.bf16.mxu0 0
        %1759 = vmatpush1.bf16.msra.mxu0 0
        %1760 = vmatprep.subr.bf16.mxu0 0
        %1761 = vmatpush1.bf16.msra.mxu0 0
        %1762 = vmatprep.subr.bf16.mxu0 0
        %1763 = vmatpush1.bf16.msra.mxu0 0
        %1764 = vmatprep.subr.bf16.mxu0 0
        %1765 = vmatpush1.bf16.msra.mxu0 0
        %1766 = vmatprep.subr.bf16.mxu0 0
        %1767 = vmatpush1.bf16.msra.mxu0 0
        %1768 = vmatprep.subr.bf16.mxu0 0
        %1769 = vmatpush1.bf16.msra.mxu0 0
        %1770 = vmatprep.subr.bf16.mxu0 0
        %1771 = vmatpush1.bf16.msra.mxu0 0
        %1772 = vmatprep.mubr.bf16.mxu0 0
        %1773 = vmatmul.mubr.bf16.gmra.mrb[0].mxu0 %v674
        %v1774 = vpop.f32.mrb[0].mxu0
        %v1775 = vadd.f32 %v1687, %v1774
        %v1776 = vpop.f32.mrb[0].mxu0
        %v1777 = vpop.f32.mrb[0].mxu0
        %v1778 = vpop.f32.mrb[0].mxu0
        %1779 = vdwg.mxu0
        %v1780 = vpack.c.bf16 %v1583, %v1583
        %v1781 = vpack.c.bf16 %v1639, %v1639
        %v1782 = vpack.c.bf16 %v1679, %v1679
        %v1784 = vrot.slane %v1782, 4
        %v1787 = vsel %vm916, %v1781, %v1784
        %v1788 = vpack.c.bf16 %v1735, %v1735
        %v1789 = vpack.c.bf16 %v1775, %v1775
        %v1791 = vrot.slane %v1789, 4
        %v1794 = vsel %vm916, %v1788, %v1791
        %s1796 = scalar_lea.vmem %s543, 8 [#allocation7]
        %v1797 = vld [vmem:[%s1796] sm:$0xf]
        %v1798 = vunpack.c.l.bf16 %v1797
        %v1800 = vsel %vm930, %v1780, 0
        %v1802 = vsel %vm930, %v1787, 0
        %1804 = vmatprep.subr.bf16.mxu0 0
        %1805 = vmatpush1.bf16.xpose.msra.mxu0 %v1802
        %1806 = vmatprep.subr.bf16.mxu0 0
        %1807 = vmatpush1.bf16.xpose.msra.mxu0 0
        %1808 = vmatprep.subr.bf16.mxu0 0
        %1809 = vmatpush1.bf16.xpose.msra.mxu0 0
        %1810 = vmatprep.subr.bf16.mxu0 0
        %1811 = vmatpush1.bf16.xpose.msra.mxu0 0
        %1812 = vmatprep.subr.bf16.mxu0 0
        %1813 = vmatpush1.bf16.xpose.msra.mxu0 0
        %1814 = vmatprep.subr.bf16.mxu0 0
        %1815 = vmatpush1.bf16.xpose.msra.mxu0 0
        %1816 = vmatprep.subr.bf16.mxu0 0
        %1817 = vmatpush1.bf16.xpose.msra.mxu0 0
        %1818 = vmatprep.subr.bf16.mxu0 0
        %1819 = vmatpush1.bf16.xpose.msra.mxu0 0
        %1820 = vmatprep.subr.bf16.mxu0 0
        %1821 = vmatpush1.bf16.xpose.msra.mxu0 0
        %1822 = vmatprep.subr.bf16.mxu0 0
        %1823 = vmatpush1.bf16.xpose.msra.mxu0 0
        %1824 = vmatprep.subr.bf16.mxu0 0
        %1825 = vmatpush1.bf16.xpose.msra.mxu0 0
        %1826 = vmatprep.subr.bf16.mxu0 0
        %1827 = vmatpush1.bf16.xpose.msra.mxu0 0
        %1828 = vmatprep.subr.bf16.mxu0 0
        %1829 = vmatpush1.bf16.xpose.msra.mxu0 0
        %1830 = vmatprep.subr.bf16.mxu0 0
        %1831 = vmatpush1.bf16.xpose.msra.mxu0 0
        %1832 = vmatprep.subr.bf16.mxu0 0
        %1833 = vmatpush1.bf16.xpose.msra.mxu0 0
        %1834 = vmatprep.subr.bf16.mxu0 0
        %1835 = vmatpush1.bf16.xpose.msra.mxu0 0
        %1836 = vmatprep.mubr.bf16.mxu0 0
        %1837 = vmatmul.mubr.bf16.gmra.mrb[0].mxu0 %v1800
        %v1838 = vpop.f32.mrb[0].mxu0
        %v1839 = vadd.f32 %v1798, %v1838
        %v1840 = vpop.f32.mrb[0].mxu0
        %v1841 = vpop.f32.mrb[0].mxu0
        %v1842 = vpop.f32.mrb[0].mxu0
        %1843 = vdwg.mxu0
        %v1844 = vsel %vm976, %v1839, -inf
        %1845 = vmax.xlane.f32.xlu0 %v1844
        %v1846 = vpop.xlane.xlu0 %1845
        %v1847 = vsub.f32 %v1839, %v1846
        %v1848 = vmul.f32 %v1847, 1.442695
        %v1849 = vpow.pop %v1848
        %v1850 = vsel %vm976, %v1849, 0.0
        %1851 = vadd.xlane.f32.xlu0 %v1850
        %v1852 = vpop.xlane.xlu0 %1851
        %v1853 = vrcp.pop %v1852
        %v1854 = vmul.f32 %v1849, %v1853
        %v1855 = vpack.c.bf16 %v1854, %v1854
        %v1857 = vsel %vm976, %v1855, 0
        %1859 = vmatprep.subr.bf16.mxu0 0
        %1860 = vmatpush1.bf16.msra.mxu0 %v1794
        %1861 = vmatprep.subr.bf16.mxu0 0
        %1862 = vmatpush1.bf16.msra.mxu0 0
        %1863 = vmatprep.subr.bf16.mxu0 0
        %1864 = vmatpush1.bf16.msra.mxu0 0
        %1865 = vmatprep.subr.bf16.mxu0 0
        %1866 = vmatpush1.bf16.msra.mxu0 0
        %1867 = vmatprep.subr.bf16.mxu0 0
        %1868 = vmatpush1.bf16.msra.mxu0 0
        %1869 = vmatprep.subr.bf16.mxu0 0
        %1870 = vmatpush1.bf16.msra.mxu0 0
        %1871 = vmatprep.subr.bf16.mxu0 0
        %1872 = vmatpush1.bf16.msra.mxu0 0
        %1873 = vmatprep.subr.bf16.mxu0 0
        %1874 = vmatpush1.bf16.msra.mxu0 0
        %1875 = vmatprep.subr.bf16.mxu0 0
        %1876 = vmatpush1.bf16.msra.mxu0 0
        %1877 = vmatprep.subr.bf16.mxu0 0
        %1878 = vmatpush1.bf16.msra.mxu0 0
        %1879 = vmatprep.subr.bf16.mxu0 0
        %1880 = vmatpush1.bf16.msra.mxu0 0
        %1881 = vmatprep.subr.bf16.mxu0 0
        %1882 = vmatpush1.bf16.msra.mxu0 0
        %1883 = vmatprep.subr.bf16.mxu0 0
        %1884 = vmatpush1.bf16.msra.mxu0 0
        %1885 = vmatprep.subr.bf16.mxu0 0
        %1886 = vmatpush1.bf16.msra.mxu0 0
        %1887 = vmatprep.subr.bf16.mxu0 0
        %1888 = vmatpush1.bf16.msra.mxu0 0
        %1889 = vmatprep.subr.bf16.mxu0 0
        %1890 = vmatpush1.bf16.msra.mxu0 0
        %1891 = vmatprep.mubr.bf16.mxu0 0
        %1892 = vmatmul.mubr.bf16.gmra.mrb[0].mxu0 %v1857
        %v1893 = vpop.f32.mrb[0].mxu0
        %v1894 = vadd.f32 0.0, %v1893
        %v1895 = vpop.f32.mrb[0].mxu0
        %v1896 = vpop.f32.mrb[0].mxu0
        %v1897 = vpop.f32.mrb[0].mxu0
        %1898 = vdwg.mxu0
        %v1899 = vpack.c.bf16 %v1894, %v1894
        %s1900 = scalar_lea.vmem [#allocation13], 8
        %v1901 = vld [vmem:[%s1900] sm:$0xf]
        %v1903 = vsel %vm930, %v1899, 0
        %v1906 = vsel %vm916, %v1901, 0
        %1908 = vmatprep.subr.bf16.mxu0 0
        %1909 = vmatpush1.bf16.msra.mxu0 %v1906
        %1910 = vmatprep.subr.bf16.mxu0 0
        %1911 = vmatpush1.bf16.msra.mxu0 0
        %1912 = vmatprep.subr.bf16.mxu0 0
        %1913 = vmatpush1.bf16.msra.mxu0 0
        %1914 = vmatprep.subr.bf16.mxu0 0
        %1915 = vmatpush1.bf16.msra.mxu0 0
        %1916 = vmatprep.subr.bf16.mxu0 0
        %1917 = vmatpush1.bf16.msra.mxu0 0
        %1918 = vmatprep.subr.bf16.mxu0 0
        %1919 = vmatpush1.bf16.msra.mxu0 0
        %1920 = vmatprep.subr.bf16.mxu0 0
        %1921 = vmatpush1.bf16.msra.mxu0 0
        %1922 = vmatprep.subr.bf16.mxu0 0
        %1923 = vmatpush1.bf16.msra.mxu0 0
        %1924 = vmatprep.subr.bf16.mxu0 0
        %1925 = vmatpush1.bf16.msra.mxu0 0
        %1926 = vmatprep.subr.bf16.mxu0 0
        %1927 = vmatpush1.bf16.msra.mxu0 0
        %1928 = vmatprep.subr.bf16.mxu0 0
        %1929 = vmatpush1.bf16.msra.mxu0 0
        %1930 = vmatprep.subr.bf16.mxu0 0
        %1931 = vmatpush1.bf16.msra.mxu0 0
        %1932 = vmatprep.subr.bf16.mxu0 0
        %1933 = vmatpush1.bf16.msra.mxu0 0
        %1934 = vmatprep.subr.bf16.mxu0 0
        %1935 = vmatpush1.bf16.msra.mxu0 0
        %1936 = vmatprep.subr.bf16.mxu0 0
        %1937 = vmatpush1.bf16.msra.mxu0 0
        %1938 = vmatprep.subr.bf16.mxu0 0
        %1939 = vmatpush1.bf16.msra.mxu0 0
        %1940 = vmatprep.mubr.bf16.mxu0 0
        %1941 = vmatmul.mubr.bf16.gmra.mrb[0].mxu0 %v1903
        %v1942 = vpop.f32.mrb[0].mxu0
        %v1943 = vadd.f32 0.0, %v1942
        %v1944 = vpop.f32.mrb[0].mxu0
        %v1945 = vpop.f32.mrb[0].mxu0
        %v1946 = vpop.f32.mrb[0].mxu0
        %1947 = vdwg.mxu0
        %v1948 = vadd.f32 %v1509, %v1943
        %s1949 = scalar_lea.vmem [#allocation8], 48
        %v1950 = vld [vmem:[%s1949] sm:$0xf]
        %v1951 = vld [vmem:[%s1949 + $0x4] sm:$0xf]
        %v1952 = vld [vmem:[%s1949 + $0x8] sm:$0xf]
        %v1953 = vld [vmem:[%s1949 + $0xc] sm:$0xf]
        %s1954 = scalar_lea.vmem [#allocation10], 48
        %v1955 = vld [vmem:[%s1954] sm:$0xf]
        %v1956 = vld [vmem:[%s1954 + $0x4] sm:$0xf]
        %v1957 = vld [vmem:[%s1954 + $0x8] sm:$0xf]
        %v1958 = vld [vmem:[%s1954 + $0xc] sm:$0xf]
        %s1959 = scalar_lea.vmem [#allocation11], 48
        %v1960 = vld [vmem:[%s1959] sm:$0xf]
        %v1961 = vld [vmem:[%s1959 + $0x4] sm:$0xf]
        %v1962 = vld [vmem:[%s1959 + $0x8] sm:$0xf]
        %v1963 = vld [vmem:[%s1959 + $0xc] sm:$0xf]
        %v1964 = vld [vmem:[#allocation17 + $0x3] sm:$0x1]
        %v1965 = vld [vmem:[#allocation17 + $0x7] sm:$0x1]
        %v1966 = vld [vmem:[#allocation17 + $0xb] sm:$0x1]
        %v1967 = vlaneseq
        %v1968 = vshrl.u32 %v1967, 7
        %v1969 = vsub.s32 0, %v1968
        %v1970 = vrot.slane %v1964, %v1969
        %v1975 = vunpack.c.l.b16 %v1950
        %v1976 = vunpack.c.l.b16 %v1951
        %v1977 = vunpack.c.l.b16 %v1952
        %v1978 = vunpack.c.l.b16 %v1953
        %v1979 = vpack.c.b16 %v1976, %v1975
        %v1980 = vpack.c.b16 %v1978, %v1977
        %1983 = vmatprep.subr.bf16.mxu0 0
        %1984 = vmatpush1.bf16.msra.mxu0 %v1979
        %1985 = vmatprep.subr.bf16.mxu0 0
        %1986 = vmatpush1.bf16.msra.mxu0 %v1980
        %1987 = vmatprep.subr.bf16.mxu0 0
        %1988 = vmatpush1.bf16.msra.mxu0 0
        %1989 = vmatprep.subr.bf16.mxu0 0
        %1990 = vmatpush1.bf16.msra.mxu0 0
        %1991 = vmatprep.subr.bf16.mxu0 0
        %1992 = vmatpush1.bf16.msra.mxu0 0
        %1993 = vmatprep.subr.bf16.mxu0 0
        %1994 = vmatpush1.bf16.msra.mxu0 0
        %1995 = vmatprep.subr.bf16.mxu0 0
        %1996 = vmatpush1.bf16.msra.mxu0 0
        %1997 = vmatprep.subr.bf16.mxu0 0
        %1998 = vmatpush1.bf16.msra.mxu0 0
        %1999 = vmatprep.subr.bf16.mxu0 0
        %2000 = vmatpush1.bf16.msra.mxu0 0
        %2001 = vmatprep.subr.bf16.mxu0 0
        %2002 = vmatpush1.bf16.msra.mxu0 0
        %2003 = vmatprep.subr.bf16.mxu0 0
        %2004 = vmatpush1.bf16.msra.mxu0 0
        %2005 = vmatprep.subr.bf16.mxu0 0
        %2006 = vmatpush1.bf16.msra.mxu0 0
        %2007 = vmatprep.subr.bf16.mxu0 0
        %2008 = vmatpush1.bf16.msra.mxu0 0
        %2009 = vmatprep.subr.bf16.mxu0 0
        %2010 = vmatpush1.bf16.msra.mxu0 0
        %2011 = vmatprep.subr.bf16.mxu0 0
        %2012 = vmatpush1.bf16.msra.mxu0 0
        %2013 = vmatprep.subr.bf16.mxu0 0
        %2014 = vmatpush1.bf16.msra.mxu0 0
        %2015 = vmatprep.mubr.bf16.mxu0 0
        %2016 = vmatmul.mubr.bf16.gmra.mrb[0].mxu0 %v674
        %v2017 = vpop.f32.mrb[0].mxu0
        %v2018 = vadd.f32 %v1970, %v2017
        %v2019 = vpop.f32.mrb[0].mxu0
        %v2020 = vpop.f32.mrb[0].mxu0
        %v2021 = vpop.f32.mrb[0].mxu0
        %2022 = vdwg.mxu0
        %v2023 = vlaneseq
        %v2024 = vshrl.u32 %v2023, 7
        %v2025 = vsub.s32 0, %v2024
        %v2026 = vrot.slane %v1965, %v2025
        %v2031 = vunpack.c.l.b16 %v1955
        %v2032 = vunpack.c.l.b16 %v1956
        %v2033 = vunpack.c.l.b16 %v1957
        %v2034 = vunpack.c.l.b16 %v1958
        %v2035 = vpack.c.b16 %v2032, %v2031
        %v2036 = vpack.c.b16 %v2034, %v2033
        %2039 = vmatprep.subr.bf16.mxu0 0
        %2040 = vmatpush1.bf16.msra.mxu0 %v2035
        %2041 = vmatprep.subr.bf16.mxu0 0
        %2042 = vmatpush1.bf16.msra.mxu0 %v2036
        %2043 = vmatprep.subr.bf16.mxu0 0
        %2044 = vmatpush1.bf16.msra.mxu0 0
        %2045 = vmatprep.subr.bf16.mxu0 0
        %2046 = vmatpush1.bf16.msra.mxu0 0
        %2047 = vmatprep.subr.bf16.mxu0 0
        %2048 = vmatpush1.bf16.msra.mxu0 0
        %2049 = vmatprep.subr.bf16.mxu0 0
        %2050 = vmatpush1.bf16.msra.mxu0 0
        %2051 = vmatprep.subr.bf16.mxu0 0
        %2052 = vmatpush1.bf16.msra.mxu0 0
        %2053 = vmatprep.subr.bf16.mxu0 0
        %2054 = vmatpush1.bf16.msra.mxu0 0
        %2055 = vmatprep.subr.bf16.mxu0 0
        %2056 = vmatpush1.bf16.msra.mxu0 0
        %2057 = vmatprep.subr.bf16.mxu0 0
        %2058 = vmatpush1.bf16.msra.mxu0 0
        %2059 = vmatprep.subr.bf16.mxu0 0
        %2060 = vmatpush1.bf16.msra.mxu0 0
        %2061 = vmatprep.subr.bf16.mxu0 0
        %2062 = vmatpush1.bf16.msra.mxu0 0
        %2063 = vmatprep.subr.bf16.mxu0 0
        %2064 = vmatpush1.bf16.msra.mxu0 0
        %2065 = vmatprep.subr.bf16.mxu0 0
        %2066 = vmatpush1.bf16.msra.mxu0 0
        %2067 = vmatprep.subr.bf16.mxu0 0
        %2068 = vmatpush1.bf16.msra.mxu0 0
        %2069 = vmatprep.subr.bf16.mxu0 0
        %2070 = vmatpush1.bf16.msra.mxu0 0
        %2071 = vmatprep.mubr.bf16.mxu0 0
        %2072 = vmatmul.mubr.bf16.gmra.mrb[0].mxu0 %v733
        %v2073 = vpop.f32.mrb[0].mxu0
        %v2074 = vadd.f32 %v2026, %v2073
        %v2075 = vpop.f32.mrb[0].mxu0
        %v2076 = vpop.f32.mrb[0].mxu0
        %v2077 = vpop.f32.mrb[0].mxu0
        %2078 = vdwg.mxu0
        %2079 = vmatprep.subr.bf16.mxu0 0
        %2080 = vmatpush1.bf16.msra.mxu0 %v2035
        %2081 = vmatprep.subr.bf16.mxu0 0
        %2082 = vmatpush1.bf16.msra.mxu0 %v2036
        %2083 = vmatprep.subr.bf16.mxu0 0
        %2084 = vmatpush1.bf16.msra.mxu0 0
        %2085 = vmatprep.subr.bf16.mxu0 0
        %2086 = vmatpush1.bf16.msra.mxu0 0
        %2087 = vmatprep.subr.bf16.mxu0 0
        %2088 = vmatpush1.bf16.msra.mxu0 0
        %2089 = vmatprep.subr.bf16.mxu0 0
        %2090 = vmatpush1.bf16.msra.mxu0 0
        %2091 = vmatprep.subr.bf16.mxu0 0
        %2092 = vmatpush1.bf16.msra.mxu0 0
        %2093 = vmatprep.subr.bf16.mxu0 0
        %2094 = vmatpush1.bf16.msra.mxu0 0
        %2095 = vmatprep.subr.bf16.mxu0 0
        %2096 = vmatpush1.bf16.msra.mxu0 0
        %2097 = vmatprep.subr.bf16.mxu0 0
        %2098 = vmatpush1.bf16.msra.mxu0 0
        %2099 = vmatprep.subr.bf16.mxu0 0
        %2100 = vmatpush1.bf16.msra.mxu0 0
        %2101 = vmatprep.subr.bf16.mxu0 0
        %2102 = vmatpush1.bf16.msra.mxu0 0
        %2103 = vmatprep.subr.bf16.mxu0 0
        %2104 = vmatpush1.bf16.msra.mxu0 0
        %2105 = vmatprep.subr.bf16.mxu0 0
        %2106 = vmatpush1.bf16.msra.mxu0 0
        %2107 = vmatprep.subr.bf16.mxu0 0
        %2108 = vmatpush1.bf16.msra.mxu0 0
        %2109 = vmatprep.subr.bf16.mxu0 0
        %2110 = vmatpush1.bf16.msra.mxu0 0
        %2111 = vmatprep.mubr.bf16.mxu0 0
        %2112 = vmatmul.mubr.bf16.gmra.mrb[0].mxu0 %v674
        %v2113 = vpop.f32.mrb[0].mxu0
        %v2114 = vadd.f32 %v2026, %v2113
        %v2115 = vpop.f32.mrb[0].mxu0
        %v2116 = vpop.f32.mrb[0].mxu0
        %v2117 = vpop.f32.mrb[0].mxu0
        %2118 = vdwg.mxu0
        %v2119 = vlaneseq
        %v2120 = vshrl.u32 %v2119, 7
        %v2121 = vsub.s32 0, %v2120
        %v2122 = vrot.slane %v1966, %v2121
        %v2127 = vunpack.c.l.b16 %v1960
        %v2128 = vunpack.c.l.b16 %v1961
        %v2129 = vunpack.c.l.b16 %v1962
        %v2130 = vunpack.c.l.b16 %v1963
        %v2131 = vpack.c.b16 %v2128, %v2127
        %v2132 = vpack.c.b16 %v2130, %v2129
        %2135 = vmatprep.subr.bf16.mxu0 0
        %2136 = vmatpush1.bf16.msra.mxu0 %v2131
        %2137 = vmatprep.subr.bf16.mxu0 0
        %2138 = vmatpush1.bf16.msra.mxu0 %v2132
        %2139 = vmatprep.subr.bf16.mxu0 0
        %2140 = vmatpush1.bf16.msra.mxu0 0
        %2141 = vmatprep.subr.bf16.mxu0 0
        %2142 = vmatpush1.bf16.msra.mxu0 0
        %2143 = vmatprep.subr.bf16.mxu0 0
        %2144 = vmatpush1.bf16.msra.mxu0 0
        %2145 = vmatprep.subr.bf16.mxu0 0
        %2146 = vmatpush1.bf16.msra.mxu0 0
        %2147 = vmatprep.subr.bf16.mxu0 0
        %2148 = vmatpush1.bf16.msra.mxu0 0
        %2149 = vmatprep.subr.bf16.mxu0 0
        %2150 = vmatpush1.bf16.msra.mxu0 0
        %2151 = vmatprep.subr.bf16.mxu0 0
        %2152 = vmatpush1.bf16.msra.mxu0 0
        %2153 = vmatprep.subr.bf16.mxu0 0
        %2154 = vmatpush1.bf16.msra.mxu0 0
        %2155 = vmatprep.subr.bf16.mxu0 0
        %2156 = vmatpush1.bf16.msra.mxu0 0
        %2157 = vmatprep.subr.bf16.mxu0 0
        %2158 = vmatpush1.bf16.msra.mxu0 0
        %2159 = vmatprep.subr.bf16.mxu0 0
        %2160 = vmatpush1.bf16.msra.mxu0 0
        %2161 = vmatprep.subr.bf16.mxu0 0
        %2162 = vmatpush1.bf16.msra.mxu0 0
        %2163 = vmatprep.subr.bf16.mxu0 0
        %2164 = vmatpush1.bf16.msra.mxu0 0
        %2165 = vmatprep.subr.bf16.mxu0 0
        %2166 = vmatpush1.bf16.msra.mxu0 0
        %2167 = vmatprep.mubr.bf16.mxu0 0
        %2168 = vmatmul.mubr.bf16.gmra.mrb[0].mxu0 %v733
        %v2169 = vpop.f32.mrb[0].mxu0
        %v2170 = vadd.f32 %v2122, %v2169
        %v2171 = vpop.f32.mrb[0].mxu0
        %v2172 = vpop.f32.mrb[0].mxu0
        %v2173 = vpop.f32.mrb[0].mxu0
        %2174 = vdwg.mxu0
        %2175 = vmatprep.subr.bf16.mxu0 0
        %2176 = vmatpush1.bf16.msra.mxu0 %v2131
        %2177 = vmatprep.subr.bf16.mxu0 0
        %2178 = vmatpush1.bf16.msra.mxu0 %v2132
        %2179 = vmatprep.subr.bf16.mxu0 0
        %2180 = vmatpush1.bf16.msra.mxu0 0
        %2181 = vmatprep.subr.bf16.mxu0 0
        %2182 = vmatpush1.bf16.msra.mxu0 0
        %2183 = vmatprep.subr.bf16.mxu0 0
        %2184 = vmatpush1.bf16.msra.mxu0 0
        %2185 = vmatprep.subr.bf16.mxu0 0
        %2186 = vmatpush1.bf16.msra.mxu0 0
        %2187 = vmatprep.subr.bf16.mxu0 0
        %2188 = vmatpush1.bf16.msra.mxu0 0
        %2189 = vmatprep.subr.bf16.mxu0 0
        %2190 = vmatpush1.bf16.msra.mxu0 0
        %2191 = vmatprep.subr.bf16.mxu0 0
        %2192 = vmatpush1.bf16.msra.mxu0 0
        %2193 = vmatprep.subr.bf16.mxu0 0
        %2194 = vmatpush1.bf16.msra.mxu0 0
        %2195 = vmatprep.subr.bf16.mxu0 0
        %2196 = vmatpush1.bf16.msra.mxu0 0
        %2197 = vmatprep.subr.bf16.mxu0 0
        %2198 = vmatpush1.bf16.msra.mxu0 0
        %2199 = vmatprep.subr.bf16.mxu0 0
        %2200 = vmatpush1.bf16.msra.mxu0 0
        %2201 = vmatprep.subr.bf16.mxu0 0
        %2202 = vmatpush1.bf16.msra.mxu0 0
        %2203 = vmatprep.subr.bf16.mxu0 0
        %2204 = vmatpush1.bf16.msra.mxu0 0
        %2205 = vmatprep.subr.bf16.mxu0 0
        %2206 = vmatpush1.bf16.msra.mxu0 0
        %2207 = vmatprep.mubr.bf16.mxu0 0
        %2208 = vmatmul.mubr.bf16.gmra.mrb[0].mxu0 %v674
        %v2209 = vpop.f32.mrb[0].mxu0
        %v2210 = vadd.f32 %v2122, %v2209
        %v2211 = vpop.f32.mrb[0].mxu0
        %v2212 = vpop.f32.mrb[0].mxu0
        %v2213 = vpop.f32.mrb[0].mxu0
        %2214 = vdwg.mxu0
        %v2215 = vpack.c.bf16 %v2018, %v2018
        %v2216 = vpack.c.bf16 %v2074, %v2074
        %v2217 = vpack.c.bf16 %v2114, %v2114
        %v2219 = vrot.slane %v2217, 4
        %v2222 = vsel %vm916, %v2216, %v2219
        %v2223 = vpack.c.bf16 %v2170, %v2170
        %v2224 = vpack.c.bf16 %v2210, %v2210
        %v2226 = vrot.slane %v2224, 4
        %v2229 = vsel %vm916, %v2223, %v2226
        %s2231 = scalar_lea.vmem %s543, 12 [#allocation7]
        %v2232 = vld [vmem:[%s2231] sm:$0xf]
        %v2233 = vunpack.c.l.bf16 %v2232
        %v2235 = vsel %vm930, %v2215, 0
        %v2237 = vsel %vm930, %v2222, 0
        %2239 = vmatprep.subr.bf16.mxu0 0
        %2240 = vmatpush1.bf16.xpose.msra.mxu0 %v2237
        %2241 = vmatprep.subr.bf16.mxu0 0
        %2242 = vmatpush1.bf16.xpose.msra.mxu0 0
        %2243 = vmatprep.subr.bf16.mxu0 0
        %2244 = vmatpush1.bf16.xpose.msra.mxu0 0
        %2245 = vmatprep.subr.bf16.mxu0 0
        %2246 = vmatpush1.bf16.xpose.msra.mxu0 0
        %2247 = vmatprep.subr.bf16.mxu0 0
        %2248 = vmatpush1.bf16.xpose.msra.mxu0 0
        %2249 = vmatprep.subr.bf16.mxu0 0
        %2250 = vmatpush1.bf16.xpose.msra.mxu0 0
        %2251 = vmatprep.subr.bf16.mxu0 0
        %2252 = vmatpush1.bf16.xpose.msra.mxu0 0
        %2253 = vmatprep.subr.bf16.mxu0 0
        %2254 = vmatpush1.bf16.xpose.msra.mxu0 0
        %2255 = vmatprep.subr.bf16.mxu0 0
        %2256 = vmatpush1.bf16.xpose.msra.mxu0 0
        %2257 = vmatprep.subr.bf16.mxu0 0
        %2258 = vmatpush1.bf16.xpose.msra.mxu0 0
        %2259 = vmatprep.subr.bf16.mxu0 0
        %2260 = vmatpush1.bf16.xpose.msra.mxu0 0
        %2261 = vmatprep.subr.bf16.mxu0 0
        %2262 = vmatpush1.bf16.xpose.msra.mxu0 0
        %2263 = vmatprep.subr.bf16.mxu0 0
        %2264 = vmatpush1.bf16.xpose.msra.mxu0 0
        %2265 = vmatprep.subr.bf16.mxu0 0
        %2266 = vmatpush1.bf16.xpose.msra.mxu0 0
        %2267 = vmatprep.subr.bf16.mxu0 0
        %2268 = vmatpush1.bf16.xpose.msra.mxu0 0
        %2269 = vmatprep.subr.bf16.mxu0 0
        %2270 = vmatpush1.bf16.xpose.msra.mxu0 0
        %2271 = vmatprep.mubr.bf16.mxu0 0
        %2272 = vmatmul.mubr.bf16.gmra.mrb[0].mxu0 %v2235
        %v2273 = vpop.f32.mrb[0].mxu0
        %v2274 = vadd.f32 %v2233, %v2273
        %v2275 = vpop.f32.mrb[0].mxu0
        %v2276 = vpop.f32.mrb[0].mxu0
        %v2277 = vpop.f32.mrb[0].mxu0
        %2278 = vdwg.mxu0
        %v2279 = vsel %vm976, %v2274, -inf
        %2280 = vmax.xlane.f32.xlu0 %v2279
        %v2281 = vpop.xlane.xlu0 %2280
        %v2282 = vsub.f32 %v2274, %v2281
        %v2283 = vmul.f32 %v2282, 1.442695
        %v2284 = vpow.pop %v2283
        %v2285 = vsel %vm976, %v2284, 0.0
        %2286 = vadd.xlane.f32.xlu0 %v2285
        %v2287 = vpop.xlane.xlu0 %2286
        %v2288 = vrcp.pop %v2287
        %v2289 = vmul.f32 %v2284, %v2288
        %v2290 = vpack.c.bf16 %v2289, %v2289
        %v2292 = vsel %vm976, %v2290, 0
        %2294 = vmatprep.subr.bf16.mxu0 0
        %2295 = vmatpush1.bf16.msra.mxu0 %v2229
        %2296 = vmatprep.subr.bf16.mxu0 0
        %2297 = vmatpush1.bf16.msra.mxu0 0
        %2298 = vmatprep.subr.bf16.mxu0 0
        %2299 = vmatpush1.bf16.msra.mxu0 0
        %2300 = vmatprep.subr.bf16.mxu0 0
        %2301 = vmatpush1.bf16.msra.mxu0 0
        %2302 = vmatprep.subr.bf16.mxu0 0
        %2303 = vmatpush1.bf16.msra.mxu0 0
        %2304 = vmatprep.subr.bf16.mxu0 0
        %2305 = vmatpush1.bf16.msra.mxu0 0
        %2306 = vmatprep.subr.bf16.mxu0 0
        %2307 = vmatpush1.bf16.msra.mxu0 0
        %2308 = vmatprep.subr.bf16.mxu0 0
        %2309 = vmatpush1.bf16.msra.mxu0 0
        %2310 = vmatprep.subr.bf16.mxu0 0
        %2311 = vmatpush1.bf16.msra.mxu0 0
        %2312 = vmatprep.subr.bf16.mxu0 0
        %2313 = vmatpush1.bf16.msra.mxu0 0
        %2314 = vmatprep.subr.bf16.mxu0 0
        %2315 = vmatpush1.bf16.msra.mxu0 0
        %2316 = vmatprep.subr.bf16.mxu0 0
        %2317 = vmatpush1.bf16.msra.mxu0 0
        %2318 = vmatprep.subr.bf16.mxu0 0
        %2319 = vmatpush1.bf16.msra.mxu0 0
        %2320 = vmatprep.subr.bf16.mxu0 0
        %2321 = vmatpush1.bf16.msra.mxu0 0
        %2322 = vmatprep.subr.bf16.mxu0 0
        %2323 = vmatpush1.bf16.msra.mxu0 0
        %2324 = vmatprep.subr.bf16.mxu0 0
        %2325 = vmatpush1.bf16.msra.mxu0 0
        %2326 = vmatprep.mubr.bf16.mxu0 0
        %2327 = vmatmul.mubr.bf16.gmra.mrb[0].mxu0 %v2292
        %v2328 = vpop.f32.mrb[0].mxu0
        %v2329 = vadd.f32 0.0, %v2328
        %v2330 = vpop.f32.mrb[0].mxu0
        %v2331 = vpop.f32.mrb[0].mxu0
        %v2332 = vpop.f32.mrb[0].mxu0
        %2333 = vdwg.mxu0
        %v2334 = vpack.c.bf16 %v2329, %v2329
        %s2335 = scalar_lea.vmem [#allocation13], 12
        %v2336 = vld [vmem:[%s2335] sm:$0xf]
        %v2338 = vsel %vm930, %v2334, 0
        %v2341 = vsel %vm916, %v2336, 0
        %2343 = vmatprep.subr.bf16.mxu0 0
        %2344 = vmatpush1.bf16.msra.mxu0 %v2341
        %2345 = vmatprep.subr.bf16.mxu0 0
        %2346 = vmatpush1.bf16.msra.mxu0 0
        %2347 = vmatprep.subr.bf16.mxu0 0
        %2348 = vmatpush1.bf16.msra.mxu0 0
        %2349 = vmatprep.subr.bf16.mxu0 0
        %2350 = vmatpush1.bf16.msra.mxu0 0
        %2351 = vmatprep.subr.bf16.mxu0 0
        %2352 = vmatpush1.bf16.msra.mxu0 0
        %2353 = vmatprep.subr.bf16.mxu0 0
        %2354 = vmatpush1.bf16.msra.mxu0 0
        %2355 = vmatprep.subr.bf16.mxu0 0
        %2356 = vmatpush1.bf16.msra.mxu0 0
        %2357 = vmatprep.subr.bf16.mxu0 0
        %2358 = vmatpush1.bf16.msra.mxu0 0
        %2359 = vmatprep.subr.bf16.mxu0 0
        %2360 = vmatpush1.bf16.msra.mxu0 0
        %2361 = vmatprep.subr.bf16.mxu0 0
        %2362 = vmatpush1.bf16.msra.mxu0 0
        %2363 = vmatprep.subr.bf16.mxu0 0
        %2364 = vmatpush1.bf16.msra.mxu0 0
        %2365 = vmatprep.subr.bf16.mxu0 0
        %2366 = vmatpush1.bf16.msra.mxu0 0
        %2367 = vmatprep.subr.bf16.mxu0 0
        %2368 = vmatpush1.bf16.msra.mxu0 0
        %2369 = vmatprep.subr.bf16.mxu0 0
        %2370 = vmatpush1.bf16.msra.mxu0 0
        %2371 = vmatprep.subr.bf16.mxu0 0
        %2372 = vmatpush1.bf16.msra.mxu0 0
        %2373 = vmatprep.subr.bf16.mxu0 0
        %2374 = vmatpush1.bf16.msra.mxu0 0
        %2375 = vmatprep.mubr.bf16.mxu0 0
        %2376 = vmatmul.mubr.bf16.gmra.mrb[0].mxu0 %v2338
        %v2377 = vpop.f32.mrb[0].mxu0
        %v2378 = vadd.f32 0.0, %v2377
        %v2379 = vpop.f32.mrb[0].mxu0
        %v2380 = vpop.f32.mrb[0].mxu0
        %v2381 = vpop.f32.mrb[0].mxu0
        %2382 = vdwg.mxu0
        %v2383 = vadd.f32 %v1948, %v2378
        %v2384 = vlaneseq
        %v2385 = vshrl.u32 %v2384, 7
        %v2386 = vsub.s32 0, %v2385
        %v2387 = vrot.slane %v635, %v2386
        %v2388 = vadd.f32 %v2383, %v2387
        %v2389 = vadd.f32 %v631, %v2388
        %v2390 = vsel %vm672, %v2389, 0.0
        %2391 = vadd.xlane.f32.xlu0 %v2390
        %v2392 = vpop.xlane.xlu0 %2391
        %v2393 = vrcp.pop 32.0
        %v2394 = vmul.f32 %v2392, %v2393
        %v2395 = vsub.f32 %v2389, %v2394
        %v2396 = vmul.f32 %v2395, %v2395
        %v2397 = vsel %vm672, %v2396, 0.0
        %2398 = vadd.xlane.f32.xlu0 %v2397
        %v2399 = vpop.xlane.xlu0 %2398
        %v2400 = vmul.f32 %v2399, %v2393
        %v2401 = vadd.f32 %v2400, 1e-05
        %v2402 = vrsqrt.pop %v2401
        %v2403 = vmul.f32 %v2395, %v2402
        %v2404 = vlaneseq
        %v2405 = vshrl.u32 %v2404, 7
        %v2406 = vsub.s32 0, %v2405
        %v2407 = vrot.slane %v637, %v2406
        %v2408 = vmul.f32 %v2403, %v2407
        %v2409 = vlaneseq
        %v2410 = vshrl.u32 %v2409, 7
        %v2411 = vsub.s32 0, %v2410
        %v2412 = vrot.slane %v638, %v2411
        %v2413 = vadd.f32 %v2408, %v2412
        %v2414 = vpack.c.bf16 %v2413, %v2413
        %v2415 = vld [vmem:[#allocation14] sm:$0xf]
        %v2416 = vld [vmem:[#allocation14 + $0x4] sm:$0xf]
        %v2417 = vld [vmem:[#allocation14 + $0x8] sm:$0xf]
        %v2418 = vld [vmem:[#allocation14 + $0xc] sm:$0xf]
        %v2419 = vld [vmem:[#allocation20] sm:$0x1]
        %v2421 = vlaneseq
        %v2422 = vshrl.u32 %v2421, 7
        %v2423 = vsub.s32 0, %v2422
        %v2424 = vrot.slane %v2419, %v2423
        %v2430 = vunpack.c.l.b16 %v2415
        %v2431 = vunpack.c.l.b16 %v2416
        %v2432 = vunpack.c.l.b16 %v2417
        %v2433 = vunpack.c.l.b16 %v2418
        %v2434 = vpack.c.b16 %v2431, %v2430
        %v2435 = vpack.c.b16 %v2433, %v2432
        %v2439 = vsel %vm672, %v2414, 0
        %2441 = vmatprep.subr.bf16.mxu0 0
        %2442 = vmatpush1.bf16.msra.mxu0 %v2434
        %2443 = vmatprep.subr.bf16.mxu0 0
        %2444 = vmatpush1.bf16.msra.mxu0 %v2435
        %2445 = vmatprep.subr.bf16.mxu0 0
        %2446 = vmatpush1.bf16.msra.mxu0 0
        %2447 = vmatprep.subr.bf16.mxu0 0
        %2448 = vmatpush1.bf16.msra.mxu0 0
        %2449 = vmatprep.subr.bf16.mxu0 0
        %2450 = vmatpush1.bf16.msra.mxu0 0
        %2451 = vmatprep.subr.bf16.mxu0 0
        %2452 = vmatpush1.bf16.msra.mxu0 0
        %2453 = vmatprep.subr.bf16.mxu0 0
        %2454 = vmatpush1.bf16.msra.mxu0 0
        %2455 = vmatprep.subr.bf16.mxu0 0
        %2456 = vmatpush1.bf16.msra.mxu0 0
        %2457 = vmatprep.subr.bf16.mxu0 0
        %2458 = vmatpush1.bf16.msra.mxu0 0
        %2459 = vmatprep.subr.bf16.mxu0 0
        %2460 = vmatpush1.bf16.msra.mxu0 0
        %2461 = vmatprep.subr.bf16.mxu0 0
        %2462 = vmatpush1.bf16.msra.mxu0 0
        %2463 = vmatprep.subr.bf16.mxu0 0
        %2464 = vmatpush1.bf16.msra.mxu0 0
        %2465 = vmatprep.subr.bf16.mxu0 0
        %2466 = vmatpush1.bf16.msra.mxu0 0
        %2467 = vmatprep.subr.bf16.mxu0 0
        %2468 = vmatpush1.bf16.msra.mxu0 0
        %2469 = vmatprep.subr.bf16.mxu0 0
        %2470 = vmatpush1.bf16.msra.mxu0 0
        %2471 = vmatprep.subr.bf16.mxu0 0
        %2472 = vmatpush1.bf16.msra.mxu0 0
        %2473 = vmatprep.mubr.bf16.mxu0 0
        %2474 = vmatmul.mubr.bf16.gmra.mrb[0].mxu0 %v2439
        %v2475 = vpop.f32.mrb[0].mxu0
        %v2476 = vadd.f32 %v2424, %v2475
        %v2477 = vpop.f32.mrb[0].mxu0
        %v2478 = vpop.f32.mrb[0].mxu0
        %v2479 = vpop.f32.mrb[0].mxu0
        %2480 = vdwg.mxu0
        %v2481 = vmax.f32 %v2476, 0.0
        %v2482 = vpack.c.bf16 %v2481, %v2481
        %v2483 = vld [vmem:[#allocation16] sm:$0xf]
        %v2484 = vld [vmem:[#allocation16 + $0x4] sm:$0xf]
        %v2485 = vld [vmem:[#allocation16 + $0x8] sm:$0xf]
        %v2486 = vld [vmem:[#allocation16 + $0xc] sm:$0xf]
        %v2487 = vld [vmem:[#allocation16 + $0x10] sm:$0xf]
        %v2488 = vld [vmem:[#allocation16 + $0x14] sm:$0xf]
        %v2489 = vld [vmem:[#allocation16 + $0x18] sm:$0xf]
        %v2490 = vld [vmem:[#allocation16 + $0x1c] sm:$0xf]
        %v2491 = vlaneseq
        %v2492 = vshrl.u32 %v2491, 7
        %v2493 = vsub.s32 0, %v2492
        %v2494 = vrot.slane %v636, %v2493
        %v2503 = vunpack.c.l.b16 %v2483
        %v2504 = vunpack.c.l.b16 %v2484
        %v2505 = vunpack.c.l.b16 %v2485
        %v2506 = vunpack.c.l.b16 %v2486
        %v2507 = vunpack.c.l.b16 %v2487
        %v2508 = vunpack.c.l.b16 %v2488
        %v2509 = vunpack.c.l.b16 %v2489
        %v2510 = vunpack.c.l.b16 %v2490
        %v2511 = vpack.c.b16 %v2504, %v2503
        %v2512 = vpack.c.b16 %v2506, %v2505
        %v2513 = vpack.c.b16 %v2508, %v2507
        %v2514 = vpack.c.b16 %v2510, %v2509
        %vm2519 = vcmask 523264
        %v2521 = vsel %vm2519, %v2482, 0
        %2523 = vmatprep.subr.bf16.mxu0 0
        %2524 = vmatpush1.bf16.msra.mxu0 %v2511
        %2525 = vmatprep.subr.bf16.mxu0 0
        %2526 = vmatpush1.bf16.msra.mxu0 %v2512
        %2527 = vmatprep.subr.bf16.mxu0 0
        %2528 = vmatpush1.bf16.msra.mxu0 %v2513
        %2529 = vmatprep.subr.bf16.mxu0 0
        %2530 = vmatpush1.bf16.msra.mxu0 %v2514
        %2531 = vmatprep.subr.bf16.mxu0 0
        %2532 = vmatpush1.bf16.msra.mxu0 0
        %2533 = vmatprep.subr.bf16.mxu0 0
        %2534 = vmatpush1.bf16.msra.mxu0 0
        %2535 = vmatprep.subr.bf16.mxu0 0
        %2536 = vmatpush1.bf16.msra.mxu0 0
        %2537 = vmatprep.subr.bf16.mxu0 0
        %2538 = vmatpush1.bf16.msra.mxu0 0
        %2539 = vmatprep.subr.bf16.mxu0 0
        %2540 = vmatpush1.bf16.msra.mxu0 0
        %2541 = vmatprep.subr.bf16.mxu0 0
        %2542 = vmatpush1.bf16.msra.mxu0 0
        %2543 = vmatprep.subr.bf16.mxu0 0
        %2544 = vmatpush1.bf16.msra.mxu0 0
        %2545 = vmatprep.subr.bf16.mxu0 0
        %2546 = vmatpush1.bf16.msra.mxu0 0
        %2547 = vmatprep.subr.bf16.mxu0 0
        %2548 = vmatpush1.bf16.msra.mxu0 0
        %2549 = vmatprep.subr.bf16.mxu0 0
        %2550 = vmatpush1.bf16.msra.mxu0 0
        %2551 = vmatprep.subr.bf16.mxu0 0
        %2552 = vmatpush1.bf16.msra.mxu0 0
        %2553 = vmatprep.subr.bf16.mxu0 0
        %2554 = vmatpush1.bf16.msra.mxu0 0
        %2555 = vmatprep.mubr.bf16.mxu0 0
        %2556 = vmatmul.mubr.bf16.gmra.mrb[0].mxu0 %v2521
        %v2557 = vpop.f32.mrb[0].mxu0
        %v2558 = vadd.f32 %v2494, %v2557
        %v2559 = vpop.f32.mrb[0].mxu0
        %v2560 = vpop.f32.mrb[0].mxu0
        %v2561 = vpop.f32.mrb[0].mxu0
        %2562 = vdwg.mxu0
        %v2563 = vadd.f32 %v2413, %v2558
        %v2564 = vsel %vm672, %v2563, 0.0
        %2565 = vadd.xlane.f32.xlu0 %v2564
        %v2566 = vpop.xlane.xlu0 %2565
        %v2567 = vmul.f32 %v2566, %v2393
        %v2568 = vsub.f32 %v2563, %v2567
        %v2569 = vmul.f32 %v2568, %v2568
        %v2570 = vsel %vm672, %v2569, 0.0
        %2571 = vadd.xlane.f32.xlu0 %v2570
        %v2572 = vpop.xlane.xlu0 %2571
        %v2573 = vmul.f32 %v2572, %v2393
        %v2574 = vadd.f32 %v2573, 1e-05
        %v2575 = vrsqrt.pop %v2574
        %v2576 = vmul.f32 %v2568, %v2575
        %v2577 = vlaneseq
        %v2578 = vshrl.u32 %v2577, 7
        %v2579 = vsub.s32 0, %v2578
        %v2580 = vrot.slane %v639, %v2579
        %v2581 = vmul.f32 %v2576, %v2580
        %v2582 = vlaneseq
        %v2583 = vshrl.u32 %v2582, 7
        %v2584 = vsub.s32 0, %v2583
        %v2585 = vrot.slane %v640, %v2584
        %v2586 = vadd.f32 %v2581, %v2585
        %2587 = vst.msk [vmem:[%s629] sm:$0xff] %vm672, %v2586
        %s2588 = sand.u32 %s312, 1
        %s2589 = scalar_lea.sflag [#allocation4], %s2588
        %s2590 = sand.u32 %s312, 1
        %s2591 = smul.addr %s2590, 8
        %s2592 = scalar_lea.vmem [#allocation22], %s2591
        // Predicated region
        $region117: #{tpu_custom_call.1} parent=67 // pred_check
          %p2593 = pneg %p322
        $region118: #{tpu_custom_call.1} parent=67 // pred_check_branch
          %2595 = sbr.rel (%p2593) target = $region120
        $region119: #{tpu_custom_call.1} parent=67 // pred_region
          %s2597 = ssub.s32 128, 128
          %2598 = vsyncadd %s2589, %s2597
          %s2599 = smul.addr %s37, 128
          %s2600 = scalar_lea.hbm %s12, %s2599
          %s2602 = sshll.u32 %s2592, 4
          %s2603 = int_to_ptr.vmem [resolvable:$true] %s2602
          %2605 = dma.vmem_to_hbm [thread:$0]  %s2603, 128, %s2600, %s2589
        $region120: #{tpu_custom_call.1} parent=67 // pred_fallthru
          _
      $region68: #{tpu_custom_call.1} parent=5 // pred_fallthru
        _
      %p2606 = scmp.le.s32.totalorder 2, %s32
      // Predicated region
      $region121: #{tpu_custom_call.1} parent=5 // pred_check
        %p2607 = pneg %p2606
      $region122: #{tpu_custom_call.1} parent=5 // pred_check_branch
        %2609 = sbr.rel (%p2607) target = $region124
      $region123: #{tpu_custom_call.1} parent=5 // pred_region
        %s2610 = ssub.s32 %s32, 2
        // Predicated region
        $region125: #{tpu_custom_call.1} parent=123 // pred_check
          %p2611 = pneg %p328
        $region126: #{tpu_custom_call.1} parent=123 // pred_check_branch
          %2613 = sbr.rel (%p2611) target = $region128
        $region127: #{tpu_custom_call.1} parent=123 // pred_region
          %s2614 = sand.u32 %s313, 1
          %s2615 = scalar_lea.sflag [#allocation4], %s2614
          %s2616 = sand.u32 %s313, 1
          %s2617 = smul.addr %s2616, 8
          %s2618 = scalar_lea.vmem [#allocation22], %s2617
          %2619 = dma.done %s2615, 128
        $region128: #{tpu_custom_call.1} parent=123 // pred_fallthru
          _
      $region124: #{tpu_custom_call.1} parent=5 // pred_fallthru
        _
    $region6: #{tpu_custom_call.1} parent=1 // loop_footer
      %s36 = sadd.s32 1, %s32
    $region7: #{tpu_custom_call.1} parent=1 // loop_footer_branch
      %31 = sbr.rel target = $region3
    $region8: #{tpu_custom_call.1} parent=1 // loop_exit
      _
    %2620 = vsyncpa [#allocation3], 1
    %s2621 = scalar_lea.sflag [#allocation3], 1
    %2622 = vsyncpa %s2621, 1
    %2623 = vsyncpa [#allocation6], 1
    %s2624 = scalar_lea.sflag [#allocation6], 1
    %2625 = vsyncpa %s2624, 1
    %2626 = vsyncpa [#allocation9], 1
    %2627 = vsyncpa [#allocation12], 1
    %2628 = vsyncpa [#allocation15], 1
    %2629 = vsyncpa [#allocation18], 1
    %2630 = vsyncpa [#allocation21], 1
    %2631 = vsyncpa [#allocation4], 1
    %s2632 = scalar_lea.sflag [#allocation4], 1
    %2633 = vsyncpa %s2632, 1

</llo_original>
